<compile_context>
chip_gen: v7x
topology: tpu7x:2x2x1
jax: 0.10.0
libtpu: 0.0.40
codegen_flags: <defaults>
</compile_context>

<pallas_src>
import numpy as np
import jax
import jax.numpy as jnp
from jax.experimental import pallas as pl
from jax.experimental.pallas import tpu as pltpu

# ---- hyper-parameters consistent with the module ---------------------------- #
SEQ_LEN = 64          # sequence_length
K       = 5           # kernel_size
NL      = 4           # num_layers
CN      = 16          # n_channels
CR      = 8           # n_channels_reduced
CE      = 4           # n_encoding_channels
CEP     = 8           # CE padded to a full sublane group (pad channels are zero)
POOL    = 2           # pool_rate

TB = 8                # samples per grid step (batch folded into the lane axis)
MB = TB * SEQ_LEN     # 512 lanes per block

WEIGHT_KEYS = ("enc_w0", "enc_b0", "enc_wc", "enc_bc", "enc_wp", "enc_bp",
               "comp_w", "comp_b",
               "dec_w0", "dec_b0", "dec_wc", "dec_bc", "dec_wp", "dec_bp",
               "out_w", "out_b")


# --------------------------------------------------------------------------- #
# Fused kernel: whole TCN auto-encoder forward for TB samples per grid step.   #
# Layout: activations are (C, TB*L) f32 (channels on sublanes, time on lanes). #
# --------------------------------------------------------------------------- #
def _tcn_kernel(gid_ref, x_ref,
                enc_w0, enc_b0, enc_wc, enc_bc, enc_wp, enc_bp,
                comp_w, comp_b,
                dec_w0, dec_b0, dec_wc, dec_bc, dec_wp, dec_bp,
                out_w, out_b,
                o_ref):
    del gid_ref                      # only consumed by the index_maps
    f32 = jnp.float32
    # lane position within each length-SEQ_LEN sample (hoisted constant)
    pos = jax.lax.broadcasted_iota(jnp.int32, (1, MB), 1) % SEQ_LEN

    mask_cache = {}

    def _valid(s):
        # f32 mask: 1.0 where position t+s stays inside the same sample.
        if s not in mask_cache:
            mask_cache[s] = jnp.logical_and(pos + s >= 0,
                                            pos + s < SEQ_LEN).astype(f32)
        return mask_cache[s]

    def shift_time(v, s):
        # shifted[:, t] = v[:, t + s] inside each sample, 0 outside ('same' pad).
        if s == 0:
            return v
        c = v.shape[0]
        if s > 0:
            sh = jnp.concatenate([v[:, s:], jnp.zeros((c, s), f32)], axis=1)
        else:
            sh = jnp.concatenate([jnp.zeros((c, -s), f32), v[:, :MB + s]], axis=1)
        return sh * _valid(s)

    def dconv_c1(xv, w, b, d):
        # first encoder layer (C_in = 1): VPU broadcast FMAs, skip the MXU.
        # xv: (1, MB); w: (CN, K); b: (CN, 1)
        acc = None
        for k in range(K):
            term = w[:, k:k + 1] * shift_time(xv, (k - 2) * d)      # (CN, MB)
            acc = term if acc is None else acc + term
        return acc + b

    def dconv(xv, w_fused, b, d):
        # fused-tap dilated conv: one (CN, K*Cin) x (K*Cin, MB) MXU matmul.
        # xv: (Cin, MB) with Cin = 8 (sublane-aligned pieces -> cheap concat).
        slab = jnp.concatenate([shift_time(xv, (k - 2) * d) for k in range(K)],
                               axis=0)                              # (K*Cin, MB)
        return jnp.dot(w_fused, slab, preferred_element_type=f32) + b

    # ---------------- encoder ---------------- #
    cur = x_ref[0]                                                  # (1, MB)
    comp_acc = None
    for j in range(NL):
        d = 2 ** j
        if j == 0:
            h = dconv_c1(cur, enc_w0[0], enc_b0[0], d)
        else:
            h = dconv(cur, enc_wc[0, j - 1], enc_bc[0, j - 1], d)
        h = jnp.maximum(h, 0.0)                                     # (CN, MB)
        cur = jnp.maximum(jnp.dot(enc_wp[0, j], h, preferred_element_type=f32)
                          + enc_bp[0, j], 0.0)                      # (CR, MB)
        # distributed 1x1 compressor: concat(cur_0..cur_{NL-1}) never materialised
        part = jnp.dot(comp_w[0, j], cur, preferred_element_type=f32)
        comp_acc = part if comp_acc is None else comp_acc + part
    enc_c = comp_acc + comp_b[0]                                    # (CEP, MB)

    # AvgPool1d(2) + nearest interpolation back to L, fused as shift + select.
    c_enc = enc_c.shape[0]
    nxt = jnp.concatenate([enc_c[:, 1:], jnp.zeros((c_enc, 1), f32)], axis=1)
    prv = jnp.concatenate([jnp.zeros((c_enc, 1), f32), enc_c[:, :-1]], axis=1)
    even_f = ((pos % 2) == 0).astype(f32)
    cur = 0.5 * (enc_c + nxt * even_f + prv * (1.0 - even_f))       # (CEP, MB)

    # ---------------- decoder ---------------- #
    out_acc = None
    for j in range(NL):
        d = 2 ** (NL - 1 - j)
        if j == 0:
            h = dconv(cur, dec_w0[0], dec_b0[0], d)
        else:
            h = dconv(cur, dec_wc[0, j - 1], dec_bc[0, j - 1], d)
        h = jnp.maximum(h, 0.0)
        cur = jnp.maximum(jnp.dot(dec_wp[0, j], h, preferred_element_type=f32)
                          + dec_bp[0, j], 0.0)                      # (CR, MB)
        part = jnp.dot(out_w[0, j], cur, preferred_element_type=f32)  # (1, MB)
        out_acc = part if out_acc is None else out_acc + part
    o_ref[0] = out_acc + out_b[0]                                   # (1, MB) lane-dense


# --------------------------------------------------------------------------- #
# Single pallas_call over all groups (scalar-prefetched per-block group ids)    #
# --------------------------------------------------------------------------- #
def _weight_spec(w):
    nd = w.ndim
    return pl.BlockSpec((1,) + tuple(w.shape[1:]),
                        lambda b, g, nd=nd: (g[b],) + (0,) * (nd - 1))


def _forward_blocks(xb, gid, params):
    """xb: (nblk, 1, MB) f32, gid: (nblk,) int32 -> (nblk, 1, MB)."""
    nblk = xb.shape[0]
    weights = [params[k] for k in WEIGHT_KEYS]
    return pl.pallas_call(
        _tcn_kernel,
        out_shape=jax.ShapeDtypeStruct((nblk, 1, MB), jnp.float32),
        grid_spec=pltpu.PrefetchScalarGridSpec(
            num_scalar_prefetch=1,
            grid=(nblk,),
            in_specs=[pl.BlockSpec((1, 1, MB), lambda b, g: (b, 0, 0))]
                     + [_weight_spec(w) for w in weights],
            out_specs=pl.BlockSpec((1, 1, MB), lambda b, g: (b, 0, 0)),
        ),
        compiler_params=pltpu.CompilerParams(
            dimension_semantics=("parallel",)),
    )(gid, xb, *weights)


forward_blocks = jax.jit(_forward_blocks)


# --------------------------------------------------------------------------- #
# Host-side routing (data-dependent grouping, done once in NumPy)               #
# --------------------------------------------------------------------------- #
def _group_rows(ids_np):
    order, groups = [], {}
    for i, v in enumerate(ids_np):
        iv = int(round(float(v)))          # inherited from the original design
        if iv not in groups:
            groups[iv] = []
            order.append(iv)
        groups[iv].append(i)
    return [(iv, np.asarray(groups[iv], dtype=np.int64)) for iv in order]


def tcn_ae_separate_forward(x, params, id_to_index):
    """x: (B, SEQ_LEN + 1); last column holds the combination ID.
    Returns (B, SEQ_LEN) rows in group-major (first-appearance) order,
    matching the PyTorch module's concat-per-unique-id semantics."""
    ids_np = np.asarray(jax.device_get(x[:, SEQ_LEN]))
    perm, keep, blk_gid = [], [], []
    for comb_id, rows in _group_rows(ids_np):
        g = id_to_index[comb_id]
        n = rows.shape[0]
        n_pad = (-n) % TB
        base = len(perm)
        perm.extend(int(r) for r in rows)
        perm.extend([int(rows[0])] * n_pad)          # pad slots; results discarded
        keep.extend(range(base, base + n))
        blk_gid.extend([g] * ((n + n_pad) // TB))

    perm_j = jnp.asarray(np.asarray(perm, dtype=np.int32))
    keep_j = jnp.asarray(np.asarray(keep, dtype=np.int32))
    gid = jnp.asarray(np.asarray(blk_gid, dtype=np.int32))

    x_seq = x[:, :SEQ_LEN]
    xb = x_seq[perm_j].reshape(len(blk_gid), 1, MB)
    out = forward_blocks(xb, gid, params)
    out = out.reshape(perm_j.shape[0], SEQ_LEN)
    return out[keep_j]


# --------------------------------------------------------------------------- #
# Parameter init (stacked over combinations, MXU-friendly matmul layouts)       #
# --------------------------------------------------------------------------- #
def init_stacked_params(key, n_comb):
    G = n_comb
    ks = iter(jax.random.split(key, 20))

    def nrm(shape, scale=0.2):
        return scale * jax.random.normal(next(ks), shape, dtype=jnp.float32)

    p = {}
    # encoder: layer0 Conv1d(1,CN,5) as (CN,K); layers 1..NL-1 Conv1d(CR,CN,5)
    # fused over taps as (CN, K*CR) with column index k*CR + c.
    p["enc_w0"] = nrm((G, CN, K));               p["enc_b0"] = nrm((G, CN, 1), 0.1)
    p["enc_wc"] = nrm((G, NL - 1, CN, K * CR));  p["enc_bc"] = nrm((G, NL - 1, CN, 1), 0.1)
    p["enc_wp"] = nrm((G, NL, CR, CN));          p["enc_bp"] = nrm((G, NL, CR, 1), 0.1)
    # encoder compressor Conv1d(CR*NL, CE, 1) split per layer; CE padded to CEP
    # with zero rows (pad channels stay exactly zero through the whole network).
    p["comp_w"] = jnp.zeros((G, NL, CEP, CR), jnp.float32).at[:, :, :CE].set(
        nrm((G, NL, CE, CR)))
    p["comp_b"] = jnp.zeros((G, CEP, 1), jnp.float32).at[:, :CE].set(
        nrm((G, CE, 1), 0.1))
    # decoder layer0 Conv1d(CE,CN,5): input channels padded CE->CEP, fused taps.
    dw0 = jnp.zeros((G, CN, K, CEP), jnp.float32).at[..., :CE].set(
        nrm((G, CN, K, CE)))
    p["dec_w0"] = dw0.reshape(G, CN, K * CEP);   p["dec_b0"] = nrm((G, CN, 1), 0.1)
    p["dec_wc"] = nrm((G, NL - 1, CN, K * CR));  p["dec_bc"] = nrm((G, NL - 1, CN, 1), 0.1)
    p["dec_wp"] = nrm((G, NL, CR, CN));          p["dec_bp"] = nrm((G, NL, CR, 1), 0.1)
    # decoder compressor Conv1d(CR*NL, 1, 1) split per layer.
    p["out_w"] = nrm((G, NL, 1, CR));            p["out_b"] = nrm((G, 1, 1), 0.1)
    return p


# --------------------------------------------------------------------------- #
# Pure-JAX reference (same math, plain XLA) for correctness check               #
# --------------------------------------------------------------------------- #
def _reference_group(x2d, P, g):
    B, L = x2d.shape
    cur = x2d[:, None, :]                                 # (B, 1, L) channels-first

    def dconv(h, w_okc, b_c1, d):
        hp = jnp.pad(h, ((0, 0), (0, 0), (2 * d, 2 * d)))
        acc = None
        for k in range(K):
            t = jnp.einsum("bcl,oc->bol", hp[:, :, k * d:k * d + L], w_okc[:, k, :])
            acc = t if acc is None else acc + t
        return acc + b_c1[None, :, :]

    comp_acc = None
    for j in range(NL):
        d = 2 ** j
        if j == 0:
            w = P["enc_w0"][g][:, :, None]                # (CN, K, 1)
            b = P["enc_b0"][g]
        else:
            w = P["enc_wc"][g, j - 1].reshape(CN, K, CR)
            b = P["enc_bc"][g, j - 1]
        h = jnp.maximum(dconv(cur, w, b, d), 0.0)
        cur = jnp.maximum(jnp.einsum("bcl,rc->brl", h, P["enc_wp"][g, j])
                          + P["enc_bp"][g, j][None], 0.0)
        part = jnp.einsum("brl,er->bel", cur, P["comp_w"][g, j, :CE])
        comp_acc = part if comp_acc is None else comp_acc + part
    enc = comp_acc + P["comp_b"][g, :CE][None]            # (B, CE, L)
    pooled = 0.5 * (enc[:, :, 0::2] + enc[:, :, 1::2])    # AvgPool1d(2)
    cur = jnp.repeat(pooled, POOL, axis=-1)               # nearest interp to L

    out_acc = None
    for j in range(NL):
        d = 2 ** (NL - 1 - j)
        if j == 0:
            w = P["dec_w0"][g].reshape(CN, K, CEP)[:, :, :CE]
            b = P["dec_b0"][g]
        else:
            w = P["dec_wc"][g, j - 1].reshape(CN, K, CR)
            b = P["dec_bc"][g, j - 1]
        h = jnp.maximum(dconv(cur, w, b, d), 0.0)
        cur = jnp.maximum(jnp.einsum("bcl,rc->brl", h, P["dec_wp"][g, j])
                          + P["dec_bp"][g, j][None], 0.0)
        part = jnp.einsum("brl,or->bol", cur, P["out_w"][g, j])
        out_acc = part if out_acc is None else out_acc + part
    out = out_acc + P["out_b"][g][None]                   # (B, 1, L)
    return out[:, 0, :]


def reference_forward(x, params, id_to_index):
    ids_np = np.asarray(jax.device_get(x[:, SEQ_LEN]))
    outs = []
    for comb_id, rows in _group_rows(ids_np):
        xi = x[np.asarray(rows)][:, :SEQ_LEN]
        outs.append(_reference_group(xi, params, id_to_index[comb_id]))
    return jnp.concatenate(outs, axis=0)


# --------------------------------------------------------------------------- #
if __name__ == "__main__":
    key = jax.random.PRNGKey(0)
    k_p, k_x = jax.random.split(key, 2)

    # two "combinations" (two independent parameter sets), IDs 0 and 1
    n_comb = 2
    params = init_stacked_params(k_p, n_comb)
    id_to_index = {0: 0, 1: 1}

    B = 6
    x_seq = jax.random.normal(k_x, (B, SEQ_LEN), dtype=jnp.float32)
    ids = jnp.array([0., 1., 0., 1., 1., 0.], dtype=jnp.float32).reshape(B, 1)
    x = jnp.concatenate([x_seq, ids], axis=1)             # (B, SEQ_LEN + 1)

    out = jax.block_until_ready(tcn_ae_separate_forward(x, params, id_to_index))
    assert out.shape == (B, SEQ_LEN), out.shape
    assert bool(jnp.all(jnp.isfinite(out)))

    ref = jax.block_until_ready(reference_forward(x, params, id_to_index))
    denom = float(jnp.max(jnp.abs(ref))) + 1e-6
    rel_err = float(jnp.max(jnp.abs(out - ref))) / denom
    assert rel_err < 1e-3, f"relative error too large: {rel_err}"

    print("KERNEL_OK")
</pallas_src>

<mosaic_0001>
module attributes {stable_mosaic.version = 11 : i64} {
  func.func @_tcn_kernel(%arg0: i32, %arg1: memref<2xi32, #tpu.memory_space<smem>>, %arg2: memref<1x1x512xf32, #tpu.memory_space<vmem>>, %arg3: memref<1x16x5xf32, #tpu.memory_space<vmem>>, %arg4: memref<1x16x1xf32, #tpu.memory_space<vmem>>, %arg5: memref<1x3x16x40xf32, #tpu.memory_space<vmem>>, %arg6: memref<1x3x16x1xf32, #tpu.memory_space<vmem>>, %arg7: memref<1x4x8x16xf32, #tpu.memory_space<vmem>>, %arg8: memref<1x4x8x1xf32, #tpu.memory_space<vmem>>, %arg9: memref<1x4x8x8xf32, #tpu.memory_space<vmem>>, %arg10: memref<1x8x1xf32, #tpu.memory_space<vmem>>, %arg11: memref<1x16x40xf32, #tpu.memory_space<vmem>>, %arg12: memref<1x16x1xf32, #tpu.memory_space<vmem>>, %arg13: memref<1x3x16x40xf32, #tpu.memory_space<vmem>>, %arg14: memref<1x3x16x1xf32, #tpu.memory_space<vmem>>, %arg15: memref<1x4x8x16xf32, #tpu.memory_space<vmem>>, %arg16: memref<1x4x8x1xf32, #tpu.memory_space<vmem>>, %arg17: memref<1x4x1x8xf32, #tpu.memory_space<vmem>>, %arg18: memref<1x1x1xf32, #tpu.memory_space<vmem>>, %arg19: memref<1x1x512xf32, #tpu.memory_space<vmem>>) attributes {dimension_semantics = [#tpu.dimension_semantics<parallel>], iteration_bounds = array<i64: 2>, scalar_prefetch = 1 : i64, scratch_operands = 0 : i64, tpu.core_type = #tpu.core_type<tc>, window_params = [{transform_indices = @transform_0, window_bounds = array<i64: 1, 1, 512>}, {transform_indices = @transform_1, window_bounds = array<i64: 1, 16, 5>}, {transform_indices = @transform_2, window_bounds = array<i64: 1, 16, 1>}, {transform_indices = @transform_3, window_bounds = array<i64: 1, 3, 16, 40>}, {transform_indices = @transform_4, window_bounds = array<i64: 1, 3, 16, 1>}, {transform_indices = @transform_5, window_bounds = array<i64: 1, 4, 8, 16>}, {transform_indices = @transform_6, window_bounds = array<i64: 1, 4, 8, 1>}, {transform_indices = @transform_7, window_bounds = array<i64: 1, 4, 8, 8>}, {transform_indices = @transform_8, window_bounds = array<i64: 1, 8, 1>}, {transform_indices = @transform_9, window_bounds = array<i64: 1, 16, 40>}, {transform_indices = @transform_10, window_bounds = array<i64: 1, 16, 1>}, {transform_indices = @transform_11, window_bounds = array<i64: 1, 3, 16, 40>}, {transform_indices = @transform_12, window_bounds = array<i64: 1, 3, 16, 1>}, {transform_indices = @transform_13, window_bounds = array<i64: 1, 4, 8, 16>}, {transform_indices = @transform_14, window_bounds = array<i64: 1, 4, 8, 1>}, {transform_indices = @transform_15, window_bounds = array<i64: 1, 4, 1, 8>}, {transform_indices = @transform_16, window_bounds = array<i64: 1, 1, 1>}, {transform_indices = @transform_17, window_bounds = array<i64: 1, 1, 512>}]} {
    %0 = tpu.iota {dimensions = array<i32: 1>} : vector<1x512xi32>
    %c64_i32 = arith.constant 64 : i32
    %c0_i32 = arith.constant 0 : i32
    %1 = arith.cmpi eq, %c64_i32, %c0_i32 : i32
    %c1_i32 = arith.constant 1 : i32
    %2 = arith.select %1, %c1_i32, %c64_i32 : i32
    %3 = vector.broadcast %2 : i32 to vector<1x512xi32>
    %4 = arith.remsi %0, %3 : vector<1x512xi32>
    %c0_i32_0 = arith.constant 0 : i32
    %5 = vector.broadcast %c0_i32_0 : i32 to vector<1x512xi32>
    %6 = arith.cmpi ne, %4, %5 : vector<1x512xi32>
    %c0_i32_1 = arith.constant 0 : i32
    %7 = vector.broadcast %c0_i32_1 : i32 to vector<1x512xi32>
    %8 = arith.cmpi slt, %4, %7 : vector<1x512xi32>
    %c0_i32_2 = arith.constant 0 : i32
    %9 = arith.cmpi slt, %2, %c0_i32_2 : i32
    %10 = vector.broadcast %9 : i1 to vector<1x512xi1>
    %11 = vector.broadcast %10 : vector<1x512xi1> to vector<1x512xi1>
    %12 = arith.xori %8, %11 : vector<1x512xi1>
    %13 = arith.andi %12, %6 : vector<1x512xi1>
    %14 = vector.broadcast %2 : i32 to vector<1x512xi32>
    %15 = arith.addi %4, %14 : vector<1x512xi32>
    %16 = arith.select %13, %15, %4 : vector<1x512xi1>, vector<1x512xi32>
    %c0 = arith.constant 0 : index
    %c0_3 = arith.constant 0 : index
    %c0_4 = arith.constant 0 : index
    %17 = vector.load %arg2[%c0, %c0_3, %c0_4] : memref<1x1x512xf32, #tpu.memory_space<vmem>>, vector<1x1x512xf32>
    %18 = vector.shape_cast %17 : vector<1x1x512xf32> to vector<1x512xf32>
    %c0_5 = arith.constant 0 : index
    %c0_6 = arith.constant 0 : index
    %c0_7 = arith.constant 0 : index
    %19 = vector.load %arg3[%c0_5, %c0_6, %c0_7] : memref<1x16x5xf32, #tpu.memory_space<vmem>>, vector<1x16x5xf32>
    %20 = vector.shape_cast %19 : vector<1x16x5xf32> to vector<16x5xf32>
    %c0_8 = arith.constant 0 : index
    %c0_9 = arith.constant 0 : index
    %c0_10 = arith.constant 0 : index
    %21 = vector.load %arg4[%c0_8, %c0_9, %c0_10] : memref<1x16x1xf32, #tpu.memory_space<vmem>>, vector<1x16x1xf32>
    %22 = vector.shape_cast %21 : vector<1x16x1xf32> to vector<16x1xf32>
    %23 = vector.extract_strided_slice %20 {offsets = [0, 0], sizes = [16, 1], strides = [1, 1]} : vector<16x5xf32> to vector<16x1xf32>
    %cst = arith.constant 0.000000e+00 : f32
    %24 = vector.broadcast %cst : f32 to vector<1x2xf32>
    %25 = vector.extract_strided_slice %18 {offsets = [0, 0], sizes = [1, 510], strides = [1, 1]} : vector<1x512xf32> to vector<1x510xf32>
    %26 = tpu.concatenate %24, %25 in 1 : vector<1x2xf32>, vector<1x510xf32> -> vector<1x512xf32>
    %c-2_i32 = arith.constant -2 : i32
    %27 = vector.broadcast %c-2_i32 : i32 to vector<1x512xi32>
    %28 = arith.addi %16, %27 : vector<1x512xi32>
    %c0_i32_11 = arith.constant 0 : i32
    %29 = vector.broadcast %c0_i32_11 : i32 to vector<1x512xi32>
    %30 = arith.cmpi sge, %28, %29 : vector<1x512xi32>
    %c-2_i32_12 = arith.constant -2 : i32
    %31 = vector.broadcast %c-2_i32_12 : i32 to vector<1x512xi32>
    %32 = arith.addi %16, %31 : vector<1x512xi32>
    %c64_i32_13 = arith.constant 64 : i32
    %33 = vector.broadcast %c64_i32_13 : i32 to vector<1x512xi32>
    %34 = arith.cmpi slt, %32, %33 : vector<1x512xi32>
    %35 = arith.andi %30, %34 : vector<1x512xi1>
    %36 = arith.extui %35 : vector<1x512xi1> to vector<1x512xi32>
    %37 = arith.sitofp %36 : vector<1x512xi32> to vector<1x512xf32>
    %38 = arith.mulf %26, %37 : vector<1x512xf32>
    %39 = vector.broadcast %23 : vector<16x1xf32> to vector<16x512xf32>
    %40 = vector.broadcast %38 : vector<1x512xf32> to vector<16x512xf32>
    %41 = arith.mulf %39, %40 : vector<16x512xf32>
    %42 = vector.extract_strided_slice %20 {offsets = [0, 1], sizes = [16, 1], strides = [1, 1]} : vector<16x5xf32> to vector<16x1xf32>
    %cst_14 = arith.constant 0.000000e+00 : f32
    %43 = vector.broadcast %cst_14 : f32 to vector<1x1xf32>
    %44 = vector.extract_strided_slice %18 {offsets = [0, 0], sizes = [1, 511], strides = [1, 1]} : vector<1x512xf32> to vector<1x511xf32>
    %45 = tpu.concatenate %43, %44 in 1 : vector<1x1xf32>, vector<1x511xf32> -> vector<1x512xf32>
    %c-1_i32 = arith.constant -1 : i32
    %46 = vector.broadcast %c-1_i32 : i32 to vector<1x512xi32>
    %47 = arith.addi %16, %46 : vector<1x512xi32>
    %c0_i32_15 = arith.constant 0 : i32
    %48 = vector.broadcast %c0_i32_15 : i32 to vector<1x512xi32>
    %49 = arith.cmpi sge, %47, %48 : vector<1x512xi32>
    %c-1_i32_16 = arith.constant -1 : i32
    %50 = vector.broadcast %c-1_i32_16 : i32 to vector<1x512xi32>
    %51 = arith.addi %16, %50 : vector<1x512xi32>
    %c64_i32_17 = arith.constant 64 : i32
    %52 = vector.broadcast %c64_i32_17 : i32 to vector<1x512xi32>
    %53 = arith.cmpi slt, %51, %52 : vector<1x512xi32>
    %54 = arith.andi %49, %53 : vector<1x512xi1>
    %55 = arith.extui %54 : vector<1x512xi1> to vector<1x512xi32>
    %56 = arith.sitofp %55 : vector<1x512xi32> to vector<1x512xf32>
    %57 = arith.mulf %45, %56 : vector<1x512xf32>
    %58 = vector.broadcast %42 : vector<16x1xf32> to vector<16x512xf32>
    %59 = vector.broadcast %57 : vector<1x512xf32> to vector<16x512xf32>
    %60 = arith.mulf %58, %59 : vector<16x512xf32>
    %61 = arith.addf %41, %60 : vector<16x512xf32>
    %62 = vector.extract_strided_slice %20 {offsets = [0, 2], sizes = [16, 1], strides = [1, 1]} : vector<16x5xf32> to vector<16x1xf32>
    %63 = vector.broadcast %62 : vector<16x1xf32> to vector<16x512xf32>
    %64 = vector.broadcast %18 : vector<1x512xf32> to vector<16x512xf32>
    %65 = arith.mulf %63, %64 : vector<16x512xf32>
    %66 = arith.addf %61, %65 : vector<16x512xf32>
    %67 = vector.extract_strided_slice %20 {offsets = [0, 3], sizes = [16, 1], strides = [1, 1]} : vector<16x5xf32> to vector<16x1xf32>
    %68 = vector.extract_strided_slice %18 {offsets = [0, 1], sizes = [1, 511], strides = [1, 1]} : vector<1x512xf32> to vector<1x511xf32>
    %cst_18 = arith.constant 0.000000e+00 : f32
    %69 = vector.broadcast %cst_18 : f32 to vector<1x1xf32>
    %70 = tpu.concatenate %68, %69 in 1 : vector<1x511xf32>, vector<1x1xf32> -> vector<1x512xf32>
    %c1_i32_19 = arith.constant 1 : i32
    %71 = vector.broadcast %c1_i32_19 : i32 to vector<1x512xi32>
    %72 = arith.addi %16, %71 : vector<1x512xi32>
    %c0_i32_20 = arith.constant 0 : i32
    %73 = vector.broadcast %c0_i32_20 : i32 to vector<1x512xi32>
    %74 = arith.cmpi sge, %72, %73 : vector<1x512xi32>
    %c1_i32_21 = arith.constant 1 : i32
    %75 = vector.broadcast %c1_i32_21 : i32 to vector<1x512xi32>
    %76 = arith.addi %16, %75 : vector<1x512xi32>
    %c64_i32_22 = arith.constant 64 : i32
    %77 = vector.broadcast %c64_i32_22 : i32 to vector<1x512xi32>
    %78 = arith.cmpi slt, %76, %77 : vector<1x512xi32>
    %79 = arith.andi %74, %78 : vector<1x512xi1>
    %80 = arith.extui %79 : vector<1x512xi1> to vector<1x512xi32>
    %81 = arith.sitofp %80 : vector<1x512xi32> to vector<1x512xf32>
    %82 = arith.mulf %70, %81 : vector<1x512xf32>
    %83 = vector.broadcast %67 : vector<16x1xf32> to vector<16x512xf32>
    %84 = vector.broadcast %82 : vector<1x512xf32> to vector<16x512xf32>
    %85 = arith.mulf %83, %84 : vector<16x512xf32>
    %86 = arith.addf %66, %85 : vector<16x512xf32>
    %87 = vector.extract_strided_slice %20 {offsets = [0, 4], sizes = [16, 1], strides = [1, 1]} : vector<16x5xf32> to vector<16x1xf32>
    %88 = vector.extract_strided_slice %18 {offsets = [0, 2], sizes = [1, 510], strides = [1, 1]} : vector<1x512xf32> to vector<1x510xf32>
    %cst_23 = arith.constant 0.000000e+00 : f32
    %89 = vector.broadcast %cst_23 : f32 to vector<1x2xf32>
    %90 = tpu.concatenate %88, %89 in 1 : vector<1x510xf32>, vector<1x2xf32> -> vector<1x512xf32>
    %c2_i32 = arith.constant 2 : i32
    %91 = vector.broadcast %c2_i32 : i32 to vector<1x512xi32>
    %92 = arith.addi %16, %91 : vector<1x512xi32>
    %c0_i32_24 = arith.constant 0 : i32
    %93 = vector.broadcast %c0_i32_24 : i32 to vector<1x512xi32>
    %94 = arith.cmpi sge, %92, %93 : vector<1x512xi32>
    %c2_i32_25 = arith.constant 2 : i32
    %95 = vector.broadcast %c2_i32_25 : i32 to vector<1x512xi32>
    %96 = arith.addi %16, %95 : vector<1x512xi32>
    %c64_i32_26 = arith.constant 64 : i32
    %97 = vector.broadcast %c64_i32_26 : i32 to vector<1x512xi32>
    %98 = arith.cmpi slt, %96, %97 : vector<1x512xi32>
    %99 = arith.andi %94, %98 : vector<1x512xi1>
    %100 = arith.extui %99 : vector<1x512xi1> to vector<1x512xi32>
    %101 = arith.sitofp %100 : vector<1x512xi32> to vector<1x512xf32>
    %102 = arith.mulf %90, %101 : vector<1x512xf32>
    %103 = vector.broadcast %87 : vector<16x1xf32> to vector<16x512xf32>
    %104 = vector.broadcast %102 : vector<1x512xf32> to vector<16x512xf32>
    %105 = arith.mulf %103, %104 : vector<16x512xf32>
    %106 = arith.addf %86, %105 : vector<16x512xf32>
    %107 = vector.broadcast %22 : vector<16x1xf32> to vector<16x512xf32>
    %108 = arith.addf %106, %107 : vector<16x512xf32>
    %cst_27 = arith.constant 0.000000e+00 : f32
    %109 = vector.broadcast %cst_27 : f32 to vector<16x512xf32>
    %110 = arith.maximumf %108, %109 : vector<16x512xf32>
    %c0_28 = arith.constant 0 : index
    %c0_29 = arith.constant 0 : index
    %c0_30 = arith.constant 0 : index
    %c0_31 = arith.constant 0 : index
    %111 = vector.load %arg7[%c0_28, %c0_29, %c0_30, %c0_31] : memref<1x4x8x16xf32, #tpu.memory_space<vmem>>, vector<1x1x8x16xf32>
    %112 = vector.shape_cast %111 : vector<1x1x8x16xf32> to vector<8x16xf32>
    %cst_32 = arith.constant dense<0.000000e+00> : vector<8x512xf32>
    %113 = tpu.matmul %112, %110, %cst_32 {dimension_numbers = #tpu.dot_dimension_numbers<[1], [0], [0], [1], [0, 0, 1, 1], [], []>} : vector<8x16xf32>, vector<16x512xf32>, vector<8x512xf32> -> vector<8x512xf32>
    %c0_33 = arith.constant 0 : index
    %c0_34 = arith.constant 0 : index
    %c0_35 = arith.constant 0 : index
    %c0_36 = arith.constant 0 : index
    %114 = vector.load %arg8[%c0_33, %c0_34, %c0_35, %c0_36] : memref<1x4x8x1xf32, #tpu.memory_space<vmem>>, vector<1x1x8x1xf32>
    %115 = vector.shape_cast %114 : vector<1x1x8x1xf32> to vector<8x1xf32>
    %116 = vector.broadcast %115 : vector<8x1xf32> to vector<8x512xf32>
    %117 = arith.addf %113, %116 : vector<8x512xf32>
    %cst_37 = arith.constant 0.000000e+00 : f32
    %118 = vector.broadcast %cst_37 : f32 to vector<8x512xf32>
    %119 = arith.maximumf %117, %118 : vector<8x512xf32>
    %c0_38 = arith.constant 0 : index
    %c0_39 = arith.constant 0 : index
    %c0_40 = arith.constant 0 : index
    %c0_41 = arith.constant 0 : index
    %120 = vector.load %arg9[%c0_38, %c0_39, %c0_40, %c0_41] : memref<1x4x8x8xf32, #tpu.memory_space<vmem>>, vector<1x1x8x8xf32>
    %121 = vector.shape_cast %120 : vector<1x1x8x8xf32> to vector<8x8xf32>
    %cst_42 = arith.constant dense<0.000000e+00> : vector<8x512xf32>
    %122 = tpu.matmul %121, %119, %cst_42 {dimension_numbers = #tpu.dot_dimension_numbers<[1], [0], [0], [1], [0, 0, 1, 1], [], []>} : vector<8x8xf32>, vector<8x512xf32>, vector<8x512xf32> -> vector<8x512xf32>
    %c0_43 = arith.constant 0 : index
    %c0_44 = arith.constant 0 : index
    %c0_45 = arith.constant 0 : index
    %c0_46 = arith.constant 0 : index
    %123 = vector.load %arg5[%c0_43, %c0_44, %c0_45, %c0_46] : memref<1x3x16x40xf32, #tpu.memory_space<vmem>>, vector<1x1x16x40xf32>
    %124 = vector.shape_cast %123 : vector<1x1x16x40xf32> to vector<16x40xf32>
    %c0_47 = arith.constant 0 : index
    %c0_48 = arith.constant 0 : index
    %c0_49 = arith.constant 0 : index
    %c0_50 = arith.constant 0 : index
    %125 = vector.load %arg6[%c0_47, %c0_48, %c0_49, %c0_50] : memref<1x3x16x1xf32, #tpu.memory_space<vmem>>, vector<1x1x16x1xf32>
    %126 = vector.shape_cast %125 : vector<1x1x16x1xf32> to vector<16x1xf32>
    %cst_51 = arith.constant 0.000000e+00 : f32
    %127 = vector.broadcast %cst_51 : f32 to vector<8x4xf32>
    %128 = vector.extract_strided_slice %119 {offsets = [0, 0], sizes = [8, 508], strides = [1, 1]} : vector<8x512xf32> to vector<8x508xf32>
    %129 = tpu.concatenate %127, %128 in 1 : vector<8x4xf32>, vector<8x508xf32> -> vector<8x512xf32>
    %c-4_i32 = arith.constant -4 : i32
    %130 = vector.broadcast %c-4_i32 : i32 to vector<1x512xi32>
    %131 = arith.addi %16, %130 : vector<1x512xi32>
    %c0_i32_52 = arith.constant 0 : i32
    %132 = vector.broadcast %c0_i32_52 : i32 to vector<1x512xi32>
    %133 = arith.cmpi sge, %131, %132 : vector<1x512xi32>
    %c-4_i32_53 = arith.constant -4 : i32
    %134 = vector.broadcast %c-4_i32_53 : i32 to vector<1x512xi32>
    %135 = arith.addi %16, %134 : vector<1x512xi32>
    %c64_i32_54 = arith.constant 64 : i32
    %136 = vector.broadcast %c64_i32_54 : i32 to vector<1x512xi32>
    %137 = arith.cmpi slt, %135, %136 : vector<1x512xi32>
    %138 = arith.andi %133, %137 : vector<1x512xi1>
    %139 = arith.extui %138 : vector<1x512xi1> to vector<1x512xi32>
    %140 = arith.sitofp %139 : vector<1x512xi32> to vector<1x512xf32>
    %141 = vector.broadcast %140 : vector<1x512xf32> to vector<8x512xf32>
    %142 = arith.mulf %129, %141 : vector<8x512xf32>
    %cst_55 = arith.constant 0.000000e+00 : f32
    %143 = vector.broadcast %cst_55 : f32 to vector<8x2xf32>
    %144 = vector.extract_strided_slice %119 {offsets = [0, 0], sizes = [8, 510], strides = [1, 1]} : vector<8x512xf32> to vector<8x510xf32>
    %145 = tpu.concatenate %143, %144 in 1 : vector<8x2xf32>, vector<8x510xf32> -> vector<8x512xf32>
    %146 = vector.broadcast %37 : vector<1x512xf32> to vector<8x512xf32>
    %147 = arith.mulf %145, %146 : vector<8x512xf32>
    %148 = vector.extract_strided_slice %119 {offsets = [0, 2], sizes = [8, 510], strides = [1, 1]} : vector<8x512xf32> to vector<8x510xf32>
    %cst_56 = arith.constant 0.000000e+00 : f32
    %149 = vector.broadcast %cst_56 : f32 to vector<8x2xf32>
    %150 = tpu.concatenate %148, %149 in 1 : vector<8x510xf32>, vector<8x2xf32> -> vector<8x512xf32>
    %151 = vector.broadcast %101 : vector<1x512xf32> to vector<8x512xf32>
    %152 = arith.mulf %150, %151 : vector<8x512xf32>
    %153 = vector.extract_strided_slice %119 {offsets = [0, 4], sizes = [8, 508], strides = [1, 1]} : vector<8x512xf32> to vector<8x508xf32>
    %cst_57 = arith.constant 0.000000e+00 : f32
    %154 = vector.broadcast %cst_57 : f32 to vector<8x4xf32>
    %155 = tpu.concatenate %153, %154 in 1 : vector<8x508xf32>, vector<8x4xf32> -> vector<8x512xf32>
    %c4_i32 = arith.constant 4 : i32
    %156 = vector.broadcast %c4_i32 : i32 to vector<1x512xi32>
    %157 = arith.addi %16, %156 : vector<1x512xi32>
    %c0_i32_58 = arith.constant 0 : i32
    %158 = vector.broadcast %c0_i32_58 : i32 to vector<1x512xi32>
    %159 = arith.cmpi sge, %157, %158 : vector<1x512xi32>
    %c4_i32_59 = arith.constant 4 : i32
    %160 = vector.broadcast %c4_i32_59 : i32 to vector<1x512xi32>
    %161 = arith.addi %16, %160 : vector<1x512xi32>
    %c64_i32_60 = arith.constant 64 : i32
    %162 = vector.broadcast %c64_i32_60 : i32 to vector<1x512xi32>
    %163 = arith.cmpi slt, %161, %162 : vector<1x512xi32>
    %164 = arith.andi %159, %163 : vector<1x512xi1>
    %165 = arith.extui %164 : vector<1x512xi1> to vector<1x512xi32>
    %166 = arith.sitofp %165 : vector<1x512xi32> to vector<1x512xf32>
    %167 = vector.broadcast %166 : vector<1x512xf32> to vector<8x512xf32>
    %168 = arith.mulf %155, %167 : vector<8x512xf32>
    %169 = tpu.concatenate %142, %147, %119, %152, %168 in 0 : vector<8x512xf32>, vector<8x512xf32>, vector<8x512xf32>, vector<8x512xf32>, vector<8x512xf32> -> vector<40x512xf32>
    %cst_61 = arith.constant dense<0.000000e+00> : vector<16x512xf32>
    %170 = tpu.matmul %124, %169, %cst_61 {dimension_numbers = #tpu.dot_dimension_numbers<[1], [0], [0], [1], [0, 0, 1, 1], [], []>} : vector<16x40xf32>, vector<40x512xf32>, vector<16x512xf32> -> vector<16x512xf32>
    %171 = vector.broadcast %126 : vector<16x1xf32> to vector<16x512xf32>
    %172 = arith.addf %170, %171 : vector<16x512xf32>
    %cst_62 = arith.constant 0.000000e+00 : f32
    %173 = vector.broadcast %cst_62 : f32 to vector<16x512xf32>
    %174 = arith.maximumf %172, %173 : vector<16x512xf32>
    %c0_63 = arith.constant 0 : index
    %c1 = arith.constant 1 : index
    %c0_64 = arith.constant 0 : index
    %c0_65 = arith.constant 0 : index
    %175 = vector.load %arg7[%c0_63, %c1, %c0_64, %c0_65] : memref<1x4x8x16xf32, #tpu.memory_space<vmem>>, vector<1x1x8x16xf32>
    %176 = vector.shape_cast %175 : vector<1x1x8x16xf32> to vector<8x16xf32>
    %cst_66 = arith.constant dense<0.000000e+00> : vector<8x512xf32>
    %177 = tpu.matmul %176, %174, %cst_66 {dimension_numbers = #tpu.dot_dimension_numbers<[1], [0], [0], [1], [0, 0, 1, 1], [], []>} : vector<8x16xf32>, vector<16x512xf32>, vector<8x512xf32> -> vector<8x512xf32>
    %c0_67 = arith.constant 0 : index
    %c1_68 = arith.constant 1 : index
    %c0_69 = arith.constant 0 : index
    %c0_70 = arith.constant 0 : index
    %178 = vector.load %arg8[%c0_67, %c1_68, %c0_69, %c0_70] : memref<1x4x8x1xf32, #tpu.memory_space<vmem>>, vector<1x1x8x1xf32>
    %179 = vector.shape_cast %178 : vector<1x1x8x1xf32> to vector<8x1xf32>
    %180 = vector.broadcast %179 : vector<8x1xf32> to vector<8x512xf32>
    %181 = arith.addf %177, %180 : vector<8x512xf32>
    %cst_71 = arith.constant 0.000000e+00 : f32
    %182 = vector.broadcast %cst_71 : f32 to vector<8x512xf32>
    %183 = arith.maximumf %181, %182 : vector<8x512xf32>
    %c0_72 = arith.constant 0 : index
    %c1_73 = arith.constant 1 : index
    %c0_74 = arith.constant 0 : index
    %c0_75 = arith.constant 0 : index
    %184 = vector.load %arg9[%c0_72, %c1_73, %c0_74, %c0_75] : memref<1x4x8x8xf32, #tpu.memory_space<vmem>>, vector<1x1x8x8xf32>
    %185 = vector.shape_cast %184 : vector<1x1x8x8xf32> to vector<8x8xf32>
    %cst_76 = arith.constant dense<0.000000e+00> : vector<8x512xf32>
    %186 = tpu.matmul %185, %183, %cst_76 {dimension_numbers = #tpu.dot_dimension_numbers<[1], [0], [0], [1], [0, 0, 1, 1], [], []>} : vector<8x8xf32>, vector<8x512xf32>, vector<8x512xf32> -> vector<8x512xf32>
    %187 = arith.addf %122, %186 : vector<8x512xf32>
    %c0_77 = arith.constant 0 : index
    %c1_78 = arith.constant 1 : index
    %c0_79 = arith.constant 0 : index
    %c0_80 = arith.constant 0 : index
    %188 = vector.load %arg5[%c0_77, %c1_78, %c0_79, %c0_80] : memref<1x3x16x40xf32, #tpu.memory_space<vmem>>, vector<1x1x16x40xf32>
    %189 = vector.shape_cast %188 : vector<1x1x16x40xf32> to vector<16x40xf32>
    %c0_81 = arith.constant 0 : index
    %c1_82 = arith.constant 1 : index
    %c0_83 = arith.constant 0 : index
    %c0_84 = arith.constant 0 : index
    %190 = vector.load %arg6[%c0_81, %c1_82, %c0_83, %c0_84] : memref<1x3x16x1xf32, #tpu.memory_space<vmem>>, vector<1x1x16x1xf32>
    %191 = vector.shape_cast %190 : vector<1x1x16x1xf32> to vector<16x1xf32>
    %cst_85 = arith.constant 0.000000e+00 : f32
    %192 = vector.broadcast %cst_85 : f32 to vector<8x8xf32>
    %193 = vector.extract_strided_slice %183 {offsets = [0, 0], sizes = [8, 504], strides = [1, 1]} : vector<8x512xf32> to vector<8x504xf32>
    %194 = tpu.concatenate %192, %193 in 1 : vector<8x8xf32>, vector<8x504xf32> -> vector<8x512xf32>
    %c-8_i32 = arith.constant -8 : i32
    %195 = vector.broadcast %c-8_i32 : i32 to vector<1x512xi32>
    %196 = arith.addi %16, %195 : vector<1x512xi32>
    %c0_i32_86 = arith.constant 0 : i32
    %197 = vector.broadcast %c0_i32_86 : i32 to vector<1x512xi32>
    %198 = arith.cmpi sge, %196, %197 : vector<1x512xi32>
    %c-8_i32_87 = arith.constant -8 : i32
    %199 = vector.broadcast %c-8_i32_87 : i32 to vector<1x512xi32>
    %200 = arith.addi %16, %199 : vector<1x512xi32>
    %c64_i32_88 = arith.constant 64 : i32
    %201 = vector.broadcast %c64_i32_88 : i32 to vector<1x512xi32>
    %202 = arith.cmpi slt, %200, %201 : vector<1x512xi32>
    %203 = arith.andi %198, %202 : vector<1x512xi1>
    %204 = arith.extui %203 : vector<1x512xi1> to vector<1x512xi32>
    %205 = arith.sitofp %204 : vector<1x512xi32> to vector<1x512xf32>
    %206 = vector.broadcast %205 : vector<1x512xf32> to vector<8x512xf32>
    %207 = arith.mulf %194, %206 : vector<8x512xf32>
    %cst_89 = arith.constant 0.000000e+00 : f32
    %208 = vector.broadcast %cst_89 : f32 to vector<8x4xf32>
    %209 = vector.extract_strided_slice %183 {offsets = [0, 0], sizes = [8, 508], strides = [1, 1]} : vector<8x512xf32> to vector<8x508xf32>
    %210 = tpu.concatenate %208, %209 in 1 : vector<8x4xf32>, vector<8x508xf32> -> vector<8x512xf32>
    %211 = vector.broadcast %140 : vector<1x512xf32> to vector<8x512xf32>
    %212 = arith.mulf %210, %211 : vector<8x512xf32>
    %213 = vector.extract_strided_slice %183 {offsets = [0, 4], sizes = [8, 508], strides = [1, 1]} : vector<8x512xf32> to vector<8x508xf32>
    %cst_90 = arith.constant 0.000000e+00 : f32
    %214 = vector.broadcast %cst_90 : f32 to vector<8x4xf32>
    %215 = tpu.concatenate %213, %214 in 1 : vector<8x508xf32>, vector<8x4xf32> -> vector<8x512xf32>
    %216 = vector.broadcast %166 : vector<1x512xf32> to vector<8x512xf32>
    %217 = arith.mulf %215, %216 : vector<8x512xf32>
    %218 = vector.extract_strided_slice %183 {offsets = [0, 8], sizes = [8, 504], strides = [1, 1]} : vector<8x512xf32> to vector<8x504xf32>
    %cst_91 = arith.constant 0.000000e+00 : f32
    %219 = vector.broadcast %cst_91 : f32 to vector<8x8xf32>
    %220 = tpu.concatenate %218, %219 in 1 : vector<8x504xf32>, vector<8x8xf32> -> vector<8x512xf32>
    %c8_i32 = arith.constant 8 : i32
    %221 = vector.broadcast %c8_i32 : i32 to vector<1x512xi32>
    %222 = arith.addi %16, %221 : vector<1x512xi32>
    %c0_i32_92 = arith.constant 0 : i32
    %223 = vector.broadcast %c0_i32_92 : i32 to vector<1x512xi32>
    %224 = arith.cmpi sge, %222, %223 : vector<1x512xi32>
    %c8_i32_93 = arith.constant 8 : i32
    %225 = vector.broadcast %c8_i32_93 : i32 to vector<1x512xi32>
    %226 = arith.addi %16, %225 : vector<1x512xi32>
    %c64_i32_94 = arith.constant 64 : i32
    %227 = vector.broadcast %c64_i32_94 : i32 to vector<1x512xi32>
    %228 = arith.cmpi slt, %226, %227 : vector<1x512xi32>
    %229 = arith.andi %224, %228 : vector<1x512xi1>
    %230 = arith.extui %229 : vector<1x512xi1> to vector<1x512xi32>
    %231 = arith.sitofp %230 : vector<1x512xi32> to vector<1x512xf32>
    %232 = vector.broadcast %231 : vector<1x512xf32> to vector<8x512xf32>
    %233 = arith.mulf %220, %232 : vector<8x512xf32>
    %234 = tpu.concatenate %207, %212, %183, %217, %233 in 0 : vector<8x512xf32>, vector<8x512xf32>, vector<8x512xf32>, vector<8x512xf32>, vector<8x512xf32> -> vector<40x512xf32>
    %cst_95 = arith.constant dense<0.000000e+00> : vector<16x512xf32>
    %235 = tpu.matmul %189, %234, %cst_95 {dimension_numbers = #tpu.dot_dimension_numbers<[1], [0], [0], [1], [0, 0, 1, 1], [], []>} : vector<16x40xf32>, vector<40x512xf32>, vector<16x512xf32> -> vector<16x512xf32>
    %236 = vector.broadcast %191 : vector<16x1xf32> to vector<16x512xf32>
    %237 = arith.addf %235, %236 : vector<16x512xf32>
    %cst_96 = arith.constant 0.000000e+00 : f32
    %238 = vector.broadcast %cst_96 : f32 to vector<16x512xf32>
    %239 = arith.maximumf %237, %238 : vector<16x512xf32>
    %c0_97 = arith.constant 0 : index
    %c2 = arith.constant 2 : index
    %c0_98 = arith.constant 0 : index
    %c0_99 = arith.constant 0 : index
    %240 = vector.load %arg7[%c0_97, %c2, %c0_98, %c0_99] : memref<1x4x8x16xf32, #tpu.memory_space<vmem>>, vector<1x1x8x16xf32>
    %241 = vector.shape_cast %240 : vector<1x1x8x16xf32> to vector<8x16xf32>
    %cst_100 = arith.constant dense<0.000000e+00> : vector<8x512xf32>
    %242 = tpu.matmul %241, %239, %cst_100 {dimension_numbers = #tpu.dot_dimension_numbers<[1], [0], [0], [1], [0, 0, 1, 1], [], []>} : vector<8x16xf32>, vector<16x512xf32>, vector<8x512xf32> -> vector<8x512xf32>
    %c0_101 = arith.constant 0 : index
    %c2_102 = arith.constant 2 : index
    %c0_103 = arith.constant 0 : index
    %c0_104 = arith.constant 0 : index
    %243 = vector.load %arg8[%c0_101, %c2_102, %c0_103, %c0_104] : memref<1x4x8x1xf32, #tpu.memory_space<vmem>>, vector<1x1x8x1xf32>
    %244 = vector.shape_cast %243 : vector<1x1x8x1xf32> to vector<8x1xf32>
    %245 = vector.broadcast %244 : vector<8x1xf32> to vector<8x512xf32>
    %246 = arith.addf %242, %245 : vector<8x512xf32>
    %cst_105 = arith.constant 0.000000e+00 : f32
    %247 = vector.broadcast %cst_105 : f32 to vector<8x512xf32>
    %248 = arith.maximumf %246, %247 : vector<8x512xf32>
    %c0_106 = arith.constant 0 : index
    %c2_107 = arith.constant 2 : index
    %c0_108 = arith.constant 0 : index
    %c0_109 = arith.constant 0 : index
    %249 = vector.load %arg9[%c0_106, %c2_107, %c0_108, %c0_109] : memref<1x4x8x8xf32, #tpu.memory_space<vmem>>, vector<1x1x8x8xf32>
    %250 = vector.shape_cast %249 : vector<1x1x8x8xf32> to vector<8x8xf32>
    %cst_110 = arith.constant dense<0.000000e+00> : vector<8x512xf32>
    %251 = tpu.matmul %250, %248, %cst_110 {dimension_numbers = #tpu.dot_dimension_numbers<[1], [0], [0], [1], [0, 0, 1, 1], [], []>} : vector<8x8xf32>, vector<8x512xf32>, vector<8x512xf32> -> vector<8x512xf32>
    %252 = arith.addf %187, %251 : vector<8x512xf32>
    %c0_111 = arith.constant 0 : index
    %c2_112 = arith.constant 2 : index
    %c0_113 = arith.constant 0 : index
    %c0_114 = arith.constant 0 : index
    %253 = vector.load %arg5[%c0_111, %c2_112, %c0_113, %c0_114] : memref<1x3x16x40xf32, #tpu.memory_space<vmem>>, vector<1x1x16x40xf32>
    %254 = vector.shape_cast %253 : vector<1x1x16x40xf32> to vector<16x40xf32>
    %c0_115 = arith.constant 0 : index
    %c2_116 = arith.constant 2 : index
    %c0_117 = arith.constant 0 : index
    %c0_118 = arith.constant 0 : index
    %255 = vector.load %arg6[%c0_115, %c2_116, %c0_117, %c0_118] : memref<1x3x16x1xf32, #tpu.memory_space<vmem>>, vector<1x1x16x1xf32>
    %256 = vector.shape_cast %255 : vector<1x1x16x1xf32> to vector<16x1xf32>
    %cst_119 = arith.constant 0.000000e+00 : f32
    %257 = vector.broadcast %cst_119 : f32 to vector<8x16xf32>
    %258 = vector.extract_strided_slice %248 {offsets = [0, 0], sizes = [8, 496], strides = [1, 1]} : vector<8x512xf32> to vector<8x496xf32>
    %259 = tpu.concatenate %257, %258 in 1 : vector<8x16xf32>, vector<8x496xf32> -> vector<8x512xf32>
    %c-16_i32 = arith.constant -16 : i32
    %260 = vector.broadcast %c-16_i32 : i32 to vector<1x512xi32>
    %261 = arith.addi %16, %260 : vector<1x512xi32>
    %c0_i32_120 = arith.constant 0 : i32
    %262 = vector.broadcast %c0_i32_120 : i32 to vector<1x512xi32>
    %263 = arith.cmpi sge, %261, %262 : vector<1x512xi32>
    %c-16_i32_121 = arith.constant -16 : i32
    %264 = vector.broadcast %c-16_i32_121 : i32 to vector<1x512xi32>
    %265 = arith.addi %16, %264 : vector<1x512xi32>
    %c64_i32_122 = arith.constant 64 : i32
    %266 = vector.broadcast %c64_i32_122 : i32 to vector<1x512xi32>
    %267 = arith.cmpi slt, %265, %266 : vector<1x512xi32>
    %268 = arith.andi %263, %267 : vector<1x512xi1>
    %269 = arith.extui %268 : vector<1x512xi1> to vector<1x512xi32>
    %270 = arith.sitofp %269 : vector<1x512xi32> to vector<1x512xf32>
    %271 = vector.broadcast %270 : vector<1x512xf32> to vector<8x512xf32>
    %272 = arith.mulf %259, %271 : vector<8x512xf32>
    %cst_123 = arith.constant 0.000000e+00 : f32
    %273 = vector.broadcast %cst_123 : f32 to vector<8x8xf32>
    %274 = vector.extract_strided_slice %248 {offsets = [0, 0], sizes = [8, 504], strides = [1, 1]} : vector<8x512xf32> to vector<8x504xf32>
    %275 = tpu.concatenate %273, %274 in 1 : vector<8x8xf32>, vector<8x504xf32> -> vector<8x512xf32>
    %276 = vector.broadcast %205 : vector<1x512xf32> to vector<8x512xf32>
    %277 = arith.mulf %275, %276 : vector<8x512xf32>
    %278 = vector.extract_strided_slice %248 {offsets = [0, 8], sizes = [8, 504], strides = [1, 1]} : vector<8x512xf32> to vector<8x504xf32>
    %cst_124 = arith.constant 0.000000e+00 : f32
    %279 = vector.broadcast %cst_124 : f32 to vector<8x8xf32>
    %280 = tpu.concatenate %278, %279 in 1 : vector<8x504xf32>, vector<8x8xf32> -> vector<8x512xf32>
    %281 = vector.broadcast %231 : vector<1x512xf32> to vector<8x512xf32>
    %282 = arith.mulf %280, %281 : vector<8x512xf32>
    %283 = vector.extract_strided_slice %248 {offsets = [0, 16], sizes = [8, 496], strides = [1, 1]} : vector<8x512xf32> to vector<8x496xf32>
    %cst_125 = arith.constant 0.000000e+00 : f32
    %284 = vector.broadcast %cst_125 : f32 to vector<8x16xf32>
    %285 = tpu.concatenate %283, %284 in 1 : vector<8x496xf32>, vector<8x16xf32> -> vector<8x512xf32>
    %c16_i32 = arith.constant 16 : i32
    %286 = vector.broadcast %c16_i32 : i32 to vector<1x512xi32>
    %287 = arith.addi %16, %286 : vector<1x512xi32>
    %c0_i32_126 = arith.constant 0 : i32
    %288 = vector.broadcast %c0_i32_126 : i32 to vector<1x512xi32>
    %289 = arith.cmpi sge, %287, %288 : vector<1x512xi32>
    %c16_i32_127 = arith.constant 16 : i32
    %290 = vector.broadcast %c16_i32_127 : i32 to vector<1x512xi32>
    %291 = arith.addi %16, %290 : vector<1x512xi32>
    %c64_i32_128 = arith.constant 64 : i32
    %292 = vector.broadcast %c64_i32_128 : i32 to vector<1x512xi32>
    %293 = arith.cmpi slt, %291, %292 : vector<1x512xi32>
    %294 = arith.andi %289, %293 : vector<1x512xi1>
    %295 = arith.extui %294 : vector<1x512xi1> to vector<1x512xi32>
    %296 = arith.sitofp %295 : vector<1x512xi32> to vector<1x512xf32>
    %297 = vector.broadcast %296 : vector<1x512xf32> to vector<8x512xf32>
    %298 = arith.mulf %285, %297 : vector<8x512xf32>
    %299 = tpu.concatenate %272, %277, %248, %282, %298 in 0 : vector<8x512xf32>, vector<8x512xf32>, vector<8x512xf32>, vector<8x512xf32>, vector<8x512xf32> -> vector<40x512xf32>
    %cst_129 = arith.constant dense<0.000000e+00> : vector<16x512xf32>
    %300 = tpu.matmul %254, %299, %cst_129 {dimension_numbers = #tpu.dot_dimension_numbers<[1], [0], [0], [1], [0, 0, 1, 1], [], []>} : vector<16x40xf32>, vector<40x512xf32>, vector<16x512xf32> -> vector<16x512xf32>
    %301 = vector.broadcast %256 : vector<16x1xf32> to vector<16x512xf32>
    %302 = arith.addf %300, %301 : vector<16x512xf32>
    %cst_130 = arith.constant 0.000000e+00 : f32
    %303 = vector.broadcast %cst_130 : f32 to vector<16x512xf32>
    %304 = arith.maximumf %302, %303 : vector<16x512xf32>
    %c0_131 = arith.constant 0 : index
    %c3 = arith.constant 3 : index
    %c0_132 = arith.constant 0 : index
    %c0_133 = arith.constant 0 : index
    %305 = vector.load %arg7[%c0_131, %c3, %c0_132, %c0_133] : memref<1x4x8x16xf32, #tpu.memory_space<vmem>>, vector<1x1x8x16xf32>
    %306 = vector.shape_cast %305 : vector<1x1x8x16xf32> to vector<8x16xf32>
    %cst_134 = arith.constant dense<0.000000e+00> : vector<8x512xf32>
    %307 = tpu.matmul %306, %304, %cst_134 {dimension_numbers = #tpu.dot_dimension_numbers<[1], [0], [0], [1], [0, 0, 1, 1], [], []>} : vector<8x16xf32>, vector<16x512xf32>, vector<8x512xf32> -> vector<8x512xf32>
    %c0_135 = arith.constant 0 : index
    %c3_136 = arith.constant 3 : index
    %c0_137 = arith.constant 0 : index
    %c0_138 = arith.constant 0 : index
    %308 = vector.load %arg8[%c0_135, %c3_136, %c0_137, %c0_138] : memref<1x4x8x1xf32, #tpu.memory_space<vmem>>, vector<1x1x8x1xf32>
    %309 = vector.shape_cast %308 : vector<1x1x8x1xf32> to vector<8x1xf32>
    %310 = vector.broadcast %309 : vector<8x1xf32> to vector<8x512xf32>
    %311 = arith.addf %307, %310 : vector<8x512xf32>
    %cst_139 = arith.constant 0.000000e+00 : f32
    %312 = vector.broadcast %cst_139 : f32 to vector<8x512xf32>
    %313 = arith.maximumf %311, %312 : vector<8x512xf32>
    %c0_140 = arith.constant 0 : index
    %c3_141 = arith.constant 3 : index
    %c0_142 = arith.constant 0 : index
    %c0_143 = arith.constant 0 : index
    %314 = vector.load %arg9[%c0_140, %c3_141, %c0_142, %c0_143] : memref<1x4x8x8xf32, #tpu.memory_space<vmem>>, vector<1x1x8x8xf32>
    %315 = vector.shape_cast %314 : vector<1x1x8x8xf32> to vector<8x8xf32>
    %cst_144 = arith.constant dense<0.000000e+00> : vector<8x512xf32>
    %316 = tpu.matmul %315, %313, %cst_144 {dimension_numbers = #tpu.dot_dimension_numbers<[1], [0], [0], [1], [0, 0, 1, 1], [], []>} : vector<8x8xf32>, vector<8x512xf32>, vector<8x512xf32> -> vector<8x512xf32>
    %317 = arith.addf %252, %316 : vector<8x512xf32>
    %c0_145 = arith.constant 0 : index
    %c0_146 = arith.constant 0 : index
    %c0_147 = arith.constant 0 : index
    %318 = vector.load %arg10[%c0_145, %c0_146, %c0_147] : memref<1x8x1xf32, #tpu.memory_space<vmem>>, vector<1x8x1xf32>
    %319 = vector.shape_cast %318 : vector<1x8x1xf32> to vector<8x1xf32>
    %320 = vector.broadcast %319 : vector<8x1xf32> to vector<8x512xf32>
    %321 = arith.addf %317, %320 : vector<8x512xf32>
    %322 = vector.extract_strided_slice %321 {offsets = [0, 1], sizes = [8, 511], strides = [1, 1]} : vector<8x512xf32> to vector<8x511xf32>
    %cst_148 = arith.constant 0.000000e+00 : f32
    %323 = vector.broadcast %cst_148 : f32 to vector<8x1xf32>
    %324 = tpu.concatenate %322, %323 in 1 : vector<8x511xf32>, vector<8x1xf32> -> vector<8x512xf32>
    %cst_149 = arith.constant 0.000000e+00 : f32
    %325 = vector.broadcast %cst_149 : f32 to vector<8x1xf32>
    %326 = vector.extract_strided_slice %321 {offsets = [0, 0], sizes = [8, 511], strides = [1, 1]} : vector<8x512xf32> to vector<8x511xf32>
    %327 = tpu.concatenate %325, %326 in 1 : vector<8x1xf32>, vector<8x511xf32> -> vector<8x512xf32>
    %c2_i32_150 = arith.constant 2 : i32
    %c0_i32_151 = arith.constant 0 : i32
    %328 = arith.cmpi eq, %c2_i32_150, %c0_i32_151 : i32
    %c1_i32_152 = arith.constant 1 : i32
    %329 = arith.select %328, %c1_i32_152, %c2_i32_150 : i32
    %330 = vector.broadcast %329 : i32 to vector<1x512xi32>
    %331 = arith.remsi %16, %330 : vector<1x512xi32>
    %c0_i32_153 = arith.constant 0 : i32
    %332 = vector.broadcast %c0_i32_153 : i32 to vector<1x512xi32>
    %333 = arith.cmpi ne, %331, %332 : vector<1x512xi32>
    %c0_i32_154 = arith.constant 0 : i32
    %334 = vector.broadcast %c0_i32_154 : i32 to vector<1x512xi32>
    %335 = arith.cmpi slt, %331, %334 : vector<1x512xi32>
    %c0_i32_155 = arith.constant 0 : i32
    %336 = arith.cmpi slt, %329, %c0_i32_155 : i32
    %337 = vector.broadcast %336 : i1 to vector<1x512xi1>
    %338 = vector.broadcast %337 : vector<1x512xi1> to vector<1x512xi1>
    %339 = arith.xori %335, %338 : vector<1x512xi1>
    %340 = arith.andi %339, %333 : vector<1x512xi1>
    %341 = vector.broadcast %329 : i32 to vector<1x512xi32>
    %342 = arith.addi %331, %341 : vector<1x512xi32>
    %343 = arith.select %340, %342, %331 : vector<1x512xi1>, vector<1x512xi32>
    %c0_i32_156 = arith.constant 0 : i32
    %344 = vector.broadcast %c0_i32_156 : i32 to vector<1x512xi32>
    %345 = arith.cmpi eq, %343, %344 : vector<1x512xi32>
    %346 = arith.extui %345 : vector<1x512xi1> to vector<1x512xi32>
    %347 = arith.sitofp %346 : vector<1x512xi32> to vector<1x512xf32>
    %348 = vector.broadcast %347 : vector<1x512xf32> to vector<8x512xf32>
    %349 = arith.mulf %324, %348 : vector<8x512xf32>
    %350 = arith.addf %321, %349 : vector<8x512xf32>
    %cst_157 = arith.constant 1.000000e+00 : f32
    %351 = vector.broadcast %cst_157 : f32 to vector<1x512xf32>
    %352 = arith.subf %351, %347 : vector<1x512xf32>
    %353 = vector.broadcast %352 : vector<1x512xf32> to vector<8x512xf32>
    %354 = arith.mulf %327, %353 : vector<8x512xf32>
    %355 = arith.addf %350, %354 : vector<8x512xf32>
    %cst_158 = arith.constant 5.000000e-01 : f32
    %356 = vector.broadcast %cst_158 : f32 to vector<8x512xf32>
    %357 = arith.mulf %356, %355 : vector<8x512xf32>
    %c0_159 = arith.constant 0 : index
    %c0_160 = arith.constant 0 : index
    %c0_161 = arith.constant 0 : index
    %358 = vector.load %arg11[%c0_159, %c0_160, %c0_161] : memref<1x16x40xf32, #tpu.memory_space<vmem>>, vector<1x16x40xf32>
    %359 = vector.shape_cast %358 : vector<1x16x40xf32> to vector<16x40xf32>
    %c0_162 = arith.constant 0 : index
    %c0_163 = arith.constant 0 : index
    %c0_164 = arith.constant 0 : index
    %360 = vector.load %arg12[%c0_162, %c0_163, %c0_164] : memref<1x16x1xf32, #tpu.memory_space<vmem>>, vector<1x16x1xf32>
    %361 = vector.shape_cast %360 : vector<1x16x1xf32> to vector<16x1xf32>
    %cst_165 = arith.constant 0.000000e+00 : f32
    %362 = vector.broadcast %cst_165 : f32 to vector<8x16xf32>
    %363 = vector.extract_strided_slice %357 {offsets = [0, 0], sizes = [8, 496], strides = [1, 1]} : vector<8x512xf32> to vector<8x496xf32>
    %364 = tpu.concatenate %362, %363 in 1 : vector<8x16xf32>, vector<8x496xf32> -> vector<8x512xf32>
    %365 = vector.broadcast %270 : vector<1x512xf32> to vector<8x512xf32>
    %366 = arith.mulf %364, %365 : vector<8x512xf32>
    %cst_166 = arith.constant 0.000000e+00 : f32
    %367 = vector.broadcast %cst_166 : f32 to vector<8x8xf32>
    %368 = vector.extract_strided_slice %357 {offsets = [0, 0], sizes = [8, 504], strides = [1, 1]} : vector<8x512xf32> to vector<8x504xf32>
    %369 = tpu.concatenate %367, %368 in 1 : vector<8x8xf32>, vector<8x504xf32> -> vector<8x512xf32>
    %370 = vector.broadcast %205 : vector<1x512xf32> to vector<8x512xf32>
    %371 = arith.mulf %369, %370 : vector<8x512xf32>
    %372 = vector.extract_strided_slice %357 {offsets = [0, 8], sizes = [8, 504], strides = [1, 1]} : vector<8x512xf32> to vector<8x504xf32>
    %cst_167 = arith.constant 0.000000e+00 : f32
    %373 = vector.broadcast %cst_167 : f32 to vector<8x8xf32>
    %374 = tpu.concatenate %372, %373 in 1 : vector<8x504xf32>, vector<8x8xf32> -> vector<8x512xf32>
    %375 = vector.broadcast %231 : vector<1x512xf32> to vector<8x512xf32>
    %376 = arith.mulf %374, %375 : vector<8x512xf32>
    %377 = vector.extract_strided_slice %357 {offsets = [0, 16], sizes = [8, 496], strides = [1, 1]} : vector<8x512xf32> to vector<8x496xf32>
    %cst_168 = arith.constant 0.000000e+00 : f32
    %378 = vector.broadcast %cst_168 : f32 to vector<8x16xf32>
    %379 = tpu.concatenate %377, %378 in 1 : vector<8x496xf32>, vector<8x16xf32> -> vector<8x512xf32>
    %380 = vector.broadcast %296 : vector<1x512xf32> to vector<8x512xf32>
    %381 = arith.mulf %379, %380 : vector<8x512xf32>
    %382 = tpu.concatenate %366, %371, %357, %376, %381 in 0 : vector<8x512xf32>, vector<8x512xf32>, vector<8x512xf32>, vector<8x512xf32>, vector<8x512xf32> -> vector<40x512xf32>
    %cst_169 = arith.constant dense<0.000000e+00> : vector<16x512xf32>
    %383 = tpu.matmul %359, %382, %cst_169 {dimension_numbers = #tpu.dot_dimension_numbers<[1], [0], [0], [1], [0, 0, 1, 1], [], []>} : vector<16x40xf32>, vector<40x512xf32>, vector<16x512xf32> -> vector<16x512xf32>
    %384 = vector.broadcast %361 : vector<16x1xf32> to vector<16x512xf32>
    %385 = arith.addf %383, %384 : vector<16x512xf32>
    %cst_170 = arith.constant 0.000000e+00 : f32
    %386 = vector.broadcast %cst_170 : f32 to vector<16x512xf32>
    %387 = arith.maximumf %385, %386 : vector<16x512xf32>
    %c0_171 = arith.constant 0 : index
    %c0_172 = arith.constant 0 : index
    %c0_173 = arith.constant 0 : index
    %c0_174 = arith.constant 0 : index
    %388 = vector.load %arg15[%c0_171, %c0_172, %c0_173, %c0_174] : memref<1x4x8x16xf32, #tpu.memory_space<vmem>>, vector<1x1x8x16xf32>
    %389 = vector.shape_cast %388 : vector<1x1x8x16xf32> to vector<8x16xf32>
    %cst_175 = arith.constant dense<0.000000e+00> : vector<8x512xf32>
    %390 = tpu.matmul %389, %387, %cst_175 {dimension_numbers = #tpu.dot_dimension_numbers<[1], [0], [0], [1], [0, 0, 1, 1], [], []>} : vector<8x16xf32>, vector<16x512xf32>, vector<8x512xf32> -> vector<8x512xf32>
    %c0_176 = arith.constant 0 : index
    %c0_177 = arith.constant 0 : index
    %c0_178 = arith.constant 0 : index
    %c0_179 = arith.constant 0 : index
    %391 = vector.load %arg16[%c0_176, %c0_177, %c0_178, %c0_179] : memref<1x4x8x1xf32, #tpu.memory_space<vmem>>, vector<1x1x8x1xf32>
    %392 = vector.shape_cast %391 : vector<1x1x8x1xf32> to vector<8x1xf32>
    %393 = vector.broadcast %392 : vector<8x1xf32> to vector<8x512xf32>
    %394 = arith.addf %390, %393 : vector<8x512xf32>
    %cst_180 = arith.constant 0.000000e+00 : f32
    %395 = vector.broadcast %cst_180 : f32 to vector<8x512xf32>
    %396 = arith.maximumf %394, %395 : vector<8x512xf32>
    %c0_181 = arith.constant 0 : index
    %c0_182 = arith.constant 0 : index
    %c0_183 = arith.constant 0 : index
    %c0_184 = arith.constant 0 : index
    %397 = vector.load %arg17[%c0_181, %c0_182, %c0_183, %c0_184] : memref<1x4x1x8xf32, #tpu.memory_space<vmem>>, vector<1x1x1x8xf32>
    %398 = vector.shape_cast %397 : vector<1x1x1x8xf32> to vector<1x8xf32>
    %cst_185 = arith.constant dense<0.000000e+00> : vector<1x512xf32>
    %399 = tpu.matmul %398, %396, %cst_185 {dimension_numbers = #tpu.dot_dimension_numbers<[1], [0], [0], [1], [0, 0, 1, 1], [], []>} : vector<1x8xf32>, vector<8x512xf32>, vector<1x512xf32> -> vector<1x512xf32>
    %c0_186 = arith.constant 0 : index
    %c0_187 = arith.constant 0 : index
    %c0_188 = arith.constant 0 : index
    %c0_189 = arith.constant 0 : index
    %400 = vector.load %arg13[%c0_186, %c0_187, %c0_188, %c0_189] : memref<1x3x16x40xf32, #tpu.memory_space<vmem>>, vector<1x1x16x40xf32>
    %401 = vector.shape_cast %400 : vector<1x1x16x40xf32> to vector<16x40xf32>
    %c0_190 = arith.constant 0 : index
    %c0_191 = arith.constant 0 : index
    %c0_192 = arith.constant 0 : index
    %c0_193 = arith.constant 0 : index
    %402 = vector.load %arg14[%c0_190, %c0_191, %c0_192, %c0_193] : memref<1x3x16x1xf32, #tpu.memory_space<vmem>>, vector<1x1x16x1xf32>
    %403 = vector.shape_cast %402 : vector<1x1x16x1xf32> to vector<16x1xf32>
    %cst_194 = arith.constant 0.000000e+00 : f32
    %404 = vector.broadcast %cst_194 : f32 to vector<8x8xf32>
    %405 = vector.extract_strided_slice %396 {offsets = [0, 0], sizes = [8, 504], strides = [1, 1]} : vector<8x512xf32> to vector<8x504xf32>
    %406 = tpu.concatenate %404, %405 in 1 : vector<8x8xf32>, vector<8x504xf32> -> vector<8x512xf32>
    %407 = vector.broadcast %205 : vector<1x512xf32> to vector<8x512xf32>
    %408 = arith.mulf %406, %407 : vector<8x512xf32>
    %cst_195 = arith.constant 0.000000e+00 : f32
    %409 = vector.broadcast %cst_195 : f32 to vector<8x4xf32>
    %410 = vector.extract_strided_slice %396 {offsets = [0, 0], sizes = [8, 508], strides = [1, 1]} : vector<8x512xf32> to vector<8x508xf32>
    %411 = tpu.concatenate %409, %410 in 1 : vector<8x4xf32>, vector<8x508xf32> -> vector<8x512xf32>
    %412 = vector.broadcast %140 : vector<1x512xf32> to vector<8x512xf32>
    %413 = arith.mulf %411, %412 : vector<8x512xf32>
    %414 = vector.extract_strided_slice %396 {offsets = [0, 4], sizes = [8, 508], strides = [1, 1]} : vector<8x512xf32> to vector<8x508xf32>
    %cst_196 = arith.constant 0.000000e+00 : f32
    %415 = vector.broadcast %cst_196 : f32 to vector<8x4xf32>
    %416 = tpu.concatenate %414, %415 in 1 : vector<8x508xf32>, vector<8x4xf32> -> vector<8x512xf32>
    %417 = vector.broadcast %166 : vector<1x512xf32> to vector<8x512xf32>
    %418 = arith.mulf %416, %417 : vector<8x512xf32>
    %419 = vector.extract_strided_slice %396 {offsets = [0, 8], sizes = [8, 504], strides = [1, 1]} : vector<8x512xf32> to vector<8x504xf32>
    %cst_197 = arith.constant 0.000000e+00 : f32
    %420 = vector.broadcast %cst_197 : f32 to vector<8x8xf32>
    %421 = tpu.concatenate %419, %420 in 1 : vector<8x504xf32>, vector<8x8xf32> -> vector<8x512xf32>
    %422 = vector.broadcast %231 : vector<1x512xf32> to vector<8x512xf32>
    %423 = arith.mulf %421, %422 : vector<8x512xf32>
    %424 = tpu.concatenate %408, %413, %396, %418, %423 in 0 : vector<8x512xf32>, vector<8x512xf32>, vector<8x512xf32>, vector<8x512xf32>, vector<8x512xf32> -> vector<40x512xf32>
    %cst_198 = arith.constant dense<0.000000e+00> : vector<16x512xf32>
    %425 = tpu.matmul %401, %424, %cst_198 {dimension_numbers = #tpu.dot_dimension_numbers<[1], [0], [0], [1], [0, 0, 1, 1], [], []>} : vector<16x40xf32>, vector<40x512xf32>, vector<16x512xf32> -> vector<16x512xf32>
    %426 = vector.broadcast %403 : vector<16x1xf32> to vector<16x512xf32>
    %427 = arith.addf %425, %426 : vector<16x512xf32>
    %cst_199 = arith.constant 0.000000e+00 : f32
    %428 = vector.broadcast %cst_199 : f32 to vector<16x512xf32>
    %429 = arith.maximumf %427, %428 : vector<16x512xf32>
    %c0_200 = arith.constant 0 : index
    %c1_201 = arith.constant 1 : index
    %c0_202 = arith.constant 0 : index
    %c0_203 = arith.constant 0 : index
    %430 = vector.load %arg15[%c0_200, %c1_201, %c0_202, %c0_203] : memref<1x4x8x16xf32, #tpu.memory_space<vmem>>, vector<1x1x8x16xf32>
    %431 = vector.shape_cast %430 : vector<1x1x8x16xf32> to vector<8x16xf32>
    %cst_204 = arith.constant dense<0.000000e+00> : vector<8x512xf32>
    %432 = tpu.matmul %431, %429, %cst_204 {dimension_numbers = #tpu.dot_dimension_numbers<[1], [0], [0], [1], [0, 0, 1, 1], [], []>} : vector<8x16xf32>, vector<16x512xf32>, vector<8x512xf32> -> vector<8x512xf32>
    %c0_205 = arith.constant 0 : index
    %c1_206 = arith.constant 1 : index
    %c0_207 = arith.constant 0 : index
    %c0_208 = arith.constant 0 : index
    %433 = vector.load %arg16[%c0_205, %c1_206, %c0_207, %c0_208] : memref<1x4x8x1xf32, #tpu.memory_space<vmem>>, vector<1x1x8x1xf32>
    %434 = vector.shape_cast %433 : vector<1x1x8x1xf32> to vector<8x1xf32>
    %435 = vector.broadcast %434 : vector<8x1xf32> to vector<8x512xf32>
    %436 = arith.addf %432, %435 : vector<8x512xf32>
    %cst_209 = arith.constant 0.000000e+00 : f32
    %437 = vector.broadcast %cst_209 : f32 to vector<8x512xf32>
    %438 = arith.maximumf %436, %437 : vector<8x512xf32>
    %c0_210 = arith.constant 0 : index
    %c1_211 = arith.constant 1 : index
    %c0_212 = arith.constant 0 : index
    %c0_213 = arith.constant 0 : index
    %439 = vector.load %arg17[%c0_210, %c1_211, %c0_212, %c0_213] : memref<1x4x1x8xf32, #tpu.memory_space<vmem>>, vector<1x1x1x8xf32>
    %440 = vector.shape_cast %439 : vector<1x1x1x8xf32> to vector<1x8xf32>
    %cst_214 = arith.constant dense<0.000000e+00> : vector<1x512xf32>
    %441 = tpu.matmul %440, %438, %cst_214 {dimension_numbers = #tpu.dot_dimension_numbers<[1], [0], [0], [1], [0, 0, 1, 1], [], []>} : vector<1x8xf32>, vector<8x512xf32>, vector<1x512xf32> -> vector<1x512xf32>
    %442 = arith.addf %399, %441 : vector<1x512xf32>
    %c0_215 = arith.constant 0 : index
    %c1_216 = arith.constant 1 : index
    %c0_217 = arith.constant 0 : index
    %c0_218 = arith.constant 0 : index
    %443 = vector.load %arg13[%c0_215, %c1_216, %c0_217, %c0_218] : memref<1x3x16x40xf32, #tpu.memory_space<vmem>>, vector<1x1x16x40xf32>
    %444 = vector.shape_cast %443 : vector<1x1x16x40xf32> to vector<16x40xf32>
    %c0_219 = arith.constant 0 : index
    %c1_220 = arith.constant 1 : index
    %c0_221 = arith.constant 0 : index
    %c0_222 = arith.constant 0 : index
    %445 = vector.load %arg14[%c0_219, %c1_220, %c0_221, %c0_222] : memref<1x3x16x1xf32, #tpu.memory_space<vmem>>, vector<1x1x16x1xf32>
    %446 = vector.shape_cast %445 : vector<1x1x16x1xf32> to vector<16x1xf32>
    %cst_223 = arith.constant 0.000000e+00 : f32
    %447 = vector.broadcast %cst_223 : f32 to vector<8x4xf32>
    %448 = vector.extract_strided_slice %438 {offsets = [0, 0], sizes = [8, 508], strides = [1, 1]} : vector<8x512xf32> to vector<8x508xf32>
    %449 = tpu.concatenate %447, %448 in 1 : vector<8x4xf32>, vector<8x508xf32> -> vector<8x512xf32>
    %450 = vector.broadcast %140 : vector<1x512xf32> to vector<8x512xf32>
    %451 = arith.mulf %449, %450 : vector<8x512xf32>
    %cst_224 = arith.constant 0.000000e+00 : f32
    %452 = vector.broadcast %cst_224 : f32 to vector<8x2xf32>
    %453 = vector.extract_strided_slice %438 {offsets = [0, 0], sizes = [8, 510], strides = [1, 1]} : vector<8x512xf32> to vector<8x510xf32>
    %454 = tpu.concatenate %452, %453 in 1 : vector<8x2xf32>, vector<8x510xf32> -> vector<8x512xf32>
    %455 = vector.broadcast %37 : vector<1x512xf32> to vector<8x512xf32>
    %456 = arith.mulf %454, %455 : vector<8x512xf32>
    %457 = vector.extract_strided_slice %438 {offsets = [0, 2], sizes = [8, 510], strides = [1, 1]} : vector<8x512xf32> to vector<8x510xf32>
    %cst_225 = arith.constant 0.000000e+00 : f32
    %458 = vector.broadcast %cst_225 : f32 to vector<8x2xf32>
    %459 = tpu.concatenate %457, %458 in 1 : vector<8x510xf32>, vector<8x2xf32> -> vector<8x512xf32>
    %460 = vector.broadcast %101 : vector<1x512xf32> to vector<8x512xf32>
    %461 = arith.mulf %459, %460 : vector<8x512xf32>
    %462 = vector.extract_strided_slice %438 {offsets = [0, 4], sizes = [8, 508], strides = [1, 1]} : vector<8x512xf32> to vector<8x508xf32>
    %cst_226 = arith.constant 0.000000e+00 : f32
    %463 = vector.broadcast %cst_226 : f32 to vector<8x4xf32>
    %464 = tpu.concatenate %462, %463 in 1 : vector<8x508xf32>, vector<8x4xf32> -> vector<8x512xf32>
    %465 = vector.broadcast %166 : vector<1x512xf32> to vector<8x512xf32>
    %466 = arith.mulf %464, %465 : vector<8x512xf32>
    %467 = tpu.concatenate %451, %456, %438, %461, %466 in 0 : vector<8x512xf32>, vector<8x512xf32>, vector<8x512xf32>, vector<8x512xf32>, vector<8x512xf32> -> vector<40x512xf32>
    %cst_227 = arith.constant dense<0.000000e+00> : vector<16x512xf32>
    %468 = tpu.matmul %444, %467, %cst_227 {dimension_numbers = #tpu.dot_dimension_numbers<[1], [0], [0], [1], [0, 0, 1, 1], [], []>} : vector<16x40xf32>, vector<40x512xf32>, vector<16x512xf32> -> vector<16x512xf32>
    %469 = vector.broadcast %446 : vector<16x1xf32> to vector<16x512xf32>
    %470 = arith.addf %468, %469 : vector<16x512xf32>
    %cst_228 = arith.constant 0.000000e+00 : f32
    %471 = vector.broadcast %cst_228 : f32 to vector<16x512xf32>
    %472 = arith.maximumf %470, %471 : vector<16x512xf32>
    %c0_229 = arith.constant 0 : index
    %c2_230 = arith.constant 2 : index
    %c0_231 = arith.constant 0 : index
    %c0_232 = arith.constant 0 : index
    %473 = vector.load %arg15[%c0_229, %c2_230, %c0_231, %c0_232] : memref<1x4x8x16xf32, #tpu.memory_space<vmem>>, vector<1x1x8x16xf32>
    %474 = vector.shape_cast %473 : vector<1x1x8x16xf32> to vector<8x16xf32>
    %cst_233 = arith.constant dense<0.000000e+00> : vector<8x512xf32>
    %475 = tpu.matmul %474, %472, %cst_233 {dimension_numbers = #tpu.dot_dimension_numbers<[1], [0], [0], [1], [0, 0, 1, 1], [], []>} : vector<8x16xf32>, vector<16x512xf32>, vector<8x512xf32> -> vector<8x512xf32>
    %c0_234 = arith.constant 0 : index
    %c2_235 = arith.constant 2 : index
    %c0_236 = arith.constant 0 : index
    %c0_237 = arith.constant 0 : index
    %476 = vector.load %arg16[%c0_234, %c2_235, %c0_236, %c0_237] : memref<1x4x8x1xf32, #tpu.memory_space<vmem>>, vector<1x1x8x1xf32>
    %477 = vector.shape_cast %476 : vector<1x1x8x1xf32> to vector<8x1xf32>
    %478 = vector.broadcast %477 : vector<8x1xf32> to vector<8x512xf32>
    %479 = arith.addf %475, %478 : vector<8x512xf32>
    %cst_238 = arith.constant 0.000000e+00 : f32
    %480 = vector.broadcast %cst_238 : f32 to vector<8x512xf32>
    %481 = arith.maximumf %479, %480 : vector<8x512xf32>
    %c0_239 = arith.constant 0 : index
    %c2_240 = arith.constant 2 : index
    %c0_241 = arith.constant 0 : index
    %c0_242 = arith.constant 0 : index
    %482 = vector.load %arg17[%c0_239, %c2_240, %c0_241, %c0_242] : memref<1x4x1x8xf32, #tpu.memory_space<vmem>>, vector<1x1x1x8xf32>
    %483 = vector.shape_cast %482 : vector<1x1x1x8xf32> to vector<1x8xf32>
    %cst_243 = arith.constant dense<0.000000e+00> : vector<1x512xf32>
    %484 = tpu.matmul %483, %481, %cst_243 {dimension_numbers = #tpu.dot_dimension_numbers<[1], [0], [0], [1], [0, 0, 1, 1], [], []>} : vector<1x8xf32>, vector<8x512xf32>, vector<1x512xf32> -> vector<1x512xf32>
    %485 = arith.addf %442, %484 : vector<1x512xf32>
    %c0_244 = arith.constant 0 : index
    %c2_245 = arith.constant 2 : index
    %c0_246 = arith.constant 0 : index
    %c0_247 = arith.constant 0 : index
    %486 = vector.load %arg13[%c0_244, %c2_245, %c0_246, %c0_247] : memref<1x3x16x40xf32, #tpu.memory_space<vmem>>, vector<1x1x16x40xf32>
    %487 = vector.shape_cast %486 : vector<1x1x16x40xf32> to vector<16x40xf32>
    %c0_248 = arith.constant 0 : index
    %c2_249 = arith.constant 2 : index
    %c0_250 = arith.constant 0 : index
    %c0_251 = arith.constant 0 : index
    %488 = vector.load %arg14[%c0_248, %c2_249, %c0_250, %c0_251] : memref<1x3x16x1xf32, #tpu.memory_space<vmem>>, vector<1x1x16x1xf32>
    %489 = vector.shape_cast %488 : vector<1x1x16x1xf32> to vector<16x1xf32>
    %cst_252 = arith.constant 0.000000e+00 : f32
    %490 = vector.broadcast %cst_252 : f32 to vector<8x2xf32>
    %491 = vector.extract_strided_slice %481 {offsets = [0, 0], sizes = [8, 510], strides = [1, 1]} : vector<8x512xf32> to vector<8x510xf32>
    %492 = tpu.concatenate %490, %491 in 1 : vector<8x2xf32>, vector<8x510xf32> -> vector<8x512xf32>
    %493 = vector.broadcast %37 : vector<1x512xf32> to vector<8x512xf32>
    %494 = arith.mulf %492, %493 : vector<8x512xf32>
    %cst_253 = arith.constant 0.000000e+00 : f32
    %495 = vector.broadcast %cst_253 : f32 to vector<8x1xf32>
    %496 = vector.extract_strided_slice %481 {offsets = [0, 0], sizes = [8, 511], strides = [1, 1]} : vector<8x512xf32> to vector<8x511xf32>
    %497 = tpu.concatenate %495, %496 in 1 : vector<8x1xf32>, vector<8x511xf32> -> vector<8x512xf32>
    %498 = vector.broadcast %56 : vector<1x512xf32> to vector<8x512xf32>
    %499 = arith.mulf %497, %498 : vector<8x512xf32>
    %500 = vector.extract_strided_slice %481 {offsets = [0, 1], sizes = [8, 511], strides = [1, 1]} : vector<8x512xf32> to vector<8x511xf32>
    %cst_254 = arith.constant 0.000000e+00 : f32
    %501 = vector.broadcast %cst_254 : f32 to vector<8x1xf32>
    %502 = tpu.concatenate %500, %501 in 1 : vector<8x511xf32>, vector<8x1xf32> -> vector<8x512xf32>
    %503 = vector.broadcast %81 : vector<1x512xf32> to vector<8x512xf32>
    %504 = arith.mulf %502, %503 : vector<8x512xf32>
    %505 = vector.extract_strided_slice %481 {offsets = [0, 2], sizes = [8, 510], strides = [1, 1]} : vector<8x512xf32> to vector<8x510xf32>
    %cst_255 = arith.constant 0.000000e+00 : f32
    %506 = vector.broadcast %cst_255 : f32 to vector<8x2xf32>
    %507 = tpu.concatenate %505, %506 in 1 : vector<8x510xf32>, vector<8x2xf32> -> vector<8x512xf32>
    %508 = vector.broadcast %101 : vector<1x512xf32> to vector<8x512xf32>
    %509 = arith.mulf %507, %508 : vector<8x512xf32>
    %510 = tpu.concatenate %494, %499, %481, %504, %509 in 0 : vector<8x512xf32>, vector<8x512xf32>, vector<8x512xf32>, vector<8x512xf32>, vector<8x512xf32> -> vector<40x512xf32>
    %cst_256 = arith.constant dense<0.000000e+00> : vector<16x512xf32>
    %511 = tpu.matmul %487, %510, %cst_256 {dimension_numbers = #tpu.dot_dimension_numbers<[1], [0], [0], [1], [0, 0, 1, 1], [], []>} : vector<16x40xf32>, vector<40x512xf32>, vector<16x512xf32> -> vector<16x512xf32>
    %512 = vector.broadcast %489 : vector<16x1xf32> to vector<16x512xf32>
    %513 = arith.addf %511, %512 : vector<16x512xf32>
    %cst_257 = arith.constant 0.000000e+00 : f32
    %514 = vector.broadcast %cst_257 : f32 to vector<16x512xf32>
    %515 = arith.maximumf %513, %514 : vector<16x512xf32>
    %c0_258 = arith.constant 0 : index
    %c3_259 = arith.constant 3 : index
    %c0_260 = arith.constant 0 : index
    %c0_261 = arith.constant 0 : index
    %516 = vector.load %arg15[%c0_258, %c3_259, %c0_260, %c0_261] : memref<1x4x8x16xf32, #tpu.memory_space<vmem>>, vector<1x1x8x16xf32>
    %517 = vector.shape_cast %516 : vector<1x1x8x16xf32> to vector<8x16xf32>
    %cst_262 = arith.constant dense<0.000000e+00> : vector<8x512xf32>
    %518 = tpu.matmul %517, %515, %cst_262 {dimension_numbers = #tpu.dot_dimension_numbers<[1], [0], [0], [1], [0, 0, 1, 1], [], []>} : vector<8x16xf32>, vector<16x512xf32>, vector<8x512xf32> -> vector<8x512xf32>
    %c0_263 = arith.constant 0 : index
    %c3_264 = arith.constant 3 : index
    %c0_265 = arith.constant 0 : index
    %c0_266 = arith.constant 0 : index
    %519 = vector.load %arg16[%c0_263, %c3_264, %c0_265, %c0_266] : memref<1x4x8x1xf32, #tpu.memory_space<vmem>>, vector<1x1x8x1xf32>
    %520 = vector.shape_cast %519 : vector<1x1x8x1xf32> to vector<8x1xf32>
    %521 = vector.broadcast %520 : vector<8x1xf32> to vector<8x512xf32>
    %522 = arith.addf %518, %521 : vector<8x512xf32>
    %cst_267 = arith.constant 0.000000e+00 : f32
    %523 = vector.broadcast %cst_267 : f32 to vector<8x512xf32>
    %524 = arith.maximumf %522, %523 : vector<8x512xf32>
    %c0_268 = arith.constant 0 : index
    %c3_269 = arith.constant 3 : index
    %c0_270 = arith.constant 0 : index
    %c0_271 = arith.constant 0 : index
    %525 = vector.load %arg17[%c0_268, %c3_269, %c0_270, %c0_271] : memref<1x4x1x8xf32, #tpu.memory_space<vmem>>, vector<1x1x1x8xf32>
    %526 = vector.shape_cast %525 : vector<1x1x1x8xf32> to vector<1x8xf32>
    %cst_272 = arith.constant dense<0.000000e+00> : vector<1x512xf32>
    %527 = tpu.matmul %526, %524, %cst_272 {dimension_numbers = #tpu.dot_dimension_numbers<[1], [0], [0], [1], [0, 0, 1, 1], [], []>} : vector<1x8xf32>, vector<8x512xf32>, vector<1x512xf32> -> vector<1x512xf32>
    %528 = arith.addf %485, %527 : vector<1x512xf32>
    %c0_273 = arith.constant 0 : index
    %c0_274 = arith.constant 0 : index
    %c0_275 = arith.constant 0 : index
    %529 = vector.load %arg18[%c0_273, %c0_274, %c0_275] : memref<1x1x1xf32, #tpu.memory_space<vmem>>, vector<1x1x1xf32>
    %530 = vector.shape_cast %529 : vector<1x1x1xf32> to vector<1x1xf32>
    %531 = vector.broadcast %530 : vector<1x1xf32> to vector<1x512xf32>
    %532 = arith.addf %528, %531 : vector<1x512xf32>
    %c0_276 = arith.constant 0 : index
    %c0_277 = arith.constant 0 : index
    %c0_278 = arith.constant 0 : index
    %533 = vector.load %arg19[%c0_276, %c0_277, %c0_278] : memref<1x1x512xf32, #tpu.memory_space<vmem>>, vector<1x1x512xf32>
    %534 = vector.shape_cast %533 : vector<1x1x512xf32> to vector<1x512xf32>
    %535 = vector.shape_cast %532 : vector<1x512xf32> to vector<1x1x512xf32>
    tpu.vector_store %arg19[%c0_276, %c0_277, %c0_278], %535 {strides = array<i32>} : memref<1x1x512xf32, #tpu.memory_space<vmem>>, vector<1x1x512xf32>,
    return
  }
  func.func @transform_0(%arg0: i32, %arg1: memref<2xi32, #tpu.memory_space<smem>>) -> (i32, i32, i32) {
    %c0_i32 = arith.constant 0 : i32
    %c0_i32_0 = arith.constant 0 : i32
    %c0_i32_1 = arith.constant 0 : i32
    return %arg0, %c0_i32, %c0_i32_0 : i32, i32, i32
  }
  func.func @transform_1(%arg0: i32, %arg1: memref<2xi32, #tpu.memory_space<smem>>) -> (i32, i32, i32) {
    %0 = arith.index_cast %arg0 : i32 to index
    %1 = memref.load %arg1[%0] : memref<2xi32, #tpu.memory_space<smem>>
    %c0_i32 = arith.constant 0 : i32
    %c0_i32_0 = arith.constant 0 : i32
    %c0_i32_1 = arith.constant 0 : i32
    return %1, %c0_i32, %c0_i32_0 : i32, i32, i32
  }
  func.func @transform_2(%arg0: i32, %arg1: memref<2xi32, #tpu.memory_space<smem>>) -> (i32, i32, i32) {
    %0 = arith.index_cast %arg0 : i32 to index
    %1 = memref.load %arg1[%0] : memref<2xi32, #tpu.memory_space<smem>>
    %c0_i32 = arith.constant 0 : i32
    %c0_i32_0 = arith.constant 0 : i32
    %c0_i32_1 = arith.constant 0 : i32
    return %1, %c0_i32, %c0_i32_0 : i32, i32, i32
  }
  func.func @transform_3(%arg0: i32, %arg1: memref<2xi32, #tpu.memory_space<smem>>) -> (i32, i32, i32, i32) {
    %0 = arith.index_cast %arg0 : i32 to index
    %1 = memref.load %arg1[%0] : memref<2xi32, #tpu.memory_space<smem>>
    %c0_i32 = arith.constant 0 : i32
    %c0_i32_0 = arith.constant 0 : i32
    %c0_i32_1 = arith.constant 0 : i32
    %c0_i32_2 = arith.constant 0 : i32
    return %1, %c0_i32, %c0_i32_0, %c0_i32_1 : i32, i32, i32, i32
  }
  func.func @transform_4(%arg0: i32, %arg1: memref<2xi32, #tpu.memory_space<smem>>) -> (i32, i32, i32, i32) {
    %0 = arith.index_cast %arg0 : i32 to index
    %1 = memref.load %arg1[%0] : memref<2xi32, #tpu.memory_space<smem>>
    %c0_i32 = arith.constant 0 : i32
    %c0_i32_0 = arith.constant 0 : i32
    %c0_i32_1 = arith.constant 0 : i32
    %c0_i32_2 = arith.constant 0 : i32
    return %1, %c0_i32, %c0_i32_0, %c0_i32_1 : i32, i32, i32, i32
  }
  func.func @transform_5(%arg0: i32, %arg1: memref<2xi32, #tpu.memory_space<smem>>) -> (i32, i32, i32, i32) {
    %0 = arith.index_cast %arg0 : i32 to index
    %1 = memref.load %arg1[%0] : memref<2xi32, #tpu.memory_space<smem>>
    %c0_i32 = arith.constant 0 : i32
    %c0_i32_0 = arith.constant 0 : i32
    %c0_i32_1 = arith.constant 0 : i32
    %c0_i32_2 = arith.constant 0 : i32
    return %1, %c0_i32, %c0_i32_0, %c0_i32_1 : i32, i32, i32, i32
  }
  func.func @transform_6(%arg0: i32, %arg1: memref<2xi32, #tpu.memory_space<smem>>) -> (i32, i32, i32, i32) {
    %0 = arith.index_cast %arg0 : i32 to index
    %1 = memref.load %arg1[%0] : memref<2xi32, #tpu.memory_space<smem>>
    %c0_i32 = arith.constant 0 : i32
    %c0_i32_0 = arith.constant 0 : i32
    %c0_i32_1 = arith.constant 0 : i32
    %c0_i32_2 = arith.constant 0 : i32
    return %1, %c0_i32, %c0_i32_0, %c0_i32_1 : i32, i32, i32, i32
  }
  func.func @transform_7(%arg0: i32, %arg1: memref<2xi32, #tpu.memory_space<smem>>) -> (i32, i32, i32, i32) {
    %0 = arith.index_cast %arg0 : i32 to index
    %1 = memref.load %arg1[%0] : memref<2xi32, #tpu.memory_space<smem>>
    %c0_i32 = arith.constant 0 : i32
    %c0_i32_0 = arith.constant 0 : i32
    %c0_i32_1 = arith.constant 0 : i32
    %c0_i32_2 = arith.constant 0 : i32
    return %1, %c0_i32, %c0_i32_0, %c0_i32_1 : i32, i32, i32, i32
  }
  func.func @transform_8(%arg0: i32, %arg1: memref<2xi32, #tpu.memory_space<smem>>) -> (i32, i32, i32) {
    %0 = arith.index_cast %arg0 : i32 to index
    %1 = memref.load %arg1[%0] : memref<2xi32, #tpu.memory_space<smem>>
    %c0_i32 = arith.constant 0 : i32
    %c0_i32_0 = arith.constant 0 : i32
    %c0_i32_1 = arith.constant 0 : i32
    return %1, %c0_i32, %c0_i32_0 : i32, i32, i32
  }
  func.func @transform_9(%arg0: i32, %arg1: memref<2xi32, #tpu.memory_space<smem>>) -> (i32, i32, i32) {
    %0 = arith.index_cast %arg0 : i32 to index
    %1 = memref.load %arg1[%0] : memref<2xi32, #tpu.memory_space<smem>>
    %c0_i32 = arith.constant 0 : i32
    %c0_i32_0 = arith.constant 0 : i32
    %c0_i32_1 = arith.constant 0 : i32
    return %1, %c0_i32, %c0_i32_0 : i32, i32, i32
  }
  func.func @transform_10(%arg0: i32, %arg1: memref<2xi32, #tpu.memory_space<smem>>) -> (i32, i32, i32) {
    %0 = arith.index_cast %arg0 : i32 to index
    %1 = memref.load %arg1[%0] : memref<2xi32, #tpu.memory_space<smem>>
    %c0_i32 = arith.constant 0 : i32
    %c0_i32_0 = arith.constant 0 : i32
    %c0_i32_1 = arith.constant 0 : i32
    return %1, %c0_i32, %c0_i32_0 : i32, i32, i32
  }
  func.func @transform_11(%arg0: i32, %arg1: memref<2xi32, #tpu.memory_space<smem>>) -> (i32, i32, i32, i32) {
    %0 = arith.index_cast %arg0 : i32 to index
    %1 = memref.load %arg1[%0] : memref<2xi32, #tpu.memory_space<smem>>
    %c0_i32 = arith.constant 0 : i32
    %c0_i32_0 = arith.constant 0 : i32
    %c0_i32_1 = arith.constant 0 : i32
    %c0_i32_2 = arith.constant 0 : i32
    return %1, %c0_i32, %c0_i32_0, %c0_i32_1 : i32, i32, i32, i32
  }
  func.func @transform_12(%arg0: i32, %arg1: memref<2xi32, #tpu.memory_space<smem>>) -> (i32, i32, i32, i32) {
    %0 = arith.index_cast %arg0 : i32 to index
    %1 = memref.load %arg1[%0] : memref<2xi32, #tpu.memory_space<smem>>
    %c0_i32 = arith.constant 0 : i32
    %c0_i32_0 = arith.constant 0 : i32
    %c0_i32_1 = arith.constant 0 : i32
    %c0_i32_2 = arith.constant 0 : i32
    return %1, %c0_i32, %c0_i32_0, %c0_i32_1 : i32, i32, i32, i32
  }
  func.func @transform_13(%arg0: i32, %arg1: memref<2xi32, #tpu.memory_space<smem>>) -> (i32, i32, i32, i32) {
    %0 = arith.index_cast %arg0 : i32 to index
    %1 = memref.load %arg1[%0] : memref<2xi32, #tpu.memory_space<smem>>
    %c0_i32 = arith.constant 0 : i32
    %c0_i32_0 = arith.constant 0 : i32
    %c0_i32_1 = arith.constant 0 : i32
    %c0_i32_2 = arith.constant 0 : i32
    return %1, %c0_i32, %c0_i32_0, %c0_i32_1 : i32, i32, i32, i32
  }
  func.func @transform_14(%arg0: i32, %arg1: memref<2xi32, #tpu.memory_space<smem>>) -> (i32, i32, i32, i32) {
    %0 = arith.index_cast %arg0 : i32 to index
    %1 = memref.load %arg1[%0] : memref<2xi32, #tpu.memory_space<smem>>
    %c0_i32 = arith.constant 0 : i32
    %c0_i32_0 = arith.constant 0 : i32
    %c0_i32_1 = arith.constant 0 : i32
    %c0_i32_2 = arith.constant 0 : i32
    return %1, %c0_i32, %c0_i32_0, %c0_i32_1 : i32, i32, i32, i32
  }
  func.func @transform_15(%arg0: i32, %arg1: memref<2xi32, #tpu.memory_space<smem>>) -> (i32, i32, i32, i32) {
    %0 = arith.index_cast %arg0 : i32 to index
    %1 = memref.load %arg1[%0] : memref<2xi32, #tpu.memory_space<smem>>
    %c0_i32 = arith.constant 0 : i32
    %c0_i32_0 = arith.constant 0 : i32
    %c0_i32_1 = arith.constant 0 : i32
    %c0_i32_2 = arith.constant 0 : i32
    return %1, %c0_i32, %c0_i32_0, %c0_i32_1 : i32, i32, i32, i32
  }
  func.func @transform_16(%arg0: i32, %arg1: memref<2xi32, #tpu.memory_space<smem>>) -> (i32, i32, i32) {
    %0 = arith.index_cast %arg0 : i32 to index
    %1 = memref.load %arg1[%0] : memref<2xi32, #tpu.memory_space<smem>>
    %c0_i32 = arith.constant 0 : i32
    %c0_i32_0 = arith.constant 0 : i32
    %c0_i32_1 = arith.constant 0 : i32
    return %1, %c0_i32, %c0_i32_0 : i32, i32, i32
  }
  func.func @transform_17(%arg0: i32, %arg1: memref<2xi32, #tpu.memory_space<smem>>) -> (i32, i32, i32) {
    %c0_i32 = arith.constant 0 : i32
    %c0_i32_0 = arith.constant 0 : i32
    %c0_i32_1 = arith.constant 0 : i32
    return %arg0, %c0_i32, %c0_i32_0 : i32, i32, i32
  }
}

</mosaic_0001>

<llo_original>
// kernel: _forward_blocks.1
$region0: #{_forward_blocks.1}
  #allocation0 [shape = 'u32[]', space=smem, size = 0x4, offset = 0x4, fixed_abs, tag = 'smem constant byte address 0x4 - core index']
  #allocation1 [shape = 'u32[144,128]{1,0:T(1,128)}', space=vmem, size = 0x12000, scoped, tag = 'internal scratch']
  #allocation2 [shape = 's32[1]{0}', space=sflag, size = 0x4, scoped, tag = 'scoped memory for _forward_blocks.1']
  #allocation3 [shape = 'u8[512]{0}', space=smem, size = 0x200, scoped, tag = 'prefetched SMEM operand 0']
  %s0 = inlined_call_operand.vmem [shape: s32[2], index: 0, kind: input, shape index: {}]
  %s1 = inlined_call_operand.vmem [shape: f32[2,1,512], index: 1, kind: input, shape index: {}]
  %s2 = inlined_call_operand.vmem [shape: f32[2,16,5], index: 2, kind: input, shape index: {}]
  %s3 = inlined_call_operand.vmem [shape: f32[2,16,1], index: 3, kind: input, shape index: {}]
  %s4 = inlined_call_operand.vmem [shape: f32[2,3,16,40], index: 4, kind: input, shape index: {}]
  %s5 = inlined_call_operand.vmem [shape: f32[2,3,16,1], index: 5, kind: input, shape index: {}]
  %s6 = inlined_call_operand.vmem [shape: f32[2,4,8,16], index: 6, kind: input, shape index: {}]
  %s7 = inlined_call_operand.vmem [shape: f32[2,4,8,1], index: 7, kind: input, shape index: {}]
  %s8 = inlined_call_operand.vmem [shape: f32[2,4,8,8], index: 8, kind: input, shape index: {}]
  %s9 = inlined_call_operand.vmem [shape: f32[2,8,1], index: 9, kind: input, shape index: {}]
  %s10 = inlined_call_operand.vmem [shape: f32[2,16,40], index: 10, kind: input, shape index: {}]
  %s11 = inlined_call_operand.vmem [shape: f32[2,16,1], index: 11, kind: input, shape index: {}]
  %s12 = inlined_call_operand.vmem [shape: f32[2,3,16,40], index: 12, kind: input, shape index: {}]
  %s13 = inlined_call_operand.vmem [shape: f32[2,3,16,1], index: 13, kind: input, shape index: {}]
  %s14 = inlined_call_operand.vmem [shape: f32[2,4,8,16], index: 14, kind: input, shape index: {}]
  %s15 = inlined_call_operand.vmem [shape: f32[2,4,8,1], index: 15, kind: input, shape index: {}]
  %s16 = inlined_call_operand.vmem [shape: f32[2,4,1,8], index: 16, kind: input, shape index: {}]
  %s17 = inlined_call_operand.vmem [shape: f32[2,1,1], index: 17, kind: input, shape index: {}]
  %s18 = inlined_call_operand.hbm [shape: f32[2,1,512], index: 18, kind: output, shape index: {}]
  %s19 = sld [smem:[#allocation0]]
  $region101: #{_forward_blocks.1} parent=0
    _
  %s21 = ssub.s32 1, %s19
  %s22 = scalar_select 0, %s21, %s19
  %s23 = sshll.u32 %s0, 4
  %s24 = int_to_ptr.vmem [resolvable:$true] %s23
  %26 = dma.vmem_to_smem %s24, 16, [#allocation3], [#allocation2]
  %27 = dma.done [#allocation2], 16
  %28 = sfence
  $region1: #{_forward_blocks.1} parent=0
    #allocation4 [shape = 'u8[4096]{0}', space=vmem, size = 0x1000, scoped, tag = 'output window, operand 0']
    #allocation5 [shape = 's32[2]{0}', space=sflag, size = 0x8, scoped, tag = 'scoped memory for _forward_blocks.1']
    %29 = vsyncpa [#allocation5], 0
    %s30 = scalar_lea.sflag [#allocation5], 1
    %31 = vsyncpa %s30, 0
    loop: start=0, step=1, limit=4
    $region2: #{_forward_blocks.1} parent=1 // loop_pre_header
      _
    $region3: #{_forward_blocks.1} parent=1 // loop_header
      %s33 = sphi 0, %s37
      %p34 = scmp.ge.s32.totalorder %s33, 4
      %s43 = sphi 0, %s45
      %s46 = sphi 0, %s43
      %s47 = sphi 0, %s46
      %s63 = sphi 0, %s47
      %s71 = sphi 0, %s73
      %s74 = sphi 0, %s71
      %s75 = sphi 0, %s74
      %s91 = sphi 0, %s75
      %s99 = sphi 0, %s101
      %s102 = sphi 0, %s99
      %s103 = sphi 0, %s102
      %s119 = sphi 0, %s103
      %s127 = sphi 0, %s129
      %s130 = sphi 0, %s127
      %s131 = sphi 0, %s130
      %s147 = sphi 0, %s131
      %s155 = sphi 0, %s157
      %s158 = sphi 0, %s155
      %s159 = sphi 0, %s158
      %s175 = sphi 0, %s159
      %s183 = sphi 0, %s185
      %s186 = sphi 0, %s183
      %s187 = sphi 0, %s186
      %s203 = sphi 0, %s187
      %s211 = sphi 0, %s213
      %s214 = sphi 0, %s211
      %s215 = sphi 0, %s214
      %s231 = sphi 0, %s215
      %s239 = sphi 0, %s241
      %s242 = sphi 0, %s239
      %s243 = sphi 0, %s242
      %s259 = sphi 0, %s243
      %s267 = sphi 0, %s269
      %s270 = sphi 0, %s267
      %s271 = sphi 0, %s270
      %s287 = sphi 0, %s271
      %s295 = sphi 0, %s297
      %s298 = sphi 0, %s295
      %s299 = sphi 0, %s298
      %s315 = sphi 0, %s299
      %s323 = sphi 0, %s325
      %s326 = sphi 0, %s323
      %s327 = sphi 0, %s326
      %s343 = sphi 0, %s327
      %s351 = sphi 0, %s353
      %s354 = sphi 0, %s351
      %s355 = sphi 0, %s354
      %s371 = sphi 0, %s355
      %s379 = sphi 0, %s381
      %s382 = sphi 0, %s379
      %s383 = sphi 0, %s382
      %s399 = sphi 0, %s383
      %s407 = sphi 0, %s409
      %s410 = sphi 0, %s407
      %s411 = sphi 0, %s410
      %s427 = sphi 0, %s411
      %s435 = sphi 0, %s437
      %s438 = sphi 0, %s435
      %s439 = sphi 0, %s438
      %s455 = sphi 0, %s439
      %s463 = sphi 0, %s465
      %s466 = sphi 0, %s463
      %s467 = sphi 0, %s466
      %s483 = sphi 0, %s467
      %s491 = sphi 0, %s493
      %s494 = sphi 0, %s491
      %s495 = sphi 0, %s494
      %s511 = sphi 0, %s495
      %s517 = sphi 0, %s519
      %s520 = sphi 0, %s517
      %s521 = sphi 0, %s520
      %s537 = sphi 0, %s521
    $region4: #{_forward_blocks.1} parent=1 // loop_header_branch
      %36 = sbr.rel (%p34) target = $region8
    $region5: #{_forward_blocks.1} parent=1 // loop_body
      %s38 = ssub.s32 %s33, 1
      %s39 = ssub.s32 %s33, 2
      %s40 = sadd.s32 %s33, 1
      %s41 = ssub.s32 %s33, %s40
      %p42 = scmp.eq.s32.totalorder %s41, 0
      %s44 = sadd.s32 %s43, 1
      %s45 = scalar_select %p42, %s43, %s44
      %p48 = pneg %p42
      %p49 = scmp.eq.s32.totalorder %s33, 1
      %p50 = por %p48, %p49
      %p51 = scmp.ne.s32.totalorder %s43, %s46
      %p52 = scmp.eq.s32.totalorder %s33, 0
      %p53 = por %p51, %p52
      %p54 = scmp.ne.s32.totalorder %s43, %s46
      %p55 = scmp.eq.s32.totalorder %s38, 1
      %p56 = por %p54, %p55
      %p57 = scmp.ne.s32.totalorder %s46, %s47
      %p58 = scmp.eq.s32.totalorder %s38, 0
      %p59 = por %p57, %p58
      %p60 = scmp.ne.s32.totalorder %s46, %s47
      %p61 = scmp.eq.s32.totalorder %s39, 1
      %p62 = por %p60, %p61
      %p64 = scmp.ne.s32.totalorder %s47, %s63
      %p65 = scmp.eq.s32.totalorder %s39, 0
      %p66 = por %p64, %p65
      %s67 = sld [smem:[#allocation3 + %s33]]
      %s68 = sld [smem:[#allocation3 + %s40]]
      %s69 = ssub.s32 %s67, %s68
      %p70 = scmp.eq.s32.totalorder %s69, 0
      %s72 = sadd.s32 %s71, 1
      %s73 = scalar_select %p70, %s71, %s72
      %p76 = pneg %p70
      %p77 = scmp.eq.s32.totalorder %s33, 1
      %p78 = por %p76, %p77
      %p79 = scmp.ne.s32.totalorder %s71, %s74
      %p80 = scmp.eq.s32.totalorder %s33, 0
      %p81 = por %p79, %p80
      %p82 = scmp.ne.s32.totalorder %s71, %s74
      %p83 = scmp.eq.s32.totalorder %s38, 1
      %p84 = por %p82, %p83
      %p85 = scmp.ne.s32.totalorder %s74, %s75
      %p86 = scmp.eq.s32.totalorder %s38, 0
      %p87 = por %p85, %p86
      %p88 = scmp.ne.s32.totalorder %s74, %s75
      %p89 = scmp.eq.s32.totalorder %s39, 1
      %p90 = por %p88, %p89
      %p92 = scmp.ne.s32.totalorder %s75, %s91
      %p93 = scmp.eq.s32.totalorder %s39, 0
      %p94 = por %p92, %p93
      %s95 = sld [smem:[#allocation3 + %s33]]
      %s96 = sld [smem:[#allocation3 + %s40]]
      %s97 = ssub.s32 %s95, %s96
      %p98 = scmp.eq.s32.totalorder %s97, 0
      %s100 = sadd.s32 %s99, 1
      %s101 = scalar_select %p98, %s99, %s100
      %p104 = pneg %p98
      %p105 = scmp.eq.s32.totalorder %s33, 1
      %p106 = por %p104, %p105
      %p107 = scmp.ne.s32.totalorder %s99, %s102
      %p108 = scmp.eq.s32.totalorder %s33, 0
      %p109 = por %p107, %p108
      %p110 = scmp.ne.s32.totalorder %s99, %s102
      %p111 = scmp.eq.s32.totalorder %s38, 1
      %p112 = por %p110, %p111
      %p113 = scmp.ne.s32.totalorder %s102, %s103
      %p114 = scmp.eq.s32.totalorder %s38, 0
      %p115 = por %p113, %p114
      %p116 = scmp.ne.s32.totalorder %s102, %s103
      %p117 = scmp.eq.s32.totalorder %s39, 1
      %p118 = por %p116, %p117
      %p120 = scmp.ne.s32.totalorder %s103, %s119
      %p121 = scmp.eq.s32.totalorder %s39, 0
      %p122 = por %p120, %p121
      %s123 = sld [smem:[#allocation3 + %s33]]
      %s124 = sld [smem:[#allocation3 + %s40]]
      %s125 = ssub.s32 %s123, %s124
      %p126 = scmp.eq.s32.totalorder %s125, 0
      %s128 = sadd.s32 %s127, 1
      %s129 = scalar_select %p126, %s127, %s128
      %p132 = pneg %p126
      %p133 = scmp.eq.s32.totalorder %s33, 1
      %p134 = por %p132, %p133
      %p135 = scmp.ne.s32.totalorder %s127, %s130
      %p136 = scmp.eq.s32.totalorder %s33, 0
      %p137 = por %p135, %p136
      %p138 = scmp.ne.s32.totalorder %s127, %s130
      %p139 = scmp.eq.s32.totalorder %s38, 1
      %p140 = por %p138, %p139
      %p141 = scmp.ne.s32.totalorder %s130, %s131
      %p142 = scmp.eq.s32.totalorder %s38, 0
      %p143 = por %p141, %p142
      %p144 = scmp.ne.s32.totalorder %s130, %s131
      %p145 = scmp.eq.s32.totalorder %s39, 1
      %p146 = por %p144, %p145
      %p148 = scmp.ne.s32.totalorder %s131, %s147
      %p149 = scmp.eq.s32.totalorder %s39, 0
      %p150 = por %p148, %p149
      %s151 = sld [smem:[#allocation3 + %s33]]
      %s152 = sld [smem:[#allocation3 + %s40]]
      %s153 = ssub.s32 %s151, %s152
      %p154 = scmp.eq.s32.totalorder %s153, 0
      %s156 = sadd.s32 %s155, 1
      %s157 = scalar_select %p154, %s155, %s156
      %p160 = pneg %p154
      %p161 = scmp.eq.s32.totalorder %s33, 1
      %p162 = por %p160, %p161
      %p163 = scmp.ne.s32.totalorder %s155, %s158
      %p164 = scmp.eq.s32.totalorder %s33, 0
      %p165 = por %p163, %p164
      %p166 = scmp.ne.s32.totalorder %s155, %s158
      %p167 = scmp.eq.s32.totalorder %s38, 1
      %p168 = por %p166, %p167
      %p169 = scmp.ne.s32.totalorder %s158, %s159
      %p170 = scmp.eq.s32.totalorder %s38, 0
      %p171 = por %p169, %p170
      %p172 = scmp.ne.s32.totalorder %s158, %s159
      %p173 = scmp.eq.s32.totalorder %s39, 1
      %p174 = por %p172, %p173
      %p176 = scmp.ne.s32.totalorder %s159, %s175
      %p177 = scmp.eq.s32.totalorder %s39, 0
      %p178 = por %p176, %p177
      %s179 = sld [smem:[#allocation3 + %s33]]
      %s180 = sld [smem:[#allocation3 + %s40]]
      %s181 = ssub.s32 %s179, %s180
      %p182 = scmp.eq.s32.totalorder %s181, 0
      %s184 = sadd.s32 %s183, 1
      %s185 = scalar_select %p182, %s183, %s184
      %p188 = pneg %p182
      %p189 = scmp.eq.s32.totalorder %s33, 1
      %p190 = por %p188, %p189
      %p191 = scmp.ne.s32.totalorder %s183, %s186
      %p192 = scmp.eq.s32.totalorder %s33, 0
      %p193 = por %p191, %p192
      %p194 = scmp.ne.s32.totalorder %s183, %s186
      %p195 = scmp.eq.s32.totalorder %s38, 1
      %p196 = por %p194, %p195
      %p197 = scmp.ne.s32.totalorder %s186, %s187
      %p198 = scmp.eq.s32.totalorder %s38, 0
      %p199 = por %p197, %p198
      %p200 = scmp.ne.s32.totalorder %s186, %s187
      %p201 = scmp.eq.s32.totalorder %s39, 1
      %p202 = por %p200, %p201
      %p204 = scmp.ne.s32.totalorder %s187, %s203
      %p205 = scmp.eq.s32.totalorder %s39, 0
      %p206 = por %p204, %p205
      %s207 = sld [smem:[#allocation3 + %s33]]
      %s208 = sld [smem:[#allocation3 + %s40]]
      %s209 = ssub.s32 %s207, %s208
      %p210 = scmp.eq.s32.totalorder %s209, 0
      %s212 = sadd.s32 %s211, 1
      %s213 = scalar_select %p210, %s211, %s212
      %p216 = pneg %p210
      %p217 = scmp.eq.s32.totalorder %s33, 1
      %p218 = por %p216, %p217
      %p219 = scmp.ne.s32.totalorder %s211, %s214
      %p220 = scmp.eq.s32.totalorder %s33, 0
      %p221 = por %p219, %p220
      %p222 = scmp.ne.s32.totalorder %s211, %s214
      %p223 = scmp.eq.s32.totalorder %s38, 1
      %p224 = por %p222, %p223
      %p225 = scmp.ne.s32.totalorder %s214, %s215
      %p226 = scmp.eq.s32.totalorder %s38, 0
      %p227 = por %p225, %p226
      %p228 = scmp.ne.s32.totalorder %s214, %s215
      %p229 = scmp.eq.s32.totalorder %s39, 1
      %p230 = por %p228, %p229
      %p232 = scmp.ne.s32.totalorder %s215, %s231
      %p233 = scmp.eq.s32.totalorder %s39, 0
      %p234 = por %p232, %p233
      %s235 = sld [smem:[#allocation3 + %s33]]
      %s236 = sld [smem:[#allocation3 + %s40]]
      %s237 = ssub.s32 %s235, %s236
      %p238 = scmp.eq.s32.totalorder %s237, 0
      %s240 = sadd.s32 %s239, 1
      %s241 = scalar_select %p238, %s239, %s240
      %p244 = pneg %p238
      %p245 = scmp.eq.s32.totalorder %s33, 1
      %p246 = por %p244, %p245
      %p247 = scmp.ne.s32.totalorder %s239, %s242
      %p248 = scmp.eq.s32.totalorder %s33, 0
      %p249 = por %p247, %p248
      %p250 = scmp.ne.s32.totalorder %s239, %s242
      %p251 = scmp.eq.s32.totalorder %s38, 1
      %p252 = por %p250, %p251
      %p253 = scmp.ne.s32.totalorder %s242, %s243
      %p254 = scmp.eq.s32.totalorder %s38, 0
      %p255 = por %p253, %p254
      %p256 = scmp.ne.s32.totalorder %s242, %s243
      %p257 = scmp.eq.s32.totalorder %s39, 1
      %p258 = por %p256, %p257
      %p260 = scmp.ne.s32.totalorder %s243, %s259
      %p261 = scmp.eq.s32.totalorder %s39, 0
      %p262 = por %p260, %p261
      %s263 = sld [smem:[#allocation3 + %s33]]
      %s264 = sld [smem:[#allocation3 + %s40]]
      %s265 = ssub.s32 %s263, %s264
      %p266 = scmp.eq.s32.totalorder %s265, 0
      %s268 = sadd.s32 %s267, 1
      %s269 = scalar_select %p266, %s267, %s268
      %p272 = pneg %p266
      %p273 = scmp.eq.s32.totalorder %s33, 1
      %p274 = por %p272, %p273
      %p275 = scmp.ne.s32.totalorder %s267, %s270
      %p276 = scmp.eq.s32.totalorder %s33, 0
      %p277 = por %p275, %p276
      %p278 = scmp.ne.s32.totalorder %s267, %s270
      %p279 = scmp.eq.s32.totalorder %s38, 1
      %p280 = por %p278, %p279
      %p281 = scmp.ne.s32.totalorder %s270, %s271
      %p282 = scmp.eq.s32.totalorder %s38, 0
      %p283 = por %p281, %p282
      %p284 = scmp.ne.s32.totalorder %s270, %s271
      %p285 = scmp.eq.s32.totalorder %s39, 1
      %p286 = por %p284, %p285
      %p288 = scmp.ne.s32.totalorder %s271, %s287
      %p289 = scmp.eq.s32.totalorder %s39, 0
      %p290 = por %p288, %p289
      %s291 = sld [smem:[#allocation3 + %s33]]
      %s292 = sld [smem:[#allocation3 + %s40]]
      %s293 = ssub.s32 %s291, %s292
      %p294 = scmp.eq.s32.totalorder %s293, 0
      %s296 = sadd.s32 %s295, 1
      %s297 = scalar_select %p294, %s295, %s296
      %p300 = pneg %p294
      %p301 = scmp.eq.s32.totalorder %s33, 1
      %p302 = por %p300, %p301
      %p303 = scmp.ne.s32.totalorder %s295, %s298
      %p304 = scmp.eq.s32.totalorder %s33, 0
      %p305 = por %p303, %p304
      %p306 = scmp.ne.s32.totalorder %s295, %s298
      %p307 = scmp.eq.s32.totalorder %s38, 1
      %p308 = por %p306, %p307
      %p309 = scmp.ne.s32.totalorder %s298, %s299
      %p310 = scmp.eq.s32.totalorder %s38, 0
      %p311 = por %p309, %p310
      %p312 = scmp.ne.s32.totalorder %s298, %s299
      %p313 = scmp.eq.s32.totalorder %s39, 1
      %p314 = por %p312, %p313
      %p316 = scmp.ne.s32.totalorder %s299, %s315
      %p317 = scmp.eq.s32.totalorder %s39, 0
      %p318 = por %p316, %p317
      %s319 = sld [smem:[#allocation3 + %s33]]
      %s320 = sld [smem:[#allocation3 + %s40]]
      %s321 = ssub.s32 %s319, %s320
      %p322 = scmp.eq.s32.totalorder %s321, 0
      %s324 = sadd.s32 %s323, 1
      %s325 = scalar_select %p322, %s323, %s324
      %p328 = pneg %p322
      %p329 = scmp.eq.s32.totalorder %s33, 1
      %p330 = por %p328, %p329
      %p331 = scmp.ne.s32.totalorder %s323, %s326
      %p332 = scmp.eq.s32.totalorder %s33, 0
      %p333 = por %p331, %p332
      %p334 = scmp.ne.s32.totalorder %s323, %s326
      %p335 = scmp.eq.s32.totalorder %s38, 1
      %p336 = por %p334, %p335
      %p337 = scmp.ne.s32.totalorder %s326, %s327
      %p338 = scmp.eq.s32.totalorder %s38, 0
      %p339 = por %p337, %p338
      %p340 = scmp.ne.s32.totalorder %s326, %s327
      %p341 = scmp.eq.s32.totalorder %s39, 1
      %p342 = por %p340, %p341
      %p344 = scmp.ne.s32.totalorder %s327, %s343
      %p345 = scmp.eq.s32.totalorder %s39, 0
      %p346 = por %p344, %p345
      %s347 = sld [smem:[#allocation3 + %s33]]
      %s348 = sld [smem:[#allocation3 + %s40]]
      %s349 = ssub.s32 %s347, %s348
      %p350 = scmp.eq.s32.totalorder %s349, 0
      %s352 = sadd.s32 %s351, 1
      %s353 = scalar_select %p350, %s351, %s352
      %p356 = pneg %p350
      %p357 = scmp.eq.s32.totalorder %s33, 1
      %p358 = por %p356, %p357
      %p359 = scmp.ne.s32.totalorder %s351, %s354
      %p360 = scmp.eq.s32.totalorder %s33, 0
      %p361 = por %p359, %p360
      %p362 = scmp.ne.s32.totalorder %s351, %s354
      %p363 = scmp.eq.s32.totalorder %s38, 1
      %p364 = por %p362, %p363
      %p365 = scmp.ne.s32.totalorder %s354, %s355
      %p366 = scmp.eq.s32.totalorder %s38, 0
      %p367 = por %p365, %p366
      %p368 = scmp.ne.s32.totalorder %s354, %s355
      %p369 = scmp.eq.s32.totalorder %s39, 1
      %p370 = por %p368, %p369
      %p372 = scmp.ne.s32.totalorder %s355, %s371
      %p373 = scmp.eq.s32.totalorder %s39, 0
      %p374 = por %p372, %p373
      %s375 = sld [smem:[#allocation3 + %s33]]
      %s376 = sld [smem:[#allocation3 + %s40]]
      %s377 = ssub.s32 %s375, %s376
      %p378 = scmp.eq.s32.totalorder %s377, 0
      %s380 = sadd.s32 %s379, 1
      %s381 = scalar_select %p378, %s379, %s380
      %p384 = pneg %p378
      %p385 = scmp.eq.s32.totalorder %s33, 1
      %p386 = por %p384, %p385
      %p387 = scmp.ne.s32.totalorder %s379, %s382
      %p388 = scmp.eq.s32.totalorder %s33, 0
      %p389 = por %p387, %p388
      %p390 = scmp.ne.s32.totalorder %s379, %s382
      %p391 = scmp.eq.s32.totalorder %s38, 1
      %p392 = por %p390, %p391
      %p393 = scmp.ne.s32.totalorder %s382, %s383
      %p394 = scmp.eq.s32.totalorder %s38, 0
      %p395 = por %p393, %p394
      %p396 = scmp.ne.s32.totalorder %s382, %s383
      %p397 = scmp.eq.s32.totalorder %s39, 1
      %p398 = por %p396, %p397
      %p400 = scmp.ne.s32.totalorder %s383, %s399
      %p401 = scmp.eq.s32.totalorder %s39, 0
      %p402 = por %p400, %p401
      %s403 = sld [smem:[#allocation3 + %s33]]
      %s404 = sld [smem:[#allocation3 + %s40]]
      %s405 = ssub.s32 %s403, %s404
      %p406 = scmp.eq.s32.totalorder %s405, 0
      %s408 = sadd.s32 %s407, 1
      %s409 = scalar_select %p406, %s407, %s408
      %p412 = pneg %p406
      %p413 = scmp.eq.s32.totalorder %s33, 1
      %p414 = por %p412, %p413
      %p415 = scmp.ne.s32.totalorder %s407, %s410
      %p416 = scmp.eq.s32.totalorder %s33, 0
      %p417 = por %p415, %p416
      %p418 = scmp.ne.s32.totalorder %s407, %s410
      %p419 = scmp.eq.s32.totalorder %s38, 1
      %p420 = por %p418, %p419
      %p421 = scmp.ne.s32.totalorder %s410, %s411
      %p422 = scmp.eq.s32.totalorder %s38, 0
      %p423 = por %p421, %p422
      %p424 = scmp.ne.s32.totalorder %s410, %s411
      %p425 = scmp.eq.s32.totalorder %s39, 1
      %p426 = por %p424, %p425
      %p428 = scmp.ne.s32.totalorder %s411, %s427
      %p429 = scmp.eq.s32.totalorder %s39, 0
      %p430 = por %p428, %p429
      %s431 = sld [smem:[#allocation3 + %s33]]
      %s432 = sld [smem:[#allocation3 + %s40]]
      %s433 = ssub.s32 %s431, %s432
      %p434 = scmp.eq.s32.totalorder %s433, 0
      %s436 = sadd.s32 %s435, 1
      %s437 = scalar_select %p434, %s435, %s436
      %p440 = pneg %p434
      %p441 = scmp.eq.s32.totalorder %s33, 1
      %p442 = por %p440, %p441
      %p443 = scmp.ne.s32.totalorder %s435, %s438
      %p444 = scmp.eq.s32.totalorder %s33, 0
      %p445 = por %p443, %p444
      %p446 = scmp.ne.s32.totalorder %s435, %s438
      %p447 = scmp.eq.s32.totalorder %s38, 1
      %p448 = por %p446, %p447
      %p449 = scmp.ne.s32.totalorder %s438, %s439
      %p450 = scmp.eq.s32.totalorder %s38, 0
      %p451 = por %p449, %p450
      %p452 = scmp.ne.s32.totalorder %s438, %s439
      %p453 = scmp.eq.s32.totalorder %s39, 1
      %p454 = por %p452, %p453
      %p456 = scmp.ne.s32.totalorder %s439, %s455
      %p457 = scmp.eq.s32.totalorder %s39, 0
      %p458 = por %p456, %p457
      %s459 = sld [smem:[#allocation3 + %s33]]
      %s460 = sld [smem:[#allocation3 + %s40]]
      %s461 = ssub.s32 %s459, %s460
      %p462 = scmp.eq.s32.totalorder %s461, 0
      %s464 = sadd.s32 %s463, 1
      %s465 = scalar_select %p462, %s463, %s464
      %p468 = pneg %p462
      %p469 = scmp.eq.s32.totalorder %s33, 1
      %p470 = por %p468, %p469
      %p471 = scmp.ne.s32.totalorder %s463, %s466
      %p472 = scmp.eq.s32.totalorder %s33, 0
      %p473 = por %p471, %p472
      %p474 = scmp.ne.s32.totalorder %s463, %s466
      %p475 = scmp.eq.s32.totalorder %s38, 1
      %p476 = por %p474, %p475
      %p477 = scmp.ne.s32.totalorder %s466, %s467
      %p478 = scmp.eq.s32.totalorder %s38, 0
      %p479 = por %p477, %p478
      %p480 = scmp.ne.s32.totalorder %s466, %s467
      %p481 = scmp.eq.s32.totalorder %s39, 1
      %p482 = por %p480, %p481
      %p484 = scmp.ne.s32.totalorder %s467, %s483
      %p485 = scmp.eq.s32.totalorder %s39, 0
      %p486 = por %p484, %p485
      %s487 = sld [smem:[#allocation3 + %s33]]
      %s488 = sld [smem:[#allocation3 + %s40]]
      %s489 = ssub.s32 %s487, %s488
      %p490 = scmp.eq.s32.totalorder %s489, 0
      %s492 = sadd.s32 %s491, 1
      %s493 = scalar_select %p490, %s491, %s492
      %p496 = pneg %p490
      %p497 = scmp.eq.s32.totalorder %s33, 1
      %p498 = por %p496, %p497
      %p499 = scmp.ne.s32.totalorder %s491, %s494
      %p500 = scmp.eq.s32.totalorder %s33, 0
      %p501 = por %p499, %p500
      %p502 = scmp.ne.s32.totalorder %s491, %s494
      %p503 = scmp.eq.s32.totalorder %s38, 1
      %p504 = por %p502, %p503
      %p505 = scmp.ne.s32.totalorder %s494, %s495
      %p506 = scmp.eq.s32.totalorder %s38, 0
      %p507 = por %p505, %p506
      %p508 = scmp.ne.s32.totalorder %s494, %s495
      %p509 = scmp.eq.s32.totalorder %s39, 1
      %p510 = por %p508, %p509
      %p512 = scmp.ne.s32.totalorder %s495, %s511
      %p513 = scmp.eq.s32.totalorder %s39, 0
      %p514 = por %p512, %p513
      %s515 = ssub.s32 %s33, %s40
      %p516 = scmp.eq.s32.totalorder %s515, 0
      %s518 = sadd.s32 %s517, 1
      %s519 = scalar_select %p516, %s517, %s518
      %p522 = pneg %p516
      %p523 = scmp.eq.s32.totalorder %s33, 1
      %p524 = por %p522, %p523
      %p525 = scmp.ne.s32.totalorder %s517, %s520
      %p526 = scmp.eq.s32.totalorder %s33, 0
      %p527 = por %p525, %p526
      %p528 = scmp.ne.s32.totalorder %s517, %s520
      %p529 = scmp.eq.s32.totalorder %s38, 1
      %p530 = por %p528, %p529
      %p531 = scmp.ne.s32.totalorder %s520, %s521
      %p532 = scmp.eq.s32.totalorder %s38, 0
      %p533 = por %p531, %p532
      %p534 = scmp.ne.s32.totalorder %s520, %s521
      %p535 = scmp.eq.s32.totalorder %s39, 1
      %p536 = por %p534, %p535
      %p538 = scmp.ne.s32.totalorder %s521, %s537
      %p539 = scmp.eq.s32.totalorder %s39, 0
      %p540 = por %p538, %p539
      %p541 = scmp.le.s32.totalorder 1, %s33
      %p542 = scmp.lt.s32.totalorder %s33, 3
      %p543 = pnand %p541, %p542
      %p544 = pneg %p543
      // Predicated region
      $region9: #{_forward_blocks.1} parent=5 // pred_check
        _
      $region10: #{_forward_blocks.1} parent=5 // pred_check_branch
        %546 = sbr.rel (%p543) target = $region12
      $region11: #{_forward_blocks.1} parent=5 // pred_region
        %s547 = ssub.s32 %s33, 1
      $region12: #{_forward_blocks.1} parent=5 // pred_fallthru
        _
      %p548 = scmp.lt.s32.totalorder %s33, 2
      // Predicated region
      $region13: #{_forward_blocks.1} parent=5 // pred_check
        %p549 = pneg %p548
      $region14: #{_forward_blocks.1} parent=5 // pred_check_branch
        %551 = sbr.rel (%p549) target = $region16
      $region15: #{_forward_blocks.1} parent=5 // pred_region
        // Predicated region
        $region17: #{_forward_blocks.1} parent=15 // pred_check
          %p552 = pneg %p53
        $region18: #{_forward_blocks.1} parent=15 // pred_check_branch
          %554 = sbr.rel (%p552) target = $region20
        $region19: #{_forward_blocks.1} parent=15 // pred_region
          %p555 = scmp.lt.s32.totalorder %s33, 1
          %s556 = scalar_select %p555, %s33, 1
          %s557 = smul.addr %s556, 4
          %s558 = scalar_lea.vmem %s1, %s557
        $region20: #{_forward_blocks.1} parent=15 // pred_fallthru
          _
        // Predicated region
        $region21: #{_forward_blocks.1} parent=15 // pred_check
          %p559 = pneg %p81
        $region22: #{_forward_blocks.1} parent=15 // pred_check_branch
          %561 = sbr.rel (%p559) target = $region24
        $region23: #{_forward_blocks.1} parent=15 // pred_region
          %s562 = sld [smem:[#allocation3 + %s33]]
          %p563 = scmp.lt.s32.totalorder %s562, 1
          %s564 = scalar_select %p563, %s562, 1
          %s565 = smul.addr %s564, 2
          %s566 = smul.addr %s565, 8
          %s567 = scalar_lea.vmem %s2, %s566
          %s568 = sld [smem:[#allocation3 + %s33]]
        $region24: #{_forward_blocks.1} parent=15 // pred_fallthru
          _
        // Predicated region
        $region25: #{_forward_blocks.1} parent=15 // pred_check
          %p569 = pneg %p109
        $region26: #{_forward_blocks.1} parent=15 // pred_check_branch
          %571 = sbr.rel (%p569) target = $region28
        $region27: #{_forward_blocks.1} parent=15 // pred_region
          %s572 = sld [smem:[#allocation3 + %s33]]
          %p573 = scmp.lt.s32.totalorder %s572, 1
          %s574 = scalar_select %p573, %s572, 1
          %s575 = smul.addr %s574, 2
          %s576 = smul.addr %s575, 8
          %s577 = scalar_lea.vmem %s3, %s576
          %s578 = sld [smem:[#allocation3 + %s33]]
        $region28: #{_forward_blocks.1} parent=15 // pred_fallthru
          _
        // Predicated region
        $region29: #{_forward_blocks.1} parent=15 // pred_check
          %p579 = pneg %p137
        $region30: #{_forward_blocks.1} parent=15 // pred_check_branch
          %581 = sbr.rel (%p579) target = $region32
        $region31: #{_forward_blocks.1} parent=15 // pred_region
          %s582 = sld [smem:[#allocation3 + %s33]]
          %p583 = scmp.lt.s32.totalorder %s582, 1
          %s584 = scalar_select %p583, %s582, 1
          %s585 = smul.addr %s584, 6
          %s586 = smul.addr %s585, 8
          %s587 = scalar_lea.vmem %s4, %s586
          %s588 = sld [smem:[#allocation3 + %s33]]
        $region32: #{_forward_blocks.1} parent=15 // pred_fallthru
          _
        // Predicated region
        $region33: #{_forward_blocks.1} parent=15 // pred_check
          %p589 = pneg %p165
        $region34: #{_forward_blocks.1} parent=15 // pred_check_branch
          %591 = sbr.rel (%p589) target = $region36
        $region35: #{_forward_blocks.1} parent=15 // pred_region
          %s592 = sld [smem:[#allocation3 + %s33]]
          %p593 = scmp.lt.s32.totalorder %s592, 1
          %s594 = scalar_select %p593, %s592, 1
          %s595 = smul.addr %s594, 6
          %s596 = smul.addr %s595, 8
          %s597 = scalar_lea.vmem %s5, %s596
          %s598 = sld [smem:[#allocation3 + %s33]]
        $region36: #{_forward_blocks.1} parent=15 // pred_fallthru
          _
        // Predicated region
        $region37: #{_forward_blocks.1} parent=15 // pred_check
          %p599 = pneg %p193
        $region38: #{_forward_blocks.1} parent=15 // pred_check_branch
          %601 = sbr.rel (%p599) target = $region40
        $region39: #{_forward_blocks.1} parent=15 // pred_region
          %s602 = sld [smem:[#allocation3 + %s33]]
          %p603 = scmp.lt.s32.totalorder %s602, 1
          %s604 = scalar_select %p603, %s602, 1
          %s605 = smul.addr %s604, 4
          %s606 = smul.addr %s605, 8
          %s607 = scalar_lea.vmem %s6, %s606
          %s608 = sld [smem:[#allocation3 + %s33]]
        $region40: #{_forward_blocks.1} parent=15 // pred_fallthru
          _
        // Predicated region
        $region41: #{_forward_blocks.1} parent=15 // pred_check
          %p609 = pneg %p221
        $region42: #{_forward_blocks.1} parent=15 // pred_check_branch
          %611 = sbr.rel (%p609) target = $region44
        $region43: #{_forward_blocks.1} parent=15 // pred_region
          %s612 = sld [smem:[#allocation3 + %s33]]
          %p613 = scmp.lt.s32.totalorder %s612, 1
          %s614 = scalar_select %p613, %s612, 1
          %s615 = smul.addr %s614, 4
          %s616 = smul.addr %s615, 8
          %s617 = scalar_lea.vmem %s7, %s616
          %s618 = sld [smem:[#allocation3 + %s33]]
        $region44: #{_forward_blocks.1} parent=15 // pred_fallthru
          _
        // Predicated region
        $region45: #{_forward_blocks.1} parent=15 // pred_check
          %p619 = pneg %p249
        $region46: #{_forward_blocks.1} parent=15 // pred_check_branch
          %621 = sbr.rel (%p619) target = $region48
        $region47: #{_forward_blocks.1} parent=15 // pred_region
          %s622 = sld [smem:[#allocation3 + %s33]]
          %p623 = scmp.lt.s32.totalorder %s622, 1
          %s624 = scalar_select %p623, %s622, 1
          %s625 = smul.addr %s624, 4
          %s626 = smul.addr %s625, 8
          %s627 = scalar_lea.vmem %s8, %s626
          %s628 = sld [smem:[#allocation3 + %s33]]
        $region48: #{_forward_blocks.1} parent=15 // pred_fallthru
          _
        // Predicated region
        $region49: #{_forward_blocks.1} parent=15 // pred_check
          %p629 = pneg %p277
        $region50: #{_forward_blocks.1} parent=15 // pred_check_branch
          %631 = sbr.rel (%p629) target = $region52
        $region51: #{_forward_blocks.1} parent=15 // pred_region
          %s632 = sld [smem:[#allocation3 + %s33]]
          %p633 = scmp.lt.s32.totalorder %s632, 1
          %s634 = scalar_select %p633, %s632, 1
          %s635 = smul.addr %s634, 8
          %s636 = scalar_lea.vmem %s9, %s635
          %s637 = sld [smem:[#allocation3 + %s33]]
        $region52: #{_forward_blocks.1} parent=15 // pred_fallthru
          _
        // Predicated region
        $region53: #{_forward_blocks.1} parent=15 // pred_check
          %p638 = pneg %p305
        $region54: #{_forward_blocks.1} parent=15 // pred_check_branch
          %640 = sbr.rel (%p638) target = $region56
        $region55: #{_forward_blocks.1} parent=15 // pred_region
          %s641 = sld [smem:[#allocation3 + %s33]]
          %p642 = scmp.lt.s32.totalorder %s641, 1
          %s643 = scalar_select %p642, %s641, 1
          %s644 = smul.addr %s643, 2
          %s645 = smul.addr %s644, 8
          %s646 = scalar_lea.vmem %s10, %s645
          %s647 = sld [smem:[#allocation3 + %s33]]
        $region56: #{_forward_blocks.1} parent=15 // pred_fallthru
          _
        // Predicated region
        $region57: #{_forward_blocks.1} parent=15 // pred_check
          %p648 = pneg %p333
        $region58: #{_forward_blocks.1} parent=15 // pred_check_branch
          %650 = sbr.rel (%p648) target = $region60
        $region59: #{_forward_blocks.1} parent=15 // pred_region
          %s651 = sld [smem:[#allocation3 + %s33]]
          %p652 = scmp.lt.s32.totalorder %s651, 1
          %s653 = scalar_select %p652, %s651, 1
          %s654 = smul.addr %s653, 2
          %s655 = smul.addr %s654, 8
          %s656 = scalar_lea.vmem %s11, %s655
          %s657 = sld [smem:[#allocation3 + %s33]]
        $region60: #{_forward_blocks.1} parent=15 // pred_fallthru
          _
        // Predicated region
        $region61: #{_forward_blocks.1} parent=15 // pred_check
          %p658 = pneg %p361
        $region62: #{_forward_blocks.1} parent=15 // pred_check_branch
          %660 = sbr.rel (%p658) target = $region64
        $region63: #{_forward_blocks.1} parent=15 // pred_region
          %s661 = sld [smem:[#allocation3 + %s33]]
          %p662 = scmp.lt.s32.totalorder %s661, 1
          %s663 = scalar_select %p662, %s661, 1
          %s664 = smul.addr %s663, 6
          %s665 = smul.addr %s664, 8
          %s666 = scalar_lea.vmem %s12, %s665
          %s667 = sld [smem:[#allocation3 + %s33]]
        $region64: #{_forward_blocks.1} parent=15 // pred_fallthru
          _
        // Predicated region
        $region65: #{_forward_blocks.1} parent=15 // pred_check
          %p668 = pneg %p389
        $region66: #{_forward_blocks.1} parent=15 // pred_check_branch
          %670 = sbr.rel (%p668) target = $region68
        $region67: #{_forward_blocks.1} parent=15 // pred_region
          %s671 = sld [smem:[#allocation3 + %s33]]
          %p672 = scmp.lt.s32.totalorder %s671, 1
          %s673 = scalar_select %p672, %s671, 1
          %s674 = smul.addr %s673, 6
          %s675 = smul.addr %s674, 8
          %s676 = scalar_lea.vmem %s13, %s675
          %s677 = sld [smem:[#allocation3 + %s33]]
        $region68: #{_forward_blocks.1} parent=15 // pred_fallthru
          _
        // Predicated region
        $region69: #{_forward_blocks.1} parent=15 // pred_check
          %p678 = pneg %p417
        $region70: #{_forward_blocks.1} parent=15 // pred_check_branch
          %680 = sbr.rel (%p678) target = $region72
        $region71: #{_forward_blocks.1} parent=15 // pred_region
          %s681 = sld [smem:[#allocation3 + %s33]]
          %p682 = scmp.lt.s32.totalorder %s681, 1
          %s683 = scalar_select %p682, %s681, 1
          %s684 = smul.addr %s683, 4
          %s685 = smul.addr %s684, 8
          %s686 = scalar_lea.vmem %s14, %s685
          %s687 = sld [smem:[#allocation3 + %s33]]
        $region72: #{_forward_blocks.1} parent=15 // pred_fallthru
          _
        // Predicated region
        $region73: #{_forward_blocks.1} parent=15 // pred_check
          %p688 = pneg %p445
        $region74: #{_forward_blocks.1} parent=15 // pred_check_branch
          %690 = sbr.rel (%p688) target = $region76
        $region75: #{_forward_blocks.1} parent=15 // pred_region
          %s691 = sld [smem:[#allocation3 + %s33]]
          %p692 = scmp.lt.s32.totalorder %s691, 1
          %s693 = scalar_select %p692, %s691, 1
          %s694 = smul.addr %s693, 4
          %s695 = smul.addr %s694, 8
          %s696 = scalar_lea.vmem %s15, %s695
          %s697 = sld [smem:[#allocation3 + %s33]]
        $region76: #{_forward_blocks.1} parent=15 // pred_fallthru
          _
        // Predicated region
        $region77: #{_forward_blocks.1} parent=15 // pred_check
          %p698 = pneg %p473
        $region78: #{_forward_blocks.1} parent=15 // pred_check_branch
          %700 = sbr.rel (%p698) target = $region80
        $region79: #{_forward_blocks.1} parent=15 // pred_region
          %s701 = sld [smem:[#allocation3 + %s33]]
          %p702 = scmp.lt.s32.totalorder %s701, 1
          %s703 = scalar_select %p702, %s701, 1
          %s704 = smul.addr %s703, 4
          %s705 = scalar_lea.vmem %s16, %s704
          %s706 = sld [smem:[#allocation3 + %s33]]
        $region80: #{_forward_blocks.1} parent=15 // pred_fallthru
          _
        // Predicated region
        $region81: #{_forward_blocks.1} parent=15 // pred_check
          %p707 = pneg %p501
        $region82: #{_forward_blocks.1} parent=15 // pred_check_branch
          %709 = sbr.rel (%p707) target = $region84
        $region83: #{_forward_blocks.1} parent=15 // pred_region
          %s710 = sld [smem:[#allocation3 + %s33]]
          %p711 = scmp.lt.s32.totalorder %s710, 1
          %s712 = scalar_select %p711, %s710, 1
          %s713 = scalar_lea.vmem %s17, %s712
          %s714 = sld [smem:[#allocation3 + %s33]]
        $region84: #{_forward_blocks.1} parent=15 // pred_fallthru
          _
      $region16: #{_forward_blocks.1} parent=5 // pred_fallthru
        _
      %p715 = scmp.le.s32.totalorder 1, %s33
      %p716 = scmp.lt.s32.totalorder %s33, 3
      %p717 = pnand %p715, %p716
      %p718 = pneg %p717
      // Predicated region
      $region85: #{_forward_blocks.1} parent=5 // pred_check
        _
      $region86: #{_forward_blocks.1} parent=5 // pred_check_branch
        %720 = sbr.rel (%p717) target = $region88
      $region87: #{_forward_blocks.1} parent=5 // pred_region
        %s721 = ssub.s32 %s33, 1
        %p722 = scmp.lt.s32.totalorder %s38, 1
        %s723 = scalar_select %p722, %s38, 1
        %s724 = smul.addr %s723, 4
        %s725 = scalar_lea.vmem %s1, %s724
        %p726 = pneg %p59
        %p727 = pneg %p56
        %s728 = sld [smem:[#allocation3 + %s38]]
        %p729 = scmp.lt.s32.totalorder %s728, 1
        %s730 = scalar_select %p729, %s728, 1
        %s731 = smul.addr %s730, 2
        %s732 = smul.addr %s731, 8
        %s733 = scalar_lea.vmem %s2, %s732
        %p734 = pneg %p87
        %p735 = pneg %p84
        %s736 = sld [smem:[#allocation3 + %s38]]
        %p737 = scmp.lt.s32.totalorder %s736, 1
        %s738 = scalar_select %p737, %s736, 1
        %s739 = smul.addr %s738, 2
        %s740 = smul.addr %s739, 8
        %s741 = scalar_lea.vmem %s3, %s740
        %p742 = pneg %p115
        %p743 = pneg %p112
        %s744 = sld [smem:[#allocation3 + %s38]]
        %p745 = scmp.lt.s32.totalorder %s744, 1
        %s746 = scalar_select %p745, %s744, 1
        %s747 = smul.addr %s746, 6
        %s748 = smul.addr %s747, 8
        %s749 = scalar_lea.vmem %s4, %s748
        %p750 = pneg %p143
        %p751 = pneg %p140
        %s752 = sld [smem:[#allocation3 + %s38]]
        %p753 = scmp.lt.s32.totalorder %s752, 1
        %s754 = scalar_select %p753, %s752, 1
        %s755 = smul.addr %s754, 6
        %s756 = smul.addr %s755, 8
        %s757 = scalar_lea.vmem %s5, %s756
        %p758 = pneg %p171
        %p759 = pneg %p168
        %s760 = sld [smem:[#allocation3 + %s38]]
        %p761 = scmp.lt.s32.totalorder %s760, 1
        %s762 = scalar_select %p761, %s760, 1
        %s763 = smul.addr %s762, 4
        %s764 = smul.addr %s763, 8
        %s765 = scalar_lea.vmem %s6, %s764
        %p766 = pneg %p199
        %p767 = pneg %p196
        %s768 = sld [smem:[#allocation3 + %s38]]
        %p769 = scmp.lt.s32.totalorder %s768, 1
        %s770 = scalar_select %p769, %s768, 1
        %s771 = smul.addr %s770, 4
        %s772 = smul.addr %s771, 8
        %s773 = scalar_lea.vmem %s7, %s772
        %p774 = pneg %p227
        %p775 = pneg %p224
        %s776 = sld [smem:[#allocation3 + %s38]]
        %p777 = scmp.lt.s32.totalorder %s776, 1
        %s778 = scalar_select %p777, %s776, 1
        %s779 = smul.addr %s778, 4
        %s780 = smul.addr %s779, 8
        %s781 = scalar_lea.vmem %s8, %s780
        %p782 = pneg %p255
        %p783 = pneg %p252
        %s784 = sld [smem:[#allocation3 + %s38]]
        %p785 = scmp.lt.s32.totalorder %s784, 1
        %s786 = scalar_select %p785, %s784, 1
        %s787 = smul.addr %s786, 8
        %s788 = scalar_lea.vmem %s9, %s787
        %p789 = pneg %p283
        %p790 = pneg %p280
        %s791 = sld [smem:[#allocation3 + %s38]]
        %p792 = scmp.lt.s32.totalorder %s791, 1
        %s793 = scalar_select %p792, %s791, 1
        %s794 = smul.addr %s793, 2
        %s795 = smul.addr %s794, 8
        %s796 = scalar_lea.vmem %s10, %s795
        %p797 = pneg %p311
        %p798 = pneg %p308
        %s799 = sld [smem:[#allocation3 + %s38]]
        %p800 = scmp.lt.s32.totalorder %s799, 1
        %s801 = scalar_select %p800, %s799, 1
        %s802 = smul.addr %s801, 2
        %s803 = smul.addr %s802, 8
        %s804 = scalar_lea.vmem %s11, %s803
        %p805 = pneg %p339
        %p806 = pneg %p336
        %s807 = sld [smem:[#allocation3 + %s38]]
        %p808 = scmp.lt.s32.totalorder %s807, 1
        %s809 = scalar_select %p808, %s807, 1
        %s810 = smul.addr %s809, 6
        %s811 = smul.addr %s810, 8
        %s812 = scalar_lea.vmem %s12, %s811
        %p813 = pneg %p367
        %p814 = pneg %p364
        %s815 = sld [smem:[#allocation3 + %s38]]
        %p816 = scmp.lt.s32.totalorder %s815, 1
        %s817 = scalar_select %p816, %s815, 1
        %s818 = smul.addr %s817, 6
        %s819 = smul.addr %s818, 8
        %s820 = scalar_lea.vmem %s13, %s819
        %p821 = pneg %p395
        %p822 = pneg %p392
        %s823 = sld [smem:[#allocation3 + %s38]]
        %p824 = scmp.lt.s32.totalorder %s823, 1
        %s825 = scalar_select %p824, %s823, 1
        %s826 = smul.addr %s825, 4
        %s827 = smul.addr %s826, 8
        %s828 = scalar_lea.vmem %s14, %s827
        %p829 = pneg %p423
        %p830 = pneg %p420
        %s831 = sld [smem:[#allocation3 + %s38]]
        %p832 = scmp.lt.s32.totalorder %s831, 1
        %s833 = scalar_select %p832, %s831, 1
        %s834 = smul.addr %s833, 4
        %s835 = smul.addr %s834, 8
        %s836 = scalar_lea.vmem %s15, %s835
        %p837 = pneg %p451
        %p838 = pneg %p448
        %s839 = sld [smem:[#allocation3 + %s38]]
        %p840 = scmp.lt.s32.totalorder %s839, 1
        %s841 = scalar_select %p840, %s839, 1
        %s842 = smul.addr %s841, 4
        %s843 = scalar_lea.vmem %s16, %s842
        %p844 = pneg %p479
        %p845 = pneg %p476
        %s846 = sld [smem:[#allocation3 + %s38]]
        %p847 = scmp.lt.s32.totalorder %s846, 1
        %s848 = scalar_select %p847, %s846, 1
        %s849 = scalar_lea.vmem %s17, %s848
        %p850 = pneg %p507
        %p851 = pneg %p504
        %p852 = pneg %p533
        %p853 = pneg %p530
        %s854 = sand.u32 %s520, 1
        %s855 = scalar_lea.sflag [#allocation5], %s854
        %s856 = sand.u32 %s520, 1
        %s857 = smul.addr %s856, 4
        %s858 = scalar_lea.vmem [#allocation4], %s857
        %p859 = scmp.lt.s32.totalorder %s38, 1
        %s860 = scalar_select %p859, %s38, 1
        %s861 = smul.addr %s860, 4
        %s862 = scalar_lea.vmem %s1, %s861
        %s863 = sld [smem:[#allocation3 + %s38]]
        %p864 = scmp.lt.s32.totalorder %s863, 1
        %s865 = scalar_select %p864, %s863, 1
        %s866 = smul.addr %s865, 2
        %s867 = smul.addr %s866, 8
        %s868 = scalar_lea.vmem %s2, %s867
        %s869 = sld [smem:[#allocation3 + %s38]]
        %s870 = sld [smem:[#allocation3 + %s38]]
        %p871 = scmp.lt.s32.totalorder %s870, 1
        %s872 = scalar_select %p871, %s870, 1
        %s873 = smul.addr %s872, 2
        %s874 = smul.addr %s873, 8
        %s875 = scalar_lea.vmem %s3, %s874
        %s876 = sld [smem:[#allocation3 + %s38]]
        %s877 = sld [smem:[#allocation3 + %s38]]
        %p878 = scmp.lt.s32.totalorder %s877, 1
        %s879 = scalar_select %p878, %s877, 1
        %s880 = smul.addr %s879, 6
        %s881 = smul.addr %s880, 8
        %s882 = scalar_lea.vmem %s4, %s881
        %s883 = sld [smem:[#allocation3 + %s38]]
        %s884 = sld [smem:[#allocation3 + %s38]]
        %p885 = scmp.lt.s32.totalorder %s884, 1
        %s886 = scalar_select %p885, %s884, 1
        %s887 = smul.addr %s886, 6
        %s888 = smul.addr %s887, 8
        %s889 = scalar_lea.vmem %s5, %s888
        %s890 = sld [smem:[#allocation3 + %s38]]
        %s891 = sld [smem:[#allocation3 + %s38]]
        %p892 = scmp.lt.s32.totalorder %s891, 1
        %s893 = scalar_select %p892, %s891, 1
        %s894 = smul.addr %s893, 4
        %s895 = smul.addr %s894, 8
        %s896 = scalar_lea.vmem %s6, %s895
        %s897 = sld [smem:[#allocation3 + %s38]]
        %s898 = sld [smem:[#allocation3 + %s38]]
        %p899 = scmp.lt.s32.totalorder %s898, 1
        %s900 = scalar_select %p899, %s898, 1
        %s901 = smul.addr %s900, 4
        %s902 = smul.addr %s901, 8
        %s903 = scalar_lea.vmem %s7, %s902
        %s904 = sld [smem:[#allocation3 + %s38]]
        %s905 = sld [smem:[#allocation3 + %s38]]
        %p906 = scmp.lt.s32.totalorder %s905, 1
        %s907 = scalar_select %p906, %s905, 1
        %s908 = smul.addr %s907, 4
        %s909 = smul.addr %s908, 8
        %s910 = scalar_lea.vmem %s8, %s909
        %s911 = sld [smem:[#allocation3 + %s38]]
        %s912 = sld [smem:[#allocation3 + %s38]]
        %p913 = scmp.lt.s32.totalorder %s912, 1
        %s914 = scalar_select %p913, %s912, 1
        %s915 = smul.addr %s914, 8
        %s916 = scalar_lea.vmem %s9, %s915
        %s917 = sld [smem:[#allocation3 + %s38]]
        %s918 = sld [smem:[#allocation3 + %s38]]
        %p919 = scmp.lt.s32.totalorder %s918, 1
        %s920 = scalar_select %p919, %s918, 1
        %s921 = smul.addr %s920, 2
        %s922 = smul.addr %s921, 8
        %s923 = scalar_lea.vmem %s10, %s922
        %s924 = sld [smem:[#allocation3 + %s38]]
        %s925 = sld [smem:[#allocation3 + %s38]]
        %p926 = scmp.lt.s32.totalorder %s925, 1
        %s927 = scalar_select %p926, %s925, 1
        %s928 = smul.addr %s927, 2
        %s929 = smul.addr %s928, 8
        %s930 = scalar_lea.vmem %s11, %s929
        %s931 = sld [smem:[#allocation3 + %s38]]
        %s932 = sld [smem:[#allocation3 + %s38]]
        %p933 = scmp.lt.s32.totalorder %s932, 1
        %s934 = scalar_select %p933, %s932, 1
        %s935 = smul.addr %s934, 6
        %s936 = smul.addr %s935, 8
        %s937 = scalar_lea.vmem %s12, %s936
        %s938 = sld [smem:[#allocation3 + %s38]]
        %s939 = sld [smem:[#allocation3 + %s38]]
        %p940 = scmp.lt.s32.totalorder %s939, 1
        %s941 = scalar_select %p940, %s939, 1
        %s942 = smul.addr %s941, 6
        %s943 = smul.addr %s942, 8
        %s944 = scalar_lea.vmem %s13, %s943
        %s945 = sld [smem:[#allocation3 + %s38]]
        %s946 = sld [smem:[#allocation3 + %s38]]
        %p947 = scmp.lt.s32.totalorder %s946, 1
        %s948 = scalar_select %p947, %s946, 1
        %s949 = smul.addr %s948, 4
        %s950 = smul.addr %s949, 8
        %s951 = scalar_lea.vmem %s14, %s950
        %s952 = sld [smem:[#allocation3 + %s38]]
        %s953 = sld [smem:[#allocation3 + %s38]]
        %p954 = scmp.lt.s32.totalorder %s953, 1
        %s955 = scalar_select %p954, %s953, 1
        %s956 = smul.addr %s955, 4
        %s957 = smul.addr %s956, 8
        %s958 = scalar_lea.vmem %s15, %s957
        %s959 = sld [smem:[#allocation3 + %s38]]
        %s960 = sld [smem:[#allocation3 + %s38]]
        %p961 = scmp.lt.s32.totalorder %s960, 1
        %s962 = scalar_select %p961, %s960, 1
        %s963 = smul.addr %s962, 4
        %s964 = scalar_lea.vmem %s16, %s963
        %s965 = sld [smem:[#allocation3 + %s38]]
        %s966 = sld [smem:[#allocation3 + %s38]]
        %p967 = scmp.lt.s32.totalorder %s966, 1
        %s968 = scalar_select %p967, %s966, 1
        %s969 = scalar_lea.vmem %s17, %s968
        %s970 = sld [smem:[#allocation3 + %s38]]
        %v971 = vlaneseq
        %v972 = vand.u32 %v971, 127
        %v973 = vadd.s32 %v972, 128
        %v974 = vadd.s32 %v972, 256
        %v975 = vadd.s32 %v972, 384
        %vm976 = vcmp.lt.s32.totalorder %v972, 0
        %v977 = vsub.s32 0, %v972
        %v978 = vsel %vm976, %v977, %v972
        %v979 = vshrl.u32 %v978, 6
        %v980 = vand.u32 %v978, 63
        %v981 = vsub.s32 0, %v980
        %v982 = vsel %vm976, %v981, %v980
        %vm983 = vcmp.lt.s32.totalorder %v973, 0
        %v984 = vsub.s32 0, %v973
        %v985 = vsel %vm983, %v984, %v973
        %v986 = vshrl.u32 %v985, 6
        %v987 = vand.u32 %v985, 63
        %v988 = vsub.s32 0, %v987
        %v989 = vsel %vm983, %v988, %v987
        %vm990 = vcmp.lt.s32.totalorder %v974, 0
        %v991 = vsub.s32 0, %v974
        %v992 = vsel %vm990, %v991, %v974
        %v993 = vshrl.u32 %v992, 6
        %v994 = vand.u32 %v992, 63
        %v995 = vsub.s32 0, %v994
        %v996 = vsel %vm990, %v995, %v994
        %vm997 = vcmp.lt.s32.totalorder %v975, 0
        %v998 = vsub.s32 0, %v975
        %v999 = vsel %vm997, %v998, %v975
        %v1000 = vshrl.u32 %v999, 6
        %v1001 = vand.u32 %v999, 63
        %v1002 = vsub.s32 0, %v1001
        %v1003 = vsel %vm997, %v1002, %v1001
        %vm1004 = vcmp.ne.s32.totalorder %v982, 0
        %vm1005 = vcmp.ne.s32.totalorder %v989, 0
        %vm1006 = vcmp.ne.s32.totalorder %v996, 0
        %vm1007 = vcmp.ne.s32.totalorder %v1003, 0
        %vm1008 = vcmp.lt.s32.totalorder %v982, 0
        %vm1009 = vcmp.lt.s32.totalorder %v989, 0
        %vm1010 = vcmp.lt.s32.totalorder %v996, 0
        %vm1011 = vcmp.lt.s32.totalorder %v1003, 0
        %vm1012 = vmand %vm1008, %vm1004
        %vm1013 = vmand %vm1009, %vm1005
        %vm1014 = vmand %vm1010, %vm1006
        %vm1015 = vmand %vm1011, %vm1007
        %v1016 = vadd.s32 %v982, 64
        %v1017 = vadd.s32 %v989, 64
        %v1018 = vadd.s32 %v996, 64
        %v1019 = vadd.s32 %v1003, 64
        %v1020 = vsel %vm1012, %v1016, %v982
        %v1021 = vsel %vm1013, %v1017, %v989
        %v1022 = vsel %vm1014, %v1018, %v996
        %v1023 = vsel %vm1015, %v1019, %v1003
        %v1024 = vld [vmem:[%s862] sm:$0xf]
        %v1025 = vld [vmem:[%s868] sm:$0xff]
        %v1026 = vld [vmem:[%s868 + $0x8] sm:$0xff]
        %v1027 = vld [vmem:[%s875] sm:$0xff]
        %v1028 = vld [vmem:[%s875 + $0x8] sm:$0xff]
        %v1030 = vlaneseq
        %v1031 = vshrl.u32 %v1030, 7
        %v1032 = vsub.s32 0, %v1031
        %v1033 = vrot.slane %v1024, %v1032
        %v1034 = vlaneseq
        %v1035 = vshrl.u32 %v1034, 7
        %v1036 = vsub.s32 1, %v1035
        %v1037 = vrot.slane %v1024, %v1036
        %v1038 = vlaneseq
        %v1039 = vshrl.u32 %v1038, 7
        %v1040 = vsub.s32 2, %v1039
        %v1041 = vrot.slane %v1024, %v1040
        %v1042 = vlaneseq
        %v1043 = vshrl.u32 %v1042, 7
        %v1044 = vsub.s32 3, %v1043
        %v1045 = vrot.slane %v1024, %v1044
        %1046 = vrot.lane.b32.xlu0 %v1033, 2
        %v1047 = vpop.permute.xlu0 %1046
        %1048 = vrot.lane.b32.xlu0 %v1037, 2
        %v1049 = vpop.permute.xlu0 %1048
        %1050 = vrot.lane.b32.xlu0 %v1041, 2
        %v1051 = vpop.permute.xlu0 %1050
        %1052 = vrot.lane.b32.xlu0 %v1045, 2
        %v1053 = vpop.permute.xlu0 %1052
        %vm1054 = vcmask 15360
        %v1055 = vsel %vm1054, %v1047, %v1049
        %v1056 = vsel %vm1054, %v1049, %v1051
        %v1057 = vsel %vm1054, %v1051, %v1053
        %v1062 = vsel %vm1054, 0.0, %v1047
        %v1063 = vadd.s32 %v1020, 4294967294
        %v1064 = vadd.s32 %v1021, 4294967294
        %v1065 = vadd.s32 %v1022, 4294967294
        %v1066 = vadd.s32 %v1023, 4294967294
        %vm1067 = vcmp.ge.s32.totalorder %v1063, 0
        %vm1068 = vcmp.ge.s32.totalorder %v1064, 0
        %vm1069 = vcmp.ge.s32.totalorder %v1065, 0
        %vm1070 = vcmp.ge.s32.totalorder %v1066, 0
        %vm1071 = vcmp.lt.s32.totalorder %v1063, 64
        %vm1072 = vcmp.lt.s32.totalorder %v1064, 64
        %vm1073 = vcmp.lt.s32.totalorder %v1065, 64
        %vm1074 = vcmp.lt.s32.totalorder %v1066, 64
        %vm1075 = vmand %vm1067, %vm1071
        %vm1076 = vmand %vm1068, %vm1072
        %vm1077 = vmand %vm1069, %vm1073
        %vm1078 = vmand %vm1070, %vm1074
        %v1079 = vsel %vm1075, 1, 0
        %v1080 = vsel %vm1076, 1, 0
        %v1081 = vsel %vm1077, 1, 0
        %v1082 = vsel %vm1078, 1, 0
        %v1083 = vcvt.s32.f32 %v1079
        %v1084 = vcvt.s32.f32 %v1080
        %v1085 = vcvt.s32.f32 %v1081
        %v1086 = vcvt.s32.f32 %v1082
        %v1087 = vmul.f32 %v1062, %v1083
        %v1088 = vmul.f32 %v1055, %v1084
        %v1089 = vmul.f32 %v1056, %v1085
        %v1090 = vmul.f32 %v1057, %v1086
        %1092 = vset.pattern.permute.xlu0 0
        %1093 = vperm.xlu0 %1092, %v1025
        %v1094 = vpop.permute.xlu0 %1093
        %1097 = vset.pattern.permute.xlu0 0
        %1098 = vperm.xlu0 %1097, %v1026
        %v1099 = vpop.permute.xlu0 %1098
        %v1101 = vlaneseq
        %v1102 = vshrl.u32 %v1101, 7
        %v1103 = vsub.s32 0, %v1102
        %v1104 = vrot.slane %v1087, %v1103
        %v1105 = vlaneseq
        %v1106 = vshrl.u32 %v1105, 7
        %v1107 = vsub.s32 0, %v1106
        %v1108 = vrot.slane %v1088, %v1107
        %v1109 = vlaneseq
        %v1110 = vshrl.u32 %v1109, 7
        %v1111 = vsub.s32 0, %v1110
        %v1112 = vrot.slane %v1089, %v1111
        %v1113 = vlaneseq
        %v1114 = vshrl.u32 %v1113, 7
        %v1115 = vsub.s32 0, %v1114
        %v1116 = vrot.slane %v1090, %v1115
        %v1117 = vmul.f32 %v1094, %v1104
        %v1118 = vmul.f32 %v1094, %v1108
        %v1119 = vmul.f32 %v1094, %v1112
        %v1120 = vmul.f32 %v1094, %v1116
        %v1121 = vmul.f32 %v1099, %v1104
        %v1122 = vmul.f32 %v1099, %v1108
        %v1123 = vmul.f32 %v1099, %v1112
        %v1124 = vmul.f32 %v1099, %v1116
        %1125 = vrot.lane.b32.xlu0 %v1033, 1
        %v1126 = vpop.permute.xlu0 %1125
        %1127 = vrot.lane.b32.xlu0 %v1037, 1
        %v1128 = vpop.permute.xlu0 %1127
        %1129 = vrot.lane.b32.xlu0 %v1041, 1
        %v1130 = vpop.permute.xlu0 %1129
        %1131 = vrot.lane.b32.xlu0 %v1045, 1
        %v1132 = vpop.permute.xlu0 %1131
        %vm1133 = vcmask 7168
        %v1134 = vsel %vm1133, %v1126, %v1128
        %v1135 = vsel %vm1133, %v1128, %v1130
        %v1136 = vsel %vm1133, %v1130, %v1132
        %v1141 = vsel %vm1133, 0.0, %v1126
        %v1142 = vadd.s32 %v1020, 4294967295
        %v1143 = vadd.s32 %v1021, 4294967295
        %v1144 = vadd.s32 %v1022, 4294967295
        %v1145 = vadd.s32 %v1023, 4294967295
        %vm1146 = vcmp.ge.s32.totalorder %v1142, 0
        %vm1147 = vcmp.ge.s32.totalorder %v1143, 0
        %vm1148 = vcmp.ge.s32.totalorder %v1144, 0
        %vm1149 = vcmp.ge.s32.totalorder %v1145, 0
        %vm1150 = vcmp.lt.s32.totalorder %v1142, 64
        %vm1151 = vcmp.lt.s32.totalorder %v1143, 64
        %vm1152 = vcmp.lt.s32.totalorder %v1144, 64
        %vm1153 = vcmp.lt.s32.totalorder %v1145, 64
        %vm1154 = vmand %vm1146, %vm1150
        %vm1155 = vmand %vm1147, %vm1151
        %vm1156 = vmand %vm1148, %vm1152
        %vm1157 = vmand %vm1149, %vm1153
        %v1158 = vsel %vm1154, 1, 0
        %v1159 = vsel %vm1155, 1, 0
        %v1160 = vsel %vm1156, 1, 0
        %v1161 = vsel %vm1157, 1, 0
        %v1162 = vcvt.s32.f32 %v1158
        %v1163 = vcvt.s32.f32 %v1159
        %v1164 = vcvt.s32.f32 %v1160
        %v1165 = vcvt.s32.f32 %v1161
        %v1166 = vmul.f32 %v1141, %v1162
        %v1167 = vmul.f32 %v1134, %v1163
        %v1168 = vmul.f32 %v1135, %v1164
        %v1169 = vmul.f32 %v1136, %v1165
        %1170 = vset.pattern.permute.xlu0 1
        %1171 = vperm.xlu0 %1170, %v1025
        %v1172 = vpop.permute.xlu0 %1171
        %1174 = vset.pattern.permute.xlu0 1
        %1175 = vperm.xlu0 %1174, %v1026
        %v1176 = vpop.permute.xlu0 %1175
        %v1178 = vlaneseq
        %v1179 = vshrl.u32 %v1178, 7
        %v1180 = vsub.s32 0, %v1179
        %v1181 = vrot.slane %v1166, %v1180
        %v1182 = vlaneseq
        %v1183 = vshrl.u32 %v1182, 7
        %v1184 = vsub.s32 0, %v1183
        %v1185 = vrot.slane %v1167, %v1184
        %v1186 = vlaneseq
        %v1187 = vshrl.u32 %v1186, 7
        %v1188 = vsub.s32 0, %v1187
        %v1189 = vrot.slane %v1168, %v1188
        %v1190 = vlaneseq
        %v1191 = vshrl.u32 %v1190, 7
        %v1192 = vsub.s32 0, %v1191
        %v1193 = vrot.slane %v1169, %v1192
        %v1194 = vmul.f32 %v1172, %v1181
        %v1195 = vmul.f32 %v1172, %v1185
        %v1196 = vmul.f32 %v1172, %v1189
        %v1197 = vmul.f32 %v1172, %v1193
        %v1198 = vmul.f32 %v1176, %v1181
        %v1199 = vmul.f32 %v1176, %v1185
        %v1200 = vmul.f32 %v1176, %v1189
        %v1201 = vmul.f32 %v1176, %v1193
        %v1202 = vadd.f32 %v1117, %v1194
        %v1203 = vadd.f32 %v1118, %v1195
        %v1204 = vadd.f32 %v1119, %v1196
        %v1205 = vadd.f32 %v1120, %v1197
        %v1206 = vadd.f32 %v1121, %v1198
        %v1207 = vadd.f32 %v1122, %v1199
        %v1208 = vadd.f32 %v1123, %v1200
        %v1209 = vadd.f32 %v1124, %v1201
        %1210 = vset.pattern.permute.xlu0 2
        %1211 = vperm.xlu0 %1210, %v1025
        %v1212 = vpop.permute.xlu0 %1211
        %1214 = vset.pattern.permute.xlu0 2
        %1215 = vperm.xlu0 %1214, %v1026
        %v1216 = vpop.permute.xlu0 %1215
        %v1222 = vmul.f32 %v1212, %v1033
        %v1223 = vmul.f32 %v1212, %v1037
        %v1224 = vmul.f32 %v1212, %v1041
        %v1225 = vmul.f32 %v1212, %v1045
        %v1226 = vmul.f32 %v1216, %v1033
        %v1227 = vmul.f32 %v1216, %v1037
        %v1228 = vmul.f32 %v1216, %v1041
        %v1229 = vmul.f32 %v1216, %v1045
        %v1230 = vadd.f32 %v1202, %v1222
        %v1231 = vadd.f32 %v1203, %v1223
        %v1232 = vadd.f32 %v1204, %v1224
        %v1233 = vadd.f32 %v1205, %v1225
        %v1234 = vadd.f32 %v1206, %v1226
        %v1235 = vadd.f32 %v1207, %v1227
        %v1236 = vadd.f32 %v1208, %v1228
        %v1237 = vadd.f32 %v1209, %v1229
        %1238 = vrot.lane.b32.xlu0 %v1033, 127
        %v1239 = vpop.permute.xlu0 %1238
        %1240 = vrot.lane.b32.xlu0 %v1037, 127
        %v1241 = vpop.permute.xlu0 %1240
        %1242 = vrot.lane.b32.xlu0 %v1041, 127
        %v1243 = vpop.permute.xlu0 %1242
        %1244 = vrot.lane.b32.xlu0 %v1045, 127
        %v1245 = vpop.permute.xlu0 %1244
        %vm1246 = vcmask 1039360
        %v1247 = vsel %vm1246, %v1239, %v1241
        %v1248 = vsel %vm1246, %v1241, %v1243
        %v1249 = vsel %vm1246, %v1243, %v1245
        %v1254 = vsel %vm1246, %v1245, 0.0
        %v1255 = vadd.s32 %v1020, 1
        %v1256 = vadd.s32 %v1021, 1
        %v1257 = vadd.s32 %v1022, 1
        %v1258 = vadd.s32 %v1023, 1
        %vm1259 = vcmp.ge.s32.totalorder %v1255, 0
        %vm1260 = vcmp.ge.s32.totalorder %v1256, 0
        %vm1261 = vcmp.ge.s32.totalorder %v1257, 0
        %vm1262 = vcmp.ge.s32.totalorder %v1258, 0
        %vm1263 = vcmp.lt.s32.totalorder %v1255, 64
        %vm1264 = vcmp.lt.s32.totalorder %v1256, 64
        %vm1265 = vcmp.lt.s32.totalorder %v1257, 64
        %vm1266 = vcmp.lt.s32.totalorder %v1258, 64
        %vm1267 = vmand %vm1259, %vm1263
        %vm1268 = vmand %vm1260, %vm1264
        %vm1269 = vmand %vm1261, %vm1265
        %vm1270 = vmand %vm1262, %vm1266
        %v1271 = vsel %vm1267, 1, 0
        %v1272 = vsel %vm1268, 1, 0
        %v1273 = vsel %vm1269, 1, 0
        %v1274 = vsel %vm1270, 1, 0
        %v1275 = vcvt.s32.f32 %v1271
        %v1276 = vcvt.s32.f32 %v1272
        %v1277 = vcvt.s32.f32 %v1273
        %v1278 = vcvt.s32.f32 %v1274
        %v1279 = vmul.f32 %v1247, %v1275
        %v1280 = vmul.f32 %v1248, %v1276
        %v1281 = vmul.f32 %v1249, %v1277
        %v1282 = vmul.f32 %v1254, %v1278
        %1283 = vset.pattern.permute.xlu0 3
        %1284 = vperm.xlu0 %1283, %v1025
        %v1285 = vpop.permute.xlu0 %1284
        %1287 = vset.pattern.permute.xlu0 3
        %1288 = vperm.xlu0 %1287, %v1026
        %v1289 = vpop.permute.xlu0 %1288
        %v1291 = vlaneseq
        %v1292 = vshrl.u32 %v1291, 7
        %v1293 = vsub.s32 0, %v1292
        %v1294 = vrot.slane %v1279, %v1293
        %v1295 = vlaneseq
        %v1296 = vshrl.u32 %v1295, 7
        %v1297 = vsub.s32 0, %v1296
        %v1298 = vrot.slane %v1280, %v1297
        %v1299 = vlaneseq
        %v1300 = vshrl.u32 %v1299, 7
        %v1301 = vsub.s32 0, %v1300
        %v1302 = vrot.slane %v1281, %v1301
        %v1303 = vlaneseq
        %v1304 = vshrl.u32 %v1303, 7
        %v1305 = vsub.s32 0, %v1304
        %v1306 = vrot.slane %v1282, %v1305
        %v1307 = vmul.f32 %v1285, %v1294
        %v1308 = vmul.f32 %v1285, %v1298
        %v1309 = vmul.f32 %v1285, %v1302
        %v1310 = vmul.f32 %v1285, %v1306
        %v1311 = vmul.f32 %v1289, %v1294
        %v1312 = vmul.f32 %v1289, %v1298
        %v1313 = vmul.f32 %v1289, %v1302
        %v1314 = vmul.f32 %v1289, %v1306
        %v1315 = vadd.f32 %v1230, %v1307
        %v1316 = vadd.f32 %v1231, %v1308
        %v1317 = vadd.f32 %v1232, %v1309
        %v1318 = vadd.f32 %v1233, %v1310
        %v1319 = vadd.f32 %v1234, %v1311
        %v1320 = vadd.f32 %v1235, %v1312
        %v1321 = vadd.f32 %v1236, %v1313
        %v1322 = vadd.f32 %v1237, %v1314
        %1323 = vrot.lane.b32.xlu0 %v1033, 126
        %v1324 = vpop.permute.xlu0 %1323
        %1325 = vrot.lane.b32.xlu0 %v1037, 126
        %v1326 = vpop.permute.xlu0 %1325
        %1327 = vrot.lane.b32.xlu0 %v1041, 126
        %v1328 = vpop.permute.xlu0 %1327
        %1329 = vrot.lane.b32.xlu0 %v1045, 126
        %v1330 = vpop.permute.xlu0 %1329
        %vm1331 = vcmask 1031168
        %v1332 = vsel %vm1331, %v1324, %v1326
        %v1333 = vsel %vm1331, %v1326, %v1328
        %v1334 = vsel %vm1331, %v1328, %v1330
        %v1339 = vsel %vm1331, %v1330, 0.0
        %v1340 = vadd.s32 %v1020, 2
        %v1341 = vadd.s32 %v1021, 2
        %v1342 = vadd.s32 %v1022, 2
        %v1343 = vadd.s32 %v1023, 2
        %vm1344 = vcmp.ge.s32.totalorder %v1340, 0
        %vm1345 = vcmp.ge.s32.totalorder %v1341, 0
        %vm1346 = vcmp.ge.s32.totalorder %v1342, 0
        %vm1347 = vcmp.ge.s32.totalorder %v1343, 0
        %vm1348 = vcmp.lt.s32.totalorder %v1340, 64
        %vm1349 = vcmp.lt.s32.totalorder %v1341, 64
        %vm1350 = vcmp.lt.s32.totalorder %v1342, 64
        %vm1351 = vcmp.lt.s32.totalorder %v1343, 64
        %vm1352 = vmand %vm1344, %vm1348
        %vm1353 = vmand %vm1345, %vm1349
        %vm1354 = vmand %vm1346, %vm1350
        %vm1355 = vmand %vm1347, %vm1351
        %v1356 = vsel %vm1352, 1, 0
        %v1357 = vsel %vm1353, 1, 0
        %v1358 = vsel %vm1354, 1, 0
        %v1359 = vsel %vm1355, 1, 0
        %v1360 = vcvt.s32.f32 %v1356
        %v1361 = vcvt.s32.f32 %v1357
        %v1362 = vcvt.s32.f32 %v1358
        %v1363 = vcvt.s32.f32 %v1359
        %v1364 = vmul.f32 %v1332, %v1360
        %v1365 = vmul.f32 %v1333, %v1361
        %v1366 = vmul.f32 %v1334, %v1362
        %v1367 = vmul.f32 %v1339, %v1363
        %1368 = vset.pattern.permute.xlu0 4
        %1369 = vperm.xlu0 %1368, %v1025
        %v1370 = vpop.permute.xlu0 %1369
        %1372 = vset.pattern.permute.xlu0 4
        %1373 = vperm.xlu0 %1372, %v1026
        %v1374 = vpop.permute.xlu0 %1373
        %v1376 = vlaneseq
        %v1377 = vshrl.u32 %v1376, 7
        %v1378 = vsub.s32 0, %v1377
        %v1379 = vrot.slane %v1364, %v1378
        %v1380 = vlaneseq
        %v1381 = vshrl.u32 %v1380, 7
        %v1382 = vsub.s32 0, %v1381
        %v1383 = vrot.slane %v1365, %v1382
        %v1384 = vlaneseq
        %v1385 = vshrl.u32 %v1384, 7
        %v1386 = vsub.s32 0, %v1385
        %v1387 = vrot.slane %v1366, %v1386
        %v1388 = vlaneseq
        %v1389 = vshrl.u32 %v1388, 7
        %v1390 = vsub.s32 0, %v1389
        %v1391 = vrot.slane %v1367, %v1390
        %v1392 = vmul.f32 %v1370, %v1379
        %v1393 = vmul.f32 %v1370, %v1383
        %v1394 = vmul.f32 %v1370, %v1387
        %v1395 = vmul.f32 %v1370, %v1391
        %v1396 = vmul.f32 %v1374, %v1379
        %v1397 = vmul.f32 %v1374, %v1383
        %v1398 = vmul.f32 %v1374, %v1387
        %v1399 = vmul.f32 %v1374, %v1391
        %v1400 = vadd.f32 %v1315, %v1392
        %v1401 = vadd.f32 %v1316, %v1393
        %v1402 = vadd.f32 %v1317, %v1394
        %v1403 = vadd.f32 %v1318, %v1395
        %v1404 = vadd.f32 %v1319, %v1396
        %v1405 = vadd.f32 %v1320, %v1397
        %v1406 = vadd.f32 %v1321, %v1398
        %v1407 = vadd.f32 %v1322, %v1399
        %1409 = vset.pattern.permute.xlu0 0
        %1410 = vperm.xlu0 %1409, %v1027
        %v1411 = vpop.permute.xlu0 %1410
        %1414 = vset.pattern.permute.xlu0 0
        %1415 = vperm.xlu0 %1414, %v1028
        %v1416 = vpop.permute.xlu0 %1415
        %v1418 = vadd.f32 %v1400, %v1411
        %v1419 = vadd.f32 %v1401, %v1411
        %v1420 = vadd.f32 %v1402, %v1411
        %v1421 = vadd.f32 %v1403, %v1411
        %v1422 = vadd.f32 %v1404, %v1416
        %v1423 = vadd.f32 %v1405, %v1416
        %v1424 = vadd.f32 %v1406, %v1416
        %v1425 = vadd.f32 %v1407, %v1416
        %v1426 = vmax.f32 %v1418, 0.0
        %v1427 = vmax.f32 %v1419, 0.0
        %v1428 = vmax.f32 %v1420, 0.0
        %v1429 = vmax.f32 %v1421, 0.0
        %v1430 = vmax.f32 %v1422, 0.0
        %v1431 = vmax.f32 %v1423, 0.0
        %v1432 = vmax.f32 %v1424, 0.0
        %v1433 = vmax.f32 %v1425, 0.0
        %v1434 = vld [vmem:[%s896] sm:$0xff]
        %v1435 = vld [vmem:[%s903] sm:$0xff]
        %1437 = vset.pattern.permute.xlu0 0
        %1438 = vperm.xlu0 %1437, %v1435
        %v1439 = vpop.permute.xlu0 %1438
        %vm1441 = vcmask 130048
        %v1443 = vsel %vm1441, %v1434, 0
        %1445 = vmatprep.subr.mxu0 %v1427
        %1446 = vmatpush1.msra.mxu0 %v1426
        %1447 = vmatprep.subr.mxu0 %v1431
        %1448 = vmatpush1.msra.mxu0 %v1430
        %1449 = vmatprep.subr.mxu0 0.0
        %1450 = vmatpush1.msra.mxu0 0.0
        %1451 = vmatprep.subr.mxu0 0.0
        %1452 = vmatpush1.msra.mxu0 0.0
        %1453 = vmatprep.subr.mxu0 0.0
        %1454 = vmatpush1.msra.mxu0 0.0
        %1455 = vmatprep.subr.mxu0 0.0
        %1456 = vmatpush1.msra.mxu0 0.0
        %1457 = vmatprep.subr.mxu0 0.0
        %1458 = vmatpush1.msra.mxu0 0.0
        %1459 = vmatprep.subr.mxu0 0.0
        %1460 = vmatpush1.msra.mxu0 0.0
        %1461 = vmatprep.subr.mxu0 0.0
        %1462 = vmatpush1.msra.mxu0 0.0
        %1463 = vmatprep.subr.mxu0 0.0
        %1464 = vmatpush1.msra.mxu0 0.0
        %1465 = vmatprep.subr.mxu0 0.0
        %1466 = vmatpush1.msra.mxu0 0.0
        %1467 = vmatprep.subr.mxu0 0.0
        %1468 = vmatpush1.msra.mxu0 0.0
        %1469 = vmatprep.subr.mxu0 0.0
        %1470 = vmatpush1.msra.mxu0 0.0
        %1471 = vmatprep.subr.mxu0 0.0
        %1472 = vmatpush1.msra.mxu0 0.0
        %1473 = vmatprep.subr.mxu0 0.0
        %1474 = vmatpush1.msra.mxu0 0.0
        %1475 = vmatprep.subr.mxu0 0.0
        %1476 = vmatpush1.msra.mxu0 0.0
        %1477 = vmatprep.subr.mxu0 0.0
        %1478 = vmatpush1.msra.mxu0 0.0
        %1479 = vmatprep.subr.mxu0 0.0
        %1480 = vmatpush1.msra.mxu0 0.0
        %1481 = vmatprep.subr.mxu0 0.0
        %1482 = vmatpush1.msra.mxu0 0.0
        %1483 = vmatprep.subr.mxu0 0.0
        %1484 = vmatpush1.msra.mxu0 0.0
        %1485 = vmatprep.subr.mxu0 0.0
        %1486 = vmatpush1.msra.mxu0 0.0
        %1487 = vmatprep.subr.mxu0 0.0
        %1488 = vmatpush1.msra.mxu0 0.0
        %1489 = vmatprep.subr.mxu0 0.0
        %1490 = vmatpush1.msra.mxu0 0.0
        %1491 = vmatprep.subr.mxu0 0.0
        %1492 = vmatpush1.msra.mxu0 0.0
        %1493 = vmatprep.subr.mxu0 0.0
        %1494 = vmatpush1.msra.mxu0 0.0
        %1495 = vmatprep.subr.mxu0 0.0
        %1496 = vmatpush1.msra.mxu0 0.0
        %1497 = vmatprep.subr.mxu0 0.0
        %1498 = vmatpush1.msra.mxu0 0.0
        %1499 = vmatprep.subr.mxu0 0.0
        %1500 = vmatpush1.msra.mxu0 0.0
        %1501 = vmatprep.subr.mxu0 0.0
        %1502 = vmatpush1.msra.mxu0 0.0
        %1503 = vmatprep.subr.mxu0 0.0
        %1504 = vmatpush1.msra.mxu0 0.0
        %1505 = vmatprep.subr.mxu0 0.0
        %1506 = vmatpush1.msra.mxu0 0.0
        %1507 = vmatprep.subr.mxu0 0.0
        %1508 = vmatpush1.msra.mxu0 0.0
        %1509 = vmatprep.mubr.f32.mxu0 0.0
        %1510 = vmatmul.mubr.f32.gmra.mrb[0].mxu0 %v1443
        %v1511 = vpop.f32.mrb[0].mxu0
        %v1512 = vadd.f32 %v1439, %v1511
        %v1513 = vpop.f32.mrb[0].mxu0
        %v1514 = vadd.f32 %v1439, %v1513
        %1515 = vdwg.mxu0
        %1516 = vmatprep.subr.mxu0 %v1429
        %1517 = vmatpush1.msra.mxu0 %v1428
        %1518 = vmatprep.subr.mxu0 %v1433
        %1519 = vmatpush1.msra.mxu0 %v1432
        %1520 = vmatprep.subr.mxu0 0.0
        %1521 = vmatpush1.msra.mxu0 0.0
        %1522 = vmatprep.subr.mxu0 0.0
        %1523 = vmatpush1.msra.mxu0 0.0
        %1524 = vmatprep.subr.mxu0 0.0
        %1525 = vmatpush1.msra.mxu0 0.0
        %1526 = vmatprep.subr.mxu0 0.0
        %1527 = vmatpush1.msra.mxu0 0.0
        %1528 = vmatprep.subr.mxu0 0.0
        %1529 = vmatpush1.msra.mxu0 0.0
        %1530 = vmatprep.subr.mxu0 0.0
        %1531 = vmatpush1.msra.mxu0 0.0
        %1532 = vmatprep.subr.mxu0 0.0
        %1533 = vmatpush1.msra.mxu0 0.0
        %1534 = vmatprep.subr.mxu0 0.0
        %1535 = vmatpush1.msra.mxu0 0.0
        %1536 = vmatprep.subr.mxu0 0.0
        %1537 = vmatpush1.msra.mxu0 0.0
        %1538 = vmatprep.subr.mxu0 0.0
        %1539 = vmatpush1.msra.mxu0 0.0
        %1540 = vmatprep.subr.mxu0 0.0
        %1541 = vmatpush1.msra.mxu0 0.0
        %1542 = vmatprep.subr.mxu0 0.0
        %1543 = vmatpush1.msra.mxu0 0.0
        %1544 = vmatprep.subr.mxu0 0.0
        %1545 = vmatpush1.msra.mxu0 0.0
        %1546 = vmatprep.subr.mxu0 0.0
        %1547 = vmatpush1.msra.mxu0 0.0
        %1548 = vmatprep.subr.mxu0 0.0
        %1549 = vmatpush1.msra.mxu0 0.0
        %1550 = vmatprep.subr.mxu0 0.0
        %1551 = vmatpush1.msra.mxu0 0.0
        %1552 = vmatprep.subr.mxu0 0.0
        %1553 = vmatpush1.msra.mxu0 0.0
        %1554 = vmatprep.subr.mxu0 0.0
        %1555 = vmatpush1.msra.mxu0 0.0
        %1556 = vmatprep.subr.mxu0 0.0
        %1557 = vmatpush1.msra.mxu0 0.0
        %1558 = vmatprep.subr.mxu0 0.0
        %1559 = vmatpush1.msra.mxu0 0.0
        %1560 = vmatprep.subr.mxu0 0.0
        %1561 = vmatpush1.msra.mxu0 0.0
        %1562 = vmatprep.subr.mxu0 0.0
        %1563 = vmatpush1.msra.mxu0 0.0
        %1564 = vmatprep.subr.mxu0 0.0
        %1565 = vmatpush1.msra.mxu0 0.0
        %1566 = vmatprep.subr.mxu0 0.0
        %1567 = vmatpush1.msra.mxu0 0.0
        %1568 = vmatprep.subr.mxu0 0.0
        %1569 = vmatpush1.msra.mxu0 0.0
        %1570 = vmatprep.subr.mxu0 0.0
        %1571 = vmatpush1.msra.mxu0 0.0
        %1572 = vmatprep.subr.mxu0 0.0
        %1573 = vmatpush1.msra.mxu0 0.0
        %1574 = vmatprep.subr.mxu0 0.0
        %1575 = vmatpush1.msra.mxu0 0.0
        %1576 = vmatprep.subr.mxu0 0.0
        %1577 = vmatpush1.msra.mxu0 0.0
        %1578 = vmatprep.subr.mxu0 0.0
        %1579 = vmatpush1.msra.mxu0 0.0
        %1580 = vmatprep.mubr.f32.mxu0 0.0
        %1581 = vmatmul.mubr.f32.gmra.mrb[0].mxu0 %v1443
        %v1582 = vpop.f32.mrb[0].mxu0
        %v1583 = vadd.f32 %v1439, %v1582
        %v1584 = vpop.f32.mrb[0].mxu0
        %v1585 = vadd.f32 %v1439, %v1584
        %1586 = vdwg.mxu0
        %v1587 = vmax.f32 %v1512, 0.0
        %v1588 = vmax.f32 %v1514, 0.0
        %v1589 = vmax.f32 %v1583, 0.0
        %v1590 = vmax.f32 %v1585, 0.0
        %v1591 = vld [vmem:[%s910] sm:$0xff]
        %v1592 = vld [vmem:[%s882] sm:$0xff]
        %v1593 = vld [vmem:[%s882 + $0x8] sm:$0xff]
        %v1594 = vld [vmem:[%s889] sm:$0xff]
        %v1595 = vld [vmem:[%s889 + $0x8] sm:$0xff]
        %1600 = vrot.lane.b32.xlu0 %v1587, 4
        %v1601 = vpop.permute.xlu0 %1600
        %1602 = vrot.lane.b32.xlu0 %v1588, 4
        %v1603 = vpop.permute.xlu0 %1602
        %1604 = vrot.lane.b32.xlu0 %v1589, 4
        %v1605 = vpop.permute.xlu0 %1604
        %1606 = vrot.lane.b32.xlu0 %v1590, 4
        %v1607 = vpop.permute.xlu0 %1606
        %vm1608 = vcmask 31744
        %v1609 = vsel %vm1608, %v1601, %v1603
        %v1610 = vsel %vm1608, %v1603, %v1605
        %v1611 = vsel %vm1608, %v1605, %v1607
        %v1616 = vsel %vm1608, 0.0, %v1601
        %v1617 = vadd.s32 %v1020, 4294967292
        %v1618 = vadd.s32 %v1021, 4294967292
        %v1619 = vadd.s32 %v1022, 4294967292
        %v1620 = vadd.s32 %v1023, 4294967292
        %vm1621 = vcmp.ge.s32.totalorder %v1617, 0
        %vm1622 = vcmp.ge.s32.totalorder %v1618, 0
        %vm1623 = vcmp.ge.s32.totalorder %v1619, 0
        %vm1624 = vcmp.ge.s32.totalorder %v1620, 0
        %vm1625 = vcmp.lt.s32.totalorder %v1617, 64
        %vm1626 = vcmp.lt.s32.totalorder %v1618, 64
        %vm1627 = vcmp.lt.s32.totalorder %v1619, 64
        %vm1628 = vcmp.lt.s32.totalorder %v1620, 64
        %vm1629 = vmand %vm1621, %vm1625
        %vm1630 = vmand %vm1622, %vm1626
        %vm1631 = vmand %vm1623, %vm1627
        %vm1632 = vmand %vm1624, %vm1628
        %v1633 = vsel %vm1629, 1, 0
        %v1634 = vsel %vm1630, 1, 0
        %v1635 = vsel %vm1631, 1, 0
        %v1636 = vsel %vm1632, 1, 0
        %v1637 = vcvt.s32.f32 %v1633
        %v1638 = vcvt.s32.f32 %v1634
        %v1639 = vcvt.s32.f32 %v1635
        %v1640 = vcvt.s32.f32 %v1636
        %v1641 = vmul.f32 %v1616, %v1637
        %v1642 = vmul.f32 %v1609, %v1638
        %v1643 = vmul.f32 %v1610, %v1639
        %v1644 = vmul.f32 %v1611, %v1640
        %1645 = vrot.lane.b32.xlu0 %v1587, 2
        %v1646 = vpop.permute.xlu0 %1645
        %1647 = vrot.lane.b32.xlu0 %v1588, 2
        %v1648 = vpop.permute.xlu0 %1647
        %1649 = vrot.lane.b32.xlu0 %v1589, 2
        %v1650 = vpop.permute.xlu0 %1649
        %1651 = vrot.lane.b32.xlu0 %v1590, 2
        %v1652 = vpop.permute.xlu0 %1651
        %v1653 = vsel %vm1054, %v1646, %v1648
        %v1654 = vsel %vm1054, %v1648, %v1650
        %v1655 = vsel %vm1054, %v1650, %v1652
        %v1660 = vsel %vm1054, 0.0, %v1646
        %v1661 = vmul.f32 %v1660, %v1083
        %v1662 = vmul.f32 %v1653, %v1084
        %v1663 = vmul.f32 %v1654, %v1085
        %v1664 = vmul.f32 %v1655, %v1086
        %1665 = vrot.lane.b32.xlu0 %v1587, 126
        %v1666 = vpop.permute.xlu0 %1665
        %1667 = vrot.lane.b32.xlu0 %v1588, 126
        %v1668 = vpop.permute.xlu0 %1667
        %1669 = vrot.lane.b32.xlu0 %v1589, 126
        %v1670 = vpop.permute.xlu0 %1669
        %1671 = vrot.lane.b32.xlu0 %v1590, 126
        %v1672 = vpop.permute.xlu0 %1671
        %v1673 = vsel %vm1331, %v1666, %v1668
        %v1674 = vsel %vm1331, %v1668, %v1670
        %v1675 = vsel %vm1331, %v1670, %v1672
        %v1680 = vsel %vm1331, %v1672, 0.0
        %v1681 = vmul.f32 %v1673, %v1360
        %v1682 = vmul.f32 %v1674, %v1361
        %v1683 = vmul.f32 %v1675, %v1362
        %v1684 = vmul.f32 %v1680, %v1363
        %1685 = vrot.lane.b32.xlu0 %v1587, 124
        %v1686 = vpop.permute.xlu0 %1685
        %1687 = vrot.lane.b32.xlu0 %v1588, 124
        %v1688 = vpop.permute.xlu0 %1687
        %1689 = vrot.lane.b32.xlu0 %v1589, 124
        %v1690 = vpop.permute.xlu0 %1689
        %1691 = vrot.lane.b32.xlu0 %v1590, 124
        %v1692 = vpop.permute.xlu0 %1691
        %vm1693 = vcmask 1014784
        %v1694 = vsel %vm1693, %v1686, %v1688
        %v1695 = vsel %vm1693, %v1688, %v1690
        %v1696 = vsel %vm1693, %v1690, %v1692
        %v1701 = vsel %vm1693, %v1692, 0.0
        %v1702 = vadd.s32 %v1020, 4
        %v1703 = vadd.s32 %v1021, 4
        %v1704 = vadd.s32 %v1022, 4
        %v1705 = vadd.s32 %v1023, 4
        %vm1706 = vcmp.ge.s32.totalorder %v1702, 0
        %vm1707 = vcmp.ge.s32.totalorder %v1703, 0
        %vm1708 = vcmp.ge.s32.totalorder %v1704, 0
        %vm1709 = vcmp.ge.s32.totalorder %v1705, 0
        %vm1710 = vcmp.lt.s32.totalorder %v1702, 64
        %vm1711 = vcmp.lt.s32.totalorder %v1703, 64
        %vm1712 = vcmp.lt.s32.totalorder %v1704, 64
        %vm1713 = vcmp.lt.s32.totalorder %v1705, 64
        %vm1714 = vmand %vm1706, %vm1710
        %vm1715 = vmand %vm1707, %vm1711
        %vm1716 = vmand %vm1708, %vm1712
        %vm1717 = vmand %vm1709, %vm1713
        %v1718 = vsel %vm1714, 1, 0
        %v1719 = vsel %vm1715, 1, 0
        %v1720 = vsel %vm1716, 1, 0
        %v1721 = vsel %vm1717, 1, 0
        %v1722 = vcvt.s32.f32 %v1718
        %v1723 = vcvt.s32.f32 %v1719
        %v1724 = vcvt.s32.f32 %v1720
        %v1725 = vcvt.s32.f32 %v1721
        %v1726 = vmul.f32 %v1694, %v1722
        %v1727 = vmul.f32 %v1695, %v1723
        %v1728 = vmul.f32 %v1696, %v1724
        %v1729 = vmul.f32 %v1701, %v1725
        %1731 = vset.pattern.permute.xlu0 0
        %1732 = vperm.xlu0 %1731, %v1594
        %v1733 = vpop.permute.xlu0 %1732
        %1736 = vset.pattern.permute.xlu0 0
        %1737 = vperm.xlu0 %1736, %v1595
        %v1738 = vpop.permute.xlu0 %1737
        %vm1740 = vcmask 326656
        %v1742 = vsel %vm1740, %v1592, 0
        %v1745 = vsel %vm1740, %v1593, 0
        %1747 = vmatprep.subr.mxu0 %v1642
        %1748 = vmatpush1.msra.mxu0 %v1641
        %1749 = vmatprep.subr.mxu0 %v1662
        %1750 = vmatpush1.msra.mxu0 %v1661
        %1751 = vmatprep.subr.mxu0 %v1588
        %1752 = vmatpush1.msra.mxu0 %v1587
        %1753 = vmatprep.subr.mxu0 %v1682
        %1754 = vmatpush1.msra.mxu0 %v1681
        %1755 = vmatprep.subr.mxu0 %v1727
        %1756 = vmatpush1.msra.mxu0 %v1726
        %1757 = vmatprep.subr.mxu0 0.0
        %1758 = vmatpush1.msra.mxu0 0.0
        %1759 = vmatprep.subr.mxu0 0.0
        %1760 = vmatpush1.msra.mxu0 0.0
        %1761 = vmatprep.subr.mxu0 0.0
        %1762 = vmatpush1.msra.mxu0 0.0
        %1763 = vmatprep.subr.mxu0 0.0
        %1764 = vmatpush1.msra.mxu0 0.0
        %1765 = vmatprep.subr.mxu0 0.0
        %1766 = vmatpush1.msra.mxu0 0.0
        %1767 = vmatprep.subr.mxu0 0.0
        %1768 = vmatpush1.msra.mxu0 0.0
        %1769 = vmatprep.subr.mxu0 0.0
        %1770 = vmatpush1.msra.mxu0 0.0
        %1771 = vmatprep.subr.mxu0 0.0
        %1772 = vmatpush1.msra.mxu0 0.0
        %1773 = vmatprep.subr.mxu0 0.0
        %1774 = vmatpush1.msra.mxu0 0.0
        %1775 = vmatprep.subr.mxu0 0.0
        %1776 = vmatpush1.msra.mxu0 0.0
        %1777 = vmatprep.subr.mxu0 0.0
        %1778 = vmatpush1.msra.mxu0 0.0
        %1779 = vmatprep.subr.mxu0 0.0
        %1780 = vmatpush1.msra.mxu0 0.0
        %1781 = vmatprep.subr.mxu0 0.0
        %1782 = vmatpush1.msra.mxu0 0.0
        %1783 = vmatprep.subr.mxu0 0.0
        %1784 = vmatpush1.msra.mxu0 0.0
        %1785 = vmatprep.subr.mxu0 0.0
        %1786 = vmatpush1.msra.mxu0 0.0
        %1787 = vmatprep.subr.mxu0 0.0
        %1788 = vmatpush1.msra.mxu0 0.0
        %1789 = vmatprep.subr.mxu0 0.0
        %1790 = vmatpush1.msra.mxu0 0.0
        %1791 = vmatprep.subr.mxu0 0.0
        %1792 = vmatpush1.msra.mxu0 0.0
        %1793 = vmatprep.subr.mxu0 0.0
        %1794 = vmatpush1.msra.mxu0 0.0
        %1795 = vmatprep.subr.mxu0 0.0
        %1796 = vmatpush1.msra.mxu0 0.0
        %1797 = vmatprep.subr.mxu0 0.0
        %1798 = vmatpush1.msra.mxu0 0.0
        %1799 = vmatprep.subr.mxu0 0.0
        %1800 = vmatpush1.msra.mxu0 0.0
        %1801 = vmatprep.subr.mxu0 0.0
        %1802 = vmatpush1.msra.mxu0 0.0
        %1803 = vmatprep.subr.mxu0 0.0
        %1804 = vmatpush1.msra.mxu0 0.0
        %1805 = vmatprep.subr.mxu0 0.0
        %1806 = vmatpush1.msra.mxu0 0.0
        %1807 = vmatprep.subr.mxu0 0.0
        %1808 = vmatpush1.msra.mxu0 0.0
        %1809 = vmatprep.subr.mxu0 0.0
        %1810 = vmatpush1.msra.mxu0 0.0
        %1811 = vmatprep.mubr.f32.mxu0 0.0
        %1812 = vmatmul.mubr.f32.gmra.mrb[0].mxu0 %v1742
        %v1813 = vpop.f32.mrb[0].mxu0
        %v1814 = vadd.f32 %v1733, %v1813
        %v1815 = vpop.f32.mrb[0].mxu0
        %v1816 = vadd.f32 %v1733, %v1815
        %1817 = vmatprep.mubr.f32.mxu0 0.0
        %1818 = vmatmul.mubr.f32.gmra.mrb[0].mxu0 %v1745
        %v1819 = vpop.f32.mrb[0].mxu0
        %v1820 = vadd.f32 %v1738, %v1819
        %v1821 = vpop.f32.mrb[0].mxu0
        %v1822 = vadd.f32 %v1738, %v1821
        %1823 = vdwg.mxu0
        %1824 = vmatprep.subr.mxu0 %v1644
        %1825 = vmatpush1.msra.mxu0 %v1643
        %1826 = vmatprep.subr.mxu0 %v1664
        %1827 = vmatpush1.msra.mxu0 %v1663
        %1828 = vmatprep.subr.mxu0 %v1590
        %1829 = vmatpush1.msra.mxu0 %v1589
        %1830 = vmatprep.subr.mxu0 %v1684
        %1831 = vmatpush1.msra.mxu0 %v1683
        %1832 = vmatprep.subr.mxu0 %v1729
        %1833 = vmatpush1.msra.mxu0 %v1728
        %1834 = vmatprep.subr.mxu0 0.0
        %1835 = vmatpush1.msra.mxu0 0.0
        %1836 = vmatprep.subr.mxu0 0.0
        %1837 = vmatpush1.msra.mxu0 0.0
        %1838 = vmatprep.subr.mxu0 0.0
        %1839 = vmatpush1.msra.mxu0 0.0
        %1840 = vmatprep.subr.mxu0 0.0
        %1841 = vmatpush1.msra.mxu0 0.0
        %1842 = vmatprep.subr.mxu0 0.0
        %1843 = vmatpush1.msra.mxu0 0.0
        %1844 = vmatprep.subr.mxu0 0.0
        %1845 = vmatpush1.msra.mxu0 0.0
        %1846 = vmatprep.subr.mxu0 0.0
        %1847 = vmatpush1.msra.mxu0 0.0
        %1848 = vmatprep.subr.mxu0 0.0
        %1849 = vmatpush1.msra.mxu0 0.0
        %1850 = vmatprep.subr.mxu0 0.0
        %1851 = vmatpush1.msra.mxu0 0.0
        %1852 = vmatprep.subr.mxu0 0.0
        %1853 = vmatpush1.msra.mxu0 0.0
        %1854 = vmatprep.subr.mxu0 0.0
        %1855 = vmatpush1.msra.mxu0 0.0
        %1856 = vmatprep.subr.mxu0 0.0
        %1857 = vmatpush1.msra.mxu0 0.0
        %1858 = vmatprep.subr.mxu0 0.0
        %1859 = vmatpush1.msra.mxu0 0.0
        %1860 = vmatprep.subr.mxu0 0.0
        %1861 = vmatpush1.msra.mxu0 0.0
        %1862 = vmatprep.subr.mxu0 0.0
        %1863 = vmatpush1.msra.mxu0 0.0
        %1864 = vmatprep.subr.mxu0 0.0
        %1865 = vmatpush1.msra.mxu0 0.0
        %1866 = vmatprep.subr.mxu0 0.0
        %1867 = vmatpush1.msra.mxu0 0.0
        %1868 = vmatprep.subr.mxu0 0.0
        %1869 = vmatpush1.msra.mxu0 0.0
        %1870 = vmatprep.subr.mxu0 0.0
        %1871 = vmatpush1.msra.mxu0 0.0
        %1872 = vmatprep.subr.mxu0 0.0
        %1873 = vmatpush1.msra.mxu0 0.0
        %1874 = vmatprep.subr.mxu0 0.0
        %1875 = vmatpush1.msra.mxu0 0.0
        %1876 = vmatprep.subr.mxu0 0.0
        %1877 = vmatpush1.msra.mxu0 0.0
        %1878 = vmatprep.subr.mxu0 0.0
        %1879 = vmatpush1.msra.mxu0 0.0
        %1880 = vmatprep.subr.mxu0 0.0
        %1881 = vmatpush1.msra.mxu0 0.0
        %1882 = vmatprep.subr.mxu0 0.0
        %1883 = vmatpush1.msra.mxu0 0.0
        %1884 = vmatprep.subr.mxu0 0.0
        %1885 = vmatpush1.msra.mxu0 0.0
        %1886 = vmatprep.subr.mxu0 0.0
        %1887 = vmatpush1.msra.mxu0 0.0
        %1888 = vmatprep.mubr.f32.mxu0 0.0
        %1889 = vmatmul.mubr.f32.gmra.mrb[0].mxu0 %v1742
        %v1890 = vpop.f32.mrb[0].mxu0
        %v1891 = vadd.f32 %v1733, %v1890
        %v1892 = vpop.f32.mrb[0].mxu0
        %v1893 = vadd.f32 %v1733, %v1892
        %1894 = vmatprep.mubr.f32.mxu0 0.0
        %1895 = vmatmul.mubr.f32.gmra.mrb[0].mxu0 %v1745
        %v1896 = vpop.f32.mrb[0].mxu0
        %v1897 = vadd.f32 %v1738, %v1896
        %v1898 = vpop.f32.mrb[0].mxu0
        %v1899 = vadd.f32 %v1738, %v1898
        %1900 = vdwg.mxu0
        %v1901 = vmax.f32 %v1814, 0.0
        %v1902 = vmax.f32 %v1816, 0.0
        %v1903 = vmax.f32 %v1891, 0.0
        %v1904 = vmax.f32 %v1893, 0.0
        %v1905 = vmax.f32 %v1820, 0.0
        %v1906 = vmax.f32 %v1822, 0.0
        %v1907 = vmax.f32 %v1897, 0.0
        %v1908 = vmax.f32 %v1899, 0.0
        %s1909 = scalar_lea.vmem %s896, 8
        %v1910 = vld [vmem:[%s1909] sm:$0xff]
        %s1911 = scalar_lea.vmem %s903, 8
        %v1912 = vld [vmem:[%s1911] sm:$0xff]
        %1914 = vset.pattern.permute.xlu0 0
        %1915 = vperm.xlu0 %1914, %v1912
        %v1916 = vpop.permute.xlu0 %1915
        %v1919 = vsel %vm1441, %v1910, 0
        %1921 = vmatprep.subr.mxu0 %v1902
        %1922 = vmatpush1.msra.mxu0 %v1901
        %1923 = vmatprep.subr.mxu0 %v1906
        %1924 = vmatpush1.msra.mxu0 %v1905
        %1925 = vmatprep.subr.mxu0 0.0
        %1926 = vmatpush1.msra.mxu0 0.0
        %1927 = vmatprep.subr.mxu0 0.0
        %1928 = vmatpush1.msra.mxu0 0.0
        %1929 = vmatprep.subr.mxu0 0.0
        %1930 = vmatpush1.msra.mxu0 0.0
        %1931 = vmatprep.subr.mxu0 0.0
        %1932 = vmatpush1.msra.mxu0 0.0
        %1933 = vmatprep.subr.mxu0 0.0
        %1934 = vmatpush1.msra.mxu0 0.0
        %1935 = vmatprep.subr.mxu0 0.0
        %1936 = vmatpush1.msra.mxu0 0.0
        %1937 = vmatprep.subr.mxu0 0.0
        %1938 = vmatpush1.msra.mxu0 0.0
        %1939 = vmatprep.subr.mxu0 0.0
        %1940 = vmatpush1.msra.mxu0 0.0
        %1941 = vmatprep.subr.mxu0 0.0
        %1942 = vmatpush1.msra.mxu0 0.0
        %1943 = vmatprep.subr.mxu0 0.0
        %1944 = vmatpush1.msra.mxu0 0.0
        %1945 = vmatprep.subr.mxu0 0.0
        %1946 = vmatpush1.msra.mxu0 0.0
        %1947 = vmatprep.subr.mxu0 0.0
        %1948 = vmatpush1.msra.mxu0 0.0
        %1949 = vmatprep.subr.mxu0 0.0
        %1950 = vmatpush1.msra.mxu0 0.0
        %1951 = vmatprep.subr.mxu0 0.0
        %1952 = vmatpush1.msra.mxu0 0.0
        %1953 = vmatprep.subr.mxu0 0.0
        %1954 = vmatpush1.msra.mxu0 0.0
        %1955 = vmatprep.subr.mxu0 0.0
        %1956 = vmatpush1.msra.mxu0 0.0
        %1957 = vmatprep.subr.mxu0 0.0
        %1958 = vmatpush1.msra.mxu0 0.0
        %1959 = vmatprep.subr.mxu0 0.0
        %1960 = vmatpush1.msra.mxu0 0.0
        %1961 = vmatprep.subr.mxu0 0.0
        %1962 = vmatpush1.msra.mxu0 0.0
        %1963 = vmatprep.subr.mxu0 0.0
        %1964 = vmatpush1.msra.mxu0 0.0
        %1965 = vmatprep.subr.mxu0 0.0
        %1966 = vmatpush1.msra.mxu0 0.0
        %1967 = vmatprep.subr.mxu0 0.0
        %1968 = vmatpush1.msra.mxu0 0.0
        %1969 = vmatprep.subr.mxu0 0.0
        %1970 = vmatpush1.msra.mxu0 0.0
        %1971 = vmatprep.subr.mxu0 0.0
        %1972 = vmatpush1.msra.mxu0 0.0
        %1973 = vmatprep.subr.mxu0 0.0
        %1974 = vmatpush1.msra.mxu0 0.0
        %1975 = vmatprep.subr.mxu0 0.0
        %1976 = vmatpush1.msra.mxu0 0.0
        %1977 = vmatprep.subr.mxu0 0.0
        %1978 = vmatpush1.msra.mxu0 0.0
        %1979 = vmatprep.subr.mxu0 0.0
        %1980 = vmatpush1.msra.mxu0 0.0
        %1981 = vmatprep.subr.mxu0 0.0
        %1982 = vmatpush1.msra.mxu0 0.0
        %1983 = vmatprep.subr.mxu0 0.0
        %1984 = vmatpush1.msra.mxu0 0.0
        %1985 = vmatprep.mubr.f32.mxu0 0.0
        %1986 = vmatmul.mubr.f32.gmra.mrb[0].mxu0 %v1919
        %v1987 = vpop.f32.mrb[0].mxu0
        %v1988 = vadd.f32 %v1916, %v1987
        %v1989 = vpop.f32.mrb[0].mxu0
        %v1990 = vadd.f32 %v1916, %v1989
        %1991 = vdwg.mxu0
        %1992 = vmatprep.subr.mxu0 %v1904
        %1993 = vmatpush1.msra.mxu0 %v1903
        %1994 = vmatprep.subr.mxu0 %v1908
        %1995 = vmatpush1.msra.mxu0 %v1907
        %1996 = vmatprep.subr.mxu0 0.0
        %1997 = vmatpush1.msra.mxu0 0.0
        %1998 = vmatprep.subr.mxu0 0.0
        %1999 = vmatpush1.msra.mxu0 0.0
        %2000 = vmatprep.subr.mxu0 0.0
        %2001 = vmatpush1.msra.mxu0 0.0
        %2002 = vmatprep.subr.mxu0 0.0
        %2003 = vmatpush1.msra.mxu0 0.0
        %2004 = vmatprep.subr.mxu0 0.0
        %2005 = vmatpush1.msra.mxu0 0.0
        %2006 = vmatprep.subr.mxu0 0.0
        %2007 = vmatpush1.msra.mxu0 0.0
        %2008 = vmatprep.subr.mxu0 0.0
        %2009 = vmatpush1.msra.mxu0 0.0
        %2010 = vmatprep.subr.mxu0 0.0
        %2011 = vmatpush1.msra.mxu0 0.0
        %2012 = vmatprep.subr.mxu0 0.0
        %2013 = vmatpush1.msra.mxu0 0.0
        %2014 = vmatprep.subr.mxu0 0.0
        %2015 = vmatpush1.msra.mxu0 0.0
        %2016 = vmatprep.subr.mxu0 0.0
        %2017 = vmatpush1.msra.mxu0 0.0
        %2018 = vmatprep.subr.mxu0 0.0
        %2019 = vmatpush1.msra.mxu0 0.0
        %2020 = vmatprep.subr.mxu0 0.0
        %2021 = vmatpush1.msra.mxu0 0.0
        %2022 = vmatprep.subr.mxu0 0.0
        %2023 = vmatpush1.msra.mxu0 0.0
        %2024 = vmatprep.subr.mxu0 0.0
        %2025 = vmatpush1.msra.mxu0 0.0
        %2026 = vmatprep.subr.mxu0 0.0
        %2027 = vmatpush1.msra.mxu0 0.0
        %2028 = vmatprep.subr.mxu0 0.0
        %2029 = vmatpush1.msra.mxu0 0.0
        %2030 = vmatprep.subr.mxu0 0.0
        %2031 = vmatpush1.msra.mxu0 0.0
        %2032 = vmatprep.subr.mxu0 0.0
        %2033 = vmatpush1.msra.mxu0 0.0
        %2034 = vmatprep.subr.mxu0 0.0
        %2035 = vmatpush1.msra.mxu0 0.0
        %2036 = vmatprep.subr.mxu0 0.0
        %2037 = vmatpush1.msra.mxu0 0.0
        %2038 = vmatprep.subr.mxu0 0.0
        %2039 = vmatpush1.msra.mxu0 0.0
        %2040 = vmatprep.subr.mxu0 0.0
        %2041 = vmatpush1.msra.mxu0 0.0
        %2042 = vmatprep.subr.mxu0 0.0
        %2043 = vmatpush1.msra.mxu0 0.0
        %2044 = vmatprep.subr.mxu0 0.0
        %2045 = vmatpush1.msra.mxu0 0.0
        %2046 = vmatprep.subr.mxu0 0.0
        %2047 = vmatpush1.msra.mxu0 0.0
        %2048 = vmatprep.subr.mxu0 0.0
        %2049 = vmatpush1.msra.mxu0 0.0
        %2050 = vmatprep.subr.mxu0 0.0
        %2051 = vmatpush1.msra.mxu0 0.0
        %2052 = vmatprep.subr.mxu0 0.0
        %2053 = vmatpush1.msra.mxu0 0.0
        %2054 = vmatprep.subr.mxu0 0.0
        %2055 = vmatpush1.msra.mxu0 0.0
        %2056 = vmatprep.mubr.f32.mxu0 0.0
        %2057 = vmatmul.mubr.f32.gmra.mrb[0].mxu0 %v1919
        %v2058 = vpop.f32.mrb[0].mxu0
        %v2059 = vadd.f32 %v1916, %v2058
        %v2060 = vpop.f32.mrb[0].mxu0
        %v2061 = vadd.f32 %v1916, %v2060
        %2062 = vdwg.mxu0
        %v2063 = vmax.f32 %v1988, 0.0
        %v2064 = vmax.f32 %v1990, 0.0
        %v2065 = vmax.f32 %v2059, 0.0
        %v2066 = vmax.f32 %v2061, 0.0
        %s2067 = scalar_lea.vmem %s910, 8
        %v2068 = vld [vmem:[%s2067] sm:$0xff]
        %vm2069 = vcmask 64512
        %v2071 = vsel %vm2069, %v2068, 0
        %2073 = vmatprep.subr.mxu0 %v2064
        %2074 = vmatpush1.msra.mxu0 %v2063
        %2075 = vmatprep.subr.mxu0 0.0
        %2076 = vmatpush1.msra.mxu0 0.0
        %2077 = vmatprep.subr.mxu0 0.0
        %2078 = vmatpush1.msra.mxu0 0.0
        %2079 = vmatprep.subr.mxu0 0.0
        %2080 = vmatpush1.msra.mxu0 0.0
        %2081 = vmatprep.subr.mxu0 0.0
        %2082 = vmatpush1.msra.mxu0 0.0
        %2083 = vmatprep.subr.mxu0 0.0
        %2084 = vmatpush1.msra.mxu0 0.0
        %2085 = vmatprep.subr.mxu0 0.0
        %2086 = vmatpush1.msra.mxu0 0.0
        %2087 = vmatprep.subr.mxu0 0.0
        %2088 = vmatpush1.msra.mxu0 0.0
        %2089 = vmatprep.subr.mxu0 0.0
        %2090 = vmatpush1.msra.mxu0 0.0
        %2091 = vmatprep.subr.mxu0 0.0
        %2092 = vmatpush1.msra.mxu0 0.0
        %2093 = vmatprep.subr.mxu0 0.0
        %2094 = vmatpush1.msra.mxu0 0.0
        %2095 = vmatprep.subr.mxu0 0.0
        %2096 = vmatpush1.msra.mxu0 0.0
        %2097 = vmatprep.subr.mxu0 0.0
        %2098 = vmatpush1.msra.mxu0 0.0
        %2099 = vmatprep.subr.mxu0 0.0
        %2100 = vmatpush1.msra.mxu0 0.0
        %2101 = vmatprep.subr.mxu0 0.0
        %2102 = vmatpush1.msra.mxu0 0.0
        %2103 = vmatprep.subr.mxu0 0.0
        %2104 = vmatpush1.msra.mxu0 0.0
        %2105 = vmatprep.subr.mxu0 0.0
        %2106 = vmatpush1.msra.mxu0 0.0
        %2107 = vmatprep.subr.mxu0 0.0
        %2108 = vmatpush1.msra.mxu0 0.0
        %2109 = vmatprep.subr.mxu0 0.0
        %2110 = vmatpush1.msra.mxu0 0.0
        %2111 = vmatprep.subr.mxu0 0.0
        %2112 = vmatpush1.msra.mxu0 0.0
        %2113 = vmatprep.subr.mxu0 0.0
        %2114 = vmatpush1.msra.mxu0 0.0
        %2115 = vmatprep.subr.mxu0 0.0
        %2116 = vmatpush1.msra.mxu0 0.0
        %2117 = vmatprep.subr.mxu0 0.0
        %2118 = vmatpush1.msra.mxu0 0.0
        %2119 = vmatprep.subr.mxu0 0.0
        %2120 = vmatpush1.msra.mxu0 0.0
        %2121 = vmatprep.subr.mxu0 0.0
        %2122 = vmatpush1.msra.mxu0 0.0
        %2123 = vmatprep.subr.mxu0 0.0
        %2124 = vmatpush1.msra.mxu0 0.0
        %2125 = vmatprep.subr.mxu0 0.0
        %2126 = vmatpush1.msra.mxu0 0.0
        %2127 = vmatprep.subr.mxu0 0.0
        %2128 = vmatpush1.msra.mxu0 0.0
        %2129 = vmatprep.subr.mxu0 0.0
        %2130 = vmatpush1.msra.mxu0 0.0
        %2131 = vmatprep.subr.mxu0 0.0
        %2132 = vmatpush1.msra.mxu0 0.0
        %2133 = vmatprep.subr.mxu0 0.0
        %2134 = vmatpush1.msra.mxu0 0.0
        %2135 = vmatprep.subr.mxu0 0.0
        %2136 = vmatpush1.msra.mxu0 0.0
        %2137 = vmatprep.mubr.f32.mxu0 0.0
        %2138 = vmatmul.mubr.f32.gmra.mrb[0].mxu0 %v2071
        %v2139 = vpop.f32.mrb[0].mxu0
        %v2140 = vadd.f32 0.0, %v2139
        %v2141 = vpop.f32.mrb[0].mxu0
        %v2142 = vadd.f32 0.0, %v2141
        %2143 = vdwg.mxu0
        %2144 = vmatprep.subr.mxu0 %v2066
        %2145 = vmatpush1.msra.mxu0 %v2065
        %2146 = vmatprep.subr.mxu0 0.0
        %2147 = vmatpush1.msra.mxu0 0.0
        %2148 = vmatprep.subr.mxu0 0.0
        %2149 = vmatpush1.msra.mxu0 0.0
        %2150 = vmatprep.subr.mxu0 0.0
        %2151 = vmatpush1.msra.mxu0 0.0
        %2152 = vmatprep.subr.mxu0 0.0
        %2153 = vmatpush1.msra.mxu0 0.0
        %2154 = vmatprep.subr.mxu0 0.0
        %2155 = vmatpush1.msra.mxu0 0.0
        %2156 = vmatprep.subr.mxu0 0.0
        %2157 = vmatpush1.msra.mxu0 0.0
        %2158 = vmatprep.subr.mxu0 0.0
        %2159 = vmatpush1.msra.mxu0 0.0
        %2160 = vmatprep.subr.mxu0 0.0
        %2161 = vmatpush1.msra.mxu0 0.0
        %2162 = vmatprep.subr.mxu0 0.0
        %2163 = vmatpush1.msra.mxu0 0.0
        %2164 = vmatprep.subr.mxu0 0.0
        %2165 = vmatpush1.msra.mxu0 0.0
        %2166 = vmatprep.subr.mxu0 0.0
        %2167 = vmatpush1.msra.mxu0 0.0
        %2168 = vmatprep.subr.mxu0 0.0
        %2169 = vmatpush1.msra.mxu0 0.0
        %2170 = vmatprep.subr.mxu0 0.0
        %2171 = vmatpush1.msra.mxu0 0.0
        %2172 = vmatprep.subr.mxu0 0.0
        %2173 = vmatpush1.msra.mxu0 0.0
        %2174 = vmatprep.subr.mxu0 0.0
        %2175 = vmatpush1.msra.mxu0 0.0
        %2176 = vmatprep.subr.mxu0 0.0
        %2177 = vmatpush1.msra.mxu0 0.0
        %2178 = vmatprep.subr.mxu0 0.0
        %2179 = vmatpush1.msra.mxu0 0.0
        %2180 = vmatprep.subr.mxu0 0.0
        %2181 = vmatpush1.msra.mxu0 0.0
        %2182 = vmatprep.subr.mxu0 0.0
        %2183 = vmatpush1.msra.mxu0 0.0
        %2184 = vmatprep.subr.mxu0 0.0
        %2185 = vmatpush1.msra.mxu0 0.0
        %2186 = vmatprep.subr.mxu0 0.0
        %2187 = vmatpush1.msra.mxu0 0.0
        %2188 = vmatprep.subr.mxu0 0.0
        %2189 = vmatpush1.msra.mxu0 0.0
        %2190 = vmatprep.subr.mxu0 0.0
        %2191 = vmatpush1.msra.mxu0 0.0
        %2192 = vmatprep.subr.mxu0 0.0
        %2193 = vmatpush1.msra.mxu0 0.0
        %2194 = vmatprep.subr.mxu0 0.0
        %2195 = vmatpush1.msra.mxu0 0.0
        %2196 = vmatprep.subr.mxu0 0.0
        %2197 = vmatpush1.msra.mxu0 0.0
        %2198 = vmatprep.subr.mxu0 0.0
        %2199 = vmatpush1.msra.mxu0 0.0
        %2200 = vmatprep.subr.mxu0 0.0
        %2201 = vmatpush1.msra.mxu0 0.0
        %2202 = vmatprep.subr.mxu0 0.0
        %2203 = vmatpush1.msra.mxu0 0.0
        %2204 = vmatprep.subr.mxu0 0.0
        %2205 = vmatpush1.msra.mxu0 0.0
        %2206 = vmatprep.subr.mxu0 0.0
        %2207 = vmatpush1.msra.mxu0 0.0
        %2208 = vmatprep.mubr.f32.mxu0 0.0
        %2209 = vmatmul.mubr.f32.gmra.mrb[0].mxu0 %v2071
        %v2210 = vpop.f32.mrb[0].mxu0
        %v2211 = vadd.f32 0.0, %v2210
        %v2212 = vpop.f32.mrb[0].mxu0
        %v2213 = vadd.f32 0.0, %v2212
        %2214 = vdwg.mxu0
        %v2216 = vsel %vm2069, %v1591, 0
        %2218 = vmatprep.subr.mxu0 %v1588
        %2219 = vmatpush1.msra.mxu0 %v1587
        %2220 = vmatprep.subr.mxu0 0.0
        %2221 = vmatpush1.msra.mxu0 0.0
        %2222 = vmatprep.subr.mxu0 0.0
        %2223 = vmatpush1.msra.mxu0 0.0
        %2224 = vmatprep.subr.mxu0 0.0
        %2225 = vmatpush1.msra.mxu0 0.0
        %2226 = vmatprep.subr.mxu0 0.0
        %2227 = vmatpush1.msra.mxu0 0.0
        %2228 = vmatprep.subr.mxu0 0.0
        %2229 = vmatpush1.msra.mxu0 0.0
        %2230 = vmatprep.subr.mxu0 0.0
        %2231 = vmatpush1.msra.mxu0 0.0
        %2232 = vmatprep.subr.mxu0 0.0
        %2233 = vmatpush1.msra.mxu0 0.0
        %2234 = vmatprep.subr.mxu0 0.0
        %2235 = vmatpush1.msra.mxu0 0.0
        %2236 = vmatprep.subr.mxu0 0.0
        %2237 = vmatpush1.msra.mxu0 0.0
        %2238 = vmatprep.subr.mxu0 0.0
        %2239 = vmatpush1.msra.mxu0 0.0
        %2240 = vmatprep.subr.mxu0 0.0
        %2241 = vmatpush1.msra.mxu0 0.0
        %2242 = vmatprep.subr.mxu0 0.0
        %2243 = vmatpush1.msra.mxu0 0.0
        %2244 = vmatprep.subr.mxu0 0.0
        %2245 = vmatpush1.msra.mxu0 0.0
        %2246 = vmatprep.subr.mxu0 0.0
        %2247 = vmatpush1.msra.mxu0 0.0
        %2248 = vmatprep.subr.mxu0 0.0
        %2249 = vmatpush1.msra.mxu0 0.0
        %2250 = vmatprep.subr.mxu0 0.0
        %2251 = vmatpush1.msra.mxu0 0.0
        %2252 = vmatprep.subr.mxu0 0.0
        %2253 = vmatpush1.msra.mxu0 0.0
        %2254 = vmatprep.subr.mxu0 0.0
        %2255 = vmatpush1.msra.mxu0 0.0
        %2256 = vmatprep.subr.mxu0 0.0
        %2257 = vmatpush1.msra.mxu0 0.0
        %2258 = vmatprep.subr.mxu0 0.0
        %2259 = vmatpush1.msra.mxu0 0.0
        %2260 = vmatprep.subr.mxu0 0.0
        %2261 = vmatpush1.msra.mxu0 0.0
        %2262 = vmatprep.subr.mxu0 0.0
        %2263 = vmatpush1.msra.mxu0 0.0
        %2264 = vmatprep.subr.mxu0 0.0
        %2265 = vmatpush1.msra.mxu0 0.0
        %2266 = vmatprep.subr.mxu0 0.0
        %2267 = vmatpush1.msra.mxu0 0.0
        %2268 = vmatprep.subr.mxu0 0.0
        %2269 = vmatpush1.msra.mxu0 0.0
        %2270 = vmatprep.subr.mxu0 0.0
        %2271 = vmatpush1.msra.mxu0 0.0
        %2272 = vmatprep.subr.mxu0 0.0
        %2273 = vmatpush1.msra.mxu0 0.0
        %2274 = vmatprep.subr.mxu0 0.0
        %2275 = vmatpush1.msra.mxu0 0.0
        %2276 = vmatprep.subr.mxu0 0.0
        %2277 = vmatpush1.msra.mxu0 0.0
        %2278 = vmatprep.subr.mxu0 0.0
        %2279 = vmatpush1.msra.mxu0 0.0
        %2280 = vmatprep.subr.mxu0 0.0
        %2281 = vmatpush1.msra.mxu0 0.0
        %2282 = vmatprep.mubr.f32.mxu0 0.0
        %2283 = vmatmul.mubr.f32.gmra.mrb[0].mxu0 %v2216
        %v2284 = vpop.f32.mrb[0].mxu0
        %v2285 = vadd.f32 %v2140, %v2284
        %v2286 = vpop.f32.mrb[0].mxu0
        %v2287 = vadd.f32 %v2142, %v2286
        %2288 = vdwg.mxu0
        %2289 = vmatprep.subr.mxu0 %v1590
        %2290 = vmatpush1.msra.mxu0 %v1589
        %2291 = vmatprep.subr.mxu0 0.0
        %2292 = vmatpush1.msra.mxu0 0.0
        %2293 = vmatprep.subr.mxu0 0.0
        %2294 = vmatpush1.msra.mxu0 0.0
        %2295 = vmatprep.subr.mxu0 0.0
        %2296 = vmatpush1.msra.mxu0 0.0
        %2297 = vmatprep.subr.mxu0 0.0
        %2298 = vmatpush1.msra.mxu0 0.0
        %2299 = vmatprep.subr.mxu0 0.0
        %2300 = vmatpush1.msra.mxu0 0.0
        %2301 = vmatprep.subr.mxu0 0.0
        %2302 = vmatpush1.msra.mxu0 0.0
        %2303 = vmatprep.subr.mxu0 0.0
        %2304 = vmatpush1.msra.mxu0 0.0
        %2305 = vmatprep.subr.mxu0 0.0
        %2306 = vmatpush1.msra.mxu0 0.0
        %2307 = vmatprep.subr.mxu0 0.0
        %2308 = vmatpush1.msra.mxu0 0.0
        %2309 = vmatprep.subr.mxu0 0.0
        %2310 = vmatpush1.msra.mxu0 0.0
        %2311 = vmatprep.subr.mxu0 0.0
        %2312 = vmatpush1.msra.mxu0 0.0
        %2313 = vmatprep.subr.mxu0 0.0
        %2314 = vmatpush1.msra.mxu0 0.0
        %2315 = vmatprep.subr.mxu0 0.0
        %2316 = vmatpush1.msra.mxu0 0.0
        %2317 = vmatprep.subr.mxu0 0.0
        %2318 = vmatpush1.msra.mxu0 0.0
        %2319 = vmatprep.subr.mxu0 0.0
        %2320 = vmatpush1.msra.mxu0 0.0
        %2321 = vmatprep.subr.mxu0 0.0
        %2322 = vmatpush1.msra.mxu0 0.0
        %2323 = vmatprep.subr.mxu0 0.0
        %2324 = vmatpush1.msra.mxu0 0.0
        %2325 = vmatprep.subr.mxu0 0.0
        %2326 = vmatpush1.msra.mxu0 0.0
        %2327 = vmatprep.subr.mxu0 0.0
        %2328 = vmatpush1.msra.mxu0 0.0
        %2329 = vmatprep.subr.mxu0 0.0
        %2330 = vmatpush1.msra.mxu0 0.0
        %2331 = vmatprep.subr.mxu0 0.0
        %2332 = vmatpush1.msra.mxu0 0.0
        %2333 = vmatprep.subr.mxu0 0.0
        %2334 = vmatpush1.msra.mxu0 0.0
        %2335 = vmatprep.subr.mxu0 0.0
        %2336 = vmatpush1.msra.mxu0 0.0
        %2337 = vmatprep.subr.mxu0 0.0
        %2338 = vmatpush1.msra.mxu0 0.0
        %2339 = vmatprep.subr.mxu0 0.0
        %2340 = vmatpush1.msra.mxu0 0.0
        %2341 = vmatprep.subr.mxu0 0.0
        %2342 = vmatpush1.msra.mxu0 0.0
        %2343 = vmatprep.subr.mxu0 0.0
        %2344 = vmatpush1.msra.mxu0 0.0
        %2345 = vmatprep.subr.mxu0 0.0
        %2346 = vmatpush1.msra.mxu0 0.0
        %2347 = vmatprep.subr.mxu0 0.0
        %2348 = vmatpush1.msra.mxu0 0.0
        %2349 = vmatprep.subr.mxu0 0.0
        %2350 = vmatpush1.msra.mxu0 0.0
        %2351 = vmatprep.subr.mxu0 0.0
        %2352 = vmatpush1.msra.mxu0 0.0
        %2353 = vmatprep.mubr.f32.mxu0 0.0
        %2354 = vmatmul.mubr.f32.gmra.mrb[0].mxu0 %v2216
        %v2355 = vpop.f32.mrb[0].mxu0
        %v2356 = vadd.f32 %v2211, %v2355
        %v2357 = vpop.f32.mrb[0].mxu0
        %v2358 = vadd.f32 %v2213, %v2357
        %2359 = vdwg.mxu0
        %s2360 = scalar_lea.vmem %s882, 16
        %v2361 = vld [vmem:[%s2360] sm:$0xff]
        %v2362 = vld [vmem:[%s2360 + $0x8] sm:$0xff]
        %s2363 = scalar_lea.vmem %s889, 16
        %v2364 = vld [vmem:[%s2363] sm:$0xff]
        %v2365 = vld [vmem:[%s2363 + $0x8] sm:$0xff]
        %2370 = vrot.lane.b32.xlu0 %v2063, 8
        %v2371 = vpop.permute.xlu0 %2370
        %2372 = vrot.lane.b32.xlu0 %v2064, 8
        %v2373 = vpop.permute.xlu0 %2372
        %2374 = vrot.lane.b32.xlu0 %v2065, 8
        %v2375 = vpop.permute.xlu0 %2374
        %2376 = vrot.lane.b32.xlu0 %v2066, 8
        %v2377 = vpop.permute.xlu0 %2376
        %v2378 = vsel %vm2069, %v2371, %v2373
        %v2379 = vsel %vm2069, %v2373, %v2375
        %v2380 = vsel %vm2069, %v2375, %v2377
        %v2385 = vsel %vm2069, 0.0, %v2371
        %v2386 = vadd.s32 %v1020, 4294967288
        %v2387 = vadd.s32 %v1021, 4294967288
        %v2388 = vadd.s32 %v1022, 4294967288
        %v2389 = vadd.s32 %v1023, 4294967288
        %vm2390 = vcmp.ge.s32.totalorder %v2386, 0
        %vm2391 = vcmp.ge.s32.totalorder %v2387, 0
        %vm2392 = vcmp.ge.s32.totalorder %v2388, 0
        %vm2393 = vcmp.ge.s32.totalorder %v2389, 0
        %vm2394 = vcmp.lt.s32.totalorder %v2386, 64
        %vm2395 = vcmp.lt.s32.totalorder %v2387, 64
        %vm2396 = vcmp.lt.s32.totalorder %v2388, 64
        %vm2397 = vcmp.lt.s32.totalorder %v2389, 64
        %vm2398 = vmand %vm2390, %vm2394
        %vm2399 = vmand %vm2391, %vm2395
        %vm2400 = vmand %vm2392, %vm2396
        %vm2401 = vmand %vm2393, %vm2397
        %v2402 = vsel %vm2398, 1, 0
        %v2403 = vsel %vm2399, 1, 0
        %v2404 = vsel %vm2400, 1, 0
        %v2405 = vsel %vm2401, 1, 0
        %v2406 = vcvt.s32.f32 %v2402
        %v2407 = vcvt.s32.f32 %v2403
        %v2408 = vcvt.s32.f32 %v2404
        %v2409 = vcvt.s32.f32 %v2405
        %v2410 = vmul.f32 %v2385, %v2406
        %v2411 = vmul.f32 %v2378, %v2407
        %v2412 = vmul.f32 %v2379, %v2408
        %v2413 = vmul.f32 %v2380, %v2409
        %2414 = vrot.lane.b32.xlu0 %v2063, 4
        %v2415 = vpop.permute.xlu0 %2414
        %2416 = vrot.lane.b32.xlu0 %v2064, 4
        %v2417 = vpop.permute.xlu0 %2416
        %2418 = vrot.lane.b32.xlu0 %v2065, 4
        %v2419 = vpop.permute.xlu0 %2418
        %2420 = vrot.lane.b32.xlu0 %v2066, 4
        %v2421 = vpop.permute.xlu0 %2420
        %v2422 = vsel %vm1608, %v2415, %v2417
        %v2423 = vsel %vm1608, %v2417, %v2419
        %v2424 = vsel %vm1608, %v2419, %v2421
        %v2429 = vsel %vm1608, 0.0, %v2415
        %v2430 = vmul.f32 %v2429, %v1637
        %v2431 = vmul.f32 %v2422, %v1638
        %v2432 = vmul.f32 %v2423, %v1639
        %v2433 = vmul.f32 %v2424, %v1640
        %2434 = vrot.lane.b32.xlu0 %v2063, 124
        %v2435 = vpop.permute.xlu0 %2434
        %2436 = vrot.lane.b32.xlu0 %v2064, 124
        %v2437 = vpop.permute.xlu0 %2436
        %2438 = vrot.lane.b32.xlu0 %v2065, 124
        %v2439 = vpop.permute.xlu0 %2438
        %2440 = vrot.lane.b32.xlu0 %v2066, 124
        %v2441 = vpop.permute.xlu0 %2440
        %v2442 = vsel %vm1693, %v2435, %v2437
        %v2443 = vsel %vm1693, %v2437, %v2439
        %v2444 = vsel %vm1693, %v2439, %v2441
        %v2449 = vsel %vm1693, %v2441, 0.0
        %v2450 = vmul.f32 %v2442, %v1722
        %v2451 = vmul.f32 %v2443, %v1723
        %v2452 = vmul.f32 %v2444, %v1724
        %v2453 = vmul.f32 %v2449, %v1725
        %2454 = vrot.lane.b32.xlu0 %v2063, 120
        %v2455 = vpop.permute.xlu0 %2454
        %2456 = vrot.lane.b32.xlu0 %v2064, 120
        %v2457 = vpop.permute.xlu0 %2456
        %2458 = vrot.lane.b32.xlu0 %v2065, 120
        %v2459 = vpop.permute.xlu0 %2458
        %2460 = vrot.lane.b32.xlu0 %v2066, 120
        %v2461 = vpop.permute.xlu0 %2460
        %vm2462 = vcmask 982016
        %v2463 = vsel %vm2462, %v2455, %v2457
        %v2464 = vsel %vm2462, %v2457, %v2459
        %v2465 = vsel %vm2462, %v2459, %v2461
        %v2470 = vsel %vm2462, %v2461, 0.0
        %v2471 = vadd.s32 %v1020, 8
        %v2472 = vadd.s32 %v1021, 8
        %v2473 = vadd.s32 %v1022, 8
        %v2474 = vadd.s32 %v1023, 8
        %vm2475 = vcmp.ge.s32.totalorder %v2471, 0
        %vm2476 = vcmp.ge.s32.totalorder %v2472, 0
        %vm2477 = vcmp.ge.s32.totalorder %v2473, 0
        %vm2478 = vcmp.ge.s32.totalorder %v2474, 0
        %vm2479 = vcmp.lt.s32.totalorder %v2471, 64
        %vm2480 = vcmp.lt.s32.totalorder %v2472, 64
        %vm2481 = vcmp.lt.s32.totalorder %v2473, 64
        %vm2482 = vcmp.lt.s32.totalorder %v2474, 64
        %vm2483 = vmand %vm2475, %vm2479
        %vm2484 = vmand %vm2476, %vm2480
        %vm2485 = vmand %vm2477, %vm2481
        %vm2486 = vmand %vm2478, %vm2482
        %v2487 = vsel %vm2483, 1, 0
        %v2488 = vsel %vm2484, 1, 0
        %v2489 = vsel %vm2485, 1, 0
        %v2490 = vsel %vm2486, 1, 0
        %v2491 = vcvt.s32.f32 %v2487
        %v2492 = vcvt.s32.f32 %v2488
        %v2493 = vcvt.s32.f32 %v2489
        %v2494 = vcvt.s32.f32 %v2490
        %v2495 = vmul.f32 %v2463, %v2491
        %v2496 = vmul.f32 %v2464, %v2492
        %v2497 = vmul.f32 %v2465, %v2493
        %v2498 = vmul.f32 %v2470, %v2494
        %2500 = vset.pattern.permute.xlu0 0
        %2501 = vperm.xlu0 %2500, %v2364
        %v2502 = vpop.permute.xlu0 %2501
        %2505 = vset.pattern.permute.xlu0 0
        %2506 = vperm.xlu0 %2505, %v2365
        %v2507 = vpop.permute.xlu0 %2506
        %v2510 = vsel %vm1740, %v2361, 0
        %v2513 = vsel %vm1740, %v2362, 0
        %2515 = vmatprep.subr.mxu0 %v2411
        %2516 = vmatpush1.msra.mxu0 %v2410
        %2517 = vmatprep.subr.mxu0 %v2431
        %2518 = vmatpush1.msra.mxu0 %v2430
        %2519 = vmatprep.subr.mxu0 %v2064
        %2520 = vmatpush1.msra.mxu0 %v2063
        %2521 = vmatprep.subr.mxu0 %v2451
        %2522 = vmatpush1.msra.mxu0 %v2450
        %2523 = vmatprep.subr.mxu0 %v2496
        %2524 = vmatpush1.msra.mxu0 %v2495
        %2525 = vmatprep.subr.mxu0 0.0
        %2526 = vmatpush1.msra.mxu0 0.0
        %2527 = vmatprep.subr.mxu0 0.0
        %2528 = vmatpush1.msra.mxu0 0.0
        %2529 = vmatprep.subr.mxu0 0.0
        %2530 = vmatpush1.msra.mxu0 0.0
        %2531 = vmatprep.subr.mxu0 0.0
        %2532 = vmatpush1.msra.mxu0 0.0
        %2533 = vmatprep.subr.mxu0 0.0
        %2534 = vmatpush1.msra.mxu0 0.0
        %2535 = vmatprep.subr.mxu0 0.0
        %2536 = vmatpush1.msra.mxu0 0.0
        %2537 = vmatprep.subr.mxu0 0.0
        %2538 = vmatpush1.msra.mxu0 0.0
        %2539 = vmatprep.subr.mxu0 0.0
        %2540 = vmatpush1.msra.mxu0 0.0
        %2541 = vmatprep.subr.mxu0 0.0
        %2542 = vmatpush1.msra.mxu0 0.0
        %2543 = vmatprep.subr.mxu0 0.0
        %2544 = vmatpush1.msra.mxu0 0.0
        %2545 = vmatprep.subr.mxu0 0.0
        %2546 = vmatpush1.msra.mxu0 0.0
        %2547 = vmatprep.subr.mxu0 0.0
        %2548 = vmatpush1.msra.mxu0 0.0
        %2549 = vmatprep.subr.mxu0 0.0
        %2550 = vmatpush1.msra.mxu0 0.0
        %2551 = vmatprep.subr.mxu0 0.0
        %2552 = vmatpush1.msra.mxu0 0.0
        %2553 = vmatprep.subr.mxu0 0.0
        %2554 = vmatpush1.msra.mxu0 0.0
        %2555 = vmatprep.subr.mxu0 0.0
        %2556 = vmatpush1.msra.mxu0 0.0
        %2557 = vmatprep.subr.mxu0 0.0
        %2558 = vmatpush1.msra.mxu0 0.0
        %2559 = vmatprep.subr.mxu0 0.0
        %2560 = vmatpush1.msra.mxu0 0.0
        %2561 = vmatprep.subr.mxu0 0.0
        %2562 = vmatpush1.msra.mxu0 0.0
        %2563 = vmatprep.subr.mxu0 0.0
        %2564 = vmatpush1.msra.mxu0 0.0
        %2565 = vmatprep.subr.mxu0 0.0
        %2566 = vmatpush1.msra.mxu0 0.0
        %2567 = vmatprep.subr.mxu0 0.0
        %2568 = vmatpush1.msra.mxu0 0.0
        %2569 = vmatprep.subr.mxu0 0.0
        %2570 = vmatpush1.msra.mxu0 0.0
        %2571 = vmatprep.subr.mxu0 0.0
        %2572 = vmatpush1.msra.mxu0 0.0
        %2573 = vmatprep.subr.mxu0 0.0
        %2574 = vmatpush1.msra.mxu0 0.0
        %2575 = vmatprep.subr.mxu0 0.0
        %2576 = vmatpush1.msra.mxu0 0.0
        %2577 = vmatprep.subr.mxu0 0.0
        %2578 = vmatpush1.msra.mxu0 0.0
        %2579 = vmatprep.mubr.f32.mxu0 0.0
        %2580 = vmatmul.mubr.f32.gmra.mrb[0].mxu0 %v2510
        %v2581 = vpop.f32.mrb[0].mxu0
        %v2582 = vadd.f32 %v2502, %v2581
        %v2583 = vpop.f32.mrb[0].mxu0
        %v2584 = vadd.f32 %v2502, %v2583
        %2585 = vmatprep.mubr.f32.mxu0 0.0
        %2586 = vmatmul.mubr.f32.gmra.mrb[0].mxu0 %v2513
        %v2587 = vpop.f32.mrb[0].mxu0
        %v2588 = vadd.f32 %v2507, %v2587
        %v2589 = vpop.f32.mrb[0].mxu0
        %v2590 = vadd.f32 %v2507, %v2589
        %2591 = vdwg.mxu0
        %2592 = vmatprep.subr.mxu0 %v2413
        %2593 = vmatpush1.msra.mxu0 %v2412
        %2594 = vmatprep.subr.mxu0 %v2433
        %2595 = vmatpush1.msra.mxu0 %v2432
        %2596 = vmatprep.subr.mxu0 %v2066
        %2597 = vmatpush1.msra.mxu0 %v2065
        %2598 = vmatprep.subr.mxu0 %v2453
        %2599 = vmatpush1.msra.mxu0 %v2452
        %2600 = vmatprep.subr.mxu0 %v2498
        %2601 = vmatpush1.msra.mxu0 %v2497
        %2602 = vmatprep.subr.mxu0 0.0
        %2603 = vmatpush1.msra.mxu0 0.0
        %2604 = vmatprep.subr.mxu0 0.0
        %2605 = vmatpush1.msra.mxu0 0.0
        %2606 = vmatprep.subr.mxu0 0.0
        %2607 = vmatpush1.msra.mxu0 0.0
        %2608 = vmatprep.subr.mxu0 0.0
        %2609 = vmatpush1.msra.mxu0 0.0
        %2610 = vmatprep.subr.mxu0 0.0
        %2611 = vmatpush1.msra.mxu0 0.0
        %2612 = vmatprep.subr.mxu0 0.0
        %2613 = vmatpush1.msra.mxu0 0.0
        %2614 = vmatprep.subr.mxu0 0.0
        %2615 = vmatpush1.msra.mxu0 0.0
        %2616 = vmatprep.subr.mxu0 0.0
        %2617 = vmatpush1.msra.mxu0 0.0
        %2618 = vmatprep.subr.mxu0 0.0
        %2619 = vmatpush1.msra.mxu0 0.0
        %2620 = vmatprep.subr.mxu0 0.0
        %2621 = vmatpush1.msra.mxu0 0.0
        %2622 = vmatprep.subr.mxu0 0.0
        %2623 = vmatpush1.msra.mxu0 0.0
        %2624 = vmatprep.subr.mxu0 0.0
        %2625 = vmatpush1.msra.mxu0 0.0
        %2626 = vmatprep.subr.mxu0 0.0
        %2627 = vmatpush1.msra.mxu0 0.0
        %2628 = vmatprep.subr.mxu0 0.0
        %2629 = vmatpush1.msra.mxu0 0.0
        %2630 = vmatprep.subr.mxu0 0.0
        %2631 = vmatpush1.msra.mxu0 0.0
        %2632 = vmatprep.subr.mxu0 0.0
        %2633 = vmatpush1.msra.mxu0 0.0
        %2634 = vmatprep.subr.mxu0 0.0
        %2635 = vmatpush1.msra.mxu0 0.0
        %2636 = vmatprep.subr.mxu0 0.0
        %2637 = vmatpush1.msra.mxu0 0.0
        %2638 = vmatprep.subr.mxu0 0.0
        %2639 = vmatpush1.msra.mxu0 0.0
        %2640 = vmatprep.subr.mxu0 0.0
        %2641 = vmatpush1.msra.mxu0 0.0
        %2642 = vmatprep.subr.mxu0 0.0
        %2643 = vmatpush1.msra.mxu0 0.0
        %2644 = vmatprep.subr.mxu0 0.0
        %2645 = vmatpush1.msra.mxu0 0.0
        %2646 = vmatprep.subr.mxu0 0.0
        %2647 = vmatpush1.msra.mxu0 0.0
        %2648 = vmatprep.subr.mxu0 0.0
        %2649 = vmatpush1.msra.mxu0 0.0
        %2650 = vmatprep.subr.mxu0 0.0
        %2651 = vmatpush1.msra.mxu0 0.0
        %2652 = vmatprep.subr.mxu0 0.0
        %2653 = vmatpush1.msra.mxu0 0.0
        %2654 = vmatprep.subr.mxu0 0.0
        %2655 = vmatpush1.msra.mxu0 0.0
        %2656 = vmatprep.mubr.f32.mxu0 0.0
        %2657 = vmatmul.mubr.f32.gmra.mrb[0].mxu0 %v2510
        %v2658 = vpop.f32.mrb[0].mxu0
        %v2659 = vadd.f32 %v2502, %v2658
        %v2660 = vpop.f32.mrb[0].mxu0
        %v2661 = vadd.f32 %v2502, %v2660
        %2662 = vmatprep.mubr.f32.mxu0 0.0
        %2663 = vmatmul.mubr.f32.gmra.mrb[0].mxu0 %v2513
        %v2664 = vpop.f32.mrb[0].mxu0
        %v2665 = vadd.f32 %v2507, %v2664
        %v2666 = vpop.f32.mrb[0].mxu0
        %v2667 = vadd.f32 %v2507, %v2666
        %2668 = vdwg.mxu0
        %v2669 = vmax.f32 %v2582, 0.0
        %v2670 = vmax.f32 %v2584, 0.0
        %v2671 = vmax.f32 %v2659, 0.0
        %v2672 = vmax.f32 %v2661, 0.0
        %v2673 = vmax.f32 %v2588, 0.0
        %v2674 = vmax.f32 %v2590, 0.0
        %v2675 = vmax.f32 %v2665, 0.0
        %v2676 = vmax.f32 %v2667, 0.0
        %s2677 = scalar_lea.vmem %s896, 16
        %v2678 = vld [vmem:[%s2677] sm:$0xff]
        %s2679 = scalar_lea.vmem %s903, 16
        %v2680 = vld [vmem:[%s2679] sm:$0xff]
        %2682 = vset.pattern.permute.xlu0 0
        %2683 = vperm.xlu0 %2682, %v2680
        %v2684 = vpop.permute.xlu0 %2683
        %v2687 = vsel %vm1441, %v2678, 0
        %2689 = vmatprep.subr.mxu0 %v2670
        %2690 = vmatpush1.msra.mxu0 %v2669
        %2691 = vmatprep.subr.mxu0 %v2674
        %2692 = vmatpush1.msra.mxu0 %v2673
        %2693 = vmatprep.subr.mxu0 0.0
        %2694 = vmatpush1.msra.mxu0 0.0
        %2695 = vmatprep.subr.mxu0 0.0
        %2696 = vmatpush1.msra.mxu0 0.0
        %2697 = vmatprep.subr.mxu0 0.0
        %2698 = vmatpush1.msra.mxu0 0.0
        %2699 = vmatprep.subr.mxu0 0.0
        %2700 = vmatpush1.msra.mxu0 0.0
        %2701 = vmatprep.subr.mxu0 0.0
        %2702 = vmatpush1.msra.mxu0 0.0
        %2703 = vmatprep.subr.mxu0 0.0
        %2704 = vmatpush1.msra.mxu0 0.0
        %2705 = vmatprep.subr.mxu0 0.0
        %2706 = vmatpush1.msra.mxu0 0.0
        %2707 = vmatprep.subr.mxu0 0.0
        %2708 = vmatpush1.msra.mxu0 0.0
        %2709 = vmatprep.subr.mxu0 0.0
        %2710 = vmatpush1.msra.mxu0 0.0
        %2711 = vmatprep.subr.mxu0 0.0
        %2712 = vmatpush1.msra.mxu0 0.0
        %2713 = vmatprep.subr.mxu0 0.0
        %2714 = vmatpush1.msra.mxu0 0.0
        %2715 = vmatprep.subr.mxu0 0.0
        %2716 = vmatpush1.msra.mxu0 0.0
        %2717 = vmatprep.subr.mxu0 0.0
        %2718 = vmatpush1.msra.mxu0 0.0
        %2719 = vmatprep.subr.mxu0 0.0
        %2720 = vmatpush1.msra.mxu0 0.0
        %2721 = vmatprep.subr.mxu0 0.0
        %2722 = vmatpush1.msra.mxu0 0.0
        %2723 = vmatprep.subr.mxu0 0.0
        %2724 = vmatpush1.msra.mxu0 0.0
        %2725 = vmatprep.subr.mxu0 0.0
        %2726 = vmatpush1.msra.mxu0 0.0
        %2727 = vmatprep.subr.mxu0 0.0
        %2728 = vmatpush1.msra.mxu0 0.0
        %2729 = vmatprep.subr.mxu0 0.0
        %2730 = vmatpush1.msra.mxu0 0.0
        %2731 = vmatprep.subr.mxu0 0.0
        %2732 = vmatpush1.msra.mxu0 0.0
        %2733 = vmatprep.subr.mxu0 0.0
        %2734 = vmatpush1.msra.mxu0 0.0
        %2735 = vmatprep.subr.mxu0 0.0
        %2736 = vmatpush1.msra.mxu0 0.0
        %2737 = vmatprep.subr.mxu0 0.0
        %2738 = vmatpush1.msra.mxu0 0.0
        %2739 = vmatprep.subr.mxu0 0.0
        %2740 = vmatpush1.msra.mxu0 0.0
        %2741 = vmatprep.subr.mxu0 0.0
        %2742 = vmatpush1.msra.mxu0 0.0
        %2743 = vmatprep.subr.mxu0 0.0
        %2744 = vmatpush1.msra.mxu0 0.0
        %2745 = vmatprep.subr.mxu0 0.0
        %2746 = vmatpush1.msra.mxu0 0.0
        %2747 = vmatprep.subr.mxu0 0.0
        %2748 = vmatpush1.msra.mxu0 0.0
        %2749 = vmatprep.subr.mxu0 0.0
        %2750 = vmatpush1.msra.mxu0 0.0
        %2751 = vmatprep.subr.mxu0 0.0
        %2752 = vmatpush1.msra.mxu0 0.0
        %2753 = vmatprep.mubr.f32.mxu0 0.0
        %2754 = vmatmul.mubr.f32.gmra.mrb[0].mxu0 %v2687
        %v2755 = vpop.f32.mrb[0].mxu0
        %v2756 = vadd.f32 %v2684, %v2755
        %v2757 = vpop.f32.mrb[0].mxu0
        %v2758 = vadd.f32 %v2684, %v2757
        %2759 = vdwg.mxu0
        %2760 = vmatprep.subr.mxu0 %v2672
        %2761 = vmatpush1.msra.mxu0 %v2671
        %2762 = vmatprep.subr.mxu0 %v2676
        %2763 = vmatpush1.msra.mxu0 %v2675
        %2764 = vmatprep.subr.mxu0 0.0
        %2765 = vmatpush1.msra.mxu0 0.0
        %2766 = vmatprep.subr.mxu0 0.0
        %2767 = vmatpush1.msra.mxu0 0.0
        %2768 = vmatprep.subr.mxu0 0.0
        %2769 = vmatpush1.msra.mxu0 0.0
        %2770 = vmatprep.subr.mxu0 0.0
        %2771 = vmatpush1.msra.mxu0 0.0
        %2772 = vmatprep.subr.mxu0 0.0
        %2773 = vmatpush1.msra.mxu0 0.0
        %2774 = vmatprep.subr.mxu0 0.0
        %2775 = vmatpush1.msra.mxu0 0.0
        %2776 = vmatprep.subr.mxu0 0.0
        %2777 = vmatpush1.msra.mxu0 0.0
        %2778 = vmatprep.subr.mxu0 0.0
        %2779 = vmatpush1.msra.mxu0 0.0
        %2780 = vmatprep.subr.mxu0 0.0
        %2781 = vmatpush1.msra.mxu0 0.0
        %2782 = vmatprep.subr.mxu0 0.0
        %2783 = vmatpush1.msra.mxu0 0.0
        %2784 = vmatprep.subr.mxu0 0.0
        %2785 = vmatpush1.msra.mxu0 0.0
        %2786 = vmatprep.subr.mxu0 0.0
        %2787 = vmatpush1.msra.mxu0 0.0
        %2788 = vmatprep.subr.mxu0 0.0
        %2789 = vmatpush1.msra.mxu0 0.0
        %2790 = vmatprep.subr.mxu0 0.0
        %2791 = vmatpush1.msra.mxu0 0.0
        %2792 = vmatprep.subr.mxu0 0.0
        %2793 = vmatpush1.msra.mxu0 0.0
        %2794 = vmatprep.subr.mxu0 0.0
        %2795 = vmatpush1.msra.mxu0 0.0
        %2796 = vmatprep.subr.mxu0 0.0
        %2797 = vmatpush1.msra.mxu0 0.0
        %2798 = vmatprep.subr.mxu0 0.0
        %2799 = vmatpush1.msra.mxu0 0.0
        %2800 = vmatprep.subr.mxu0 0.0
        %2801 = vmatpush1.msra.mxu0 0.0
        %2802 = vmatprep.subr.mxu0 0.0
        %2803 = vmatpush1.msra.mxu0 0.0
        %2804 = vmatprep.subr.mxu0 0.0
        %2805 = vmatpush1.msra.mxu0 0.0
        %2806 = vmatprep.subr.mxu0 0.0
        %2807 = vmatpush1.msra.mxu0 0.0
        %2808 = vmatprep.subr.mxu0 0.0
        %2809 = vmatpush1.msra.mxu0 0.0
        %2810 = vmatprep.subr.mxu0 0.0
        %2811 = vmatpush1.msra.mxu0 0.0
        %2812 = vmatprep.subr.mxu0 0.0
        %2813 = vmatpush1.msra.mxu0 0.0
        %2814 = vmatprep.subr.mxu0 0.0
        %2815 = vmatpush1.msra.mxu0 0.0
        %2816 = vmatprep.subr.mxu0 0.0
        %2817 = vmatpush1.msra.mxu0 0.0
        %2818 = vmatprep.subr.mxu0 0.0
        %2819 = vmatpush1.msra.mxu0 0.0
        %2820 = vmatprep.subr.mxu0 0.0
        %2821 = vmatpush1.msra.mxu0 0.0
        %2822 = vmatprep.subr.mxu0 0.0
        %2823 = vmatpush1.msra.mxu0 0.0
        %2824 = vmatprep.mubr.f32.mxu0 0.0
        %2825 = vmatmul.mubr.f32.gmra.mrb[0].mxu0 %v2687
        %v2826 = vpop.f32.mrb[0].mxu0
        %v2827 = vadd.f32 %v2684, %v2826
        %v2828 = vpop.f32.mrb[0].mxu0
        %v2829 = vadd.f32 %v2684, %v2828
        %2830 = vdwg.mxu0
        %v2831 = vmax.f32 %v2756, 0.0
        %v2832 = vmax.f32 %v2758, 0.0
        %v2833 = vmax.f32 %v2827, 0.0
        %v2834 = vmax.f32 %v2829, 0.0
        %s2835 = scalar_lea.vmem %s910, 16
        %v2836 = vld [vmem:[%s2835] sm:$0xff]
        %v2838 = vsel %vm2069, %v2836, 0
        %2840 = vmatprep.subr.mxu0 %v2832
        %2841 = vmatpush1.msra.mxu0 %v2831
        %2842 = vmatprep.subr.mxu0 0.0
        %2843 = vmatpush1.msra.mxu0 0.0
        %2844 = vmatprep.subr.mxu0 0.0
        %2845 = vmatpush1.msra.mxu0 0.0
        %2846 = vmatprep.subr.mxu0 0.0
        %2847 = vmatpush1.msra.mxu0 0.0
        %2848 = vmatprep.subr.mxu0 0.0
        %2849 = vmatpush1.msra.mxu0 0.0
        %2850 = vmatprep.subr.mxu0 0.0
        %2851 = vmatpush1.msra.mxu0 0.0
        %2852 = vmatprep.subr.mxu0 0.0
        %2853 = vmatpush1.msra.mxu0 0.0
        %2854 = vmatprep.subr.mxu0 0.0
        %2855 = vmatpush1.msra.mxu0 0.0
        %2856 = vmatprep.subr.mxu0 0.0
        %2857 = vmatpush1.msra.mxu0 0.0
        %2858 = vmatprep.subr.mxu0 0.0
        %2859 = vmatpush1.msra.mxu0 0.0
        %2860 = vmatprep.subr.mxu0 0.0
        %2861 = vmatpush1.msra.mxu0 0.0
        %2862 = vmatprep.subr.mxu0 0.0
        %2863 = vmatpush1.msra.mxu0 0.0
        %2864 = vmatprep.subr.mxu0 0.0
        %2865 = vmatpush1.msra.mxu0 0.0
        %2866 = vmatprep.subr.mxu0 0.0
        %2867 = vmatpush1.msra.mxu0 0.0
        %2868 = vmatprep.subr.mxu0 0.0
        %2869 = vmatpush1.msra.mxu0 0.0
        %2870 = vmatprep.subr.mxu0 0.0
        %2871 = vmatpush1.msra.mxu0 0.0
        %2872 = vmatprep.subr.mxu0 0.0
        %2873 = vmatpush1.msra.mxu0 0.0
        %2874 = vmatprep.subr.mxu0 0.0
        %2875 = vmatpush1.msra.mxu0 0.0
        %2876 = vmatprep.subr.mxu0 0.0
        %2877 = vmatpush1.msra.mxu0 0.0
        %2878 = vmatprep.subr.mxu0 0.0
        %2879 = vmatpush1.msra.mxu0 0.0
        %2880 = vmatprep.subr.mxu0 0.0
        %2881 = vmatpush1.msra.mxu0 0.0
        %2882 = vmatprep.subr.mxu0 0.0
        %2883 = vmatpush1.msra.mxu0 0.0
        %2884 = vmatprep.subr.mxu0 0.0
        %2885 = vmatpush1.msra.mxu0 0.0
        %2886 = vmatprep.subr.mxu0 0.0
        %2887 = vmatpush1.msra.mxu0 0.0
        %2888 = vmatprep.subr.mxu0 0.0
        %2889 = vmatpush1.msra.mxu0 0.0
        %2890 = vmatprep.subr.mxu0 0.0
        %2891 = vmatpush1.msra.mxu0 0.0
        %2892 = vmatprep.subr.mxu0 0.0
        %2893 = vmatpush1.msra.mxu0 0.0
        %2894 = vmatprep.subr.mxu0 0.0
        %2895 = vmatpush1.msra.mxu0 0.0
        %2896 = vmatprep.subr.mxu0 0.0
        %2897 = vmatpush1.msra.mxu0 0.0
        %2898 = vmatprep.subr.mxu0 0.0
        %2899 = vmatpush1.msra.mxu0 0.0
        %2900 = vmatprep.subr.mxu0 0.0
        %2901 = vmatpush1.msra.mxu0 0.0
        %2902 = vmatprep.subr.mxu0 0.0
        %2903 = vmatpush1.msra.mxu0 0.0
        %2904 = vmatprep.mubr.f32.mxu0 0.0
        %2905 = vmatmul.mubr.f32.gmra.mrb[0].mxu0 %v2838
        %v2906 = vpop.f32.mrb[0].mxu0
        %v2907 = vadd.f32 0.0, %v2906
        %v2908 = vpop.f32.mrb[0].mxu0
        %v2909 = vadd.f32 0.0, %v2908
        %2910 = vdwg.mxu0
        %2911 = vmatprep.subr.mxu0 %v2834
        %2912 = vmatpush1.msra.mxu0 %v2833
        %2913 = vmatprep.subr.mxu0 0.0
        %2914 = vmatpush1.msra.mxu0 0.0
        %2915 = vmatprep.subr.mxu0 0.0
        %2916 = vmatpush1.msra.mxu0 0.0
        %2917 = vmatprep.subr.mxu0 0.0
        %2918 = vmatpush1.msra.mxu0 0.0
        %2919 = vmatprep.subr.mxu0 0.0
        %2920 = vmatpush1.msra.mxu0 0.0
        %2921 = vmatprep.subr.mxu0 0.0
        %2922 = vmatpush1.msra.mxu0 0.0
        %2923 = vmatprep.subr.mxu0 0.0
        %2924 = vmatpush1.msra.mxu0 0.0
        %2925 = vmatprep.subr.mxu0 0.0
        %2926 = vmatpush1.msra.mxu0 0.0
        %2927 = vmatprep.subr.mxu0 0.0
        %2928 = vmatpush1.msra.mxu0 0.0
        %2929 = vmatprep.subr.mxu0 0.0
        %2930 = vmatpush1.msra.mxu0 0.0
        %2931 = vmatprep.subr.mxu0 0.0
        %2932 = vmatpush1.msra.mxu0 0.0
        %2933 = vmatprep.subr.mxu0 0.0
        %2934 = vmatpush1.msra.mxu0 0.0
        %2935 = vmatprep.subr.mxu0 0.0
        %2936 = vmatpush1.msra.mxu0 0.0
        %2937 = vmatprep.subr.mxu0 0.0
        %2938 = vmatpush1.msra.mxu0 0.0
        %2939 = vmatprep.subr.mxu0 0.0
        %2940 = vmatpush1.msra.mxu0 0.0
        %2941 = vmatprep.subr.mxu0 0.0
        %2942 = vmatpush1.msra.mxu0 0.0
        %2943 = vmatprep.subr.mxu0 0.0
        %2944 = vmatpush1.msra.mxu0 0.0
        %2945 = vmatprep.subr.mxu0 0.0
        %2946 = vmatpush1.msra.mxu0 0.0
        %2947 = vmatprep.subr.mxu0 0.0
        %2948 = vmatpush1.msra.mxu0 0.0
        %2949 = vmatprep.subr.mxu0 0.0
        %2950 = vmatpush1.msra.mxu0 0.0
        %2951 = vmatprep.subr.mxu0 0.0
        %2952 = vmatpush1.msra.mxu0 0.0
        %2953 = vmatprep.subr.mxu0 0.0
        %2954 = vmatpush1.msra.mxu0 0.0
        %2955 = vmatprep.subr.mxu0 0.0
        %2956 = vmatpush1.msra.mxu0 0.0
        %2957 = vmatprep.subr.mxu0 0.0
        %2958 = vmatpush1.msra.mxu0 0.0
        %2959 = vmatprep.subr.mxu0 0.0
        %2960 = vmatpush1.msra.mxu0 0.0
        %2961 = vmatprep.subr.mxu0 0.0
        %2962 = vmatpush1.msra.mxu0 0.0
        %2963 = vmatprep.subr.mxu0 0.0
        %2964 = vmatpush1.msra.mxu0 0.0
        %2965 = vmatprep.subr.mxu0 0.0
        %2966 = vmatpush1.msra.mxu0 0.0
        %2967 = vmatprep.subr.mxu0 0.0
        %2968 = vmatpush1.msra.mxu0 0.0
        %2969 = vmatprep.subr.mxu0 0.0
        %2970 = vmatpush1.msra.mxu0 0.0
        %2971 = vmatprep.subr.mxu0 0.0
        %2972 = vmatpush1.msra.mxu0 0.0
        %2973 = vmatprep.subr.mxu0 0.0
        %2974 = vmatpush1.msra.mxu0 0.0
        %2975 = vmatprep.mubr.f32.mxu0 0.0
        %2976 = vmatmul.mubr.f32.gmra.mrb[0].mxu0 %v2838
        %v2977 = vpop.f32.mrb[0].mxu0
        %v2978 = vadd.f32 0.0, %v2977
        %v2979 = vpop.f32.mrb[0].mxu0
        %v2980 = vadd.f32 0.0, %v2979
        %2981 = vdwg.mxu0
        %v2982 = vadd.f32 %v2285, %v2907
        %v2983 = vadd.f32 %v2287, %v2909
        %v2984 = vadd.f32 %v2356, %v2978
        %v2985 = vadd.f32 %v2358, %v2980
        %s2986 = scalar_lea.vmem %s882, 32
        %v2987 = vld [vmem:[%s2986] sm:$0xff]
        %v2988 = vld [vmem:[%s2986 + $0x8] sm:$0xff]
        %s2989 = scalar_lea.vmem %s889, 32
        %v2990 = vld [vmem:[%s2989] sm:$0xff]
        %v2991 = vld [vmem:[%s2989 + $0x8] sm:$0xff]
        %2996 = vrot.lane.b32.xlu0 %v2831, 16
        %v2997 = vpop.permute.xlu0 %2996
        %2998 = vrot.lane.b32.xlu0 %v2832, 16
        %v2999 = vpop.permute.xlu0 %2998
        %3000 = vrot.lane.b32.xlu0 %v2833, 16
        %v3001 = vpop.permute.xlu0 %3000
        %3002 = vrot.lane.b32.xlu0 %v2834, 16
        %v3003 = vpop.permute.xlu0 %3002
        %v3004 = vsel %vm1441, %v2997, %v2999
        %v3005 = vsel %vm1441, %v2999, %v3001
        %v3006 = vsel %vm1441, %v3001, %v3003
        %v3011 = vsel %vm1441, 0.0, %v2997
        %v3012 = vadd.s32 %v1020, 4294967280
        %v3013 = vadd.s32 %v1021, 4294967280
        %v3014 = vadd.s32 %v1022, 4294967280
        %v3015 = vadd.s32 %v1023, 4294967280
        %vm3016 = vcmp.ge.s32.totalorder %v3012, 0
        %vm3017 = vcmp.ge.s32.totalorder %v3013, 0
        %vm3018 = vcmp.ge.s32.totalorder %v3014, 0
        %vm3019 = vcmp.ge.s32.totalorder %v3015, 0
        %vm3020 = vcmp.lt.s32.totalorder %v3012, 64
        %vm3021 = vcmp.lt.s32.totalorder %v3013, 64
        %vm3022 = vcmp.lt.s32.totalorder %v3014, 64
        %vm3023 = vcmp.lt.s32.totalorder %v3015, 64
        %vm3024 = vmand %vm3016, %vm3020
        %vm3025 = vmand %vm3017, %vm3021
        %vm3026 = vmand %vm3018, %vm3022
        %vm3027 = vmand %vm3019, %vm3023
        %v3028 = vsel %vm3024, 1, 0
        %v3029 = vsel %vm3025, 1, 0
        %v3030 = vsel %vm3026, 1, 0
        %v3031 = vsel %vm3027, 1, 0
        %v3032 = vcvt.s32.f32 %v3028
        %v3033 = vcvt.s32.f32 %v3029
        %v3034 = vcvt.s32.f32 %v3030
        %v3035 = vcvt.s32.f32 %v3031
        %v3036 = vmul.f32 %v3011, %v3032
        %v3037 = vmul.f32 %v3004, %v3033
        %v3038 = vmul.f32 %v3005, %v3034
        %v3039 = vmul.f32 %v3006, %v3035
        %3040 = vrot.lane.b32.xlu0 %v2831, 8
        %v3041 = vpop.permute.xlu0 %3040
        %3042 = vrot.lane.b32.xlu0 %v2832, 8
        %v3043 = vpop.permute.xlu0 %3042
        %3044 = vrot.lane.b32.xlu0 %v2833, 8
        %v3045 = vpop.permute.xlu0 %3044
        %3046 = vrot.lane.b32.xlu0 %v2834, 8
        %v3047 = vpop.permute.xlu0 %3046
        %v3048 = vsel %vm2069, %v3041, %v3043
        %v3049 = vsel %vm2069, %v3043, %v3045
        %v3050 = vsel %vm2069, %v3045, %v3047
        %v3055 = vsel %vm2069, 0.0, %v3041
        %v3056 = vmul.f32 %v3055, %v2406
        %v3057 = vmul.f32 %v3048, %v2407
        %v3058 = vmul.f32 %v3049, %v2408
        %v3059 = vmul.f32 %v3050, %v2409
        %3060 = vrot.lane.b32.xlu0 %v2831, 120
        %v3061 = vpop.permute.xlu0 %3060
        %3062 = vrot.lane.b32.xlu0 %v2832, 120
        %v3063 = vpop.permute.xlu0 %3062
        %3064 = vrot.lane.b32.xlu0 %v2833, 120
        %v3065 = vpop.permute.xlu0 %3064
        %3066 = vrot.lane.b32.xlu0 %v2834, 120
        %v3067 = vpop.permute.xlu0 %3066
        %v3068 = vsel %vm2462, %v3061, %v3063
        %v3069 = vsel %vm2462, %v3063, %v3065
        %v3070 = vsel %vm2462, %v3065, %v3067
        %v3075 = vsel %vm2462, %v3067, 0.0
        %v3076 = vmul.f32 %v3068, %v2491
        %v3077 = vmul.f32 %v3069, %v2492
        %v3078 = vmul.f32 %v3070, %v2493
        %v3079 = vmul.f32 %v3075, %v2494
        %3080 = vrot.lane.b32.xlu0 %v2831, 112
        %v3081 = vpop.permute.xlu0 %3080
        %3082 = vrot.lane.b32.xlu0 %v2832, 112
        %v3083 = vpop.permute.xlu0 %3082
        %3084 = vrot.lane.b32.xlu0 %v2833, 112
        %v3085 = vpop.permute.xlu0 %3084
        %3086 = vrot.lane.b32.xlu0 %v2834, 112
        %v3087 = vpop.permute.xlu0 %3086
        %vm3088 = vcmask 916480
        %v3089 = vsel %vm3088, %v3081, %v3083
        %v3090 = vsel %vm3088, %v3083, %v3085
        %v3091 = vsel %vm3088, %v3085, %v3087
        %v3096 = vsel %vm3088, %v3087, 0.0
        %v3097 = vadd.s32 %v1020, 16
        %v3098 = vadd.s32 %v1021, 16
        %v3099 = vadd.s32 %v1022, 16
        %v3100 = vadd.s32 %v1023, 16
        %vm3101 = vcmp.ge.s32.totalorder %v3097, 0
        %vm3102 = vcmp.ge.s32.totalorder %v3098, 0
        %vm3103 = vcmp.ge.s32.totalorder %v3099, 0
        %vm3104 = vcmp.ge.s32.totalorder %v3100, 0
        %vm3105 = vcmp.lt.s32.totalorder %v3097, 64
        %vm3106 = vcmp.lt.s32.totalorder %v3098, 64
        %vm3107 = vcmp.lt.s32.totalorder %v3099, 64
        %vm3108 = vcmp.lt.s32.totalorder %v3100, 64
        %vm3109 = vmand %vm3101, %vm3105
        %vm3110 = vmand %vm3102, %vm3106
        %vm3111 = vmand %vm3103, %vm3107
        %vm3112 = vmand %vm3104, %vm3108
        %v3113 = vsel %vm3109, 1, 0
        %v3114 = vsel %vm3110, 1, 0
        %v3115 = vsel %vm3111, 1, 0
        %v3116 = vsel %vm3112, 1, 0
        %v3117 = vcvt.s32.f32 %v3113
        %v3118 = vcvt.s32.f32 %v3114
        %v3119 = vcvt.s32.f32 %v3115
        %v3120 = vcvt.s32.f32 %v3116
        %v3121 = vmul.f32 %v3089, %v3117
        %v3122 = vmul.f32 %v3090, %v3118
        %v3123 = vmul.f32 %v3091, %v3119
        %v3124 = vmul.f32 %v3096, %v3120
        %3126 = vset.pattern.permute.xlu0 0
        %3127 = vperm.xlu0 %3126, %v2990
        %v3128 = vpop.permute.xlu0 %3127
        %3131 = vset.pattern.permute.xlu0 0
        %3132 = vperm.xlu0 %3131, %v2991
        %v3133 = vpop.permute.xlu0 %3132
        %v3136 = vsel %vm1740, %v2987, 0
        %v3139 = vsel %vm1740, %v2988, 0
        %3141 = vmatprep.subr.mxu0 %v3037
        %3142 = vmatpush1.msra.mxu0 %v3036
        %3143 = vmatprep.subr.mxu0 %v3057
        %3144 = vmatpush1.msra.mxu0 %v3056
        %3145 = vmatprep.subr.mxu0 %v2832
        %3146 = vmatpush1.msra.mxu0 %v2831
        %3147 = vmatprep.subr.mxu0 %v3077
        %3148 = vmatpush1.msra.mxu0 %v3076
        %3149 = vmatprep.subr.mxu0 %v3122
        %3150 = vmatpush1.msra.mxu0 %v3121
        %3151 = vmatprep.subr.mxu0 0.0
        %3152 = vmatpush1.msra.mxu0 0.0
        %3153 = vmatprep.subr.mxu0 0.0
        %3154 = vmatpush1.msra.mxu0 0.0
        %3155 = vmatprep.subr.mxu0 0.0
        %3156 = vmatpush1.msra.mxu0 0.0
        %3157 = vmatprep.subr.mxu0 0.0
        %3158 = vmatpush1.msra.mxu0 0.0
        %3159 = vmatprep.subr.mxu0 0.0
        %3160 = vmatpush1.msra.mxu0 0.0
        %3161 = vmatprep.subr.mxu0 0.0
        %3162 = vmatpush1.msra.mxu0 0.0
        %3163 = vmatprep.subr.mxu0 0.0
        %3164 = vmatpush1.msra.mxu0 0.0
        %3165 = vmatprep.subr.mxu0 0.0
        %3166 = vmatpush1.msra.mxu0 0.0
        %3167 = vmatprep.subr.mxu0 0.0
        %3168 = vmatpush1.msra.mxu0 0.0
        %3169 = vmatprep.subr.mxu0 0.0
        %3170 = vmatpush1.msra.mxu0 0.0
        %3171 = vmatprep.subr.mxu0 0.0
        %3172 = vmatpush1.msra.mxu0 0.0
        %3173 = vmatprep.subr.mxu0 0.0
        %3174 = vmatpush1.msra.mxu0 0.0
        %3175 = vmatprep.subr.mxu0 0.0
        %3176 = vmatpush1.msra.mxu0 0.0
        %3177 = vmatprep.subr.mxu0 0.0
        %3178 = vmatpush1.msra.mxu0 0.0
        %3179 = vmatprep.subr.mxu0 0.0
        %3180 = vmatpush1.msra.mxu0 0.0
        %3181 = vmatprep.subr.mxu0 0.0
        %3182 = vmatpush1.msra.mxu0 0.0
        %3183 = vmatprep.subr.mxu0 0.0
        %3184 = vmatpush1.msra.mxu0 0.0
        %3185 = vmatprep.subr.mxu0 0.0
        %3186 = vmatpush1.msra.mxu0 0.0
        %3187 = vmatprep.subr.mxu0 0.0
        %3188 = vmatpush1.msra.mxu0 0.0
        %3189 = vmatprep.subr.mxu0 0.0
        %3190 = vmatpush1.msra.mxu0 0.0
        %3191 = vmatprep.subr.mxu0 0.0
        %3192 = vmatpush1.msra.mxu0 0.0
        %3193 = vmatprep.subr.mxu0 0.0
        %3194 = vmatpush1.msra.mxu0 0.0
        %3195 = vmatprep.subr.mxu0 0.0
        %3196 = vmatpush1.msra.mxu0 0.0
        %3197 = vmatprep.subr.mxu0 0.0
        %3198 = vmatpush1.msra.mxu0 0.0
        %3199 = vmatprep.subr.mxu0 0.0
        %3200 = vmatpush1.msra.mxu0 0.0
        %3201 = vmatprep.subr.mxu0 0.0
        %3202 = vmatpush1.msra.mxu0 0.0
        %3203 = vmatprep.subr.mxu0 0.0
        %3204 = vmatpush1.msra.mxu0 0.0
        %3205 = vmatprep.mubr.f32.mxu0 0.0
        %3206 = vmatmul.mubr.f32.gmra.mrb[0].mxu0 %v3136
        %v3207 = vpop.f32.mrb[0].mxu0
        %v3208 = vadd.f32 %v3128, %v3207
        %v3209 = vpop.f32.mrb[0].mxu0
        %v3210 = vadd.f32 %v3128, %v3209
        %3211 = vmatprep.mubr.f32.mxu0 0.0
        %3212 = vmatmul.mubr.f32.gmra.mrb[0].mxu0 %v3139
        %v3213 = vpop.f32.mrb[0].mxu0
        %v3214 = vadd.f32 %v3133, %v3213
        %v3215 = vpop.f32.mrb[0].mxu0
        %v3216 = vadd.f32 %v3133, %v3215
        %3217 = vdwg.mxu0
        %3218 = vmatprep.subr.mxu0 %v3039
        %3219 = vmatpush1.msra.mxu0 %v3038
        %3220 = vmatprep.subr.mxu0 %v3059
        %3221 = vmatpush1.msra.mxu0 %v3058
        %3222 = vmatprep.subr.mxu0 %v2834
        %3223 = vmatpush1.msra.mxu0 %v2833
        %3224 = vmatprep.subr.mxu0 %v3079
        %3225 = vmatpush1.msra.mxu0 %v3078
        %3226 = vmatprep.subr.mxu0 %v3124
        %3227 = vmatpush1.msra.mxu0 %v3123
        %3228 = vmatprep.subr.mxu0 0.0
        %3229 = vmatpush1.msra.mxu0 0.0
        %3230 = vmatprep.subr.mxu0 0.0
        %3231 = vmatpush1.msra.mxu0 0.0
        %3232 = vmatprep.subr.mxu0 0.0
        %3233 = vmatpush1.msra.mxu0 0.0
        %3234 = vmatprep.subr.mxu0 0.0
        %3235 = vmatpush1.msra.mxu0 0.0
        %3236 = vmatprep.subr.mxu0 0.0
        %3237 = vmatpush1.msra.mxu0 0.0
        %3238 = vmatprep.subr.mxu0 0.0
        %3239 = vmatpush1.msra.mxu0 0.0
        %3240 = vmatprep.subr.mxu0 0.0
        %3241 = vmatpush1.msra.mxu0 0.0
        %3242 = vmatprep.subr.mxu0 0.0
        %3243 = vmatpush1.msra.mxu0 0.0
        %3244 = vmatprep.subr.mxu0 0.0
        %3245 = vmatpush1.msra.mxu0 0.0
        %3246 = vmatprep.subr.mxu0 0.0
        %3247 = vmatpush1.msra.mxu0 0.0
        %3248 = vmatprep.subr.mxu0 0.0
        %3249 = vmatpush1.msra.mxu0 0.0
        %3250 = vmatprep.subr.mxu0 0.0
        %3251 = vmatpush1.msra.mxu0 0.0
        %3252 = vmatprep.subr.mxu0 0.0
        %3253 = vmatpush1.msra.mxu0 0.0
        %3254 = vmatprep.subr.mxu0 0.0
        %3255 = vmatpush1.msra.mxu0 0.0
        %3256 = vmatprep.subr.mxu0 0.0
        %3257 = vmatpush1.msra.mxu0 0.0
        %3258 = vmatprep.subr.mxu0 0.0
        %3259 = vmatpush1.msra.mxu0 0.0
        %3260 = vmatprep.subr.mxu0 0.0
        %3261 = vmatpush1.msra.mxu0 0.0
        %3262 = vmatprep.subr.mxu0 0.0
        %3263 = vmatpush1.msra.mxu0 0.0
        %3264 = vmatprep.subr.mxu0 0.0
        %3265 = vmatpush1.msra.mxu0 0.0
        %3266 = vmatprep.subr.mxu0 0.0
        %3267 = vmatpush1.msra.mxu0 0.0
        %3268 = vmatprep.subr.mxu0 0.0
        %3269 = vmatpush1.msra.mxu0 0.0
        %3270 = vmatprep.subr.mxu0 0.0
        %3271 = vmatpush1.msra.mxu0 0.0
        %3272 = vmatprep.subr.mxu0 0.0
        %3273 = vmatpush1.msra.mxu0 0.0
        %3274 = vmatprep.subr.mxu0 0.0
        %3275 = vmatpush1.msra.mxu0 0.0
        %3276 = vmatprep.subr.mxu0 0.0
        %3277 = vmatpush1.msra.mxu0 0.0
        %3278 = vmatprep.subr.mxu0 0.0
        %3279 = vmatpush1.msra.mxu0 0.0
        %3280 = vmatprep.subr.mxu0 0.0
        %3281 = vmatpush1.msra.mxu0 0.0
        %3282 = vmatprep.mubr.f32.mxu0 0.0
        %3283 = vmatmul.mubr.f32.gmra.mrb[0].mxu0 %v3136
        %v3284 = vpop.f32.mrb[0].mxu0
        %v3285 = vadd.f32 %v3128, %v3284
        %v3286 = vpop.f32.mrb[0].mxu0
        %v3287 = vadd.f32 %v3128, %v3286
        %3288 = vmatprep.mubr.f32.mxu0 0.0
        %3289 = vmatmul.mubr.f32.gmra.mrb[0].mxu0 %v3139
        %v3290 = vpop.f32.mrb[0].mxu0
        %v3291 = vadd.f32 %v3133, %v3290
        %v3292 = vpop.f32.mrb[0].mxu0
        %v3293 = vadd.f32 %v3133, %v3292
        %3294 = vdwg.mxu0
        %v3295 = vmax.f32 %v3208, 0.0
        %v3296 = vmax.f32 %v3210, 0.0
        %v3297 = vmax.f32 %v3285, 0.0
        %v3298 = vmax.f32 %v3287, 0.0
        %v3299 = vmax.f32 %v3214, 0.0
        %v3300 = vmax.f32 %v3216, 0.0
        %v3301 = vmax.f32 %v3291, 0.0
        %v3302 = vmax.f32 %v3293, 0.0
        %s3303 = scalar_lea.vmem %s896, 24
        %v3304 = vld [vmem:[%s3303] sm:$0xff]
        %s3305 = scalar_lea.vmem %s903, 24
        %v3306 = vld [vmem:[%s3305] sm:$0xff]
        %3308 = vset.pattern.permute.xlu0 0
        %3309 = vperm.xlu0 %3308, %v3306
        %v3310 = vpop.permute.xlu0 %3309
        %v3313 = vsel %vm1441, %v3304, 0
        %3315 = vmatprep.subr.mxu0 %v3296
        %3316 = vmatpush1.msra.mxu0 %v3295
        %3317 = vmatprep.subr.mxu0 %v3300
        %3318 = vmatpush1.msra.mxu0 %v3299
        %3319 = vmatprep.subr.mxu0 0.0
        %3320 = vmatpush1.msra.mxu0 0.0
        %3321 = vmatprep.subr.mxu0 0.0
        %3322 = vmatpush1.msra.mxu0 0.0
        %3323 = vmatprep.subr.mxu0 0.0
        %3324 = vmatpush1.msra.mxu0 0.0
        %3325 = vmatprep.subr.mxu0 0.0
        %3326 = vmatpush1.msra.mxu0 0.0
        %3327 = vmatprep.subr.mxu0 0.0
        %3328 = vmatpush1.msra.mxu0 0.0
        %3329 = vmatprep.subr.mxu0 0.0
        %3330 = vmatpush1.msra.mxu0 0.0
        %3331 = vmatprep.subr.mxu0 0.0
        %3332 = vmatpush1.msra.mxu0 0.0
        %3333 = vmatprep.subr.mxu0 0.0
        %3334 = vmatpush1.msra.mxu0 0.0
        %3335 = vmatprep.subr.mxu0 0.0
        %3336 = vmatpush1.msra.mxu0 0.0
        %3337 = vmatprep.subr.mxu0 0.0
        %3338 = vmatpush1.msra.mxu0 0.0
        %3339 = vmatprep.subr.mxu0 0.0
        %3340 = vmatpush1.msra.mxu0 0.0
        %3341 = vmatprep.subr.mxu0 0.0
        %3342 = vmatpush1.msra.mxu0 0.0
        %3343 = vmatprep.subr.mxu0 0.0
        %3344 = vmatpush1.msra.mxu0 0.0
        %3345 = vmatprep.subr.mxu0 0.0
        %3346 = vmatpush1.msra.mxu0 0.0
        %3347 = vmatprep.subr.mxu0 0.0
        %3348 = vmatpush1.msra.mxu0 0.0
        %3349 = vmatprep.subr.mxu0 0.0
        %3350 = vmatpush1.msra.mxu0 0.0
        %3351 = vmatprep.subr.mxu0 0.0
        %3352 = vmatpush1.msra.mxu0 0.0
        %3353 = vmatprep.subr.mxu0 0.0
        %3354 = vmatpush1.msra.mxu0 0.0
        %3355 = vmatprep.subr.mxu0 0.0
        %3356 = vmatpush1.msra.mxu0 0.0
        %3357 = vmatprep.subr.mxu0 0.0
        %3358 = vmatpush1.msra.mxu0 0.0
        %3359 = vmatprep.subr.mxu0 0.0
        %3360 = vmatpush1.msra.mxu0 0.0
        %3361 = vmatprep.subr.mxu0 0.0
        %3362 = vmatpush1.msra.mxu0 0.0
        %3363 = vmatprep.subr.mxu0 0.0
        %3364 = vmatpush1.msra.mxu0 0.0
        %3365 = vmatprep.subr.mxu0 0.0
        %3366 = vmatpush1.msra.mxu0 0.0
        %3367 = vmatprep.subr.mxu0 0.0
        %3368 = vmatpush1.msra.mxu0 0.0
        %3369 = vmatprep.subr.mxu0 0.0
        %3370 = vmatpush1.msra.mxu0 0.0
        %3371 = vmatprep.subr.mxu0 0.0
        %3372 = vmatpush1.msra.mxu0 0.0
        %3373 = vmatprep.subr.mxu0 0.0
        %3374 = vmatpush1.msra.mxu0 0.0
        %3375 = vmatprep.subr.mxu0 0.0
        %3376 = vmatpush1.msra.mxu0 0.0
        %3377 = vmatprep.subr.mxu0 0.0
        %3378 = vmatpush1.msra.mxu0 0.0
        %3379 = vmatprep.mubr.f32.mxu0 0.0
        %3380 = vmatmul.mubr.f32.gmra.mrb[0].mxu0 %v3313
        %v3381 = vpop.f32.mrb[0].mxu0
        %v3382 = vadd.f32 %v3310, %v3381
        %v3383 = vpop.f32.mrb[0].mxu0
        %v3384 = vadd.f32 %v3310, %v3383
        %3385 = vdwg.mxu0
        %3386 = vmatprep.subr.mxu0 %v3298
        %3387 = vmatpush1.msra.mxu0 %v3297
        %3388 = vmatprep.subr.mxu0 %v3302
        %3389 = vmatpush1.msra.mxu0 %v3301
        %3390 = vmatprep.subr.mxu0 0.0
        %3391 = vmatpush1.msra.mxu0 0.0
        %3392 = vmatprep.subr.mxu0 0.0
        %3393 = vmatpush1.msra.mxu0 0.0
        %3394 = vmatprep.subr.mxu0 0.0
        %3395 = vmatpush1.msra.mxu0 0.0
        %3396 = vmatprep.subr.mxu0 0.0
        %3397 = vmatpush1.msra.mxu0 0.0
        %3398 = vmatprep.subr.mxu0 0.0
        %3399 = vmatpush1.msra.mxu0 0.0
        %3400 = vmatprep.subr.mxu0 0.0
        %3401 = vmatpush1.msra.mxu0 0.0
        %3402 = vmatprep.subr.mxu0 0.0
        %3403 = vmatpush1.msra.mxu0 0.0
        %3404 = vmatprep.subr.mxu0 0.0
        %3405 = vmatpush1.msra.mxu0 0.0
        %3406 = vmatprep.subr.mxu0 0.0
        %3407 = vmatpush1.msra.mxu0 0.0
        %3408 = vmatprep.subr.mxu0 0.0
        %3409 = vmatpush1.msra.mxu0 0.0
        %3410 = vmatprep.subr.mxu0 0.0
        %3411 = vmatpush1.msra.mxu0 0.0
        %3412 = vmatprep.subr.mxu0 0.0
        %3413 = vmatpush1.msra.mxu0 0.0
        %3414 = vmatprep.subr.mxu0 0.0
        %3415 = vmatpush1.msra.mxu0 0.0
        %3416 = vmatprep.subr.mxu0 0.0
        %3417 = vmatpush1.msra.mxu0 0.0
        %3418 = vmatprep.subr.mxu0 0.0
        %3419 = vmatpush1.msra.mxu0 0.0
        %3420 = vmatprep.subr.mxu0 0.0
        %3421 = vmatpush1.msra.mxu0 0.0
        %3422 = vmatprep.subr.mxu0 0.0
        %3423 = vmatpush1.msra.mxu0 0.0
        %3424 = vmatprep.subr.mxu0 0.0
        %3425 = vmatpush1.msra.mxu0 0.0
        %3426 = vmatprep.subr.mxu0 0.0
        %3427 = vmatpush1.msra.mxu0 0.0
        %3428 = vmatprep.subr.mxu0 0.0
        %3429 = vmatpush1.msra.mxu0 0.0
        %3430 = vmatprep.subr.mxu0 0.0
        %3431 = vmatpush1.msra.mxu0 0.0
        %3432 = vmatprep.subr.mxu0 0.0
        %3433 = vmatpush1.msra.mxu0 0.0
        %3434 = vmatprep.subr.mxu0 0.0
        %3435 = vmatpush1.msra.mxu0 0.0
        %3436 = vmatprep.subr.mxu0 0.0
        %3437 = vmatpush1.msra.mxu0 0.0
        %3438 = vmatprep.subr.mxu0 0.0
        %3439 = vmatpush1.msra.mxu0 0.0
        %3440 = vmatprep.subr.mxu0 0.0
        %3441 = vmatpush1.msra.mxu0 0.0
        %3442 = vmatprep.subr.mxu0 0.0
        %3443 = vmatpush1.msra.mxu0 0.0
        %3444 = vmatprep.subr.mxu0 0.0
        %3445 = vmatpush1.msra.mxu0 0.0
        %3446 = vmatprep.subr.mxu0 0.0
        %3447 = vmatpush1.msra.mxu0 0.0
        %3448 = vmatprep.subr.mxu0 0.0
        %3449 = vmatpush1.msra.mxu0 0.0
        %3450 = vmatprep.mubr.f32.mxu0 0.0
        %3451 = vmatmul.mubr.f32.gmra.mrb[0].mxu0 %v3313
        %v3452 = vpop.f32.mrb[0].mxu0
        %v3453 = vadd.f32 %v3310, %v3452
        %v3454 = vpop.f32.mrb[0].mxu0
        %v3455 = vadd.f32 %v3310, %v3454
        %3456 = vdwg.mxu0
        %v3457 = vmax.f32 %v3382, 0.0
        %v3458 = vmax.f32 %v3384, 0.0
        %v3459 = vmax.f32 %v3453, 0.0
        %v3460 = vmax.f32 %v3455, 0.0
        %s3461 = scalar_lea.vmem %s910, 24
        %v3462 = vld [vmem:[%s3461] sm:$0xff]
        %v3464 = vsel %vm2069, %v3462, 0
        %3466 = vmatprep.subr.mxu0 %v3458
        %3467 = vmatpush1.msra.mxu0 %v3457
        %3468 = vmatprep.subr.mxu0 0.0
        %3469 = vmatpush1.msra.mxu0 0.0
        %3470 = vmatprep.subr.mxu0 0.0
        %3471 = vmatpush1.msra.mxu0 0.0
        %3472 = vmatprep.subr.mxu0 0.0
        %3473 = vmatpush1.msra.mxu0 0.0
        %3474 = vmatprep.subr.mxu0 0.0
        %3475 = vmatpush1.msra.mxu0 0.0
        %3476 = vmatprep.subr.mxu0 0.0
        %3477 = vmatpush1.msra.mxu0 0.0
        %3478 = vmatprep.subr.mxu0 0.0
        %3479 = vmatpush1.msra.mxu0 0.0
        %3480 = vmatprep.subr.mxu0 0.0
        %3481 = vmatpush1.msra.mxu0 0.0
        %3482 = vmatprep.subr.mxu0 0.0
        %3483 = vmatpush1.msra.mxu0 0.0
        %3484 = vmatprep.subr.mxu0 0.0
        %3485 = vmatpush1.msra.mxu0 0.0
        %3486 = vmatprep.subr.mxu0 0.0
        %3487 = vmatpush1.msra.mxu0 0.0
        %3488 = vmatprep.subr.mxu0 0.0
        %3489 = vmatpush1.msra.mxu0 0.0
        %3490 = vmatprep.subr.mxu0 0.0
        %3491 = vmatpush1.msra.mxu0 0.0
        %3492 = vmatprep.subr.mxu0 0.0
        %3493 = vmatpush1.msra.mxu0 0.0
        %3494 = vmatprep.subr.mxu0 0.0
        %3495 = vmatpush1.msra.mxu0 0.0
        %3496 = vmatprep.subr.mxu0 0.0
        %3497 = vmatpush1.msra.mxu0 0.0
        %3498 = vmatprep.subr.mxu0 0.0
        %3499 = vmatpush1.msra.mxu0 0.0
        %3500 = vmatprep.subr.mxu0 0.0
        %3501 = vmatpush1.msra.mxu0 0.0
        %3502 = vmatprep.subr.mxu0 0.0
        %3503 = vmatpush1.msra.mxu0 0.0
        %3504 = vmatprep.subr.mxu0 0.0
        %3505 = vmatpush1.msra.mxu0 0.0
        %3506 = vmatprep.subr.mxu0 0.0
        %3507 = vmatpush1.msra.mxu0 0.0
        %3508 = vmatprep.subr.mxu0 0.0
        %3509 = vmatpush1.msra.mxu0 0.0
        %3510 = vmatprep.subr.mxu0 0.0
        %3511 = vmatpush1.msra.mxu0 0.0
        %3512 = vmatprep.subr.mxu0 0.0
        %3513 = vmatpush1.msra.mxu0 0.0
        %3514 = vmatprep.subr.mxu0 0.0
        %3515 = vmatpush1.msra.mxu0 0.0
        %3516 = vmatprep.subr.mxu0 0.0
        %3517 = vmatpush1.msra.mxu0 0.0
        %3518 = vmatprep.subr.mxu0 0.0
        %3519 = vmatpush1.msra.mxu0 0.0
        %3520 = vmatprep.subr.mxu0 0.0
        %3521 = vmatpush1.msra.mxu0 0.0
        %3522 = vmatprep.subr.mxu0 0.0
        %3523 = vmatpush1.msra.mxu0 0.0
        %3524 = vmatprep.subr.mxu0 0.0
        %3525 = vmatpush1.msra.mxu0 0.0
        %3526 = vmatprep.subr.mxu0 0.0
        %3527 = vmatpush1.msra.mxu0 0.0
        %3528 = vmatprep.subr.mxu0 0.0
        %3529 = vmatpush1.msra.mxu0 0.0
        %3530 = vmatprep.mubr.f32.mxu0 0.0
        %3531 = vmatmul.mubr.f32.gmra.mrb[0].mxu0 %v3464
        %v3532 = vpop.f32.mrb[0].mxu0
        %v3533 = vadd.f32 0.0, %v3532
        %v3534 = vpop.f32.mrb[0].mxu0
        %v3535 = vadd.f32 0.0, %v3534
        %3536 = vdwg.mxu0
        %3537 = vmatprep.subr.mxu0 %v3460
        %3538 = vmatpush1.msra.mxu0 %v3459
        %3539 = vmatprep.subr.mxu0 0.0
        %3540 = vmatpush1.msra.mxu0 0.0
        %3541 = vmatprep.subr.mxu0 0.0
        %3542 = vmatpush1.msra.mxu0 0.0
        %3543 = vmatprep.subr.mxu0 0.0
        %3544 = vmatpush1.msra.mxu0 0.0
        %3545 = vmatprep.subr.mxu0 0.0
        %3546 = vmatpush1.msra.mxu0 0.0
        %3547 = vmatprep.subr.mxu0 0.0
        %3548 = vmatpush1.msra.mxu0 0.0
        %3549 = vmatprep.subr.mxu0 0.0
        %3550 = vmatpush1.msra.mxu0 0.0
        %3551 = vmatprep.subr.mxu0 0.0
        %3552 = vmatpush1.msra.mxu0 0.0
        %3553 = vmatprep.subr.mxu0 0.0
        %3554 = vmatpush1.msra.mxu0 0.0
        %3555 = vmatprep.subr.mxu0 0.0
        %3556 = vmatpush1.msra.mxu0 0.0
        %3557 = vmatprep.subr.mxu0 0.0
        %3558 = vmatpush1.msra.mxu0 0.0
        %3559 = vmatprep.subr.mxu0 0.0
        %3560 = vmatpush1.msra.mxu0 0.0
        %3561 = vmatprep.subr.mxu0 0.0
        %3562 = vmatpush1.msra.mxu0 0.0
        %3563 = vmatprep.subr.mxu0 0.0
        %3564 = vmatpush1.msra.mxu0 0.0
        %3565 = vmatprep.subr.mxu0 0.0
        %3566 = vmatpush1.msra.mxu0 0.0
        %3567 = vmatprep.subr.mxu0 0.0
        %3568 = vmatpush1.msra.mxu0 0.0
        %3569 = vmatprep.subr.mxu0 0.0
        %3570 = vmatpush1.msra.mxu0 0.0
        %3571 = vmatprep.subr.mxu0 0.0
        %3572 = vmatpush1.msra.mxu0 0.0
        %3573 = vmatprep.subr.mxu0 0.0
        %3574 = vmatpush1.msra.mxu0 0.0
        %3575 = vmatprep.subr.mxu0 0.0
        %3576 = vmatpush1.msra.mxu0 0.0
        %3577 = vmatprep.subr.mxu0 0.0
        %3578 = vmatpush1.msra.mxu0 0.0
        %3579 = vmatprep.subr.mxu0 0.0
        %3580 = vmatpush1.msra.mxu0 0.0
        %3581 = vmatprep.subr.mxu0 0.0
        %3582 = vmatpush1.msra.mxu0 0.0
        %3583 = vmatprep.subr.mxu0 0.0
        %3584 = vmatpush1.msra.mxu0 0.0
        %3585 = vmatprep.subr.mxu0 0.0
        %3586 = vmatpush1.msra.mxu0 0.0
        %3587 = vmatprep.subr.mxu0 0.0
        %3588 = vmatpush1.msra.mxu0 0.0
        %3589 = vmatprep.subr.mxu0 0.0
        %3590 = vmatpush1.msra.mxu0 0.0
        %3591 = vmatprep.subr.mxu0 0.0
        %3592 = vmatpush1.msra.mxu0 0.0
        %3593 = vmatprep.subr.mxu0 0.0
        %3594 = vmatpush1.msra.mxu0 0.0
        %3595 = vmatprep.subr.mxu0 0.0
        %3596 = vmatpush1.msra.mxu0 0.0
        %3597 = vmatprep.subr.mxu0 0.0
        %3598 = vmatpush1.msra.mxu0 0.0
        %3599 = vmatprep.subr.mxu0 0.0
        %3600 = vmatpush1.msra.mxu0 0.0
        %3601 = vmatprep.mubr.f32.mxu0 0.0
        %3602 = vmatmul.mubr.f32.gmra.mrb[0].mxu0 %v3464
        %v3603 = vpop.f32.mrb[0].mxu0
        %v3604 = vadd.f32 0.0, %v3603
        %v3605 = vpop.f32.mrb[0].mxu0
        %v3606 = vadd.f32 0.0, %v3605
        %3607 = vdwg.mxu0
        %v3608 = vadd.f32 %v2982, %v3533
        %v3609 = vadd.f32 %v2983, %v3535
        %v3610 = vadd.f32 %v2984, %v3604
        %v3611 = vadd.f32 %v2985, %v3606
        %v3612 = vld [vmem:[%s916] sm:$0xff]
        %3614 = vset.pattern.permute.xlu0 0
        %3615 = vperm.xlu0 %3614, %v3612
        %v3616 = vpop.permute.xlu0 %3615
        %v3618 = vadd.f32 %v3608, %v3616
        %v3619 = vadd.f32 %v3609, %v3616
        %v3620 = vadd.f32 %v3610, %v3616
        %v3621 = vadd.f32 %v3611, %v3616
        %3626 = vrot.lane.b32.xlu0 %v3618, 127
        %v3627 = vpop.permute.xlu0 %3626
        %3628 = vrot.lane.b32.xlu0 %v3619, 127
        %v3629 = vpop.permute.xlu0 %3628
        %3630 = vrot.lane.b32.xlu0 %v3620, 127
        %v3631 = vpop.permute.xlu0 %3630
        %3632 = vrot.lane.b32.xlu0 %v3621, 127
        %v3633 = vpop.permute.xlu0 %3632
        %v3634 = vsel %vm1246, %v3627, %v3629
        %v3635 = vsel %vm1246, %v3629, %v3631
        %v3636 = vsel %vm1246, %v3631, %v3633
        %v3641 = vsel %vm1246, %v3633, 0.0
        %3642 = vrot.lane.b32.xlu0 %v3618, 1
        %v3643 = vpop.permute.xlu0 %3642
        %3644 = vrot.lane.b32.xlu0 %v3619, 1
        %v3645 = vpop.permute.xlu0 %3644
        %3646 = vrot.lane.b32.xlu0 %v3620, 1
        %v3647 = vpop.permute.xlu0 %3646
        %3648 = vrot.lane.b32.xlu0 %v3621, 1
        %v3649 = vpop.permute.xlu0 %3648
        %v3650 = vsel %vm1133, %v3643, %v3645
        %v3651 = vsel %vm1133, %v3645, %v3647
        %v3652 = vsel %vm1133, %v3647, %v3649
        %v3657 = vsel %vm1133, 0.0, %v3643
        %vm3658 = vcmp.lt.s32.totalorder %v1020, 0
        %v3659 = vsub.s32 0, %v1020
        %v3660 = vsel %vm3658, %v3659, %v1020
        %v3661 = vshrl.u32 %v3660, 1
        %v3662 = vand.u32 %v3660, 1
        %v3663 = vsub.s32 0, %v3662
        %v3664 = vsel %vm3658, %v3663, %v3662
        %vm3665 = vcmp.lt.s32.totalorder %v1021, 0
        %v3666 = vsub.s32 0, %v1021
        %v3667 = vsel %vm3665, %v3666, %v1021
        %v3668 = vshrl.u32 %v3667, 1
        %v3669 = vand.u32 %v3667, 1
        %v3670 = vsub.s32 0, %v3669
        %v3671 = vsel %vm3665, %v3670, %v3669
        %vm3672 = vcmp.lt.s32.totalorder %v1022, 0
        %v3673 = vsub.s32 0, %v1022
        %v3674 = vsel %vm3672, %v3673, %v1022
        %v3675 = vshrl.u32 %v3674, 1
        %v3676 = vand.u32 %v3674, 1
        %v3677 = vsub.s32 0, %v3676
        %v3678 = vsel %vm3672, %v3677, %v3676
        %vm3679 = vcmp.lt.s32.totalorder %v1023, 0
        %v3680 = vsub.s32 0, %v1023
        %v3681 = vsel %vm3679, %v3680, %v1023
        %v3682 = vshrl.u32 %v3681, 1
        %v3683 = vand.u32 %v3681, 1
        %v3684 = vsub.s32 0, %v3683
        %v3685 = vsel %vm3679, %v3684, %v3683
        %vm3686 = vcmp.ne.s32.totalorder %v3664, 0
        %vm3687 = vcmp.ne.s32.totalorder %v3671, 0
        %vm3688 = vcmp.ne.s32.totalorder %v3678, 0
        %vm3689 = vcmp.ne.s32.totalorder %v3685, 0
        %vm3690 = vcmp.lt.s32.totalorder %v3664, 0
        %vm3691 = vcmp.lt.s32.totalorder %v3671, 0
        %vm3692 = vcmp.lt.s32.totalorder %v3678, 0
        %vm3693 = vcmp.lt.s32.totalorder %v3685, 0
        %vm3694 = vmand %vm3690, %vm3686
        %vm3695 = vmand %vm3691, %vm3687
        %vm3696 = vmand %vm3692, %vm3688
        %vm3697 = vmand %vm3693, %vm3689
        %v3698 = vadd.s32 %v3664, 2
        %v3699 = vadd.s32 %v3671, 2
        %v3700 = vadd.s32 %v3678, 2
        %v3701 = vadd.s32 %v3685, 2
        %v3702 = vsel %vm3694, %v3698, %v3664
        %v3703 = vsel %vm3695, %v3699, %v3671
        %v3704 = vsel %vm3696, %v3700, %v3678
        %v3705 = vsel %vm3697, %v3701, %v3685
        %vm3706 = vcmp.eq.s32.totalorder %v3702, 0
        %vm3707 = vcmp.eq.s32.totalorder %v3703, 0
        %vm3708 = vcmp.eq.s32.totalorder %v3704, 0
        %vm3709 = vcmp.eq.s32.totalorder %v3705, 0
        %v3710 = vsel %vm3706, 1, 0
        %v3711 = vsel %vm3707, 1, 0
        %v3712 = vsel %vm3708, 1, 0
        %v3713 = vsel %vm3709, 1, 0
        %v3714 = vcvt.s32.f32 %v3710
        %v3715 = vcvt.s32.f32 %v3711
        %v3716 = vcvt.s32.f32 %v3712
        %v3717 = vcvt.s32.f32 %v3713
        %v3718 = vmul.f32 %v3634, %v3714
        %v3719 = vmul.f32 %v3635, %v3715
        %v3720 = vmul.f32 %v3636, %v3716
        %v3721 = vmul.f32 %v3641, %v3717
        %v3722 = vadd.f32 %v3618, %v3718
        %v3723 = vadd.f32 %v3619, %v3719
        %v3724 = vadd.f32 %v3620, %v3720
        %v3725 = vadd.f32 %v3621, %v3721
        %v3726 = vsub.f32 1.0, %v3714
        %v3727 = vsub.f32 1.0, %v3715
        %v3728 = vsub.f32 1.0, %v3716
        %v3729 = vsub.f32 1.0, %v3717
        %v3730 = vmul.f32 %v3657, %v3726
        %v3731 = vmul.f32 %v3650, %v3727
        %v3732 = vmul.f32 %v3651, %v3728
        %v3733 = vmul.f32 %v3652, %v3729
        %v3734 = vadd.f32 %v3722, %v3730
        %v3735 = vadd.f32 %v3723, %v3731
        %v3736 = vadd.f32 %v3724, %v3732
        %v3737 = vadd.f32 %v3725, %v3733
        %v3738 = vmul.f32 %v3734, 0.5
        %v3739 = vmul.f32 %v3735, 0.5
        %v3740 = vmul.f32 %v3736, 0.5
        %v3741 = vmul.f32 %v3737, 0.5
        %v3742 = vld [vmem:[%s923] sm:$0xff]
        %v3743 = vld [vmem:[%s923 + $0x8] sm:$0xff]
        %v3744 = vld [vmem:[%s930] sm:$0xff]
        %v3745 = vld [vmem:[%s930 + $0x8] sm:$0xff]
        %3750 = vrot.lane.b32.xlu0 %v3738, 16
        %v3751 = vpop.permute.xlu0 %3750
        %3752 = vrot.lane.b32.xlu0 %v3739, 16
        %v3753 = vpop.permute.xlu0 %3752
        %3754 = vrot.lane.b32.xlu0 %v3740, 16
        %v3755 = vpop.permute.xlu0 %3754
        %3756 = vrot.lane.b32.xlu0 %v3741, 16
        %v3757 = vpop.permute.xlu0 %3756
        %v3758 = vsel %vm1441, %v3751, %v3753
        %v3759 = vsel %vm1441, %v3753, %v3755
        %v3760 = vsel %vm1441, %v3755, %v3757
        %v3765 = vsel %vm1441, 0.0, %v3751
        %v3766 = vmul.f32 %v3765, %v3032
        %v3767 = vmul.f32 %v3758, %v3033
        %v3768 = vmul.f32 %v3759, %v3034
        %v3769 = vmul.f32 %v3760, %v3035
        %3770 = vrot.lane.b32.xlu0 %v3738, 8
        %v3771 = vpop.permute.xlu0 %3770
        %3772 = vrot.lane.b32.xlu0 %v3739, 8
        %v3773 = vpop.permute.xlu0 %3772
        %3774 = vrot.lane.b32.xlu0 %v3740, 8
        %v3775 = vpop.permute.xlu0 %3774
        %3776 = vrot.lane.b32.xlu0 %v3741, 8
        %v3777 = vpop.permute.xlu0 %3776
        %v3778 = vsel %vm2069, %v3771, %v3773
        %v3779 = vsel %vm2069, %v3773, %v3775
        %v3780 = vsel %vm2069, %v3775, %v3777
        %v3785 = vsel %vm2069, 0.0, %v3771
        %v3786 = vmul.f32 %v3785, %v2406
        %v3787 = vmul.f32 %v3778, %v2407
        %v3788 = vmul.f32 %v3779, %v2408
        %v3789 = vmul.f32 %v3780, %v2409
        %3790 = vrot.lane.b32.xlu0 %v3738, 120
        %v3791 = vpop.permute.xlu0 %3790
        %3792 = vrot.lane.b32.xlu0 %v3739, 120
        %v3793 = vpop.permute.xlu0 %3792
        %3794 = vrot.lane.b32.xlu0 %v3740, 120
        %v3795 = vpop.permute.xlu0 %3794
        %3796 = vrot.lane.b32.xlu0 %v3741, 120
        %v3797 = vpop.permute.xlu0 %3796
        %v3798 = vsel %vm2462, %v3791, %v3793
        %v3799 = vsel %vm2462, %v3793, %v3795
        %v3800 = vsel %vm2462, %v3795, %v3797
        %v3805 = vsel %vm2462, %v3797, 0.0
        %v3806 = vmul.f32 %v3798, %v2491
        %v3807 = vmul.f32 %v3799, %v2492
        %v3808 = vmul.f32 %v3800, %v2493
        %v3809 = vmul.f32 %v3805, %v2494
        %3810 = vrot.lane.b32.xlu0 %v3738, 112
        %v3811 = vpop.permute.xlu0 %3810
        %3812 = vrot.lane.b32.xlu0 %v3739, 112
        %v3813 = vpop.permute.xlu0 %3812
        %3814 = vrot.lane.b32.xlu0 %v3740, 112
        %v3815 = vpop.permute.xlu0 %3814
        %3816 = vrot.lane.b32.xlu0 %v3741, 112
        %v3817 = vpop.permute.xlu0 %3816
        %v3818 = vsel %vm3088, %v3811, %v3813
        %v3819 = vsel %vm3088, %v3813, %v3815
        %v3820 = vsel %vm3088, %v3815, %v3817
        %v3825 = vsel %vm3088, %v3817, 0.0
        %v3826 = vmul.f32 %v3818, %v3117
        %v3827 = vmul.f32 %v3819, %v3118
        %v3828 = vmul.f32 %v3820, %v3119
        %v3829 = vmul.f32 %v3825, %v3120
        %3831 = vset.pattern.permute.xlu0 0
        %3832 = vperm.xlu0 %3831, %v3744
        %v3833 = vpop.permute.xlu0 %3832
        %3836 = vset.pattern.permute.xlu0 0
        %3837 = vperm.xlu0 %3836, %v3745
        %v3838 = vpop.permute.xlu0 %3837
        %v3841 = vsel %vm1740, %v3742, 0
        %v3844 = vsel %vm1740, %v3743, 0
        %3846 = vmatprep.subr.mxu0 %v3767
        %3847 = vmatpush1.msra.mxu0 %v3766
        %3848 = vmatprep.subr.mxu0 %v3787
        %3849 = vmatpush1.msra.mxu0 %v3786
        %3850 = vmatprep.subr.mxu0 %v3739
        %3851 = vmatpush1.msra.mxu0 %v3738
        %3852 = vmatprep.subr.mxu0 %v3807
        %3853 = vmatpush1.msra.mxu0 %v3806
        %3854 = vmatprep.subr.mxu0 %v3827
        %3855 = vmatpush1.msra.mxu0 %v3826
        %3856 = vmatprep.subr.mxu0 0.0
        %3857 = vmatpush1.msra.mxu0 0.0
        %3858 = vmatprep.subr.mxu0 0.0
        %3859 = vmatpush1.msra.mxu0 0.0
        %3860 = vmatprep.subr.mxu0 0.0
        %3861 = vmatpush1.msra.mxu0 0.0
        %3862 = vmatprep.subr.mxu0 0.0
        %3863 = vmatpush1.msra.mxu0 0.0
        %3864 = vmatprep.subr.mxu0 0.0
        %3865 = vmatpush1.msra.mxu0 0.0
        %3866 = vmatprep.subr.mxu0 0.0
        %3867 = vmatpush1.msra.mxu0 0.0
        %3868 = vmatprep.subr.mxu0 0.0
        %3869 = vmatpush1.msra.mxu0 0.0
        %3870 = vmatprep.subr.mxu0 0.0
        %3871 = vmatpush1.msra.mxu0 0.0
        %3872 = vmatprep.subr.mxu0 0.0
        %3873 = vmatpush1.msra.mxu0 0.0
        %3874 = vmatprep.subr.mxu0 0.0
        %3875 = vmatpush1.msra.mxu0 0.0
        %3876 = vmatprep.subr.mxu0 0.0
        %3877 = vmatpush1.msra.mxu0 0.0
        %3878 = vmatprep.subr.mxu0 0.0
        %3879 = vmatpush1.msra.mxu0 0.0
        %3880 = vmatprep.subr.mxu0 0.0
        %3881 = vmatpush1.msra.mxu0 0.0
        %3882 = vmatprep.subr.mxu0 0.0
        %3883 = vmatpush1.msra.mxu0 0.0
        %3884 = vmatprep.subr.mxu0 0.0
        %3885 = vmatpush1.msra.mxu0 0.0
        %3886 = vmatprep.subr.mxu0 0.0
        %3887 = vmatpush1.msra.mxu0 0.0
        %3888 = vmatprep.subr.mxu0 0.0
        %3889 = vmatpush1.msra.mxu0 0.0
        %3890 = vmatprep.subr.mxu0 0.0
        %3891 = vmatpush1.msra.mxu0 0.0
        %3892 = vmatprep.subr.mxu0 0.0
        %3893 = vmatpush1.msra.mxu0 0.0
        %3894 = vmatprep.subr.mxu0 0.0
        %3895 = vmatpush1.msra.mxu0 0.0
        %3896 = vmatprep.subr.mxu0 0.0
        %3897 = vmatpush1.msra.mxu0 0.0
        %3898 = vmatprep.subr.mxu0 0.0
        %3899 = vmatpush1.msra.mxu0 0.0
        %3900 = vmatprep.subr.mxu0 0.0
        %3901 = vmatpush1.msra.mxu0 0.0
        %3902 = vmatprep.subr.mxu0 0.0
        %3903 = vmatpush1.msra.mxu0 0.0
        %3904 = vmatprep.subr.mxu0 0.0
        %3905 = vmatpush1.msra.mxu0 0.0
        %3906 = vmatprep.subr.mxu0 0.0
        %3907 = vmatpush1.msra.mxu0 0.0
        %3908 = vmatprep.subr.mxu0 0.0
        %3909 = vmatpush1.msra.mxu0 0.0
        %3910 = vmatprep.mubr.f32.mxu0 0.0
        %3911 = vmatmul.mubr.f32.gmra.mrb[0].mxu0 %v3841
        %v3912 = vpop.f32.mrb[0].mxu0
        %v3913 = vadd.f32 %v3833, %v3912
        %v3914 = vpop.f32.mrb[0].mxu0
        %v3915 = vadd.f32 %v3833, %v3914
        %3916 = vmatprep.mubr.f32.mxu0 0.0
        %3917 = vmatmul.mubr.f32.gmra.mrb[0].mxu0 %v3844
        %v3918 = vpop.f32.mrb[0].mxu0
        %v3919 = vadd.f32 %v3838, %v3918
        %v3920 = vpop.f32.mrb[0].mxu0
        %v3921 = vadd.f32 %v3838, %v3920
        %3922 = vdwg.mxu0
        %3923 = vmatprep.subr.mxu0 %v3769
        %3924 = vmatpush1.msra.mxu0 %v3768
        %3925 = vmatprep.subr.mxu0 %v3789
        %3926 = vmatpush1.msra.mxu0 %v3788
        %3927 = vmatprep.subr.mxu0 %v3741
        %3928 = vmatpush1.msra.mxu0 %v3740
        %3929 = vmatprep.subr.mxu0 %v3809
        %3930 = vmatpush1.msra.mxu0 %v3808
        %3931 = vmatprep.subr.mxu0 %v3829
        %3932 = vmatpush1.msra.mxu0 %v3828
        %3933 = vmatprep.subr.mxu0 0.0
        %3934 = vmatpush1.msra.mxu0 0.0
        %3935 = vmatprep.subr.mxu0 0.0
        %3936 = vmatpush1.msra.mxu0 0.0
        %3937 = vmatprep.subr.mxu0 0.0
        %3938 = vmatpush1.msra.mxu0 0.0
        %3939 = vmatprep.subr.mxu0 0.0
        %3940 = vmatpush1.msra.mxu0 0.0
        %3941 = vmatprep.subr.mxu0 0.0
        %3942 = vmatpush1.msra.mxu0 0.0
        %3943 = vmatprep.subr.mxu0 0.0
        %3944 = vmatpush1.msra.mxu0 0.0
        %3945 = vmatprep.subr.mxu0 0.0
        %3946 = vmatpush1.msra.mxu0 0.0
        %3947 = vmatprep.subr.mxu0 0.0
        %3948 = vmatpush1.msra.mxu0 0.0
        %3949 = vmatprep.subr.mxu0 0.0
        %3950 = vmatpush1.msra.mxu0 0.0
        %3951 = vmatprep.subr.mxu0 0.0
        %3952 = vmatpush1.msra.mxu0 0.0
        %3953 = vmatprep.subr.mxu0 0.0
        %3954 = vmatpush1.msra.mxu0 0.0
        %3955 = vmatprep.subr.mxu0 0.0
        %3956 = vmatpush1.msra.mxu0 0.0
        %3957 = vmatprep.subr.mxu0 0.0
        %3958 = vmatpush1.msra.mxu0 0.0
        %3959 = vmatprep.subr.mxu0 0.0
        %3960 = vmatpush1.msra.mxu0 0.0
        %3961 = vmatprep.subr.mxu0 0.0
        %3962 = vmatpush1.msra.mxu0 0.0
        %3963 = vmatprep.subr.mxu0 0.0
        %3964 = vmatpush1.msra.mxu0 0.0
        %3965 = vmatprep.subr.mxu0 0.0
        %3966 = vmatpush1.msra.mxu0 0.0
        %3967 = vmatprep.subr.mxu0 0.0
        %3968 = vmatpush1.msra.mxu0 0.0
        %3969 = vmatprep.subr.mxu0 0.0
        %3970 = vmatpush1.msra.mxu0 0.0
        %3971 = vmatprep.subr.mxu0 0.0
        %3972 = vmatpush1.msra.mxu0 0.0
        %3973 = vmatprep.subr.mxu0 0.0
        %3974 = vmatpush1.msra.mxu0 0.0
        %3975 = vmatprep.subr.mxu0 0.0
        %3976 = vmatpush1.msra.mxu0 0.0
        %3977 = vmatprep.subr.mxu0 0.0
        %3978 = vmatpush1.msra.mxu0 0.0
        %3979 = vmatprep.subr.mxu0 0.0
        %3980 = vmatpush1.msra.mxu0 0.0
        %3981 = vmatprep.subr.mxu0 0.0
        %3982 = vmatpush1.msra.mxu0 0.0
        %3983 = vmatprep.subr.mxu0 0.0
        %3984 = vmatpush1.msra.mxu0 0.0
        %3985 = vmatprep.subr.mxu0 0.0
        %3986 = vmatpush1.msra.mxu0 0.0
        %3987 = vmatprep.mubr.f32.mxu0 0.0
        %3988 = vmatmul.mubr.f32.gmra.mrb[0].mxu0 %v3841
        %v3989 = vpop.f32.mrb[0].mxu0
        %v3990 = vadd.f32 %v3833, %v3989
        %v3991 = vpop.f32.mrb[0].mxu0
        %v3992 = vadd.f32 %v3833, %v3991
        %3993 = vmatprep.mubr.f32.mxu0 0.0
        %3994 = vmatmul.mubr.f32.gmra.mrb[0].mxu0 %v3844
        %v3995 = vpop.f32.mrb[0].mxu0
        %v3996 = vadd.f32 %v3838, %v3995
        %v3997 = vpop.f32.mrb[0].mxu0
        %v3998 = vadd.f32 %v3838, %v3997
        %3999 = vdwg.mxu0
        %v4000 = vmax.f32 %v3913, 0.0
        %v4001 = vmax.f32 %v3915, 0.0
        %v4002 = vmax.f32 %v3990, 0.0
        %v4003 = vmax.f32 %v3992, 0.0
        %v4004 = vmax.f32 %v3919, 0.0
        %v4005 = vmax.f32 %v3921, 0.0
        %v4006 = vmax.f32 %v3996, 0.0
        %v4007 = vmax.f32 %v3998, 0.0
        %v4008 = vld [vmem:[%s951] sm:$0xff]
        %v4009 = vld [vmem:[%s958] sm:$0xff]
        %4011 = vset.pattern.permute.xlu0 0
        %4012 = vperm.xlu0 %4011, %v4009
        %v4013 = vpop.permute.xlu0 %4012
        %v4016 = vsel %vm1441, %v4008, 0
        %4018 = vmatprep.subr.mxu0 %v4001
        %4019 = vmatpush1.msra.mxu0 %v4000
        %4020 = vmatprep.subr.mxu0 %v4005
        %4021 = vmatpush1.msra.mxu0 %v4004
        %4022 = vmatprep.subr.mxu0 0.0
        %4023 = vmatpush1.msra.mxu0 0.0
        %4024 = vmatprep.subr.mxu0 0.0
        %4025 = vmatpush1.msra.mxu0 0.0
        %4026 = vmatprep.subr.mxu0 0.0
        %4027 = vmatpush1.msra.mxu0 0.0
        %4028 = vmatprep.subr.mxu0 0.0
        %4029 = vmatpush1.msra.mxu0 0.0
        %4030 = vmatprep.subr.mxu0 0.0
        %4031 = vmatpush1.msra.mxu0 0.0
        %4032 = vmatprep.subr.mxu0 0.0
        %4033 = vmatpush1.msra.mxu0 0.0
        %4034 = vmatprep.subr.mxu0 0.0
        %4035 = vmatpush1.msra.mxu0 0.0
        %4036 = vmatprep.subr.mxu0 0.0
        %4037 = vmatpush1.msra.mxu0 0.0
        %4038 = vmatprep.subr.mxu0 0.0
        %4039 = vmatpush1.msra.mxu0 0.0
        %4040 = vmatprep.subr.mxu0 0.0
        %4041 = vmatpush1.msra.mxu0 0.0
        %4042 = vmatprep.subr.mxu0 0.0
        %4043 = vmatpush1.msra.mxu0 0.0
        %4044 = vmatprep.subr.mxu0 0.0
        %4045 = vmatpush1.msra.mxu0 0.0
        %4046 = vmatprep.subr.mxu0 0.0
        %4047 = vmatpush1.msra.mxu0 0.0
        %4048 = vmatprep.subr.mxu0 0.0
        %4049 = vmatpush1.msra.mxu0 0.0
        %4050 = vmatprep.subr.mxu0 0.0
        %4051 = vmatpush1.msra.mxu0 0.0
        %4052 = vmatprep.subr.mxu0 0.0
        %4053 = vmatpush1.msra.mxu0 0.0
        %4054 = vmatprep.subr.mxu0 0.0
        %4055 = vmatpush1.msra.mxu0 0.0
        %4056 = vmatprep.subr.mxu0 0.0
        %4057 = vmatpush1.msra.mxu0 0.0
        %4058 = vmatprep.subr.mxu0 0.0
        %4059 = vmatpush1.msra.mxu0 0.0
        %4060 = vmatprep.subr.mxu0 0.0
        %4061 = vmatpush1.msra.mxu0 0.0
        %4062 = vmatprep.subr.mxu0 0.0
        %4063 = vmatpush1.msra.mxu0 0.0
        %4064 = vmatprep.subr.mxu0 0.0
        %4065 = vmatpush1.msra.mxu0 0.0
        %4066 = vmatprep.subr.mxu0 0.0
        %4067 = vmatpush1.msra.mxu0 0.0
        %4068 = vmatprep.subr.mxu0 0.0
        %4069 = vmatpush1.msra.mxu0 0.0
        %4070 = vmatprep.subr.mxu0 0.0
        %4071 = vmatpush1.msra.mxu0 0.0
        %4072 = vmatprep.subr.mxu0 0.0
        %4073 = vmatpush1.msra.mxu0 0.0
        %4074 = vmatprep.subr.mxu0 0.0
        %4075 = vmatpush1.msra.mxu0 0.0
        %4076 = vmatprep.subr.mxu0 0.0
        %4077 = vmatpush1.msra.mxu0 0.0
        %4078 = vmatprep.subr.mxu0 0.0
        %4079 = vmatpush1.msra.mxu0 0.0
        %4080 = vmatprep.subr.mxu0 0.0
        %4081 = vmatpush1.msra.mxu0 0.0
        %4082 = vmatprep.mubr.f32.mxu0 0.0
        %4083 = vmatmul.mubr.f32.gmra.mrb[0].mxu0 %v4016
        %v4084 = vpop.f32.mrb[0].mxu0
        %v4085 = vadd.f32 %v4013, %v4084
        %v4086 = vpop.f32.mrb[0].mxu0
        %v4087 = vadd.f32 %v4013, %v4086
        %4088 = vdwg.mxu0
        %4089 = vmatprep.subr.mxu0 %v4003
        %4090 = vmatpush1.msra.mxu0 %v4002
        %4091 = vmatprep.subr.mxu0 %v4007
        %4092 = vmatpush1.msra.mxu0 %v4006
        %4093 = vmatprep.subr.mxu0 0.0
        %4094 = vmatpush1.msra.mxu0 0.0
        %4095 = vmatprep.subr.mxu0 0.0
        %4096 = vmatpush1.msra.mxu0 0.0
        %4097 = vmatprep.subr.mxu0 0.0
        %4098 = vmatpush1.msra.mxu0 0.0
        %4099 = vmatprep.subr.mxu0 0.0
        %4100 = vmatpush1.msra.mxu0 0.0
        %4101 = vmatprep.subr.mxu0 0.0
        %4102 = vmatpush1.msra.mxu0 0.0
        %4103 = vmatprep.subr.mxu0 0.0
        %4104 = vmatpush1.msra.mxu0 0.0
        %4105 = vmatprep.subr.mxu0 0.0
        %4106 = vmatpush1.msra.mxu0 0.0
        %4107 = vmatprep.subr.mxu0 0.0
        %4108 = vmatpush1.msra.mxu0 0.0
        %4109 = vmatprep.subr.mxu0 0.0
        %4110 = vmatpush1.msra.mxu0 0.0
        %4111 = vmatprep.subr.mxu0 0.0
        %4112 = vmatpush1.msra.mxu0 0.0
        %4113 = vmatprep.subr.mxu0 0.0
        %4114 = vmatpush1.msra.mxu0 0.0
        %4115 = vmatprep.subr.mxu0 0.0
        %4116 = vmatpush1.msra.mxu0 0.0
        %4117 = vmatprep.subr.mxu0 0.0
        %4118 = vmatpush1.msra.mxu0 0.0
        %4119 = vmatprep.subr.mxu0 0.0
        %4120 = vmatpush1.msra.mxu0 0.0
        %4121 = vmatprep.subr.mxu0 0.0
        %4122 = vmatpush1.msra.mxu0 0.0
        %4123 = vmatprep.subr.mxu0 0.0
        %4124 = vmatpush1.msra.mxu0 0.0
        %4125 = vmatprep.subr.mxu0 0.0
        %4126 = vmatpush1.msra.mxu0 0.0
        %4127 = vmatprep.subr.mxu0 0.0
        %4128 = vmatpush1.msra.mxu0 0.0
        %4129 = vmatprep.subr.mxu0 0.0
        %4130 = vmatpush1.msra.mxu0 0.0
        %4131 = vmatprep.subr.mxu0 0.0
        %4132 = vmatpush1.msra.mxu0 0.0
        %4133 = vmatprep.subr.mxu0 0.0
        %4134 = vmatpush1.msra.mxu0 0.0
        %4135 = vmatprep.subr.mxu0 0.0
        %4136 = vmatpush1.msra.mxu0 0.0
        %4137 = vmatprep.subr.mxu0 0.0
        %4138 = vmatpush1.msra.mxu0 0.0
        %4139 = vmatprep.subr.mxu0 0.0
        %4140 = vmatpush1.msra.mxu0 0.0
        %4141 = vmatprep.subr.mxu0 0.0
        %4142 = vmatpush1.msra.mxu0 0.0
        %4143 = vmatprep.subr.mxu0 0.0
        %4144 = vmatpush1.msra.mxu0 0.0
        %4145 = vmatprep.subr.mxu0 0.0
        %4146 = vmatpush1.msra.mxu0 0.0
        %4147 = vmatprep.subr.mxu0 0.0
        %4148 = vmatpush1.msra.mxu0 0.0
        %4149 = vmatprep.subr.mxu0 0.0
        %4150 = vmatpush1.msra.mxu0 0.0
        %4151 = vmatprep.subr.mxu0 0.0
        %4152 = vmatpush1.msra.mxu0 0.0
        %4153 = vmatprep.mubr.f32.mxu0 0.0
        %4154 = vmatmul.mubr.f32.gmra.mrb[0].mxu0 %v4016
        %v4155 = vpop.f32.mrb[0].mxu0
        %v4156 = vadd.f32 %v4013, %v4155
        %v4157 = vpop.f32.mrb[0].mxu0
        %v4158 = vadd.f32 %v4013, %v4157
        %4159 = vdwg.mxu0
        %v4160 = vmax.f32 %v4085, 0.0
        %v4161 = vmax.f32 %v4087, 0.0
        %v4162 = vmax.f32 %v4156, 0.0
        %v4163 = vmax.f32 %v4158, 0.0
        %v4164 = vld [vmem:[%s964] sm:$0x1]
        %v4165 = vld [vmem:[%s937] sm:$0xff]
        %v4166 = vld [vmem:[%s937 + $0x8] sm:$0xff]
        %v4167 = vld [vmem:[%s944] sm:$0xff]
        %v4168 = vld [vmem:[%s944 + $0x8] sm:$0xff]
        %4173 = vrot.lane.b32.xlu0 %v4160, 8
        %v4174 = vpop.permute.xlu0 %4173
        %4175 = vrot.lane.b32.xlu0 %v4161, 8
        %v4176 = vpop.permute.xlu0 %4175
        %4177 = vrot.lane.b32.xlu0 %v4162, 8
        %v4178 = vpop.permute.xlu0 %4177
        %4179 = vrot.lane.b32.xlu0 %v4163, 8
        %v4180 = vpop.permute.xlu0 %4179
        %v4181 = vsel %vm2069, %v4174, %v4176
        %v4182 = vsel %vm2069, %v4176, %v4178
        %v4183 = vsel %vm2069, %v4178, %v4180
        %v4188 = vsel %vm2069, 0.0, %v4174
        %v4189 = vmul.f32 %v4188, %v2406
        %v4190 = vmul.f32 %v4181, %v2407
        %v4191 = vmul.f32 %v4182, %v2408
        %v4192 = vmul.f32 %v4183, %v2409
        %4193 = vrot.lane.b32.xlu0 %v4160, 4
        %v4194 = vpop.permute.xlu0 %4193
        %4195 = vrot.lane.b32.xlu0 %v4161, 4
        %v4196 = vpop.permute.xlu0 %4195
        %4197 = vrot.lane.b32.xlu0 %v4162, 4
        %v4198 = vpop.permute.xlu0 %4197
        %4199 = vrot.lane.b32.xlu0 %v4163, 4
        %v4200 = vpop.permute.xlu0 %4199
        %v4201 = vsel %vm1608, %v4194, %v4196
        %v4202 = vsel %vm1608, %v4196, %v4198
        %v4203 = vsel %vm1608, %v4198, %v4200
        %v4208 = vsel %vm1608, 0.0, %v4194
        %v4209 = vmul.f32 %v4208, %v1637
        %v4210 = vmul.f32 %v4201, %v1638
        %v4211 = vmul.f32 %v4202, %v1639
        %v4212 = vmul.f32 %v4203, %v1640
        %4213 = vrot.lane.b32.xlu0 %v4160, 124
        %v4214 = vpop.permute.xlu0 %4213
        %4215 = vrot.lane.b32.xlu0 %v4161, 124
        %v4216 = vpop.permute.xlu0 %4215
        %4217 = vrot.lane.b32.xlu0 %v4162, 124
        %v4218 = vpop.permute.xlu0 %4217
        %4219 = vrot.lane.b32.xlu0 %v4163, 124
        %v4220 = vpop.permute.xlu0 %4219
        %v4221 = vsel %vm1693, %v4214, %v4216
        %v4222 = vsel %vm1693, %v4216, %v4218
        %v4223 = vsel %vm1693, %v4218, %v4220
        %v4228 = vsel %vm1693, %v4220, 0.0
        %v4229 = vmul.f32 %v4221, %v1722
        %v4230 = vmul.f32 %v4222, %v1723
        %v4231 = vmul.f32 %v4223, %v1724
        %v4232 = vmul.f32 %v4228, %v1725
        %4233 = vrot.lane.b32.xlu0 %v4160, 120
        %v4234 = vpop.permute.xlu0 %4233
        %4235 = vrot.lane.b32.xlu0 %v4161, 120
        %v4236 = vpop.permute.xlu0 %4235
        %4237 = vrot.lane.b32.xlu0 %v4162, 120
        %v4238 = vpop.permute.xlu0 %4237
        %4239 = vrot.lane.b32.xlu0 %v4163, 120
        %v4240 = vpop.permute.xlu0 %4239
        %v4241 = vsel %vm2462, %v4234, %v4236
        %v4242 = vsel %vm2462, %v4236, %v4238
        %v4243 = vsel %vm2462, %v4238, %v4240
        %v4248 = vsel %vm2462, %v4240, 0.0
        %v4249 = vmul.f32 %v4241, %v2491
        %v4250 = vmul.f32 %v4242, %v2492
        %v4251 = vmul.f32 %v4243, %v2493
        %v4252 = vmul.f32 %v4248, %v2494
        %4254 = vset.pattern.permute.xlu0 0
        %4255 = vperm.xlu0 %4254, %v4167
        %v4256 = vpop.permute.xlu0 %4255
        %4259 = vset.pattern.permute.xlu0 0
        %4260 = vperm.xlu0 %4259, %v4168
        %v4261 = vpop.permute.xlu0 %4260
        %v4264 = vsel %vm1740, %v4165, 0
        %v4267 = vsel %vm1740, %v4166, 0
        %4269 = vmatprep.subr.mxu0 %v4190
        %4270 = vmatpush1.msra.mxu0 %v4189
        %4271 = vmatprep.subr.mxu0 %v4210
        %4272 = vmatpush1.msra.mxu0 %v4209
        %4273 = vmatprep.subr.mxu0 %v4161
        %4274 = vmatpush1.msra.mxu0 %v4160
        %4275 = vmatprep.subr.mxu0 %v4230
        %4276 = vmatpush1.msra.mxu0 %v4229
        %4277 = vmatprep.subr.mxu0 %v4250
        %4278 = vmatpush1.msra.mxu0 %v4249
        %4279 = vmatprep.subr.mxu0 0.0
        %4280 = vmatpush1.msra.mxu0 0.0
        %4281 = vmatprep.subr.mxu0 0.0
        %4282 = vmatpush1.msra.mxu0 0.0
        %4283 = vmatprep.subr.mxu0 0.0
        %4284 = vmatpush1.msra.mxu0 0.0
        %4285 = vmatprep.subr.mxu0 0.0
        %4286 = vmatpush1.msra.mxu0 0.0
        %4287 = vmatprep.subr.mxu0 0.0
        %4288 = vmatpush1.msra.mxu0 0.0
        %4289 = vmatprep.subr.mxu0 0.0
        %4290 = vmatpush1.msra.mxu0 0.0
        %4291 = vmatprep.subr.mxu0 0.0
        %4292 = vmatpush1.msra.mxu0 0.0
        %4293 = vmatprep.subr.mxu0 0.0
        %4294 = vmatpush1.msra.mxu0 0.0
        %4295 = vmatprep.subr.mxu0 0.0
        %4296 = vmatpush1.msra.mxu0 0.0
        %4297 = vmatprep.subr.mxu0 0.0
        %4298 = vmatpush1.msra.mxu0 0.0
        %4299 = vmatprep.subr.mxu0 0.0
        %4300 = vmatpush1.msra.mxu0 0.0
        %4301 = vmatprep.subr.mxu0 0.0
        %4302 = vmatpush1.msra.mxu0 0.0
        %4303 = vmatprep.subr.mxu0 0.0
        %4304 = vmatpush1.msra.mxu0 0.0
        %4305 = vmatprep.subr.mxu0 0.0
        %4306 = vmatpush1.msra.mxu0 0.0
        %4307 = vmatprep.subr.mxu0 0.0
        %4308 = vmatpush1.msra.mxu0 0.0
        %4309 = vmatprep.subr.mxu0 0.0
        %4310 = vmatpush1.msra.mxu0 0.0
        %4311 = vmatprep.subr.mxu0 0.0
        %4312 = vmatpush1.msra.mxu0 0.0
        %4313 = vmatprep.subr.mxu0 0.0
        %4314 = vmatpush1.msra.mxu0 0.0
        %4315 = vmatprep.subr.mxu0 0.0
        %4316 = vmatpush1.msra.mxu0 0.0
        %4317 = vmatprep.subr.mxu0 0.0
        %4318 = vmatpush1.msra.mxu0 0.0
        %4319 = vmatprep.subr.mxu0 0.0
        %4320 = vmatpush1.msra.mxu0 0.0
        %4321 = vmatprep.subr.mxu0 0.0
        %4322 = vmatpush1.msra.mxu0 0.0
        %4323 = vmatprep.subr.mxu0 0.0
        %4324 = vmatpush1.msra.mxu0 0.0
        %4325 = vmatprep.subr.mxu0 0.0
        %4326 = vmatpush1.msra.mxu0 0.0
        %4327 = vmatprep.subr.mxu0 0.0
        %4328 = vmatpush1.msra.mxu0 0.0
        %4329 = vmatprep.subr.mxu0 0.0
        %4330 = vmatpush1.msra.mxu0 0.0
        %4331 = vmatprep.subr.mxu0 0.0
        %4332 = vmatpush1.msra.mxu0 0.0
        %4333 = vmatprep.mubr.f32.mxu0 0.0
        %4334 = vmatmul.mubr.f32.gmra.mrb[0].mxu0 %v4264
        %v4335 = vpop.f32.mrb[0].mxu0
        %v4336 = vadd.f32 %v4256, %v4335
        %v4337 = vpop.f32.mrb[0].mxu0
        %v4338 = vadd.f32 %v4256, %v4337
        %4339 = vmatprep.mubr.f32.mxu0 0.0
        %4340 = vmatmul.mubr.f32.gmra.mrb[0].mxu0 %v4267
        %v4341 = vpop.f32.mrb[0].mxu0
        %v4342 = vadd.f32 %v4261, %v4341
        %v4343 = vpop.f32.mrb[0].mxu0
        %v4344 = vadd.f32 %v4261, %v4343
        %4345 = vdwg.mxu0
        %4346 = vmatprep.subr.mxu0 %v4192
        %4347 = vmatpush1.msra.mxu0 %v4191
        %4348 = vmatprep.subr.mxu0 %v4212
        %4349 = vmatpush1.msra.mxu0 %v4211
        %4350 = vmatprep.subr.mxu0 %v4163
        %4351 = vmatpush1.msra.mxu0 %v4162
        %4352 = vmatprep.subr.mxu0 %v4232
        %4353 = vmatpush1.msra.mxu0 %v4231
        %4354 = vmatprep.subr.mxu0 %v4252
        %4355 = vmatpush1.msra.mxu0 %v4251
        %4356 = vmatprep.subr.mxu0 0.0
        %4357 = vmatpush1.msra.mxu0 0.0
        %4358 = vmatprep.subr.mxu0 0.0
        %4359 = vmatpush1.msra.mxu0 0.0
        %4360 = vmatprep.subr.mxu0 0.0
        %4361 = vmatpush1.msra.mxu0 0.0
        %4362 = vmatprep.subr.mxu0 0.0
        %4363 = vmatpush1.msra.mxu0 0.0
        %4364 = vmatprep.subr.mxu0 0.0
        %4365 = vmatpush1.msra.mxu0 0.0
        %4366 = vmatprep.subr.mxu0 0.0
        %4367 = vmatpush1.msra.mxu0 0.0
        %4368 = vmatprep.subr.mxu0 0.0
        %4369 = vmatpush1.msra.mxu0 0.0
        %4370 = vmatprep.subr.mxu0 0.0
        %4371 = vmatpush1.msra.mxu0 0.0
        %4372 = vmatprep.subr.mxu0 0.0
        %4373 = vmatpush1.msra.mxu0 0.0
        %4374 = vmatprep.subr.mxu0 0.0
        %4375 = vmatpush1.msra.mxu0 0.0
        %4376 = vmatprep.subr.mxu0 0.0
        %4377 = vmatpush1.msra.mxu0 0.0
        %4378 = vmatprep.subr.mxu0 0.0
        %4379 = vmatpush1.msra.mxu0 0.0
        %4380 = vmatprep.subr.mxu0 0.0
        %4381 = vmatpush1.msra.mxu0 0.0
        %4382 = vmatprep.subr.mxu0 0.0
        %4383 = vmatpush1.msra.mxu0 0.0
        %4384 = vmatprep.subr.mxu0 0.0
        %4385 = vmatpush1.msra.mxu0 0.0
        %4386 = vmatprep.subr.mxu0 0.0
        %4387 = vmatpush1.msra.mxu0 0.0
        %4388 = vmatprep.subr.mxu0 0.0
        %4389 = vmatpush1.msra.mxu0 0.0
        %4390 = vmatprep.subr.mxu0 0.0
        %4391 = vmatpush1.msra.mxu0 0.0
        %4392 = vmatprep.subr.mxu0 0.0
        %4393 = vmatpush1.msra.mxu0 0.0
        %4394 = vmatprep.subr.mxu0 0.0
        %4395 = vmatpush1.msra.mxu0 0.0
        %4396 = vmatprep.subr.mxu0 0.0
        %4397 = vmatpush1.msra.mxu0 0.0
        %4398 = vmatprep.subr.mxu0 0.0
        %4399 = vmatpush1.msra.mxu0 0.0
        %4400 = vmatprep.subr.mxu0 0.0
        %4401 = vmatpush1.msra.mxu0 0.0
        %4402 = vmatprep.subr.mxu0 0.0
        %4403 = vmatpush1.msra.mxu0 0.0
        %4404 = vmatprep.subr.mxu0 0.0
        %4405 = vmatpush1.msra.mxu0 0.0
        %4406 = vmatprep.subr.mxu0 0.0
        %4407 = vmatpush1.msra.mxu0 0.0
        %4408 = vmatprep.subr.mxu0 0.0
        %4409 = vmatpush1.msra.mxu0 0.0
        %4410 = vmatprep.mubr.f32.mxu0 0.0
        %4411 = vmatmul.mubr.f32.gmra.mrb[0].mxu0 %v4264
        %v4412 = vpop.f32.mrb[0].mxu0
        %v4413 = vadd.f32 %v4256, %v4412
        %v4414 = vpop.f32.mrb[0].mxu0
        %v4415 = vadd.f32 %v4256, %v4414
        %4416 = vmatprep.mubr.f32.mxu0 0.0
        %4417 = vmatmul.mubr.f32.gmra.mrb[0].mxu0 %v4267
        %v4418 = vpop.f32.mrb[0].mxu0
        %v4419 = vadd.f32 %v4261, %v4418
        %v4420 = vpop.f32.mrb[0].mxu0
        %v4421 = vadd.f32 %v4261, %v4420
        %4422 = vdwg.mxu0
        %v4423 = vmax.f32 %v4336, 0.0
        %v4424 = vmax.f32 %v4338, 0.0
        %v4425 = vmax.f32 %v4413, 0.0
        %v4426 = vmax.f32 %v4415, 0.0
        %v4427 = vmax.f32 %v4342, 0.0
        %v4428 = vmax.f32 %v4344, 0.0
        %v4429 = vmax.f32 %v4419, 0.0
        %v4430 = vmax.f32 %v4421, 0.0
        %s4431 = scalar_lea.vmem %s951, 8
        %v4432 = vld [vmem:[%s4431] sm:$0xff]
        %s4433 = scalar_lea.vmem %s958, 8
        %v4434 = vld [vmem:[%s4433] sm:$0xff]
        %4436 = vset.pattern.permute.xlu0 0
        %4437 = vperm.xlu0 %4436, %v4434
        %v4438 = vpop.permute.xlu0 %4437
        %v4441 = vsel %vm1441, %v4432, 0
        %4443 = vmatprep.subr.mxu0 %v4424
        %4444 = vmatpush1.msra.mxu0 %v4423
        %4445 = vmatprep.subr.mxu0 %v4428
        %4446 = vmatpush1.msra.mxu0 %v4427
        %4447 = vmatprep.subr.mxu0 0.0
        %4448 = vmatpush1.msra.mxu0 0.0
        %4449 = vmatprep.subr.mxu0 0.0
        %4450 = vmatpush1.msra.mxu0 0.0
        %4451 = vmatprep.subr.mxu0 0.0
        %4452 = vmatpush1.msra.mxu0 0.0
        %4453 = vmatprep.subr.mxu0 0.0
        %4454 = vmatpush1.msra.mxu0 0.0
        %4455 = vmatprep.subr.mxu0 0.0
        %4456 = vmatpush1.msra.mxu0 0.0
        %4457 = vmatprep.subr.mxu0 0.0
        %4458 = vmatpush1.msra.mxu0 0.0
        %4459 = vmatprep.subr.mxu0 0.0
        %4460 = vmatpush1.msra.mxu0 0.0
        %4461 = vmatprep.subr.mxu0 0.0
        %4462 = vmatpush1.msra.mxu0 0.0
        %4463 = vmatprep.subr.mxu0 0.0
        %4464 = vmatpush1.msra.mxu0 0.0
        %4465 = vmatprep.subr.mxu0 0.0
        %4466 = vmatpush1.msra.mxu0 0.0
        %4467 = vmatprep.subr.mxu0 0.0
        %4468 = vmatpush1.msra.mxu0 0.0
        %4469 = vmatprep.subr.mxu0 0.0
        %4470 = vmatpush1.msra.mxu0 0.0
        %4471 = vmatprep.subr.mxu0 0.0
        %4472 = vmatpush1.msra.mxu0 0.0
        %4473 = vmatprep.subr.mxu0 0.0
        %4474 = vmatpush1.msra.mxu0 0.0
        %4475 = vmatprep.subr.mxu0 0.0
        %4476 = vmatpush1.msra.mxu0 0.0
        %4477 = vmatprep.subr.mxu0 0.0
        %4478 = vmatpush1.msra.mxu0 0.0
        %4479 = vmatprep.subr.mxu0 0.0
        %4480 = vmatpush1.msra.mxu0 0.0
        %4481 = vmatprep.subr.mxu0 0.0
        %4482 = vmatpush1.msra.mxu0 0.0
        %4483 = vmatprep.subr.mxu0 0.0
        %4484 = vmatpush1.msra.mxu0 0.0
        %4485 = vmatprep.subr.mxu0 0.0
        %4486 = vmatpush1.msra.mxu0 0.0
        %4487 = vmatprep.subr.mxu0 0.0
        %4488 = vmatpush1.msra.mxu0 0.0
        %4489 = vmatprep.subr.mxu0 0.0
        %4490 = vmatpush1.msra.mxu0 0.0
        %4491 = vmatprep.subr.mxu0 0.0
        %4492 = vmatpush1.msra.mxu0 0.0
        %4493 = vmatprep.subr.mxu0 0.0
        %4494 = vmatpush1.msra.mxu0 0.0
        %4495 = vmatprep.subr.mxu0 0.0
        %4496 = vmatpush1.msra.mxu0 0.0
        %4497 = vmatprep.subr.mxu0 0.0
        %4498 = vmatpush1.msra.mxu0 0.0
        %4499 = vmatprep.subr.mxu0 0.0
        %4500 = vmatpush1.msra.mxu0 0.0
        %4501 = vmatprep.subr.mxu0 0.0
        %4502 = vmatpush1.msra.mxu0 0.0
        %4503 = vmatprep.subr.mxu0 0.0
        %4504 = vmatpush1.msra.mxu0 0.0
        %4505 = vmatprep.subr.mxu0 0.0
        %4506 = vmatpush1.msra.mxu0 0.0
        %4507 = vmatprep.mubr.f32.mxu0 0.0
        %4508 = vmatmul.mubr.f32.gmra.mrb[0].mxu0 %v4441
        %v4509 = vpop.f32.mrb[0].mxu0
        %v4510 = vadd.f32 %v4438, %v4509
        %v4511 = vpop.f32.mrb[0].mxu0
        %v4512 = vadd.f32 %v4438, %v4511
        %4513 = vdwg.mxu0
        %4514 = vmatprep.subr.mxu0 %v4426
        %4515 = vmatpush1.msra.mxu0 %v4425
        %4516 = vmatprep.subr.mxu0 %v4430
        %4517 = vmatpush1.msra.mxu0 %v4429
        %4518 = vmatprep.subr.mxu0 0.0
        %4519 = vmatpush1.msra.mxu0 0.0
        %4520 = vmatprep.subr.mxu0 0.0
        %4521 = vmatpush1.msra.mxu0 0.0
        %4522 = vmatprep.subr.mxu0 0.0
        %4523 = vmatpush1.msra.mxu0 0.0
        %4524 = vmatprep.subr.mxu0 0.0
        %4525 = vmatpush1.msra.mxu0 0.0
        %4526 = vmatprep.subr.mxu0 0.0
        %4527 = vmatpush1.msra.mxu0 0.0
        %4528 = vmatprep.subr.mxu0 0.0
        %4529 = vmatpush1.msra.mxu0 0.0
        %4530 = vmatprep.subr.mxu0 0.0
        %4531 = vmatpush1.msra.mxu0 0.0
        %4532 = vmatprep.subr.mxu0 0.0
        %4533 = vmatpush1.msra.mxu0 0.0
        %4534 = vmatprep.subr.mxu0 0.0
        %4535 = vmatpush1.msra.mxu0 0.0
        %4536 = vmatprep.subr.mxu0 0.0
        %4537 = vmatpush1.msra.mxu0 0.0
        %4538 = vmatprep.subr.mxu0 0.0
        %4539 = vmatpush1.msra.mxu0 0.0
        %4540 = vmatprep.subr.mxu0 0.0
        %4541 = vmatpush1.msra.mxu0 0.0
        %4542 = vmatprep.subr.mxu0 0.0
        %4543 = vmatpush1.msra.mxu0 0.0
        %4544 = vmatprep.subr.mxu0 0.0
        %4545 = vmatpush1.msra.mxu0 0.0
        %4546 = vmatprep.subr.mxu0 0.0
        %4547 = vmatpush1.msra.mxu0 0.0
        %4548 = vmatprep.subr.mxu0 0.0
        %4549 = vmatpush1.msra.mxu0 0.0
        %4550 = vmatprep.subr.mxu0 0.0
        %4551 = vmatpush1.msra.mxu0 0.0
        %4552 = vmatprep.subr.mxu0 0.0
        %4553 = vmatpush1.msra.mxu0 0.0
        %4554 = vmatprep.subr.mxu0 0.0
        %4555 = vmatpush1.msra.mxu0 0.0
        %4556 = vmatprep.subr.mxu0 0.0
        %4557 = vmatpush1.msra.mxu0 0.0
        %4558 = vmatprep.subr.mxu0 0.0
        %4559 = vmatpush1.msra.mxu0 0.0
        %4560 = vmatprep.subr.mxu0 0.0
        %4561 = vmatpush1.msra.mxu0 0.0
        %4562 = vmatprep.subr.mxu0 0.0
        %4563 = vmatpush1.msra.mxu0 0.0
        %4564 = vmatprep.subr.mxu0 0.0
        %4565 = vmatpush1.msra.mxu0 0.0
        %4566 = vmatprep.subr.mxu0 0.0
        %4567 = vmatpush1.msra.mxu0 0.0
        %4568 = vmatprep.subr.mxu0 0.0
        %4569 = vmatpush1.msra.mxu0 0.0
        %4570 = vmatprep.subr.mxu0 0.0
        %4571 = vmatpush1.msra.mxu0 0.0
        %4572 = vmatprep.subr.mxu0 0.0
        %4573 = vmatpush1.msra.mxu0 0.0
        %4574 = vmatprep.subr.mxu0 0.0
        %4575 = vmatpush1.msra.mxu0 0.0
        %4576 = vmatprep.subr.mxu0 0.0
        %4577 = vmatpush1.msra.mxu0 0.0
        %4578 = vmatprep.mubr.f32.mxu0 0.0
        %4579 = vmatmul.mubr.f32.gmra.mrb[0].mxu0 %v4441
        %v4580 = vpop.f32.mrb[0].mxu0
        %v4581 = vadd.f32 %v4438, %v4580
        %v4582 = vpop.f32.mrb[0].mxu0
        %v4583 = vadd.f32 %v4438, %v4582
        %4584 = vdwg.mxu0
        %v4585 = vmax.f32 %v4510, 0.0
        %v4586 = vmax.f32 %v4512, 0.0
        %v4587 = vmax.f32 %v4581, 0.0
        %v4588 = vmax.f32 %v4583, 0.0
        %s4589 = scalar_lea.vmem %s964, 1
        %v4590 = vld [vmem:[%s4589] sm:$0x1]
        %v4592 = vsel %vm2069, %v4590, 0
        %4594 = vmatprep.subr.mxu0 %v4586
        %4595 = vmatpush1.msra.mxu0 %v4585
        %4596 = vmatprep.subr.mxu0 0.0
        %4597 = vmatpush1.msra.mxu0 0.0
        %4598 = vmatprep.subr.mxu0 0.0
        %4599 = vmatpush1.msra.mxu0 0.0
        %4600 = vmatprep.subr.mxu0 0.0
        %4601 = vmatpush1.msra.mxu0 0.0
        %4602 = vmatprep.subr.mxu0 0.0
        %4603 = vmatpush1.msra.mxu0 0.0
        %4604 = vmatprep.subr.mxu0 0.0
        %4605 = vmatpush1.msra.mxu0 0.0
        %4606 = vmatprep.subr.mxu0 0.0
        %4607 = vmatpush1.msra.mxu0 0.0
        %4608 = vmatprep.subr.mxu0 0.0
        %4609 = vmatpush1.msra.mxu0 0.0
        %4610 = vmatprep.subr.mxu0 0.0
        %4611 = vmatpush1.msra.mxu0 0.0
        %4612 = vmatprep.subr.mxu0 0.0
        %4613 = vmatpush1.msra.mxu0 0.0
        %4614 = vmatprep.subr.mxu0 0.0
        %4615 = vmatpush1.msra.mxu0 0.0
        %4616 = vmatprep.subr.mxu0 0.0
        %4617 = vmatpush1.msra.mxu0 0.0
        %4618 = vmatprep.subr.mxu0 0.0
        %4619 = vmatpush1.msra.mxu0 0.0
        %4620 = vmatprep.subr.mxu0 0.0
        %4621 = vmatpush1.msra.mxu0 0.0
        %4622 = vmatprep.subr.mxu0 0.0
        %4623 = vmatpush1.msra.mxu0 0.0
        %4624 = vmatprep.subr.mxu0 0.0
        %4625 = vmatpush1.msra.mxu0 0.0
        %4626 = vmatprep.subr.mxu0 0.0
        %4627 = vmatpush1.msra.mxu0 0.0
        %4628 = vmatprep.subr.mxu0 0.0
        %4629 = vmatpush1.msra.mxu0 0.0
        %4630 = vmatprep.subr.mxu0 0.0
        %4631 = vmatpush1.msra.mxu0 0.0
        %4632 = vmatprep.subr.mxu0 0.0
        %4633 = vmatpush1.msra.mxu0 0.0
        %4634 = vmatprep.subr.mxu0 0.0
        %4635 = vmatpush1.msra.mxu0 0.0
        %4636 = vmatprep.subr.mxu0 0.0
        %4637 = vmatpush1.msra.mxu0 0.0
        %4638 = vmatprep.subr.mxu0 0.0
        %4639 = vmatpush1.msra.mxu0 0.0
        %4640 = vmatprep.subr.mxu0 0.0
        %4641 = vmatpush1.msra.mxu0 0.0
        %4642 = vmatprep.subr.mxu0 0.0
        %4643 = vmatpush1.msra.mxu0 0.0
        %4644 = vmatprep.subr.mxu0 0.0
        %4645 = vmatpush1.msra.mxu0 0.0
        %4646 = vmatprep.subr.mxu0 0.0
        %4647 = vmatpush1.msra.mxu0 0.0
        %4648 = vmatprep.subr.mxu0 0.0
        %4649 = vmatpush1.msra.mxu0 0.0
        %4650 = vmatprep.subr.mxu0 0.0
        %4651 = vmatpush1.msra.mxu0 0.0
        %4652 = vmatprep.subr.mxu0 0.0
        %4653 = vmatpush1.msra.mxu0 0.0
        %4654 = vmatprep.subr.mxu0 0.0
        %4655 = vmatpush1.msra.mxu0 0.0
        %4656 = vmatprep.subr.mxu0 0.0
        %4657 = vmatpush1.msra.mxu0 0.0
        %4658 = vmatprep.mubr.f32.mxu0 0.0
        %4659 = vmatmul.mubr.f32.gmra.mrb[0].mxu0 %v4592
        %v4660 = vpop.f32.mrb[0].mxu0
        %v4661 = vadd.f32 0.0, %v4660
        %v4662 = vpop.f32.mrb[0].mxu0
        %v4663 = vadd.f32 0.0, %v4662
        %4664 = vdwg.mxu0
        %4665 = vmatprep.subr.mxu0 %v4588
        %4666 = vmatpush1.msra.mxu0 %v4587
        %4667 = vmatprep.subr.mxu0 0.0
        %4668 = vmatpush1.msra.mxu0 0.0
        %4669 = vmatprep.subr.mxu0 0.0
        %4670 = vmatpush1.msra.mxu0 0.0
        %4671 = vmatprep.subr.mxu0 0.0
        %4672 = vmatpush1.msra.mxu0 0.0
        %4673 = vmatprep.subr.mxu0 0.0
        %4674 = vmatpush1.msra.mxu0 0.0
        %4675 = vmatprep.subr.mxu0 0.0
        %4676 = vmatpush1.msra.mxu0 0.0
        %4677 = vmatprep.subr.mxu0 0.0
        %4678 = vmatpush1.msra.mxu0 0.0
        %4679 = vmatprep.subr.mxu0 0.0
        %4680 = vmatpush1.msra.mxu0 0.0
        %4681 = vmatprep.subr.mxu0 0.0
        %4682 = vmatpush1.msra.mxu0 0.0
        %4683 = vmatprep.subr.mxu0 0.0
        %4684 = vmatpush1.msra.mxu0 0.0
        %4685 = vmatprep.subr.mxu0 0.0
        %4686 = vmatpush1.msra.mxu0 0.0
        %4687 = vmatprep.subr.mxu0 0.0
        %4688 = vmatpush1.msra.mxu0 0.0
        %4689 = vmatprep.subr.mxu0 0.0
        %4690 = vmatpush1.msra.mxu0 0.0
        %4691 = vmatprep.subr.mxu0 0.0
        %4692 = vmatpush1.msra.mxu0 0.0
        %4693 = vmatprep.subr.mxu0 0.0
        %4694 = vmatpush1.msra.mxu0 0.0
        %4695 = vmatprep.subr.mxu0 0.0
        %4696 = vmatpush1.msra.mxu0 0.0
        %4697 = vmatprep.subr.mxu0 0.0
        %4698 = vmatpush1.msra.mxu0 0.0
        %4699 = vmatprep.subr.mxu0 0.0
        %4700 = vmatpush1.msra.mxu0 0.0
        %4701 = vmatprep.subr.mxu0 0.0
        %4702 = vmatpush1.msra.mxu0 0.0
        %4703 = vmatprep.subr.mxu0 0.0
        %4704 = vmatpush1.msra.mxu0 0.0
        %4705 = vmatprep.subr.mxu0 0.0
        %4706 = vmatpush1.msra.mxu0 0.0
        %4707 = vmatprep.subr.mxu0 0.0
        %4708 = vmatpush1.msra.mxu0 0.0
        %4709 = vmatprep.subr.mxu0 0.0
        %4710 = vmatpush1.msra.mxu0 0.0
        %4711 = vmatprep.subr.mxu0 0.0
        %4712 = vmatpush1.msra.mxu0 0.0
        %4713 = vmatprep.subr.mxu0 0.0
        %4714 = vmatpush1.msra.mxu0 0.0
        %4715 = vmatprep.subr.mxu0 0.0
        %4716 = vmatpush1.msra.mxu0 0.0
        %4717 = vmatprep.subr.mxu0 0.0
        %4718 = vmatpush1.msra.mxu0 0.0
        %4719 = vmatprep.subr.mxu0 0.0
        %4720 = vmatpush1.msra.mxu0 0.0
        %4721 = vmatprep.subr.mxu0 0.0
        %4722 = vmatpush1.msra.mxu0 0.0
        %4723 = vmatprep.subr.mxu0 0.0
        %4724 = vmatpush1.msra.mxu0 0.0
        %4725 = vmatprep.subr.mxu0 0.0
        %4726 = vmatpush1.msra.mxu0 0.0
        %4727 = vmatprep.subr.mxu0 0.0
        %4728 = vmatpush1.msra.mxu0 0.0
        %4729 = vmatprep.mubr.f32.mxu0 0.0
        %4730 = vmatmul.mubr.f32.gmra.mrb[0].mxu0 %v4592
        %v4731 = vpop.f32.mrb[0].mxu0
        %v4732 = vadd.f32 0.0, %v4731
        %v4733 = vpop.f32.mrb[0].mxu0
        %v4734 = vadd.f32 0.0, %v4733
        %4735 = vdwg.mxu0
        %v4737 = vsel %vm2069, %v4164, 0
        %4739 = vmatprep.subr.mxu0 %v4161
        %4740 = vmatpush1.msra.mxu0 %v4160
        %4741 = vmatprep.subr.mxu0 0.0
        %4742 = vmatpush1.msra.mxu0 0.0
        %4743 = vmatprep.subr.mxu0 0.0
        %4744 = vmatpush1.msra.mxu0 0.0
        %4745 = vmatprep.subr.mxu0 0.0
        %4746 = vmatpush1.msra.mxu0 0.0
        %4747 = vmatprep.subr.mxu0 0.0
        %4748 = vmatpush1.msra.mxu0 0.0
        %4749 = vmatprep.subr.mxu0 0.0
        %4750 = vmatpush1.msra.mxu0 0.0
        %4751 = vmatprep.subr.mxu0 0.0
        %4752 = vmatpush1.msra.mxu0 0.0
        %4753 = vmatprep.subr.mxu0 0.0
        %4754 = vmatpush1.msra.mxu0 0.0
        %4755 = vmatprep.subr.mxu0 0.0
        %4756 = vmatpush1.msra.mxu0 0.0
        %4757 = vmatprep.subr.mxu0 0.0
        %4758 = vmatpush1.msra.mxu0 0.0
        %4759 = vmatprep.subr.mxu0 0.0
        %4760 = vmatpush1.msra.mxu0 0.0
        %4761 = vmatprep.subr.mxu0 0.0
        %4762 = vmatpush1.msra.mxu0 0.0
        %4763 = vmatprep.subr.mxu0 0.0
        %4764 = vmatpush1.msra.mxu0 0.0
        %4765 = vmatprep.subr.mxu0 0.0
        %4766 = vmatpush1.msra.mxu0 0.0
        %4767 = vmatprep.subr.mxu0 0.0
        %4768 = vmatpush1.msra.mxu0 0.0
        %4769 = vmatprep.subr.mxu0 0.0
        %4770 = vmatpush1.msra.mxu0 0.0
        %4771 = vmatprep.subr.mxu0 0.0
        %4772 = vmatpush1.msra.mxu0 0.0
        %4773 = vmatprep.subr.mxu0 0.0
        %4774 = vmatpush1.msra.mxu0 0.0
        %4775 = vmatprep.subr.mxu0 0.0
        %4776 = vmatpush1.msra.mxu0 0.0
        %4777 = vmatprep.subr.mxu0 0.0
        %4778 = vmatpush1.msra.mxu0 0.0
        %4779 = vmatprep.subr.mxu0 0.0
        %4780 = vmatpush1.msra.mxu0 0.0
        %4781 = vmatprep.subr.mxu0 0.0
        %4782 = vmatpush1.msra.mxu0 0.0
        %4783 = vmatprep.subr.mxu0 0.0
        %4784 = vmatpush1.msra.mxu0 0.0
        %4785 = vmatprep.subr.mxu0 0.0
        %4786 = vmatpush1.msra.mxu0 0.0
        %4787 = vmatprep.subr.mxu0 0.0
        %4788 = vmatpush1.msra.mxu0 0.0
        %4789 = vmatprep.subr.mxu0 0.0
        %4790 = vmatpush1.msra.mxu0 0.0
        %4791 = vmatprep.subr.mxu0 0.0
        %4792 = vmatpush1.msra.mxu0 0.0
        %4793 = vmatprep.subr.mxu0 0.0
        %4794 = vmatpush1.msra.mxu0 0.0
        %4795 = vmatprep.subr.mxu0 0.0
        %4796 = vmatpush1.msra.mxu0 0.0
        %4797 = vmatprep.subr.mxu0 0.0
        %4798 = vmatpush1.msra.mxu0 0.0
        %4799 = vmatprep.subr.mxu0 0.0
        %4800 = vmatpush1.msra.mxu0 0.0
        %4801 = vmatprep.subr.mxu0 0.0
        %4802 = vmatpush1.msra.mxu0 0.0
        %4803 = vmatprep.mubr.f32.mxu0 0.0
        %4804 = vmatmul.mubr.f32.gmra.mrb[0].mxu0 %v4737
        %v4805 = vpop.f32.mrb[0].mxu0
        %v4806 = vadd.f32 %v4661, %v4805
        %v4807 = vpop.f32.mrb[0].mxu0
        %v4808 = vadd.f32 %v4663, %v4807
        %4809 = vdwg.mxu0
        %4810 = vmatprep.subr.mxu0 %v4163
        %4811 = vmatpush1.msra.mxu0 %v4162
        %4812 = vmatprep.subr.mxu0 0.0
        %4813 = vmatpush1.msra.mxu0 0.0
        %4814 = vmatprep.subr.mxu0 0.0
        %4815 = vmatpush1.msra.mxu0 0.0
        %4816 = vmatprep.subr.mxu0 0.0
        %4817 = vmatpush1.msra.mxu0 0.0
        %4818 = vmatprep.subr.mxu0 0.0
        %4819 = vmatpush1.msra.mxu0 0.0
        %4820 = vmatprep.subr.mxu0 0.0
        %4821 = vmatpush1.msra.mxu0 0.0
        %4822 = vmatprep.subr.mxu0 0.0
        %4823 = vmatpush1.msra.mxu0 0.0
        %4824 = vmatprep.subr.mxu0 0.0
        %4825 = vmatpush1.msra.mxu0 0.0
        %4826 = vmatprep.subr.mxu0 0.0
        %4827 = vmatpush1.msra.mxu0 0.0
        %4828 = vmatprep.subr.mxu0 0.0
        %4829 = vmatpush1.msra.mxu0 0.0
        %4830 = vmatprep.subr.mxu0 0.0
        %4831 = vmatpush1.msra.mxu0 0.0
        %4832 = vmatprep.subr.mxu0 0.0
        %4833 = vmatpush1.msra.mxu0 0.0
        %4834 = vmatprep.subr.mxu0 0.0
        %4835 = vmatpush1.msra.mxu0 0.0
        %4836 = vmatprep.subr.mxu0 0.0
        %4837 = vmatpush1.msra.mxu0 0.0
        %4838 = vmatprep.subr.mxu0 0.0
        %4839 = vmatpush1.msra.mxu0 0.0
        %4840 = vmatprep.subr.mxu0 0.0
        %4841 = vmatpush1.msra.mxu0 0.0
        %4842 = vmatprep.subr.mxu0 0.0
        %4843 = vmatpush1.msra.mxu0 0.0
        %4844 = vmatprep.subr.mxu0 0.0
        %4845 = vmatpush1.msra.mxu0 0.0
        %4846 = vmatprep.subr.mxu0 0.0
        %4847 = vmatpush1.msra.mxu0 0.0
        %4848 = vmatprep.subr.mxu0 0.0
        %4849 = vmatpush1.msra.mxu0 0.0
        %4850 = vmatprep.subr.mxu0 0.0
        %4851 = vmatpush1.msra.mxu0 0.0
        %4852 = vmatprep.subr.mxu0 0.0
        %4853 = vmatpush1.msra.mxu0 0.0
        %4854 = vmatprep.subr.mxu0 0.0
        %4855 = vmatpush1.msra.mxu0 0.0
        %4856 = vmatprep.subr.mxu0 0.0
        %4857 = vmatpush1.msra.mxu0 0.0
        %4858 = vmatprep.subr.mxu0 0.0
        %4859 = vmatpush1.msra.mxu0 0.0
        %4860 = vmatprep.subr.mxu0 0.0
        %4861 = vmatpush1.msra.mxu0 0.0
        %4862 = vmatprep.subr.mxu0 0.0
        %4863 = vmatpush1.msra.mxu0 0.0
        %4864 = vmatprep.subr.mxu0 0.0
        %4865 = vmatpush1.msra.mxu0 0.0
        %4866 = vmatprep.subr.mxu0 0.0
        %4867 = vmatpush1.msra.mxu0 0.0
        %4868 = vmatprep.subr.mxu0 0.0
        %4869 = vmatpush1.msra.mxu0 0.0
        %4870 = vmatprep.subr.mxu0 0.0
        %4871 = vmatpush1.msra.mxu0 0.0
        %4872 = vmatprep.subr.mxu0 0.0
        %4873 = vmatpush1.msra.mxu0 0.0
        %4874 = vmatprep.mubr.f32.mxu0 0.0
        %4875 = vmatmul.mubr.f32.gmra.mrb[0].mxu0 %v4737
        %v4876 = vpop.f32.mrb[0].mxu0
        %v4877 = vadd.f32 %v4732, %v4876
        %v4878 = vpop.f32.mrb[0].mxu0
        %v4879 = vadd.f32 %v4734, %v4878
        %4880 = vdwg.mxu0
        %s4881 = scalar_lea.vmem %s937, 16
        %v4882 = vld [vmem:[%s4881] sm:$0xff]
        %v4883 = vld [vmem:[%s4881 + $0x8] sm:$0xff]
        %s4884 = scalar_lea.vmem %s944, 16
        %v4885 = vld [vmem:[%s4884] sm:$0xff]
        %v4886 = vld [vmem:[%s4884 + $0x8] sm:$0xff]
        %4891 = vrot.lane.b32.xlu0 %v4585, 4
        %v4892 = vpop.permute.xlu0 %4891
        %4893 = vrot.lane.b32.xlu0 %v4586, 4
        %v4894 = vpop.permute.xlu0 %4893
        %4895 = vrot.lane.b32.xlu0 %v4587, 4
        %v4896 = vpop.permute.xlu0 %4895
        %4897 = vrot.lane.b32.xlu0 %v4588, 4
        %v4898 = vpop.permute.xlu0 %4897
        %v4899 = vsel %vm1608, %v4892, %v4894
        %v4900 = vsel %vm1608, %v4894, %v4896
        %v4901 = vsel %vm1608, %v4896, %v4898
        %v4906 = vsel %vm1608, 0.0, %v4892
        %v4907 = vmul.f32 %v4906, %v1637
        %v4908 = vmul.f32 %v4899, %v1638
        %v4909 = vmul.f32 %v4900, %v1639
        %v4910 = vmul.f32 %v4901, %v1640
        %4911 = vrot.lane.b32.xlu0 %v4585, 2
        %v4912 = vpop.permute.xlu0 %4911
        %4913 = vrot.lane.b32.xlu0 %v4586, 2
        %v4914 = vpop.permute.xlu0 %4913
        %4915 = vrot.lane.b32.xlu0 %v4587, 2
        %v4916 = vpop.permute.xlu0 %4915
        %4917 = vrot.lane.b32.xlu0 %v4588, 2
        %v4918 = vpop.permute.xlu0 %4917
        %v4919 = vsel %vm1054, %v4912, %v4914
        %v4920 = vsel %vm1054, %v4914, %v4916
        %v4921 = vsel %vm1054, %v4916, %v4918
        %v4926 = vsel %vm1054, 0.0, %v4912
        %v4927 = vmul.f32 %v4926, %v1083
        %v4928 = vmul.f32 %v4919, %v1084
        %v4929 = vmul.f32 %v4920, %v1085
        %v4930 = vmul.f32 %v4921, %v1086
        %4931 = vrot.lane.b32.xlu0 %v4585, 126
        %v4932 = vpop.permute.xlu0 %4931
        %4933 = vrot.lane.b32.xlu0 %v4586, 126
        %v4934 = vpop.permute.xlu0 %4933
        %4935 = vrot.lane.b32.xlu0 %v4587, 126
        %v4936 = vpop.permute.xlu0 %4935
        %4937 = vrot.lane.b32.xlu0 %v4588, 126
        %v4938 = vpop.permute.xlu0 %4937
        %v4939 = vsel %vm1331, %v4932, %v4934
        %v4940 = vsel %vm1331, %v4934, %v4936
        %v4941 = vsel %vm1331, %v4936, %v4938
        %v4946 = vsel %vm1331, %v4938, 0.0
        %v4947 = vmul.f32 %v4939, %v1360
        %v4948 = vmul.f32 %v4940, %v1361
        %v4949 = vmul.f32 %v4941, %v1362
        %v4950 = vmul.f32 %v4946, %v1363
        %4951 = vrot.lane.b32.xlu0 %v4585, 124
        %v4952 = vpop.permute.xlu0 %4951
        %4953 = vrot.lane.b32.xlu0 %v4586, 124
        %v4954 = vpop.permute.xlu0 %4953
        %4955 = vrot.lane.b32.xlu0 %v4587, 124
        %v4956 = vpop.permute.xlu0 %4955
        %4957 = vrot.lane.b32.xlu0 %v4588, 124
        %v4958 = vpop.permute.xlu0 %4957
        %v4959 = vsel %vm1693, %v4952, %v4954
        %v4960 = vsel %vm1693, %v4954, %v4956
        %v4961 = vsel %vm1693, %v4956, %v4958
        %v4966 = vsel %vm1693, %v4958, 0.0
        %v4967 = vmul.f32 %v4959, %v1722
        %v4968 = vmul.f32 %v4960, %v1723
        %v4969 = vmul.f32 %v4961, %v1724
        %v4970 = vmul.f32 %v4966, %v1725
        %4972 = vset.pattern.permute.xlu0 0
        %4973 = vperm.xlu0 %4972, %v4885
        %v4974 = vpop.permute.xlu0 %4973
        %4977 = vset.pattern.permute.xlu0 0
        %4978 = vperm.xlu0 %4977, %v4886
        %v4979 = vpop.permute.xlu0 %4978
        %v4982 = vsel %vm1740, %v4882, 0
        %v4985 = vsel %vm1740, %v4883, 0
        %4987 = vmatprep.subr.mxu0 %v4908
        %4988 = vmatpush1.msra.mxu0 %v4907
        %4989 = vmatprep.subr.mxu0 %v4928
        %4990 = vmatpush1.msra.mxu0 %v4927
        %4991 = vmatprep.subr.mxu0 %v4586
        %4992 = vmatpush1.msra.mxu0 %v4585
        %4993 = vmatprep.subr.mxu0 %v4948
        %4994 = vmatpush1.msra.mxu0 %v4947
        %4995 = vmatprep.subr.mxu0 %v4968
        %4996 = vmatpush1.msra.mxu0 %v4967
        %4997 = vmatprep.subr.mxu0 0.0
        %4998 = vmatpush1.msra.mxu0 0.0
        %4999 = vmatprep.subr.mxu0 0.0
        %5000 = vmatpush1.msra.mxu0 0.0
        %5001 = vmatprep.subr.mxu0 0.0
        %5002 = vmatpush1.msra.mxu0 0.0
        %5003 = vmatprep.subr.mxu0 0.0
        %5004 = vmatpush1.msra.mxu0 0.0
        %5005 = vmatprep.subr.mxu0 0.0
        %5006 = vmatpush1.msra.mxu0 0.0
        %5007 = vmatprep.subr.mxu0 0.0
        %5008 = vmatpush1.msra.mxu0 0.0
        %5009 = vmatprep.subr.mxu0 0.0
        %5010 = vmatpush1.msra.mxu0 0.0
        %5011 = vmatprep.subr.mxu0 0.0
        %5012 = vmatpush1.msra.mxu0 0.0
        %5013 = vmatprep.subr.mxu0 0.0
        %5014 = vmatpush1.msra.mxu0 0.0
        %5015 = vmatprep.subr.mxu0 0.0
        %5016 = vmatpush1.msra.mxu0 0.0
        %5017 = vmatprep.subr.mxu0 0.0
        %5018 = vmatpush1.msra.mxu0 0.0
        %5019 = vmatprep.subr.mxu0 0.0
        %5020 = vmatpush1.msra.mxu0 0.0
        %5021 = vmatprep.subr.mxu0 0.0
        %5022 = vmatpush1.msra.mxu0 0.0
        %5023 = vmatprep.subr.mxu0 0.0
        %5024 = vmatpush1.msra.mxu0 0.0
        %5025 = vmatprep.subr.mxu0 0.0
        %5026 = vmatpush1.msra.mxu0 0.0
        %5027 = vmatprep.subr.mxu0 0.0
        %5028 = vmatpush1.msra.mxu0 0.0
        %5029 = vmatprep.subr.mxu0 0.0
        %5030 = vmatpush1.msra.mxu0 0.0
        %5031 = vmatprep.subr.mxu0 0.0
        %5032 = vmatpush1.msra.mxu0 0.0
        %5033 = vmatprep.subr.mxu0 0.0
        %5034 = vmatpush1.msra.mxu0 0.0
        %5035 = vmatprep.subr.mxu0 0.0
        %5036 = vmatpush1.msra.mxu0 0.0
        %5037 = vmatprep.subr.mxu0 0.0
        %5038 = vmatpush1.msra.mxu0 0.0
        %5039 = vmatprep.subr.mxu0 0.0
        %5040 = vmatpush1.msra.mxu0 0.0
        %5041 = vmatprep.subr.mxu0 0.0
        %5042 = vmatpush1.msra.mxu0 0.0
        %5043 = vmatprep.subr.mxu0 0.0
        %5044 = vmatpush1.msra.mxu0 0.0
        %5045 = vmatprep.subr.mxu0 0.0
        %5046 = vmatpush1.msra.mxu0 0.0
        %5047 = vmatprep.subr.mxu0 0.0
        %5048 = vmatpush1.msra.mxu0 0.0
        %5049 = vmatprep.subr.mxu0 0.0
        %5050 = vmatpush1.msra.mxu0 0.0
        %5051 = vmatprep.mubr.f32.mxu0 0.0
        %5052 = vmatmul.mubr.f32.gmra.mrb[0].mxu0 %v4982
        %v5053 = vpop.f32.mrb[0].mxu0
        %v5054 = vadd.f32 %v4974, %v5053
        %v5055 = vpop.f32.mrb[0].mxu0
        %v5056 = vadd.f32 %v4974, %v5055
        %5057 = vmatprep.mubr.f32.mxu0 0.0
        %5058 = vmatmul.mubr.f32.gmra.mrb[0].mxu0 %v4985
        %v5059 = vpop.f32.mrb[0].mxu0
        %v5060 = vadd.f32 %v4979, %v5059
        %v5061 = vpop.f32.mrb[0].mxu0
        %v5062 = vadd.f32 %v4979, %v5061
        %5063 = vdwg.mxu0
        %5064 = vmatprep.subr.mxu0 %v4910
        %5065 = vmatpush1.msra.mxu0 %v4909
        %5066 = vmatprep.subr.mxu0 %v4930
        %5067 = vmatpush1.msra.mxu0 %v4929
        %5068 = vmatprep.subr.mxu0 %v4588
        %5069 = vmatpush1.msra.mxu0 %v4587
        %5070 = vmatprep.subr.mxu0 %v4950
        %5071 = vmatpush1.msra.mxu0 %v4949
        %5072 = vmatprep.subr.mxu0 %v4970
        %5073 = vmatpush1.msra.mxu0 %v4969
        %5074 = vmatprep.subr.mxu0 0.0
        %5075 = vmatpush1.msra.mxu0 0.0
        %5076 = vmatprep.subr.mxu0 0.0
        %5077 = vmatpush1.msra.mxu0 0.0
        %5078 = vmatprep.subr.mxu0 0.0
        %5079 = vmatpush1.msra.mxu0 0.0
        %5080 = vmatprep.subr.mxu0 0.0
        %5081 = vmatpush1.msra.mxu0 0.0
        %5082 = vmatprep.subr.mxu0 0.0
        %5083 = vmatpush1.msra.mxu0 0.0
        %5084 = vmatprep.subr.mxu0 0.0
        %5085 = vmatpush1.msra.mxu0 0.0
        %5086 = vmatprep.subr.mxu0 0.0
        %5087 = vmatpush1.msra.mxu0 0.0
        %5088 = vmatprep.subr.mxu0 0.0
        %5089 = vmatpush1.msra.mxu0 0.0
        %5090 = vmatprep.subr.mxu0 0.0
        %5091 = vmatpush1.msra.mxu0 0.0
        %5092 = vmatprep.subr.mxu0 0.0
        %5093 = vmatpush1.msra.mxu0 0.0
        %5094 = vmatprep.subr.mxu0 0.0
        %5095 = vmatpush1.msra.mxu0 0.0
        %5096 = vmatprep.subr.mxu0 0.0
        %5097 = vmatpush1.msra.mxu0 0.0
        %5098 = vmatprep.subr.mxu0 0.0
        %5099 = vmatpush1.msra.mxu0 0.0
        %5100 = vmatprep.subr.mxu0 0.0
        %5101 = vmatpush1.msra.mxu0 0.0
        %5102 = vmatprep.subr.mxu0 0.0
        %5103 = vmatpush1.msra.mxu0 0.0
        %5104 = vmatprep.subr.mxu0 0.0
        %5105 = vmatpush1.msra.mxu0 0.0
        %5106 = vmatprep.subr.mxu0 0.0
        %5107 = vmatpush1.msra.mxu0 0.0
        %5108 = vmatprep.subr.mxu0 0.0
        %5109 = vmatpush1.msra.mxu0 0.0
        %5110 = vmatprep.subr.mxu0 0.0
        %5111 = vmatpush1.msra.mxu0 0.0
        %5112 = vmatprep.subr.mxu0 0.0
        %5113 = vmatpush1.msra.mxu0 0.0
        %5114 = vmatprep.subr.mxu0 0.0
        %5115 = vmatpush1.msra.mxu0 0.0
        %5116 = vmatprep.subr.mxu0 0.0
        %5117 = vmatpush1.msra.mxu0 0.0
        %5118 = vmatprep.subr.mxu0 0.0
        %5119 = vmatpush1.msra.mxu0 0.0
        %5120 = vmatprep.subr.mxu0 0.0
        %5121 = vmatpush1.msra.mxu0 0.0
        %5122 = vmatprep.subr.mxu0 0.0
        %5123 = vmatpush1.msra.mxu0 0.0
        %5124 = vmatprep.subr.mxu0 0.0
        %5125 = vmatpush1.msra.mxu0 0.0
        %5126 = vmatprep.subr.mxu0 0.0
        %5127 = vmatpush1.msra.mxu0 0.0
        %5128 = vmatprep.mubr.f32.mxu0 0.0
        %5129 = vmatmul.mubr.f32.gmra.mrb[0].mxu0 %v4982
        %v5130 = vpop.f32.mrb[0].mxu0
        %v5131 = vadd.f32 %v4974, %v5130
        %v5132 = vpop.f32.mrb[0].mxu0
        %v5133 = vadd.f32 %v4974, %v5132
        %5134 = vmatprep.mubr.f32.mxu0 0.0
        %5135 = vmatmul.mubr.f32.gmra.mrb[0].mxu0 %v4985
        %v5136 = vpop.f32.mrb[0].mxu0
        %v5137 = vadd.f32 %v4979, %v5136
        %v5138 = vpop.f32.mrb[0].mxu0
        %v5139 = vadd.f32 %v4979, %v5138
        %5140 = vdwg.mxu0
        %v5141 = vmax.f32 %v5054, 0.0
        %v5142 = vmax.f32 %v5056, 0.0
        %v5143 = vmax.f32 %v5131, 0.0
        %v5144 = vmax.f32 %v5133, 0.0
        %v5145 = vmax.f32 %v5060, 0.0
        %v5146 = vmax.f32 %v5062, 0.0
        %v5147 = vmax.f32 %v5137, 0.0
        %v5148 = vmax.f32 %v5139, 0.0
        %s5149 = scalar_lea.vmem %s951, 16
        %v5150 = vld [vmem:[%s5149] sm:$0xff]
        %s5151 = scalar_lea.vmem %s958, 16
        %v5152 = vld [vmem:[%s5151] sm:$0xff]
        %5154 = vset.pattern.permute.xlu0 0
        %5155 = vperm.xlu0 %5154, %v5152
        %v5156 = vpop.permute.xlu0 %5155
        %v5159 = vsel %vm1441, %v5150, 0
        %5161 = vmatprep.subr.mxu0 %v5142
        %5162 = vmatpush1.msra.mxu0 %v5141
        %5163 = vmatprep.subr.mxu0 %v5146
        %5164 = vmatpush1.msra.mxu0 %v5145
        %5165 = vmatprep.subr.mxu0 0.0
        %5166 = vmatpush1.msra.mxu0 0.0
        %5167 = vmatprep.subr.mxu0 0.0
        %5168 = vmatpush1.msra.mxu0 0.0
        %5169 = vmatprep.subr.mxu0 0.0
        %5170 = vmatpush1.msra.mxu0 0.0
        %5171 = vmatprep.subr.mxu0 0.0
        %5172 = vmatpush1.msra.mxu0 0.0
        %5173 = vmatprep.subr.mxu0 0.0
        %5174 = vmatpush1.msra.mxu0 0.0
        %5175 = vmatprep.subr.mxu0 0.0
        %5176 = vmatpush1.msra.mxu0 0.0
        %5177 = vmatprep.subr.mxu0 0.0
        %5178 = vmatpush1.msra.mxu0 0.0
        %5179 = vmatprep.subr.mxu0 0.0
        %5180 = vmatpush1.msra.mxu0 0.0
        %5181 = vmatprep.subr.mxu0 0.0
        %5182 = vmatpush1.msra.mxu0 0.0
        %5183 = vmatprep.subr.mxu0 0.0
        %5184 = vmatpush1.msra.mxu0 0.0
        %5185 = vmatprep.subr.mxu0 0.0
        %5186 = vmatpush1.msra.mxu0 0.0
        %5187 = vmatprep.subr.mxu0 0.0
        %5188 = vmatpush1.msra.mxu0 0.0
        %5189 = vmatprep.subr.mxu0 0.0
        %5190 = vmatpush1.msra.mxu0 0.0
        %5191 = vmatprep.subr.mxu0 0.0
        %5192 = vmatpush1.msra.mxu0 0.0
        %5193 = vmatprep.subr.mxu0 0.0
        %5194 = vmatpush1.msra.mxu0 0.0
        %5195 = vmatprep.subr.mxu0 0.0
        %5196 = vmatpush1.msra.mxu0 0.0
        %5197 = vmatprep.subr.mxu0 0.0
        %5198 = vmatpush1.msra.mxu0 0.0
        %5199 = vmatprep.subr.mxu0 0.0
        %5200 = vmatpush1.msra.mxu0 0.0
        %5201 = vmatprep.subr.mxu0 0.0
        %5202 = vmatpush1.msra.mxu0 0.0
        %5203 = vmatprep.subr.mxu0 0.0
        %5204 = vmatpush1.msra.mxu0 0.0
        %5205 = vmatprep.subr.mxu0 0.0
        %5206 = vmatpush1.msra.mxu0 0.0
        %5207 = vmatprep.subr.mxu0 0.0
        %5208 = vmatpush1.msra.mxu0 0.0
        %5209 = vmatprep.subr.mxu0 0.0
        %5210 = vmatpush1.msra.mxu0 0.0
        %5211 = vmatprep.subr.mxu0 0.0
        %5212 = vmatpush1.msra.mxu0 0.0
        %5213 = vmatprep.subr.mxu0 0.0
        %5214 = vmatpush1.msra.mxu0 0.0
        %5215 = vmatprep.subr.mxu0 0.0
        %5216 = vmatpush1.msra.mxu0 0.0
        %5217 = vmatprep.subr.mxu0 0.0
        %5218 = vmatpush1.msra.mxu0 0.0
        %5219 = vmatprep.subr.mxu0 0.0
        %5220 = vmatpush1.msra.mxu0 0.0
        %5221 = vmatprep.subr.mxu0 0.0
        %5222 = vmatpush1.msra.mxu0 0.0
        %5223 = vmatprep.subr.mxu0 0.0
        %5224 = vmatpush1.msra.mxu0 0.0
        %5225 = vmatprep.mubr.f32.mxu0 0.0
        %5226 = vmatmul.mubr.f32.gmra.mrb[0].mxu0 %v5159
        %v5227 = vpop.f32.mrb[0].mxu0
        %v5228 = vadd.f32 %v5156, %v5227
        %v5229 = vpop.f32.mrb[0].mxu0
        %v5230 = vadd.f32 %v5156, %v5229
        %5231 = vdwg.mxu0
        %5232 = vmatprep.subr.mxu0 %v5144
        %5233 = vmatpush1.msra.mxu0 %v5143
        %5234 = vmatprep.subr.mxu0 %v5148
        %5235 = vmatpush1.msra.mxu0 %v5147
        %5236 = vmatprep.subr.mxu0 0.0
        %5237 = vmatpush1.msra.mxu0 0.0
        %5238 = vmatprep.subr.mxu0 0.0
        %5239 = vmatpush1.msra.mxu0 0.0
        %5240 = vmatprep.subr.mxu0 0.0
        %5241 = vmatpush1.msra.mxu0 0.0
        %5242 = vmatprep.subr.mxu0 0.0
        %5243 = vmatpush1.msra.mxu0 0.0
        %5244 = vmatprep.subr.mxu0 0.0
        %5245 = vmatpush1.msra.mxu0 0.0
        %5246 = vmatprep.subr.mxu0 0.0
        %5247 = vmatpush1.msra.mxu0 0.0
        %5248 = vmatprep.subr.mxu0 0.0
        %5249 = vmatpush1.msra.mxu0 0.0
        %5250 = vmatprep.subr.mxu0 0.0
        %5251 = vmatpush1.msra.mxu0 0.0
        %5252 = vmatprep.subr.mxu0 0.0
        %5253 = vmatpush1.msra.mxu0 0.0
        %5254 = vmatprep.subr.mxu0 0.0
        %5255 = vmatpush1.msra.mxu0 0.0
        %5256 = vmatprep.subr.mxu0 0.0
        %5257 = vmatpush1.msra.mxu0 0.0
        %5258 = vmatprep.subr.mxu0 0.0
        %5259 = vmatpush1.msra.mxu0 0.0
        %5260 = vmatprep.subr.mxu0 0.0
        %5261 = vmatpush1.msra.mxu0 0.0
        %5262 = vmatprep.subr.mxu0 0.0
        %5263 = vmatpush1.msra.mxu0 0.0
        %5264 = vmatprep.subr.mxu0 0.0
        %5265 = vmatpush1.msra.mxu0 0.0
        %5266 = vmatprep.subr.mxu0 0.0
        %5267 = vmatpush1.msra.mxu0 0.0
        %5268 = vmatprep.subr.mxu0 0.0
        %5269 = vmatpush1.msra.mxu0 0.0
        %5270 = vmatprep.subr.mxu0 0.0
        %5271 = vmatpush1.msra.mxu0 0.0
        %5272 = vmatprep.subr.mxu0 0.0
        %5273 = vmatpush1.msra.mxu0 0.0
        %5274 = vmatprep.subr.mxu0 0.0
        %5275 = vmatpush1.msra.mxu0 0.0
        %5276 = vmatprep.subr.mxu0 0.0
        %5277 = vmatpush1.msra.mxu0 0.0
        %5278 = vmatprep.subr.mxu0 0.0
        %5279 = vmatpush1.msra.mxu0 0.0
        %5280 = vmatprep.subr.mxu0 0.0
        %5281 = vmatpush1.msra.mxu0 0.0
        %5282 = vmatprep.subr.mxu0 0.0
        %5283 = vmatpush1.msra.mxu0 0.0
        %5284 = vmatprep.subr.mxu0 0.0
        %5285 = vmatpush1.msra.mxu0 0.0
        %5286 = vmatprep.subr.mxu0 0.0
        %5287 = vmatpush1.msra.mxu0 0.0
        %5288 = vmatprep.subr.mxu0 0.0
        %5289 = vmatpush1.msra.mxu0 0.0
        %5290 = vmatprep.subr.mxu0 0.0
        %5291 = vmatpush1.msra.mxu0 0.0
        %5292 = vmatprep.subr.mxu0 0.0
        %5293 = vmatpush1.msra.mxu0 0.0
        %5294 = vmatprep.subr.mxu0 0.0
        %5295 = vmatpush1.msra.mxu0 0.0
        %5296 = vmatprep.mubr.f32.mxu0 0.0
        %5297 = vmatmul.mubr.f32.gmra.mrb[0].mxu0 %v5159
        %v5298 = vpop.f32.mrb[0].mxu0
        %v5299 = vadd.f32 %v5156, %v5298
        %v5300 = vpop.f32.mrb[0].mxu0
        %v5301 = vadd.f32 %v5156, %v5300
        %5302 = vdwg.mxu0
        %v5303 = vmax.f32 %v5228, 0.0
        %v5304 = vmax.f32 %v5230, 0.0
        %v5305 = vmax.f32 %v5299, 0.0
        %v5306 = vmax.f32 %v5301, 0.0
        %s5307 = scalar_lea.vmem %s964, 2
        %v5308 = vld [vmem:[%s5307] sm:$0x1]
        %v5310 = vsel %vm2069, %v5308, 0
        %5312 = vmatprep.subr.mxu0 %v5304
        %5313 = vmatpush1.msra.mxu0 %v5303
        %5314 = vmatprep.subr.mxu0 0.0
        %5315 = vmatpush1.msra.mxu0 0.0
        %5316 = vmatprep.subr.mxu0 0.0
        %5317 = vmatpush1.msra.mxu0 0.0
        %5318 = vmatprep.subr.mxu0 0.0
        %5319 = vmatpush1.msra.mxu0 0.0
        %5320 = vmatprep.subr.mxu0 0.0
        %5321 = vmatpush1.msra.mxu0 0.0
        %5322 = vmatprep.subr.mxu0 0.0
        %5323 = vmatpush1.msra.mxu0 0.0
        %5324 = vmatprep.subr.mxu0 0.0
        %5325 = vmatpush1.msra.mxu0 0.0
        %5326 = vmatprep.subr.mxu0 0.0
        %5327 = vmatpush1.msra.mxu0 0.0
        %5328 = vmatprep.subr.mxu0 0.0
        %5329 = vmatpush1.msra.mxu0 0.0
        %5330 = vmatprep.subr.mxu0 0.0
        %5331 = vmatpush1.msra.mxu0 0.0
        %5332 = vmatprep.subr.mxu0 0.0
        %5333 = vmatpush1.msra.mxu0 0.0
        %5334 = vmatprep.subr.mxu0 0.0
        %5335 = vmatpush1.msra.mxu0 0.0
        %5336 = vmatprep.subr.mxu0 0.0
        %5337 = vmatpush1.msra.mxu0 0.0
        %5338 = vmatprep.subr.mxu0 0.0
        %5339 = vmatpush1.msra.mxu0 0.0
        %5340 = vmatprep.subr.mxu0 0.0
        %5341 = vmatpush1.msra.mxu0 0.0
        %5342 = vmatprep.subr.mxu0 0.0
        %5343 = vmatpush1.msra.mxu0 0.0
        %5344 = vmatprep.subr.mxu0 0.0
        %5345 = vmatpush1.msra.mxu0 0.0
        %5346 = vmatprep.subr.mxu0 0.0
        %5347 = vmatpush1.msra.mxu0 0.0
        %5348 = vmatprep.subr.mxu0 0.0
        %5349 = vmatpush1.msra.mxu0 0.0
        %5350 = vmatprep.subr.mxu0 0.0
        %5351 = vmatpush1.msra.mxu0 0.0
        %5352 = vmatprep.subr.mxu0 0.0
        %5353 = vmatpush1.msra.mxu0 0.0
        %5354 = vmatprep.subr.mxu0 0.0
        %5355 = vmatpush1.msra.mxu0 0.0
        %5356 = vmatprep.subr.mxu0 0.0
        %5357 = vmatpush1.msra.mxu0 0.0
        %5358 = vmatprep.subr.mxu0 0.0
        %5359 = vmatpush1.msra.mxu0 0.0
        %5360 = vmatprep.subr.mxu0 0.0
        %5361 = vmatpush1.msra.mxu0 0.0
        %5362 = vmatprep.subr.mxu0 0.0
        %5363 = vmatpush1.msra.mxu0 0.0
        %5364 = vmatprep.subr.mxu0 0.0
        %5365 = vmatpush1.msra.mxu0 0.0
        %5366 = vmatprep.subr.mxu0 0.0
        %5367 = vmatpush1.msra.mxu0 0.0
        %5368 = vmatprep.subr.mxu0 0.0
        %5369 = vmatpush1.msra.mxu0 0.0
        %5370 = vmatprep.subr.mxu0 0.0
        %5371 = vmatpush1.msra.mxu0 0.0
        %5372 = vmatprep.subr.mxu0 0.0
        %5373 = vmatpush1.msra.mxu0 0.0
        %5374 = vmatprep.subr.mxu0 0.0
        %5375 = vmatpush1.msra.mxu0 0.0
        %5376 = vmatprep.mubr.f32.mxu0 0.0
        %5377 = vmatmul.mubr.f32.gmra.mrb[0].mxu0 %v5310
        %v5378 = vpop.f32.mrb[0].mxu0
        %v5379 = vadd.f32 0.0, %v5378
        %v5380 = vpop.f32.mrb[0].mxu0
        %v5381 = vadd.f32 0.0, %v5380
        %5382 = vdwg.mxu0
        %5383 = vmatprep.subr.mxu0 %v5306
        %5384 = vmatpush1.msra.mxu0 %v5305
        %5385 = vmatprep.subr.mxu0 0.0
        %5386 = vmatpush1.msra.mxu0 0.0
        %5387 = vmatprep.subr.mxu0 0.0
        %5388 = vmatpush1.msra.mxu0 0.0
        %5389 = vmatprep.subr.mxu0 0.0
        %5390 = vmatpush1.msra.mxu0 0.0
        %5391 = vmatprep.subr.mxu0 0.0
        %5392 = vmatpush1.msra.mxu0 0.0
        %5393 = vmatprep.subr.mxu0 0.0
        %5394 = vmatpush1.msra.mxu0 0.0
        %5395 = vmatprep.subr.mxu0 0.0
        %5396 = vmatpush1.msra.mxu0 0.0
        %5397 = vmatprep.subr.mxu0 0.0
        %5398 = vmatpush1.msra.mxu0 0.0
        %5399 = vmatprep.subr.mxu0 0.0
        %5400 = vmatpush1.msra.mxu0 0.0
        %5401 = vmatprep.subr.mxu0 0.0
        %5402 = vmatpush1.msra.mxu0 0.0
        %5403 = vmatprep.subr.mxu0 0.0
        %5404 = vmatpush1.msra.mxu0 0.0
        %5405 = vmatprep.subr.mxu0 0.0
        %5406 = vmatpush1.msra.mxu0 0.0
        %5407 = vmatprep.subr.mxu0 0.0
        %5408 = vmatpush1.msra.mxu0 0.0
        %5409 = vmatprep.subr.mxu0 0.0
        %5410 = vmatpush1.msra.mxu0 0.0
        %5411 = vmatprep.subr.mxu0 0.0
        %5412 = vmatpush1.msra.mxu0 0.0
        %5413 = vmatprep.subr.mxu0 0.0
        %5414 = vmatpush1.msra.mxu0 0.0
        %5415 = vmatprep.subr.mxu0 0.0
        %5416 = vmatpush1.msra.mxu0 0.0
        %5417 = vmatprep.subr.mxu0 0.0
        %5418 = vmatpush1.msra.mxu0 0.0
        %5419 = vmatprep.subr.mxu0 0.0
        %5420 = vmatpush1.msra.mxu0 0.0
        %5421 = vmatprep.subr.mxu0 0.0
        %5422 = vmatpush1.msra.mxu0 0.0
        %5423 = vmatprep.subr.mxu0 0.0
        %5424 = vmatpush1.msra.mxu0 0.0
        %5425 = vmatprep.subr.mxu0 0.0
        %5426 = vmatpush1.msra.mxu0 0.0
        %5427 = vmatprep.subr.mxu0 0.0
        %5428 = vmatpush1.msra.mxu0 0.0
        %5429 = vmatprep.subr.mxu0 0.0
        %5430 = vmatpush1.msra.mxu0 0.0
        %5431 = vmatprep.subr.mxu0 0.0
        %5432 = vmatpush1.msra.mxu0 0.0
        %5433 = vmatprep.subr.mxu0 0.0
        %5434 = vmatpush1.msra.mxu0 0.0
        %5435 = vmatprep.subr.mxu0 0.0
        %5436 = vmatpush1.msra.mxu0 0.0
        %5437 = vmatprep.subr.mxu0 0.0
        %5438 = vmatpush1.msra.mxu0 0.0
        %5439 = vmatprep.subr.mxu0 0.0
        %5440 = vmatpush1.msra.mxu0 0.0
        %5441 = vmatprep.subr.mxu0 0.0
        %5442 = vmatpush1.msra.mxu0 0.0
        %5443 = vmatprep.subr.mxu0 0.0
        %5444 = vmatpush1.msra.mxu0 0.0
        %5445 = vmatprep.subr.mxu0 0.0
        %5446 = vmatpush1.msra.mxu0 0.0
        %5447 = vmatprep.mubr.f32.mxu0 0.0
        %5448 = vmatmul.mubr.f32.gmra.mrb[0].mxu0 %v5310
        %v5449 = vpop.f32.mrb[0].mxu0
        %v5450 = vadd.f32 0.0, %v5449
        %v5451 = vpop.f32.mrb[0].mxu0
        %v5452 = vadd.f32 0.0, %v5451
        %5453 = vdwg.mxu0
        %v5454 = vadd.f32 %v4806, %v5379
        %v5455 = vadd.f32 %v4808, %v5381
        %v5456 = vadd.f32 %v4877, %v5450
        %v5457 = vadd.f32 %v4879, %v5452
        %s5458 = scalar_lea.vmem %s937, 32
        %v5459 = vld [vmem:[%s5458] sm:$0xff]
        %v5460 = vld [vmem:[%s5458 + $0x8] sm:$0xff]
        %s5461 = scalar_lea.vmem %s944, 32
        %v5462 = vld [vmem:[%s5461] sm:$0xff]
        %v5463 = vld [vmem:[%s5461 + $0x8] sm:$0xff]
        %5468 = vrot.lane.b32.xlu0 %v5303, 2
        %v5469 = vpop.permute.xlu0 %5468
        %5470 = vrot.lane.b32.xlu0 %v5304, 2
        %v5471 = vpop.permute.xlu0 %5470
        %5472 = vrot.lane.b32.xlu0 %v5305, 2
        %v5473 = vpop.permute.xlu0 %5472
        %5474 = vrot.lane.b32.xlu0 %v5306, 2
        %v5475 = vpop.permute.xlu0 %5474
        %v5476 = vsel %vm1054, %v5469, %v5471
        %v5477 = vsel %vm1054, %v5471, %v5473
        %v5478 = vsel %vm1054, %v5473, %v5475
        %v5483 = vsel %vm1054, 0.0, %v5469
        %v5484 = vmul.f32 %v5483, %v1083
        %v5485 = vmul.f32 %v5476, %v1084
        %v5486 = vmul.f32 %v5477, %v1085
        %v5487 = vmul.f32 %v5478, %v1086
        %5488 = vrot.lane.b32.xlu0 %v5303, 1
        %v5489 = vpop.permute.xlu0 %5488
        %5490 = vrot.lane.b32.xlu0 %v5304, 1
        %v5491 = vpop.permute.xlu0 %5490
        %5492 = vrot.lane.b32.xlu0 %v5305, 1
        %v5493 = vpop.permute.xlu0 %5492
        %5494 = vrot.lane.b32.xlu0 %v5306, 1
        %v5495 = vpop.permute.xlu0 %5494
        %v5496 = vsel %vm1133, %v5489, %v5491
        %v5497 = vsel %vm1133, %v5491, %v5493
        %v5498 = vsel %vm1133, %v5493, %v5495
        %v5503 = vsel %vm1133, 0.0, %v5489
        %v5504 = vmul.f32 %v5503, %v1162
        %v5505 = vmul.f32 %v5496, %v1163
        %v5506 = vmul.f32 %v5497, %v1164
        %v5507 = vmul.f32 %v5498, %v1165
        %5508 = vrot.lane.b32.xlu0 %v5303, 127
        %v5509 = vpop.permute.xlu0 %5508
        %5510 = vrot.lane.b32.xlu0 %v5304, 127
        %v5511 = vpop.permute.xlu0 %5510
        %5512 = vrot.lane.b32.xlu0 %v5305, 127
        %v5513 = vpop.permute.xlu0 %5512
        %5514 = vrot.lane.b32.xlu0 %v5306, 127
        %v5515 = vpop.permute.xlu0 %5514
        %v5516 = vsel %vm1246, %v5509, %v5511
        %v5517 = vsel %vm1246, %v5511, %v5513
        %v5518 = vsel %vm1246, %v5513, %v5515
        %v5523 = vsel %vm1246, %v5515, 0.0
        %v5524 = vmul.f32 %v5516, %v1275
        %v5525 = vmul.f32 %v5517, %v1276
        %v5526 = vmul.f32 %v5518, %v1277
        %v5527 = vmul.f32 %v5523, %v1278
        %5528 = vrot.lane.b32.xlu0 %v5303, 126
        %v5529 = vpop.permute.xlu0 %5528
        %5530 = vrot.lane.b32.xlu0 %v5304, 126
        %v5531 = vpop.permute.xlu0 %5530
        %5532 = vrot.lane.b32.xlu0 %v5305, 126
        %v5533 = vpop.permute.xlu0 %5532
        %5534 = vrot.lane.b32.xlu0 %v5306, 126
        %v5535 = vpop.permute.xlu0 %5534
        %v5536 = vsel %vm1331, %v5529, %v5531
        %v5537 = vsel %vm1331, %v5531, %v5533
        %v5538 = vsel %vm1331, %v5533, %v5535
        %v5543 = vsel %vm1331, %v5535, 0.0
        %v5544 = vmul.f32 %v5536, %v1360
        %v5545 = vmul.f32 %v5537, %v1361
        %v5546 = vmul.f32 %v5538, %v1362
        %v5547 = vmul.f32 %v5543, %v1363
        %5549 = vset.pattern.permute.xlu0 0
        %5550 = vperm.xlu0 %5549, %v5462
        %v5551 = vpop.permute.xlu0 %5550
        %5554 = vset.pattern.permute.xlu0 0
        %5555 = vperm.xlu0 %5554, %v5463
        %v5556 = vpop.permute.xlu0 %5555
        %v5559 = vsel %vm1740, %v5459, 0
        %v5562 = vsel %vm1740, %v5460, 0
        %5564 = vmatprep.subr.mxu0 %v5485
        %5565 = vmatpush1.msra.mxu0 %v5484
        %5566 = vmatprep.subr.mxu0 %v5505
        %5567 = vmatpush1.msra.mxu0 %v5504
        %5568 = vmatprep.subr.mxu0 %v5304
        %5569 = vmatpush1.msra.mxu0 %v5303
        %5570 = vmatprep.subr.mxu0 %v5525
        %5571 = vmatpush1.msra.mxu0 %v5524
        %5572 = vmatprep.subr.mxu0 %v5545
        %5573 = vmatpush1.msra.mxu0 %v5544
        %5574 = vmatprep.subr.mxu0 0.0
        %5575 = vmatpush1.msra.mxu0 0.0
        %5576 = vmatprep.subr.mxu0 0.0
        %5577 = vmatpush1.msra.mxu0 0.0
        %5578 = vmatprep.subr.mxu0 0.0
        %5579 = vmatpush1.msra.mxu0 0.0
        %5580 = vmatprep.subr.mxu0 0.0
        %5581 = vmatpush1.msra.mxu0 0.0
        %5582 = vmatprep.subr.mxu0 0.0
        %5583 = vmatpush1.msra.mxu0 0.0
        %5584 = vmatprep.subr.mxu0 0.0
        %5585 = vmatpush1.msra.mxu0 0.0
        %5586 = vmatprep.subr.mxu0 0.0
        %5587 = vmatpush1.msra.mxu0 0.0
        %5588 = vmatprep.subr.mxu0 0.0
        %5589 = vmatpush1.msra.mxu0 0.0
        %5590 = vmatprep.subr.mxu0 0.0
        %5591 = vmatpush1.msra.mxu0 0.0
        %5592 = vmatprep.subr.mxu0 0.0
        %5593 = vmatpush1.msra.mxu0 0.0
        %5594 = vmatprep.subr.mxu0 0.0
        %5595 = vmatpush1.msra.mxu0 0.0
        %5596 = vmatprep.subr.mxu0 0.0
        %5597 = vmatpush1.msra.mxu0 0.0
        %5598 = vmatprep.subr.mxu0 0.0
        %5599 = vmatpush1.msra.mxu0 0.0
        %5600 = vmatprep.subr.mxu0 0.0
        %5601 = vmatpush1.msra.mxu0 0.0
        %5602 = vmatprep.subr.mxu0 0.0
        %5603 = vmatpush1.msra.mxu0 0.0
        %5604 = vmatprep.subr.mxu0 0.0
        %5605 = vmatpush1.msra.mxu0 0.0
        %5606 = vmatprep.subr.mxu0 0.0
        %5607 = vmatpush1.msra.mxu0 0.0
        %5608 = vmatprep.subr.mxu0 0.0
        %5609 = vmatpush1.msra.mxu0 0.0
        %5610 = vmatprep.subr.mxu0 0.0
        %5611 = vmatpush1.msra.mxu0 0.0
        %5612 = vmatprep.subr.mxu0 0.0
        %5613 = vmatpush1.msra.mxu0 0.0
        %5614 = vmatprep.subr.mxu0 0.0
        %5615 = vmatpush1.msra.mxu0 0.0
        %5616 = vmatprep.subr.mxu0 0.0
        %5617 = vmatpush1.msra.mxu0 0.0
        %5618 = vmatprep.subr.mxu0 0.0
        %5619 = vmatpush1.msra.mxu0 0.0
        %5620 = vmatprep.subr.mxu0 0.0
        %5621 = vmatpush1.msra.mxu0 0.0
        %5622 = vmatprep.subr.mxu0 0.0
        %5623 = vmatpush1.msra.mxu0 0.0
        %5624 = vmatprep.subr.mxu0 0.0
        %5625 = vmatpush1.msra.mxu0 0.0
        %5626 = vmatprep.subr.mxu0 0.0
        %5627 = vmatpush1.msra.mxu0 0.0
        %5628 = vmatprep.mubr.f32.mxu0 0.0
        %5629 = vmatmul.mubr.f32.gmra.mrb[0].mxu0 %v5559
        %v5630 = vpop.f32.mrb[0].mxu0
        %v5631 = vadd.f32 %v5551, %v5630
        %v5632 = vpop.f32.mrb[0].mxu0
        %v5633 = vadd.f32 %v5551, %v5632
        %5634 = vmatprep.mubr.f32.mxu0 0.0
        %5635 = vmatmul.mubr.f32.gmra.mrb[0].mxu0 %v5562
        %v5636 = vpop.f32.mrb[0].mxu0
        %v5637 = vadd.f32 %v5556, %v5636
        %v5638 = vpop.f32.mrb[0].mxu0
        %v5639 = vadd.f32 %v5556, %v5638
        %5640 = vdwg.mxu0
        %5641 = vmatprep.subr.mxu0 %v5487
        %5642 = vmatpush1.msra.mxu0 %v5486
        %5643 = vmatprep.subr.mxu0 %v5507
        %5644 = vmatpush1.msra.mxu0 %v5506
        %5645 = vmatprep.subr.mxu0 %v5306
        %5646 = vmatpush1.msra.mxu0 %v5305
        %5647 = vmatprep.subr.mxu0 %v5527
        %5648 = vmatpush1.msra.mxu0 %v5526
        %5649 = vmatprep.subr.mxu0 %v5547
        %5650 = vmatpush1.msra.mxu0 %v5546
        %5651 = vmatprep.subr.mxu0 0.0
        %5652 = vmatpush1.msra.mxu0 0.0
        %5653 = vmatprep.subr.mxu0 0.0
        %5654 = vmatpush1.msra.mxu0 0.0
        %5655 = vmatprep.subr.mxu0 0.0
        %5656 = vmatpush1.msra.mxu0 0.0
        %5657 = vmatprep.subr.mxu0 0.0
        %5658 = vmatpush1.msra.mxu0 0.0
        %5659 = vmatprep.subr.mxu0 0.0
        %5660 = vmatpush1.msra.mxu0 0.0
        %5661 = vmatprep.subr.mxu0 0.0
        %5662 = vmatpush1.msra.mxu0 0.0
        %5663 = vmatprep.subr.mxu0 0.0
        %5664 = vmatpush1.msra.mxu0 0.0
        %5665 = vmatprep.subr.mxu0 0.0
        %5666 = vmatpush1.msra.mxu0 0.0
        %5667 = vmatprep.subr.mxu0 0.0
        %5668 = vmatpush1.msra.mxu0 0.0
        %5669 = vmatprep.subr.mxu0 0.0
        %5670 = vmatpush1.msra.mxu0 0.0
        %5671 = vmatprep.subr.mxu0 0.0
        %5672 = vmatpush1.msra.mxu0 0.0
        %5673 = vmatprep.subr.mxu0 0.0
        %5674 = vmatpush1.msra.mxu0 0.0
        %5675 = vmatprep.subr.mxu0 0.0
        %5676 = vmatpush1.msra.mxu0 0.0
        %5677 = vmatprep.subr.mxu0 0.0
        %5678 = vmatpush1.msra.mxu0 0.0
        %5679 = vmatprep.subr.mxu0 0.0
        %5680 = vmatpush1.msra.mxu0 0.0
        %5681 = vmatprep.subr.mxu0 0.0
        %5682 = vmatpush1.msra.mxu0 0.0
        %5683 = vmatprep.subr.mxu0 0.0
        %5684 = vmatpush1.msra.mxu0 0.0
        %5685 = vmatprep.subr.mxu0 0.0
        %5686 = vmatpush1.msra.mxu0 0.0
        %5687 = vmatprep.subr.mxu0 0.0
        %5688 = vmatpush1.msra.mxu0 0.0
        %5689 = vmatprep.subr.mxu0 0.0
        %5690 = vmatpush1.msra.mxu0 0.0
        %5691 = vmatprep.subr.mxu0 0.0
        %5692 = vmatpush1.msra.mxu0 0.0
        %5693 = vmatprep.subr.mxu0 0.0
        %5694 = vmatpush1.msra.mxu0 0.0
        %5695 = vmatprep.subr.mxu0 0.0
        %5696 = vmatpush1.msra.mxu0 0.0
        %5697 = vmatprep.subr.mxu0 0.0
        %5698 = vmatpush1.msra.mxu0 0.0
        %5699 = vmatprep.subr.mxu0 0.0
        %5700 = vmatpush1.msra.mxu0 0.0
        %5701 = vmatprep.subr.mxu0 0.0
        %5702 = vmatpush1.msra.mxu0 0.0
        %5703 = vmatprep.subr.mxu0 0.0
        %5704 = vmatpush1.msra.mxu0 0.0
        %5705 = vmatprep.mubr.f32.mxu0 0.0
        %5706 = vmatmul.mubr.f32.gmra.mrb[0].mxu0 %v5559
        %v5707 = vpop.f32.mrb[0].mxu0
        %v5708 = vadd.f32 %v5551, %v5707
        %v5709 = vpop.f32.mrb[0].mxu0
        %v5710 = vadd.f32 %v5551, %v5709
        %5711 = vmatprep.mubr.f32.mxu0 0.0
        %5712 = vmatmul.mubr.f32.gmra.mrb[0].mxu0 %v5562
        %v5713 = vpop.f32.mrb[0].mxu0
        %v5714 = vadd.f32 %v5556, %v5713
        %v5715 = vpop.f32.mrb[0].mxu0
        %v5716 = vadd.f32 %v5556, %v5715
        %5717 = vdwg.mxu0
        %v5718 = vmax.f32 %v5631, 0.0
        %v5719 = vmax.f32 %v5633, 0.0
        %v5720 = vmax.f32 %v5708, 0.0
        %v5721 = vmax.f32 %v5710, 0.0
        %v5722 = vmax.f32 %v5637, 0.0
        %v5723 = vmax.f32 %v5639, 0.0
        %v5724 = vmax.f32 %v5714, 0.0
        %v5725 = vmax.f32 %v5716, 0.0
        %s5726 = scalar_lea.vmem %s951, 24
        %v5727 = vld [vmem:[%s5726] sm:$0xff]
        %s5728 = scalar_lea.vmem %s958, 24
        %v5729 = vld [vmem:[%s5728] sm:$0xff]
        %5731 = vset.pattern.permute.xlu0 0
        %5732 = vperm.xlu0 %5731, %v5729
        %v5733 = vpop.permute.xlu0 %5732
        %v5736 = vsel %vm1441, %v5727, 0
        %5738 = vmatprep.subr.mxu0 %v5719
        %5739 = vmatpush1.msra.mxu0 %v5718
        %5740 = vmatprep.subr.mxu0 %v5723
        %5741 = vmatpush1.msra.mxu0 %v5722
        %5742 = vmatprep.subr.mxu0 0.0
        %5743 = vmatpush1.msra.mxu0 0.0
        %5744 = vmatprep.subr.mxu0 0.0
        %5745 = vmatpush1.msra.mxu0 0.0
        %5746 = vmatprep.subr.mxu0 0.0
        %5747 = vmatpush1.msra.mxu0 0.0
        %5748 = vmatprep.subr.mxu0 0.0
        %5749 = vmatpush1.msra.mxu0 0.0
        %5750 = vmatprep.subr.mxu0 0.0
        %5751 = vmatpush1.msra.mxu0 0.0
        %5752 = vmatprep.subr.mxu0 0.0
        %5753 = vmatpush1.msra.mxu0 0.0
        %5754 = vmatprep.subr.mxu0 0.0
        %5755 = vmatpush1.msra.mxu0 0.0
        %5756 = vmatprep.subr.mxu0 0.0
        %5757 = vmatpush1.msra.mxu0 0.0
        %5758 = vmatprep.subr.mxu0 0.0
        %5759 = vmatpush1.msra.mxu0 0.0
        %5760 = vmatprep.subr.mxu0 0.0
        %5761 = vmatpush1.msra.mxu0 0.0
        %5762 = vmatprep.subr.mxu0 0.0
        %5763 = vmatpush1.msra.mxu0 0.0
        %5764 = vmatprep.subr.mxu0 0.0
        %5765 = vmatpush1.msra.mxu0 0.0
        %5766 = vmatprep.subr.mxu0 0.0
        %5767 = vmatpush1.msra.mxu0 0.0
        %5768 = vmatprep.subr.mxu0 0.0
        %5769 = vmatpush1.msra.mxu0 0.0
        %5770 = vmatprep.subr.mxu0 0.0
        %5771 = vmatpush1.msra.mxu0 0.0
        %5772 = vmatprep.subr.mxu0 0.0
        %5773 = vmatpush1.msra.mxu0 0.0
        %5774 = vmatprep.subr.mxu0 0.0
        %5775 = vmatpush1.msra.mxu0 0.0
        %5776 = vmatprep.subr.mxu0 0.0
        %5777 = vmatpush1.msra.mxu0 0.0
        %5778 = vmatprep.subr.mxu0 0.0
        %5779 = vmatpush1.msra.mxu0 0.0
        %5780 = vmatprep.subr.mxu0 0.0
        %5781 = vmatpush1.msra.mxu0 0.0
        %5782 = vmatprep.subr.mxu0 0.0
        %5783 = vmatpush1.msra.mxu0 0.0
        %5784 = vmatprep.subr.mxu0 0.0
        %5785 = vmatpush1.msra.mxu0 0.0
        %5786 = vmatprep.subr.mxu0 0.0
        %5787 = vmatpush1.msra.mxu0 0.0
        %5788 = vmatprep.subr.mxu0 0.0
        %5789 = vmatpush1.msra.mxu0 0.0
        %5790 = vmatprep.subr.mxu0 0.0
        %5791 = vmatpush1.msra.mxu0 0.0
        %5792 = vmatprep.subr.mxu0 0.0
        %5793 = vmatpush1.msra.mxu0 0.0
        %5794 = vmatprep.subr.mxu0 0.0
        %5795 = vmatpush1.msra.mxu0 0.0
        %5796 = vmatprep.subr.mxu0 0.0
        %5797 = vmatpush1.msra.mxu0 0.0
        %5798 = vmatprep.subr.mxu0 0.0
        %5799 = vmatpush1.msra.mxu0 0.0
        %5800 = vmatprep.subr.mxu0 0.0
        %5801 = vmatpush1.msra.mxu0 0.0
        %5802 = vmatprep.mubr.f32.mxu0 0.0
        %5803 = vmatmul.mubr.f32.gmra.mrb[0].mxu0 %v5736
        %v5804 = vpop.f32.mrb[0].mxu0
        %v5805 = vadd.f32 %v5733, %v5804
        %v5806 = vpop.f32.mrb[0].mxu0
        %v5807 = vadd.f32 %v5733, %v5806
        %5808 = vdwg.mxu0
        %5809 = vmatprep.subr.mxu0 %v5721
        %5810 = vmatpush1.msra.mxu0 %v5720
        %5811 = vmatprep.subr.mxu0 %v5725
        %5812 = vmatpush1.msra.mxu0 %v5724
        %5813 = vmatprep.subr.mxu0 0.0
        %5814 = vmatpush1.msra.mxu0 0.0
        %5815 = vmatprep.subr.mxu0 0.0
        %5816 = vmatpush1.msra.mxu0 0.0
        %5817 = vmatprep.subr.mxu0 0.0
        %5818 = vmatpush1.msra.mxu0 0.0
        %5819 = vmatprep.subr.mxu0 0.0
        %5820 = vmatpush1.msra.mxu0 0.0
        %5821 = vmatprep.subr.mxu0 0.0
        %5822 = vmatpush1.msra.mxu0 0.0
        %5823 = vmatprep.subr.mxu0 0.0
        %5824 = vmatpush1.msra.mxu0 0.0
        %5825 = vmatprep.subr.mxu0 0.0
        %5826 = vmatpush1.msra.mxu0 0.0
        %5827 = vmatprep.subr.mxu0 0.0
        %5828 = vmatpush1.msra.mxu0 0.0
        %5829 = vmatprep.subr.mxu0 0.0
        %5830 = vmatpush1.msra.mxu0 0.0
        %5831 = vmatprep.subr.mxu0 0.0
        %5832 = vmatpush1.msra.mxu0 0.0
        %5833 = vmatprep.subr.mxu0 0.0
        %5834 = vmatpush1.msra.mxu0 0.0
        %5835 = vmatprep.subr.mxu0 0.0
        %5836 = vmatpush1.msra.mxu0 0.0
        %5837 = vmatprep.subr.mxu0 0.0
        %5838 = vmatpush1.msra.mxu0 0.0
        %5839 = vmatprep.subr.mxu0 0.0
        %5840 = vmatpush1.msra.mxu0 0.0
        %5841 = vmatprep.subr.mxu0 0.0
        %5842 = vmatpush1.msra.mxu0 0.0
        %5843 = vmatprep.subr.mxu0 0.0
        %5844 = vmatpush1.msra.mxu0 0.0
        %5845 = vmatprep.subr.mxu0 0.0
        %5846 = vmatpush1.msra.mxu0 0.0
        %5847 = vmatprep.subr.mxu0 0.0
        %5848 = vmatpush1.msra.mxu0 0.0
        %5849 = vmatprep.subr.mxu0 0.0
        %5850 = vmatpush1.msra.mxu0 0.0
        %5851 = vmatprep.subr.mxu0 0.0
        %5852 = vmatpush1.msra.mxu0 0.0
        %5853 = vmatprep.subr.mxu0 0.0
        %5854 = vmatpush1.msra.mxu0 0.0
        %5855 = vmatprep.subr.mxu0 0.0
        %5856 = vmatpush1.msra.mxu0 0.0
        %5857 = vmatprep.subr.mxu0 0.0
        %5858 = vmatpush1.msra.mxu0 0.0
        %5859 = vmatprep.subr.mxu0 0.0
        %5860 = vmatpush1.msra.mxu0 0.0
        %5861 = vmatprep.subr.mxu0 0.0
        %5862 = vmatpush1.msra.mxu0 0.0
        %5863 = vmatprep.subr.mxu0 0.0
        %5864 = vmatpush1.msra.mxu0 0.0
        %5865 = vmatprep.subr.mxu0 0.0
        %5866 = vmatpush1.msra.mxu0 0.0
        %5867 = vmatprep.subr.mxu0 0.0
        %5868 = vmatpush1.msra.mxu0 0.0
        %5869 = vmatprep.subr.mxu0 0.0
        %5870 = vmatpush1.msra.mxu0 0.0
        %5871 = vmatprep.subr.mxu0 0.0
        %5872 = vmatpush1.msra.mxu0 0.0
        %5873 = vmatprep.mubr.f32.mxu0 0.0
        %5874 = vmatmul.mubr.f32.gmra.mrb[0].mxu0 %v5736
        %v5875 = vpop.f32.mrb[0].mxu0
        %v5876 = vadd.f32 %v5733, %v5875
        %v5877 = vpop.f32.mrb[0].mxu0
        %v5878 = vadd.f32 %v5733, %v5877
        %5879 = vdwg.mxu0
        %v5880 = vmax.f32 %v5805, 0.0
        %v5881 = vmax.f32 %v5807, 0.0
        %v5882 = vmax.f32 %v5876, 0.0
        %v5883 = vmax.f32 %v5878, 0.0
        %s5884 = scalar_lea.vmem %s964, 3
        %v5885 = vld [vmem:[%s5884] sm:$0x1]
        %v5887 = vsel %vm2069, %v5885, 0
        %5889 = vmatprep.subr.mxu0 %v5881
        %5890 = vmatpush1.msra.mxu0 %v5880
        %5891 = vmatprep.subr.mxu0 0.0
        %5892 = vmatpush1.msra.mxu0 0.0
        %5893 = vmatprep.subr.mxu0 0.0
        %5894 = vmatpush1.msra.mxu0 0.0
        %5895 = vmatprep.subr.mxu0 0.0
        %5896 = vmatpush1.msra.mxu0 0.0
        %5897 = vmatprep.subr.mxu0 0.0
        %5898 = vmatpush1.msra.mxu0 0.0
        %5899 = vmatprep.subr.mxu0 0.0
        %5900 = vmatpush1.msra.mxu0 0.0
        %5901 = vmatprep.subr.mxu0 0.0
        %5902 = vmatpush1.msra.mxu0 0.0
        %5903 = vmatprep.subr.mxu0 0.0
        %5904 = vmatpush1.msra.mxu0 0.0
        %5905 = vmatprep.subr.mxu0 0.0
        %5906 = vmatpush1.msra.mxu0 0.0
        %5907 = vmatprep.subr.mxu0 0.0
        %5908 = vmatpush1.msra.mxu0 0.0
        %5909 = vmatprep.subr.mxu0 0.0
        %5910 = vmatpush1.msra.mxu0 0.0
        %5911 = vmatprep.subr.mxu0 0.0
        %5912 = vmatpush1.msra.mxu0 0.0
        %5913 = vmatprep.subr.mxu0 0.0
        %5914 = vmatpush1.msra.mxu0 0.0
        %5915 = vmatprep.subr.mxu0 0.0
        %5916 = vmatpush1.msra.mxu0 0.0
        %5917 = vmatprep.subr.mxu0 0.0
        %5918 = vmatpush1.msra.mxu0 0.0
        %5919 = vmatprep.subr.mxu0 0.0
        %5920 = vmatpush1.msra.mxu0 0.0
        %5921 = vmatprep.subr.mxu0 0.0
        %5922 = vmatpush1.msra.mxu0 0.0
        %5923 = vmatprep.subr.mxu0 0.0
        %5924 = vmatpush1.msra.mxu0 0.0
        %5925 = vmatprep.subr.mxu0 0.0
        %5926 = vmatpush1.msra.mxu0 0.0
        %5927 = vmatprep.subr.mxu0 0.0
        %5928 = vmatpush1.msra.mxu0 0.0
        %5929 = vmatprep.subr.mxu0 0.0
        %5930 = vmatpush1.msra.mxu0 0.0
        %5931 = vmatprep.subr.mxu0 0.0
        %5932 = vmatpush1.msra.mxu0 0.0
        %5933 = vmatprep.subr.mxu0 0.0
        %5934 = vmatpush1.msra.mxu0 0.0
        %5935 = vmatprep.subr.mxu0 0.0
        %5936 = vmatpush1.msra.mxu0 0.0
        %5937 = vmatprep.subr.mxu0 0.0
        %5938 = vmatpush1.msra.mxu0 0.0
        %5939 = vmatprep.subr.mxu0 0.0
        %5940 = vmatpush1.msra.mxu0 0.0
        %5941 = vmatprep.subr.mxu0 0.0
        %5942 = vmatpush1.msra.mxu0 0.0
        %5943 = vmatprep.subr.mxu0 0.0
        %5944 = vmatpush1.msra.mxu0 0.0
        %5945 = vmatprep.subr.mxu0 0.0
        %5946 = vmatpush1.msra.mxu0 0.0
        %5947 = vmatprep.subr.mxu0 0.0
        %5948 = vmatpush1.msra.mxu0 0.0
        %5949 = vmatprep.subr.mxu0 0.0
        %5950 = vmatpush1.msra.mxu0 0.0
        %5951 = vmatprep.subr.mxu0 0.0
        %5952 = vmatpush1.msra.mxu0 0.0
        %5953 = vmatprep.mubr.f32.mxu0 0.0
        %5954 = vmatmul.mubr.f32.gmra.mrb[0].mxu0 %v5887
        %v5955 = vpop.f32.mrb[0].mxu0
        %v5956 = vadd.f32 0.0, %v5955
        %v5957 = vpop.f32.mrb[0].mxu0
        %v5958 = vadd.f32 0.0, %v5957
        %5959 = vdwg.mxu0
        %5960 = vmatprep.subr.mxu0 %v5883
        %5961 = vmatpush1.msra.mxu0 %v5882
        %5962 = vmatprep.subr.mxu0 0.0
        %5963 = vmatpush1.msra.mxu0 0.0
        %5964 = vmatprep.subr.mxu0 0.0
        %5965 = vmatpush1.msra.mxu0 0.0
        %5966 = vmatprep.subr.mxu0 0.0
        %5967 = vmatpush1.msra.mxu0 0.0
        %5968 = vmatprep.subr.mxu0 0.0
        %5969 = vmatpush1.msra.mxu0 0.0
        %5970 = vmatprep.subr.mxu0 0.0
        %5971 = vmatpush1.msra.mxu0 0.0
        %5972 = vmatprep.subr.mxu0 0.0
        %5973 = vmatpush1.msra.mxu0 0.0
        %5974 = vmatprep.subr.mxu0 0.0
        %5975 = vmatpush1.msra.mxu0 0.0
        %5976 = vmatprep.subr.mxu0 0.0
        %5977 = vmatpush1.msra.mxu0 0.0
        %5978 = vmatprep.subr.mxu0 0.0
        %5979 = vmatpush1.msra.mxu0 0.0
        %5980 = vmatprep.subr.mxu0 0.0
        %5981 = vmatpush1.msra.mxu0 0.0
        %5982 = vmatprep.subr.mxu0 0.0
        %5983 = vmatpush1.msra.mxu0 0.0
        %5984 = vmatprep.subr.mxu0 0.0
        %5985 = vmatpush1.msra.mxu0 0.0
        %5986 = vmatprep.subr.mxu0 0.0
        %5987 = vmatpush1.msra.mxu0 0.0
        %5988 = vmatprep.subr.mxu0 0.0
        %5989 = vmatpush1.msra.mxu0 0.0
        %5990 = vmatprep.subr.mxu0 0.0
        %5991 = vmatpush1.msra.mxu0 0.0
        %5992 = vmatprep.subr.mxu0 0.0
        %5993 = vmatpush1.msra.mxu0 0.0
        %5994 = vmatprep.subr.mxu0 0.0
        %5995 = vmatpush1.msra.mxu0 0.0
        %5996 = vmatprep.subr.mxu0 0.0
        %5997 = vmatpush1.msra.mxu0 0.0
        %5998 = vmatprep.subr.mxu0 0.0
        %5999 = vmatpush1.msra.mxu0 0.0
        %6000 = vmatprep.subr.mxu0 0.0
        %6001 = vmatpush1.msra.mxu0 0.0
        %6002 = vmatprep.subr.mxu0 0.0
        %6003 = vmatpush1.msra.mxu0 0.0
        %6004 = vmatprep.subr.mxu0 0.0
        %6005 = vmatpush1.msra.mxu0 0.0
        %6006 = vmatprep.subr.mxu0 0.0
        %6007 = vmatpush1.msra.mxu0 0.0
        %6008 = vmatprep.subr.mxu0 0.0
        %6009 = vmatpush1.msra.mxu0 0.0
        %6010 = vmatprep.subr.mxu0 0.0
        %6011 = vmatpush1.msra.mxu0 0.0
        %6012 = vmatprep.subr.mxu0 0.0
        %6013 = vmatpush1.msra.mxu0 0.0
        %6014 = vmatprep.subr.mxu0 0.0
        %6015 = vmatpush1.msra.mxu0 0.0
        %6016 = vmatprep.subr.mxu0 0.0
        %6017 = vmatpush1.msra.mxu0 0.0
        %6018 = vmatprep.subr.mxu0 0.0
        %6019 = vmatpush1.msra.mxu0 0.0
        %6020 = vmatprep.subr.mxu0 0.0
        %6021 = vmatpush1.msra.mxu0 0.0
        %6022 = vmatprep.subr.mxu0 0.0
        %6023 = vmatpush1.msra.mxu0 0.0
        %6024 = vmatprep.mubr.f32.mxu0 0.0
        %6025 = vmatmul.mubr.f32.gmra.mrb[0].mxu0 %v5887
        %v6026 = vpop.f32.mrb[0].mxu0
        %v6027 = vadd.f32 0.0, %v6026
        %v6028 = vpop.f32.mrb[0].mxu0
        %v6029 = vadd.f32 0.0, %v6028
        %6030 = vdwg.mxu0
        %v6031 = vadd.f32 %v5454, %v5956
        %v6032 = vadd.f32 %v5455, %v5958
        %v6033 = vadd.f32 %v5456, %v6027
        %v6034 = vadd.f32 %v5457, %v6029
        %v6035 = vld [vmem:[%s969] sm:$0x1]
        %6037 = vset.pattern.permute.xlu0 0
        %6038 = vperm.xlu0 %6037, %v6035
        %v6039 = vpop.permute.xlu0 %6038
        %v6041 = vlaneseq
        %v6042 = vshrl.u32 %v6041, 7
        %v6043 = vsub.s32 0, %v6042
        %v6044 = vrot.slane %v6039, %v6043
        %v6045 = vadd.f32 %v6031, %v6044
        %v6046 = vadd.f32 %v6032, %v6044
        %v6047 = vadd.f32 %v6033, %v6044
        %v6048 = vadd.f32 %v6034, %v6044
        %v6053 = vcombine.low %v6045, %v6046
        %v6054 = vcombine.low %v6047, %v6048
        %v6056 = vunpack.c.l.s4 1966171168
        %v6057 = vunpack.c.0.s8 %v6056
        %v6058 = vlaneseq
        %v6059 = vshrl.u32 %v6058, 7
        %v6060 = vsub.s32 %v6057, %v6059
        %v6061 = vrot.slane %v6053, %v6060
        %v6063 = vunpack.c.l.s4 1966171168
        %v6064 = vunpack.c.0.s8 %v6063
        %v6065 = vlaneseq
        %v6066 = vshrl.u32 %v6065, 7
        %v6067 = vsub.s32 %v6064, %v6066
        %v6068 = vrot.slane %v6054, %v6067
        %v6069 = vcombine.low %v6061, %v6068
        %v6071 = vunpack.c.l.s4 1966171168
        %v6072 = vunpack.c.0.s8 %v6071
        %v6073 = vlaneseq
        %v6074 = vshrl.u32 %v6073, 7
        %v6075 = vsub.s32 %v6072, %v6074
        %v6076 = vrot.slane %v6069, %v6075
        %v6078 = vlaneseq
        %vm6079 = vcmp.ge.s32.totalorder %v6078, 0
        %vm6080 = vcmp.lt.s32.totalorder %v6078, 512
        %vm6081 = vmand %vm6079, %vm6080
        %6082 = vst.msk [vmem:[%s858] sm:$0xf] %vm6081, %v6076
        %s6083 = sand.u32 %s520, 1
        %s6084 = scalar_lea.sflag [#allocation5], %s6083
        %s6085 = sand.u32 %s520, 1
        %s6086 = smul.addr %s6085, 4
        %s6087 = scalar_lea.vmem [#allocation4], %s6086
        // Predicated region
        $region89: #{_forward_blocks.1} parent=87 // pred_check
          %p6088 = pneg %p530
        $region90: #{_forward_blocks.1} parent=87 // pred_check_branch
          %6090 = sbr.rel (%p6088) target = $region92
        $region91: #{_forward_blocks.1} parent=87 // pred_region
          %s6092 = ssub.s32 64, 64
          %6093 = vsyncadd %s6084, %s6092
          %s6094 = smul.addr %s38, 4
          %s6095 = smul.addr %s6094, 16
          %s6096 = scalar_lea.hbm %s18, %s6095
          %s6098 = sshll.u32 %s6087, 4
          %s6099 = int_to_ptr.vmem [resolvable:$true] %s6098
          %6101 = dma.vmem_to_hbm [thread:$0]  %s6099, 64, %s6096, %s6084
        $region92: #{_forward_blocks.1} parent=87 // pred_fallthru
          _
      $region88: #{_forward_blocks.1} parent=5 // pred_fallthru
        _
      %p6102 = scmp.le.s32.totalorder 2, %s33
      // Predicated region
      $region93: #{_forward_blocks.1} parent=5 // pred_check
        %p6103 = pneg %p6102
      $region94: #{_forward_blocks.1} parent=5 // pred_check_branch
        %6105 = sbr.rel (%p6103) target = $region96
      $region95: #{_forward_blocks.1} parent=5 // pred_region
        %s6106 = ssub.s32 %s33, 2
        // Predicated region
        $region97: #{_forward_blocks.1} parent=95 // pred_check
          %p6107 = pneg %p536
        $region98: #{_forward_blocks.1} parent=95 // pred_check_branch
          %6109 = sbr.rel (%p6107) target = $region100
        $region99: #{_forward_blocks.1} parent=95 // pred_region
          %s6110 = sand.u32 %s521, 1
          %s6111 = scalar_lea.sflag [#allocation5], %s6110
          %s6112 = sand.u32 %s521, 1
          %s6113 = smul.addr %s6112, 4
          %s6114 = scalar_lea.vmem [#allocation4], %s6113
          %6115 = dma.done %s6111, 64
        $region100: #{_forward_blocks.1} parent=95 // pred_fallthru
          _
      $region96: #{_forward_blocks.1} parent=5 // pred_fallthru
        _
    $region6: #{_forward_blocks.1} parent=1 // loop_footer
      %s37 = sadd.s32 1, %s33
    $region7: #{_forward_blocks.1} parent=1 // loop_footer_branch
      %32 = sbr.rel target = $region3
    $region8: #{_forward_blocks.1} parent=1 // loop_exit
      _
    %6116 = vsyncpa [#allocation5], 1
    %s6117 = scalar_lea.sflag [#allocation5], 1
    %6118 = vsyncpa %s6117, 1

</llo_original>
